<compile_context>
chip_gen: v5e
topology: v5e:2x2
jax: 0.10.0
libtpu: 0.0.40
codegen_flags: <defaults>
</compile_context>

<pallas_src>
import numpy as np
import jax
import jax.numpy as jnp
from jax.experimental import pallas as pl
from jax.experimental.pallas import tpu as pltpu


def bilinear_upsample_matrix(out_size, in_size, scale):
    """1-D interpolation matrix matching nn.Upsample(mode='bilinear', align_corners=False)."""
    dst = np.arange(out_size, dtype=np.float64)
    src = (dst + 0.5) / scale - 0.5
    src = np.maximum(src, 0.0)
    i0 = np.minimum(np.floor(src).astype(np.int64), in_size - 1)
    i1 = np.minimum(i0 + 1, in_size - 1)
    lam = src - i0
    M = np.zeros((out_size, in_size), dtype=np.float32)
    M[np.arange(out_size), i0] += (1.0 - lam).astype(np.float32)
    M[np.arange(out_size), i1] += lam.astype(np.float32)
    return M


def _pick_block_batch(B, max_bb=16):
    """Largest divisor of B <= max_bb, preferring >= 2 grid steps (keeps both v7x TCs busy)."""
    divisors = [d for d in range(1, min(B, max_bb) + 1) if B % d == 0]
    two_step = [d for d in divisors if B // d >= 2]
    return max(two_step) if two_step else max(divisors)


def untok_kernel(x_ref, w_ref, u_ref, o_ref):
    # x_ref : (1, BB*Cin*K*K, H*W)        im2col'd inputs for BB images (lane-dense, 256 lanes)
    # w_ref : (BB*Cout, BB*Cin*K*K)       block-diagonal flipped ConvTranspose2d weight
    # u_ref : (H*W, Ho*Wo)                kron(U, U)^T bilinear x2 interpolation matrix
    # o_ref : (1, BB*Cout, Ho*Wo)         lane-dense output slab (1024 lanes, unmasked stores)
    conv = jnp.dot(w_ref[...], x_ref[0],
                   preferred_element_type=jnp.float32,
                   precision=jax.lax.Precision.HIGHEST)            # (BB*Cout, H*W)
    # Identity activation, then bilinear x2 upsample as a single matmul.
    o_ref[0] = jnp.dot(conv, u_ref[...],
                       preferred_element_type=jnp.float32,
                       precision=jax.lax.Precision.HIGHEST).astype(o_ref.dtype)


def untokenizer_forward(x, w_deconv, *, kernel_size=3, stride=1, padding=1,
                        pool_scale=2, block_batch=None):
    """x: (B, L=256, D) as fed to UnTokenizer.forward; w_deconv: (Cin=D, Cout, K, K)."""
    assert stride == 1, "only stride-1 ConvTranspose2d is implemented"
    # TODO(synk): ConvTranspose2d_SVD per-task SVD split / weight masks (task_id,
    # task_ord_list, weight_mask) have no checkpoint here; treated as plain ConvTranspose2d
    # (conv_bias=False, activation=Identity), matching the module defaults.
    B, L, D = x.shape
    H = W = 16                                   # torch.nn.Unflatten(2, [16, 16])
    assert L == H * W
    K = kernel_size
    Cin, Cout = w_deconv.shape[0], w_deconv.shape[1]
    assert Cin == D
    pe = K - 1 - padding                         # equivalent-conv padding
    Ho, Wo = H * pool_scale, W * pool_scale
    CKK = Cin * K * K

    BB = block_batch if block_batch is not None else _pick_block_batch(B)
    assert B % BB == 0
    G = B // BB                                  # grid steps (kept >= 2 when possible for v7x)

    # x.transpose(-2,-1) + Unflatten(2,[16,16]) -> (B, Cin, 16, 16)
    xt = jnp.transpose(x, (0, 2, 1)).reshape(B, Cin, H, W)

    # Wrapper-side im2col with the conv-equivalent padding folded in:
    # feature index = c*K*K + kh*K + kw, spatial index = h*W + w  -> (B, Cin*K*K, 256).
    x_pad = jnp.pad(xt, ((0, 0), (0, 0), (pe, pe), (pe, pe)))
    patches = [x_pad[:, :, kh:kh + H, kw:kw + W] for kh in range(K) for kw in range(K)]
    x_col = jnp.stack(patches, axis=2).reshape(B, CKK, H * W).astype(jnp.float32)
    x_col = x_col.reshape(G, BB * CKK, H * W)    # group BB images per grid step

    # ConvTranspose2d(stride=1) == correlation with the flipped weight; flatten to (Cout, Cin*K*K),
    # then block-diagonalize so BB images share one MXU matmul.
    w_conv = jnp.transpose(w_deconv[:, :, ::-1, ::-1], (1, 0, 2, 3)).reshape(Cout, CKK)
    w_bd = jnp.kron(jnp.eye(BB, dtype=jnp.float32), w_conv.astype(jnp.float32))

    # Bilinear x2 upsample (align_corners=False) as one dense kron matrix: (H*W, Ho*Wo).
    U = bilinear_upsample_matrix(Ho, H, pool_scale)
    u_kron_t = jnp.asarray(np.kron(U, U).T, jnp.float32)          # (256, 1024), ~1 MiB

    out = pl.pallas_call(
        untok_kernel,
        out_shape=jax.ShapeDtypeStruct((G, BB * Cout, Ho * Wo), jnp.float32),
        grid_spec=pltpu.PrefetchScalarGridSpec(
            num_scalar_prefetch=0,
            grid=(G,),
            in_specs=[
                pl.BlockSpec((1, BB * CKK, H * W), lambda g: (g, 0, 0)),
                pl.BlockSpec((BB * Cout, BB * CKK), lambda g: (0, 0)),
                pl.BlockSpec((H * W, Ho * Wo), lambda g: (0, 0)),
            ],
            out_specs=pl.BlockSpec((1, BB * Cout, Ho * Wo), lambda g: (g, 0, 0)),
        ),
        compiler_params=pltpu.CompilerParams(dimension_semantics=("parallel",)),
    )(x_col, w_bd, u_kron_t)

    # (G, BB*Cout, Ho*Wo) -> (B, Cout, Ho, Wo); pure metadata reshape in XLA.
    return out.reshape(B, Cout, Ho, Wo)


def _reference(x, w_deconv, kernel_size, padding, pool_scale):
    """Pure-JAX reference of the same forward pass (for correctness checking)."""
    B, L, D = x.shape
    H = W = 16
    xt = jnp.transpose(x, (0, 2, 1)).reshape(B, D, H, W)
    K = kernel_size
    pe = K - 1 - padding
    w_conv = jnp.transpose(w_deconv[:, :, ::-1, ::-1], (1, 0, 2, 3))  # (Cout, Cin, K, K)
    conv = jax.lax.conv_general_dilated(
        xt, w_conv, window_strides=(1, 1), padding=[(pe, pe), (pe, pe)],
        dimension_numbers=("NCHW", "OIHW", "NCHW"))
    U = jnp.asarray(bilinear_upsample_matrix(H * pool_scale, H, pool_scale), jnp.float32)
    t = jnp.einsum("oh,bchw->bcow", U, conv)
    return jnp.einsum("pw,bcow->bcop", U, t)


if __name__ == "__main__":
    key = jax.random.PRNGKey(0)
    k1, k2 = jax.random.split(key)

    # Small, module-consistent shapes: seq len must be 256 (Unflatten -> 16x16);
    # embed dim D plays the role of n_output_channels (conv in-channels after the
    # reversed filter list); conv out-channels = n_input_channels = 3.
    B, D, Cout, L = 2, 16, 3, 256
    x = jax.random.normal(k1, (B, L, D), jnp.float32)
    w_deconv = jax.random.normal(k2, (D, Cout, 3, 3), jnp.float32) * 0.1  # conv_bias=False

    out = jax.block_until_ready(untokenizer_forward(x, w_deconv))
    assert out.shape == (B, Cout, 32, 32)

    ref = jax.block_until_ready(_reference(x, w_deconv, 3, 1, 2))
    np.testing.assert_allclose(np.asarray(out), np.asarray(ref), rtol=1e-4, atol=1e-4)

    print("KERNEL_OK")
</pallas_src>

<mosaic_0001>
module attributes {stable_mosaic.version = 11 : i64} {
  func.func @untok_kernel(%arg0: i32, %arg1: memref<1x144x256xf32, #tpu.memory_space<vmem>>, %arg2: memref<3x144xf32, #tpu.memory_space<vmem>>, %arg3: memref<256x1024xf32, #tpu.memory_space<vmem>>, %arg4: memref<1x3x1024xf32, #tpu.memory_space<vmem>>) attributes {dimension_semantics = [#tpu.dimension_semantics<parallel>], iteration_bounds = array<i64: 2>, scalar_prefetch = 0 : i64, scratch_operands = 0 : i64, tpu.core_type = #tpu.core_type<tc>, window_params = [{transform_indices = @transform_0, window_bounds = array<i64: 1, 144, 256>}, {pipeline_mode = #tpu.pipeline_mode<synchronous>, transform_indices = @transform_1, window_bounds = array<i64: 3, 144>}, {pipeline_mode = #tpu.pipeline_mode<synchronous>, transform_indices = @transform_2, window_bounds = array<i64: 256, 1024>}, {transform_indices = @transform_3, window_bounds = array<i64: 1, 3, 1024>}]} {
    %c0 = arith.constant 0 : index
    %c0_0 = arith.constant 0 : index
    %0 = vector.load %arg2[%c0, %c0_0] : memref<3x144xf32, #tpu.memory_space<vmem>>, vector<3x144xf32>
    %c0_1 = arith.constant 0 : index
    %c0_2 = arith.constant 0 : index
    %c0_3 = arith.constant 0 : index
    %1 = vector.load %arg1[%c0_1, %c0_2, %c0_3] : memref<1x144x256xf32, #tpu.memory_space<vmem>>, vector<1x144x256xf32>
    %2 = vector.shape_cast %1 : vector<1x144x256xf32> to vector<144x256xf32>
    %cst = arith.constant dense<0.000000e+00> : vector<3x256xf32>
    %3 = tpu.matmul %0, %2, %cst {dimension_numbers = #tpu.dot_dimension_numbers<[1], [0], [0], [1], [0, 0, 1, 1], [], []>, precision = #tpu.contract_precision<fp32>} : vector<3x144xf32>, vector<144x256xf32>, vector<3x256xf32> -> vector<3x256xf32>
    %c0_4 = arith.constant 0 : index
    %c0_5 = arith.constant 0 : index
    %4 = vector.load %arg3[%c0_4, %c0_5] : memref<256x1024xf32, #tpu.memory_space<vmem>>, vector<256x1024xf32>
    %cst_6 = arith.constant dense<0.000000e+00> : vector<3x1024xf32>
    %5 = tpu.matmul %3, %4, %cst_6 {dimension_numbers = #tpu.dot_dimension_numbers<[1], [0], [0], [1], [0, 0, 1, 1], [], []>, precision = #tpu.contract_precision<fp32>} : vector<3x256xf32>, vector<256x1024xf32>, vector<3x1024xf32> -> vector<3x1024xf32>
    %c0_7 = arith.constant 0 : index
    %c0_8 = arith.constant 0 : index
    %c0_9 = arith.constant 0 : index
    %6 = vector.load %arg4[%c0_7, %c0_8, %c0_9] : memref<1x3x1024xf32, #tpu.memory_space<vmem>>, vector<1x3x1024xf32>
    %7 = vector.shape_cast %6 : vector<1x3x1024xf32> to vector<3x1024xf32>
    %8 = vector.shape_cast %5 : vector<3x1024xf32> to vector<1x3x1024xf32>
    tpu.vector_store %arg4[%c0_7, %c0_8, %c0_9], %8 {strides = array<i32>} : memref<1x3x1024xf32, #tpu.memory_space<vmem>>, vector<1x3x1024xf32>,
    return
  }
  func.func @transform_0(%arg0: i32) -> (i32, i32, i32) {
    %c0_i32 = arith.constant 0 : i32
    %c0_i32_0 = arith.constant 0 : i32
    %c0_i32_1 = arith.constant 0 : i32
    return %arg0, %c0_i32, %c0_i32_0 : i32, i32, i32
  }
  func.func @transform_1(%arg0: i32) -> (i32, i32) {
    %c0_i32 = arith.constant 0 : i32
    %c0_i32_0 = arith.constant 0 : i32
    %c0_i32_1 = arith.constant 0 : i32
    return %c0_i32, %c0_i32_0 : i32, i32
  }
  func.func @transform_2(%arg0: i32) -> (i32, i32) {
    %c0_i32 = arith.constant 0 : i32
    %c0_i32_0 = arith.constant 0 : i32
    %c0_i32_1 = arith.constant 0 : i32
    return %c0_i32, %c0_i32_0 : i32, i32
  }
  func.func @transform_3(%arg0: i32) -> (i32, i32, i32) {
    %c0_i32 = arith.constant 0 : i32
    %c0_i32_0 = arith.constant 0 : i32
    %c0_i32_1 = arith.constant 0 : i32
    return %arg0, %c0_i32, %c0_i32_0 : i32, i32, i32
  }
}

</mosaic_0001>

<llo_original>
// kernel: tpu_custom_call.1
$region0: #{tpu_custom_call.1}
  #allocation0 [shape = 'u32[]', space=smem, size = 0x4, offset = 0x4, fixed_abs, tag = 'smem constant byte address 0x4 - core index']
  #allocation1 [shape = 'u32[72,128]{1,0:T(1,128)}', space=vmem, size = 0x9000, scoped, tag = 'internal scratch']
  %s0 = inlined_call_operand.hbm [shape: f32[2,144,256], index: 0, kind: input, shape index: {}]
  %s1 = inlined_call_operand.hbm [shape: f32[3,144], index: 1, kind: input, shape index: {}]
  %s2 = inlined_call_operand.hbm [shape: f32[256,1024], index: 2, kind: input, shape index: {}]
  %s3 = inlined_call_operand.vmem [shape: f32[2,3,1024], index: 3, kind: output, shape index: {}]
  %s4 = sld [smem:[#allocation0]]
  $region57: #{tpu_custom_call.1} parent=0
    _
  %s6 = ssub.s32 1, %s4
  %s7 = scalar_select 0, %s6, %s4
  $region1: #{tpu_custom_call.1} parent=0
    #allocation2 [shape = 'u8[294912]{0}', space=vmem, size = 0x48000, scoped, tag = 'input window, operand 0']
    #allocation3 [shape = 's32[2]{0}', space=sflag, size = 0x8, scoped, tag = 'scoped memory for tpu_custom_call.1']
    #allocation4 [shape = 'u8[4096]{0}', space=vmem, size = 0x1000, scoped, tag = 'input window, operand 1, single buffered']
    #allocation5 [shape = 's32[1]{0}', space=sflag, size = 0x4, scoped, tag = 'scoped memory for tpu_custom_call.1']
    #allocation6 [shape = 'u8[1048576]{0}', space=vmem, size = 0x100000, scoped, tag = 'input window, operand 2, single buffered']
    %8 = vsyncpa [#allocation3], 0
    %s9 = scalar_lea.sflag [#allocation3], 1
    %10 = vsyncpa %s9, 0
    %11 = vsyncpa [#allocation5], 0
    loop: start=0, step=1, limit=4
    $region2: #{tpu_custom_call.1} parent=1 // loop_pre_header
      _
    $region3: #{tpu_custom_call.1} parent=1 // loop_header
      %s13 = sphi 0, %s17
      %p14 = scmp.ge.s32.totalorder %s13, 4
      %s23 = sphi 0, %s25
      %s26 = sphi 0, %s23
      %s27 = sphi 0, %s26
      %s43 = sphi 0, %s27
      %s47 = sphi 0, %s47
      %s49 = sphi 0, %s47
      %s50 = sphi 0, %s49
      %s64 = sphi 0, %s50
      %s68 = sphi 0, %s68
      %s70 = sphi 0, %s68
      %s71 = sphi 0, %s70
      %s85 = sphi 0, %s71
      %s91 = sphi 0, %s93
      %s94 = sphi 0, %s91
      %s95 = sphi 0, %s94
      %s111 = sphi 0, %s95
    $region4: #{tpu_custom_call.1} parent=1 // loop_header_branch
      %16 = sbr.rel (%p14) target = $region8
    $region5: #{tpu_custom_call.1} parent=1 // loop_body
      %s18 = ssub.s32 %s13, 1
      %s19 = ssub.s32 %s13, 2
      %s20 = sadd.s32 %s13, 1
      %s21 = ssub.s32 %s13, %s20
      %p22 = scmp.eq.s32.totalorder %s21, 0
      %s24 = sadd.s32 %s23, 1
      %s25 = scalar_select %p22, %s23, %s24
      %p28 = pneg %p22
      %p29 = scmp.eq.s32.totalorder %s13, 1
      %p30 = por %p28, %p29
      %p31 = scmp.ne.s32.totalorder %s23, %s26
      %p32 = scmp.eq.s32.totalorder %s13, 0
      %p33 = por %p31, %p32
      %p34 = scmp.ne.s32.totalorder %s23, %s26
      %p35 = scmp.eq.s32.totalorder %s18, 1
      %p36 = por %p34, %p35
      %p37 = scmp.ne.s32.totalorder %s26, %s27
      %p38 = scmp.eq.s32.totalorder %s18, 0
      %p39 = por %p37, %p38
      %p40 = scmp.ne.s32.totalorder %s26, %s27
      %p41 = scmp.eq.s32.totalorder %s19, 1
      %p42 = por %p40, %p41
      %p44 = scmp.ne.s32.totalorder %s27, %s43
      %p45 = scmp.eq.s32.totalorder %s19, 0
      %p46 = por %p44, %p45
      %s48 = sadd.s32 %s47, 1
      %p51 = scmp.eq.s32.totalorder %s13, 1
      %p52 = scmp.ne.s32.totalorder %s47, %s49
      %p53 = scmp.eq.s32.totalorder %s13, 0
      %p54 = por %p52, %p53
      %p55 = scmp.ne.s32.totalorder %s47, %s49
      %p56 = scmp.eq.s32.totalorder %s18, 1
      %p57 = por %p55, %p56
      %p58 = scmp.ne.s32.totalorder %s49, %s50
      %p59 = scmp.eq.s32.totalorder %s18, 0
      %p60 = por %p58, %p59
      %p61 = scmp.ne.s32.totalorder %s49, %s50
      %p62 = scmp.eq.s32.totalorder %s19, 1
      %p63 = por %p61, %p62
      %p65 = scmp.ne.s32.totalorder %s50, %s64
      %p66 = scmp.eq.s32.totalorder %s19, 0
      %p67 = por %p65, %p66
      %s69 = sadd.s32 %s68, 1
      %p72 = scmp.eq.s32.totalorder %s13, 1
      %p73 = scmp.ne.s32.totalorder %s68, %s70
      %p74 = scmp.eq.s32.totalorder %s13, 0
      %p75 = por %p73, %p74
      %p76 = scmp.ne.s32.totalorder %s68, %s70
      %p77 = scmp.eq.s32.totalorder %s18, 1
      %p78 = por %p76, %p77
      %p79 = scmp.ne.s32.totalorder %s70, %s71
      %p80 = scmp.eq.s32.totalorder %s18, 0
      %p81 = por %p79, %p80
      %p82 = scmp.ne.s32.totalorder %s70, %s71
      %p83 = scmp.eq.s32.totalorder %s19, 1
      %p84 = por %p82, %p83
      %p86 = scmp.ne.s32.totalorder %s71, %s85
      %p87 = scmp.eq.s32.totalorder %s19, 0
      %p88 = por %p86, %p87
      %s89 = ssub.s32 %s13, %s20
      %p90 = scmp.eq.s32.totalorder %s89, 0
      %s92 = sadd.s32 %s91, 1
      %s93 = scalar_select %p90, %s91, %s92
      %p96 = pneg %p90
      %p97 = scmp.eq.s32.totalorder %s13, 1
      %p98 = por %p96, %p97
      %p99 = scmp.ne.s32.totalorder %s91, %s94
      %p100 = scmp.eq.s32.totalorder %s13, 0
      %p101 = por %p99, %p100
      %p102 = scmp.ne.s32.totalorder %s91, %s94
      %p103 = scmp.eq.s32.totalorder %s18, 1
      %p104 = por %p102, %p103
      %p105 = scmp.ne.s32.totalorder %s94, %s95
      %p106 = scmp.eq.s32.totalorder %s18, 0
      %p107 = por %p105, %p106
      %p108 = scmp.ne.s32.totalorder %s94, %s95
      %p109 = scmp.eq.s32.totalorder %s19, 1
      %p110 = por %p108, %p109
      %p112 = scmp.ne.s32.totalorder %s95, %s111
      %p113 = scmp.eq.s32.totalorder %s19, 0
      %p114 = por %p112, %p113
      %p115 = scmp.le.s32.totalorder 1, %s13
      %p116 = scmp.lt.s32.totalorder %s13, 3
      %p117 = pnand %p115, %p116
      %p118 = pneg %p117
      // Predicated region
      $region9: #{tpu_custom_call.1} parent=5 // pred_check
        _
      $region10: #{tpu_custom_call.1} parent=5 // pred_check_branch
        %120 = sbr.rel (%p117) target = $region12
      $region11: #{tpu_custom_call.1} parent=5 // pred_region
        %s121 = ssub.s32 %s13, 1
        // Predicated region
        $region13: #{tpu_custom_call.1} parent=11 // pred_check
          %p122 = pneg %p60
        $region14: #{tpu_custom_call.1} parent=11 // pred_check_branch
          %124 = sbr.rel (%p122) target = $region16
        $region15: #{tpu_custom_call.1} parent=11 // pred_region
          %126 = vsyncadd [#allocation5], 0
          %s128 = sshll.u32 %s1, 4
          %s129 = int_to_ptr.hbm [resolvable:$true] %s128
          %s130 = sshll.u32 [#allocation4], 4
          %s131 = int_to_ptr.vmem [resolvable:$true] %s130
          %133 = dma.hbm_to_vmem [thread:$0]  %s129, 128, %s131, [#allocation5]
        $region16: #{tpu_custom_call.1} parent=11 // pred_fallthru
          _
        // Predicated region
        $region17: #{tpu_custom_call.1} parent=11 // pred_check
          %p134 = pneg %p81
        $region18: #{tpu_custom_call.1} parent=11 // pred_check_branch
          %136 = sbr.rel (%p134) target = $region20
        $region19: #{tpu_custom_call.1} parent=11 // pred_region
          %138 = vsyncadd [#allocation5], 0
          %s139 = sshll.u32 %s2, 4
          %s140 = int_to_ptr.hbm [resolvable:$true] %s139
          %s141 = sshll.u32 [#allocation6], 4
          %s142 = int_to_ptr.vmem [resolvable:$true] %s141
          %147 = dma.hbm_to_vmem [thread:$0]  %s140, 32768, %s142, [#allocation5], 1024, 1024, 64
        $region20: #{tpu_custom_call.1} parent=11 // pred_fallthru
          _
      $region12: #{tpu_custom_call.1} parent=5 // pred_fallthru
        _
      %p148 = scmp.lt.s32.totalorder %s13, 2
      // Predicated region
      $region21: #{tpu_custom_call.1} parent=5 // pred_check
        %p149 = pneg %p148
      $region22: #{tpu_custom_call.1} parent=5 // pred_check_branch
        %151 = sbr.rel (%p149) target = $region24
      $region23: #{tpu_custom_call.1} parent=5 // pred_region
        // Predicated region
        $region25: #{tpu_custom_call.1} parent=23 // pred_check
          %p152 = pneg %p33
        $region26: #{tpu_custom_call.1} parent=23 // pred_check_branch
          %154 = sbr.rel (%p152) target = $region28
        $region27: #{tpu_custom_call.1} parent=23 // pred_region
          %s155 = sand.u32 %s23, 1
          %s156 = scalar_lea.sflag [#allocation3], %s155
          %s157 = sand.u32 %s23, 1
          %s158 = smul.addr %s157, 288
          %s159 = scalar_lea.vmem [#allocation2], %s158
          %161 = vsyncadd %s156, 0
          %s162 = smul.addr %s13, 36
          %s163 = smul.addr %s162, 8
          %s164 = scalar_lea.hbm %s0, %s163
          %s165 = sshll.u32 %s164, 4
          %s166 = int_to_ptr.hbm [resolvable:$true] %s165
          %s167 = sshll.u32 %s159, 4
          %s168 = int_to_ptr.vmem [resolvable:$true] %s167
          %173 = dma.hbm_to_vmem [thread:$0]  %s166, 4608, %s168, %s156, 256, 256, 16
        $region28: #{tpu_custom_call.1} parent=23 // pred_fallthru
          _
      $region24: #{tpu_custom_call.1} parent=5 // pred_fallthru
        _
      %p174 = scmp.le.s32.totalorder 1, %s13
      %p175 = scmp.lt.s32.totalorder %s13, 3
      %p176 = pnand %p174, %p175
      %p177 = pneg %p176
      // Predicated region
      $region29: #{tpu_custom_call.1} parent=5 // pred_check
        _
      $region30: #{tpu_custom_call.1} parent=5 // pred_check_branch
        %179 = sbr.rel (%p176) target = $region32
      $region31: #{tpu_custom_call.1} parent=5 // pred_region
        %s180 = ssub.s32 %s13, 1
        %s181 = sand.u32 %s26, 1
        %s182 = scalar_lea.sflag [#allocation3], %s181
        %s183 = sand.u32 %s26, 1
        %s184 = smul.addr %s183, 288
        %s185 = scalar_lea.vmem [#allocation2], %s184
        // Predicated region
        $region33: #{tpu_custom_call.1} parent=31 // pred_check
          %p186 = pneg %p39
        $region34: #{tpu_custom_call.1} parent=31 // pred_check_branch
          %188 = sbr.rel (%p186) target = $region36
        $region35: #{tpu_custom_call.1} parent=31 // pred_region
          %190 = dma.done %s182, 4608
        $region36: #{tpu_custom_call.1} parent=31 // pred_fallthru
          _
        // Predicated region
        $region37: #{tpu_custom_call.1} parent=31 // pred_check
          %p191 = pneg %p60
        $region38: #{tpu_custom_call.1} parent=31 // pred_check_branch
          %193 = sbr.rel (%p191) target = $region40
        $region39: #{tpu_custom_call.1} parent=31 // pred_region
          %195 = dma.done [#allocation5], 128
        $region40: #{tpu_custom_call.1} parent=31 // pred_fallthru
          _
        // Predicated region
        $region41: #{tpu_custom_call.1} parent=31 // pred_check
          %p196 = pneg %p81
        $region42: #{tpu_custom_call.1} parent=31 // pred_check_branch
          %198 = sbr.rel (%p196) target = $region44
        $region43: #{tpu_custom_call.1} parent=31 // pred_region
          %200 = dma.done [#allocation5], 32768
        $region44: #{tpu_custom_call.1} parent=31 // pred_fallthru
          _
        %s201 = sand.u32 %s26, 1
        %s202 = scalar_lea.sflag [#allocation3], %s201
        %s203 = sand.u32 %s26, 1
        %s204 = smul.addr %s203, 288
        %s205 = scalar_lea.vmem [#allocation2], %s204
        %p206 = pneg %p39
        %p207 = pneg %p36
        %p208 = pneg %p60
        %p209 = pneg %p57
        %p210 = pneg %p81
        %p211 = pneg %p78
        %p212 = pneg %p107
        %p213 = pneg %p104
        %p214 = scmp.lt.s32.totalorder %s18, 1
        %s215 = scalar_select %p214, %s18, 1
        %s216 = smul.addr %s215, 8
        %s217 = smul.addr %s216, 4
        %s218 = scalar_lea.vmem %s3, %s217
        %p219 = scmp.lt.s32.totalorder %s18, 1
        %s220 = scalar_select %p219, %s18, 1
        %s221 = smul.addr %s220, 8
        %s222 = smul.addr %s221, 4
        %s223 = scalar_lea.vmem %s3, %s222
        %v224 = vld [vmem:[#allocation4] sm:$0x77]
        %v225 = vld [vmem:[%s185] sm:$0xff]
        %v226 = vld [vmem:[%s185 + $0x8] sm:$0xff]
        %v227 = vld [vmem:[%s185 + $0x10] sm:$0xff]
        %v228 = vld [vmem:[%s185 + $0x18] sm:$0xff]
        %v229 = vld [vmem:[%s185 + $0x20] sm:$0xff]
        %v230 = vld [vmem:[%s185 + $0x28] sm:$0xff]
        %v231 = vld [vmem:[%s185 + $0x30] sm:$0xff]
        %v232 = vld [vmem:[%s185 + $0x38] sm:$0xff]
        %v233 = vld [vmem:[%s185 + $0x40] sm:$0xff]
        %v234 = vld [vmem:[%s185 + $0x48] sm:$0xff]
        %v235 = vld [vmem:[%s185 + $0x50] sm:$0xff]
        %v236 = vld [vmem:[%s185 + $0x58] sm:$0xff]
        %v237 = vld [vmem:[%s185 + $0x60] sm:$0xff]
        %v238 = vld [vmem:[%s185 + $0x68] sm:$0xff]
        %v239 = vld [vmem:[%s185 + $0x70] sm:$0xff]
        %v240 = vld [vmem:[%s185 + $0x78] sm:$0xff]
        %v241 = vld [vmem:[%s185 + $0x80] sm:$0xff]
        %v242 = vld [vmem:[%s185 + $0x88] sm:$0xff]
        %v243 = vld [vmem:[%s185 + $0x90] sm:$0xff]
        %v244 = vld [vmem:[%s185 + $0x98] sm:$0xff]
        %v245 = vld [vmem:[%s185 + $0xa0] sm:$0xff]
        %v246 = vld [vmem:[%s185 + $0xa8] sm:$0xff]
        %v247 = vld [vmem:[%s185 + $0xb0] sm:$0xff]
        %v248 = vld [vmem:[%s185 + $0xb8] sm:$0xff]
        %v249 = vld [vmem:[%s185 + $0xc0] sm:$0xff]
        %v250 = vld [vmem:[%s185 + $0xc8] sm:$0xff]
        %v251 = vld [vmem:[%s185 + $0xd0] sm:$0xff]
        %v252 = vld [vmem:[%s185 + $0xd8] sm:$0xff]
        %v253 = vld [vmem:[%s185 + $0xe0] sm:$0xff]
        %v254 = vld [vmem:[%s185 + $0xe8] sm:$0xff]
        %v255 = vld [vmem:[%s185 + $0xf0] sm:$0xff]
        %v256 = vld [vmem:[%s185 + $0xf8] sm:$0xff]
        %v257 = vld [vmem:[%s185 + $0x100] sm:$0xff]
        %v258 = vld [vmem:[%s185 + $0x108] sm:$0xff]
        %v259 = vld [vmem:[%s185 + $0x110] sm:$0xff]
        %v260 = vld [vmem:[%s185 + $0x118] sm:$0xff]
        %262 = vst [vmem:[#allocation1] ss:$2 sm:$0xff] %v224
        %v263 = vld.sshfl [vmem:[#allocation1] sm:$0xff pattern:$0x75316420]
        %v264 = vld.sshfl [vmem:[#allocation1 + $0x8] sm:$0xff pattern:$0x75316420]
        %vm266 = vcmask 130048
        %v267 = vsel %vm266, %v264, 0
        %v269 = vand.u32 %v255, 4294901760
        %270 = vmatpush.msra.mxu0 %v269
        %v271 = vand.u32 %v253, 4294901760
        %272 = vmatpush.msra.mxu0 %v271
        %v273 = vand.u32 %v251, 4294901760
        %274 = vmatpush.msra.mxu0 %v273
        %v275 = vand.u32 %v249, 4294901760
        %276 = vmatpush.msra.mxu0 %v275
        %v277 = vand.u32 %v247, 4294901760
        %278 = vmatpush.msra.mxu0 %v277
        %v279 = vand.u32 %v245, 4294901760
        %280 = vmatpush.msra.mxu0 %v279
        %v281 = vand.u32 %v243, 4294901760
        %282 = vmatpush.msra.mxu0 %v281
        %v283 = vand.u32 %v241, 4294901760
        %284 = vmatpush.msra.mxu0 %v283
        %v285 = vand.u32 %v239, 4294901760
        %286 = vmatpush.msra.mxu0 %v285
        %v287 = vand.u32 %v237, 4294901760
        %288 = vmatpush.msra.mxu0 %v287
        %v289 = vand.u32 %v235, 4294901760
        %290 = vmatpush.msra.mxu0 %v289
        %v291 = vand.u32 %v233, 4294901760
        %292 = vmatpush.msra.mxu0 %v291
        %v293 = vand.u32 %v231, 4294901760
        %294 = vmatpush.msra.mxu0 %v293
        %v295 = vand.u32 %v229, 4294901760
        %296 = vmatpush.msra.mxu0 %v295
        %v297 = vand.u32 %v227, 4294901760
        %298 = vmatpush.msra.mxu0 %v297
        %v299 = vand.u32 %v225, 4294901760
        %300 = vmatpush.msra.mxu0 %v299
        %v301 = vand.u32 %v263, 4294901760
        %v302 = vsub.f32 %v263, %v301
        %v303 = vand.u32 %v302, 4294901760
        %v304 = vsub.f32 %v302, %v303
        %v305 = vand.u32 %v304, 4294901760
        %306 = vmatmul.f32.gmra.mxu0 %v305
        %v307 = vpop.f32.mrf.mxu0
        %v308 = vadd.f32 0.0, %v307
        %309 = vdwg.mxu0
        %v310 = vand.u32 %v255, 4294901760
        %v311 = vsub.f32 %v255, %v310
        %v312 = vand.u32 %v311, 4294901760
        %v313 = vsub.f32 %v311, %v312
        %v314 = vand.u32 %v313, 4294901760
        %315 = vmatpush.msra.mxu0 %v314
        %v316 = vand.u32 %v253, 4294901760
        %v317 = vsub.f32 %v253, %v316
        %v318 = vand.u32 %v317, 4294901760
        %v319 = vsub.f32 %v317, %v318
        %v320 = vand.u32 %v319, 4294901760
        %321 = vmatpush.msra.mxu0 %v320
        %v322 = vand.u32 %v251, 4294901760
        %v323 = vsub.f32 %v251, %v322
        %v324 = vand.u32 %v323, 4294901760
        %v325 = vsub.f32 %v323, %v324
        %v326 = vand.u32 %v325, 4294901760
        %327 = vmatpush.msra.mxu0 %v326
        %v328 = vand.u32 %v249, 4294901760
        %v329 = vsub.f32 %v249, %v328
        %v330 = vand.u32 %v329, 4294901760
        %v331 = vsub.f32 %v329, %v330
        %v332 = vand.u32 %v331, 4294901760
        %333 = vmatpush.msra.mxu0 %v332
        %v334 = vand.u32 %v247, 4294901760
        %v335 = vsub.f32 %v247, %v334
        %v336 = vand.u32 %v335, 4294901760
        %v337 = vsub.f32 %v335, %v336
        %v338 = vand.u32 %v337, 4294901760
        %339 = vmatpush.msra.mxu0 %v338
        %v340 = vand.u32 %v245, 4294901760
        %v341 = vsub.f32 %v245, %v340
        %v342 = vand.u32 %v341, 4294901760
        %v343 = vsub.f32 %v341, %v342
        %v344 = vand.u32 %v343, 4294901760
        %345 = vmatpush.msra.mxu0 %v344
        %v346 = vand.u32 %v243, 4294901760
        %v347 = vsub.f32 %v243, %v346
        %v348 = vand.u32 %v347, 4294901760
        %v349 = vsub.f32 %v347, %v348
        %v350 = vand.u32 %v349, 4294901760
        %351 = vmatpush.msra.mxu0 %v350
        %v352 = vand.u32 %v241, 4294901760
        %v353 = vsub.f32 %v241, %v352
        %v354 = vand.u32 %v353, 4294901760
        %v355 = vsub.f32 %v353, %v354
        %v356 = vand.u32 %v355, 4294901760
        %357 = vmatpush.msra.mxu0 %v356
        %v358 = vand.u32 %v239, 4294901760
        %v359 = vsub.f32 %v239, %v358
        %v360 = vand.u32 %v359, 4294901760
        %v361 = vsub.f32 %v359, %v360
        %v362 = vand.u32 %v361, 4294901760
        %363 = vmatpush.msra.mxu0 %v362
        %v364 = vand.u32 %v237, 4294901760
        %v365 = vsub.f32 %v237, %v364
        %v366 = vand.u32 %v365, 4294901760
        %v367 = vsub.f32 %v365, %v366
        %v368 = vand.u32 %v367, 4294901760
        %369 = vmatpush.msra.mxu0 %v368
        %v370 = vand.u32 %v235, 4294901760
        %v371 = vsub.f32 %v235, %v370
        %v372 = vand.u32 %v371, 4294901760
        %v373 = vsub.f32 %v371, %v372
        %v374 = vand.u32 %v373, 4294901760
        %375 = vmatpush.msra.mxu0 %v374
        %v376 = vand.u32 %v233, 4294901760
        %v377 = vsub.f32 %v233, %v376
        %v378 = vand.u32 %v377, 4294901760
        %v379 = vsub.f32 %v377, %v378
        %v380 = vand.u32 %v379, 4294901760
        %381 = vmatpush.msra.mxu0 %v380
        %v382 = vand.u32 %v231, 4294901760
        %v383 = vsub.f32 %v231, %v382
        %v384 = vand.u32 %v383, 4294901760
        %v385 = vsub.f32 %v383, %v384
        %v386 = vand.u32 %v385, 4294901760
        %387 = vmatpush.msra.mxu0 %v386
        %v388 = vand.u32 %v229, 4294901760
        %v389 = vsub.f32 %v229, %v388
        %v390 = vand.u32 %v389, 4294901760
        %v391 = vsub.f32 %v389, %v390
        %v392 = vand.u32 %v391, 4294901760
        %393 = vmatpush.msra.mxu0 %v392
        %v394 = vand.u32 %v227, 4294901760
        %v395 = vsub.f32 %v227, %v394
        %v396 = vand.u32 %v395, 4294901760
        %v397 = vsub.f32 %v395, %v396
        %v398 = vand.u32 %v397, 4294901760
        %399 = vmatpush.msra.mxu0 %v398
        %v400 = vand.u32 %v225, 4294901760
        %v401 = vsub.f32 %v225, %v400
        %v402 = vand.u32 %v401, 4294901760
        %v403 = vsub.f32 %v401, %v402
        %v404 = vand.u32 %v403, 4294901760
        %405 = vmatpush.msra.mxu0 %v404
        %v406 = vand.u32 %v263, 4294901760
        %407 = vmatmul.f32.gmra.mxu0 %v406
        %v408 = vpop.f32.mrf.mxu0
        %v409 = vadd.f32 %v308, %v408
        %410 = vdwg.mxu0
        %v411 = vand.u32 %v255, 4294901760
        %v412 = vsub.f32 %v255, %v411
        %413 = vmatpush.msra.mxu0 %v412
        %v414 = vand.u32 %v253, 4294901760
        %v415 = vsub.f32 %v253, %v414
        %416 = vmatpush.msra.mxu0 %v415
        %v417 = vand.u32 %v251, 4294901760
        %v418 = vsub.f32 %v251, %v417
        %419 = vmatpush.msra.mxu0 %v418
        %v420 = vand.u32 %v249, 4294901760
        %v421 = vsub.f32 %v249, %v420
        %422 = vmatpush.msra.mxu0 %v421
        %v423 = vand.u32 %v247, 4294901760
        %v424 = vsub.f32 %v247, %v423
        %425 = vmatpush.msra.mxu0 %v424
        %v426 = vand.u32 %v245, 4294901760
        %v427 = vsub.f32 %v245, %v426
        %428 = vmatpush.msra.mxu0 %v427
        %v429 = vand.u32 %v243, 4294901760
        %v430 = vsub.f32 %v243, %v429
        %431 = vmatpush.msra.mxu0 %v430
        %v432 = vand.u32 %v241, 4294901760
        %v433 = vsub.f32 %v241, %v432
        %434 = vmatpush.msra.mxu0 %v433
        %v435 = vand.u32 %v239, 4294901760
        %v436 = vsub.f32 %v239, %v435
        %437 = vmatpush.msra.mxu0 %v436
        %v438 = vand.u32 %v237, 4294901760
        %v439 = vsub.f32 %v237, %v438
        %440 = vmatpush.msra.mxu0 %v439
        %v441 = vand.u32 %v235, 4294901760
        %v442 = vsub.f32 %v235, %v441
        %443 = vmatpush.msra.mxu0 %v442
        %v444 = vand.u32 %v233, 4294901760
        %v445 = vsub.f32 %v233, %v444
        %446 = vmatpush.msra.mxu0 %v445
        %v447 = vand.u32 %v231, 4294901760
        %v448 = vsub.f32 %v231, %v447
        %449 = vmatpush.msra.mxu0 %v448
        %v450 = vand.u32 %v229, 4294901760
        %v451 = vsub.f32 %v229, %v450
        %452 = vmatpush.msra.mxu0 %v451
        %v453 = vand.u32 %v227, 4294901760
        %v454 = vsub.f32 %v227, %v453
        %455 = vmatpush.msra.mxu0 %v454
        %v456 = vand.u32 %v225, 4294901760
        %v457 = vsub.f32 %v225, %v456
        %458 = vmatpush.msra.mxu0 %v457
        %v459 = vand.u32 %v263, 4294901760
        %v460 = vsub.f32 %v263, %v459
        %461 = vmatmul.f32.gmra.mxu0 %v460
        %v462 = vpop.f32.mrf.mxu0
        %v463 = vadd.f32 %v409, %v462
        %464 = vdwg.mxu0
        %v465 = vand.u32 %v255, 4294901760
        %466 = vmatpush.msra.mxu0 %v465
        %v467 = vand.u32 %v253, 4294901760
        %468 = vmatpush.msra.mxu0 %v467
        %v469 = vand.u32 %v251, 4294901760
        %470 = vmatpush.msra.mxu0 %v469
        %v471 = vand.u32 %v249, 4294901760
        %472 = vmatpush.msra.mxu0 %v471
        %v473 = vand.u32 %v247, 4294901760
        %474 = vmatpush.msra.mxu0 %v473
        %v475 = vand.u32 %v245, 4294901760
        %476 = vmatpush.msra.mxu0 %v475
        %v477 = vand.u32 %v243, 4294901760
        %478 = vmatpush.msra.mxu0 %v477
        %v479 = vand.u32 %v241, 4294901760
        %480 = vmatpush.msra.mxu0 %v479
        %v481 = vand.u32 %v239, 4294901760
        %482 = vmatpush.msra.mxu0 %v481
        %v483 = vand.u32 %v237, 4294901760
        %484 = vmatpush.msra.mxu0 %v483
        %v485 = vand.u32 %v235, 4294901760
        %486 = vmatpush.msra.mxu0 %v485
        %v487 = vand.u32 %v233, 4294901760
        %488 = vmatpush.msra.mxu0 %v487
        %v489 = vand.u32 %v231, 4294901760
        %490 = vmatpush.msra.mxu0 %v489
        %v491 = vand.u32 %v229, 4294901760
        %492 = vmatpush.msra.mxu0 %v491
        %v493 = vand.u32 %v227, 4294901760
        %494 = vmatpush.msra.mxu0 %v493
        %v495 = vand.u32 %v225, 4294901760
        %496 = vmatpush.msra.mxu0 %v495
        %v497 = vand.u32 %v263, 4294901760
        %v498 = vsub.f32 %v263, %v497
        %v499 = vand.u32 %v498, 4294901760
        %500 = vmatmul.f32.gmra.mxu0 %v499
        %v501 = vpop.f32.mrf.mxu0
        %v502 = vadd.f32 %v463, %v501
        %503 = vdwg.mxu0
        %v504 = vand.u32 %v255, 4294901760
        %v505 = vsub.f32 %v255, %v504
        %v506 = vand.u32 %v505, 4294901760
        %507 = vmatpush.msra.mxu0 %v506
        %v508 = vand.u32 %v253, 4294901760
        %v509 = vsub.f32 %v253, %v508
        %v510 = vand.u32 %v509, 4294901760
        %511 = vmatpush.msra.mxu0 %v510
        %v512 = vand.u32 %v251, 4294901760
        %v513 = vsub.f32 %v251, %v512
        %v514 = vand.u32 %v513, 4294901760
        %515 = vmatpush.msra.mxu0 %v514
        %v516 = vand.u32 %v249, 4294901760
        %v517 = vsub.f32 %v249, %v516
        %v518 = vand.u32 %v517, 4294901760
        %519 = vmatpush.msra.mxu0 %v518
        %v520 = vand.u32 %v247, 4294901760
        %v521 = vsub.f32 %v247, %v520
        %v522 = vand.u32 %v521, 4294901760
        %523 = vmatpush.msra.mxu0 %v522
        %v524 = vand.u32 %v245, 4294901760
        %v525 = vsub.f32 %v245, %v524
        %v526 = vand.u32 %v525, 4294901760
        %527 = vmatpush.msra.mxu0 %v526
        %v528 = vand.u32 %v243, 4294901760
        %v529 = vsub.f32 %v243, %v528
        %v530 = vand.u32 %v529, 4294901760
        %531 = vmatpush.msra.mxu0 %v530
        %v532 = vand.u32 %v241, 4294901760
        %v533 = vsub.f32 %v241, %v532
        %v534 = vand.u32 %v533, 4294901760
        %535 = vmatpush.msra.mxu0 %v534
        %v536 = vand.u32 %v239, 4294901760
        %v537 = vsub.f32 %v239, %v536
        %v538 = vand.u32 %v537, 4294901760
        %539 = vmatpush.msra.mxu0 %v538
        %v540 = vand.u32 %v237, 4294901760
        %v541 = vsub.f32 %v237, %v540
        %v542 = vand.u32 %v541, 4294901760
        %543 = vmatpush.msra.mxu0 %v542
        %v544 = vand.u32 %v235, 4294901760
        %v545 = vsub.f32 %v235, %v544
        %v546 = vand.u32 %v545, 4294901760
        %547 = vmatpush.msra.mxu0 %v546
        %v548 = vand.u32 %v233, 4294901760
        %v549 = vsub.f32 %v233, %v548
        %v550 = vand.u32 %v549, 4294901760
        %551 = vmatpush.msra.mxu0 %v550
        %v552 = vand.u32 %v231, 4294901760
        %v553 = vsub.f32 %v231, %v552
        %v554 = vand.u32 %v553, 4294901760
        %555 = vmatpush.msra.mxu0 %v554
        %v556 = vand.u32 %v229, 4294901760
        %v557 = vsub.f32 %v229, %v556
        %v558 = vand.u32 %v557, 4294901760
        %559 = vmatpush.msra.mxu0 %v558
        %v560 = vand.u32 %v227, 4294901760
        %v561 = vsub.f32 %v227, %v560
        %v562 = vand.u32 %v561, 4294901760
        %563 = vmatpush.msra.mxu0 %v562
        %v564 = vand.u32 %v225, 4294901760
        %v565 = vsub.f32 %v225, %v564
        %v566 = vand.u32 %v565, 4294901760
        %567 = vmatpush.msra.mxu0 %v566
        %v568 = vand.u32 %v263, 4294901760
        %569 = vmatmul.f32.gmra.mxu0 %v568
        %v570 = vpop.f32.mrf.mxu0
        %v571 = vadd.f32 %v502, %v570
        %572 = vdwg.mxu0
        %v573 = vand.u32 %v255, 4294901760
        %574 = vmatpush.msra.mxu0 %v573
        %v575 = vand.u32 %v253, 4294901760
        %576 = vmatpush.msra.mxu0 %v575
        %v577 = vand.u32 %v251, 4294901760
        %578 = vmatpush.msra.mxu0 %v577
        %v579 = vand.u32 %v249, 4294901760
        %580 = vmatpush.msra.mxu0 %v579
        %v581 = vand.u32 %v247, 4294901760
        %582 = vmatpush.msra.mxu0 %v581
        %v583 = vand.u32 %v245, 4294901760
        %584 = vmatpush.msra.mxu0 %v583
        %v585 = vand.u32 %v243, 4294901760
        %586 = vmatpush.msra.mxu0 %v585
        %v587 = vand.u32 %v241, 4294901760
        %588 = vmatpush.msra.mxu0 %v587
        %v589 = vand.u32 %v239, 4294901760
        %590 = vmatpush.msra.mxu0 %v589
        %v591 = vand.u32 %v237, 4294901760
        %592 = vmatpush.msra.mxu0 %v591
        %v593 = vand.u32 %v235, 4294901760
        %594 = vmatpush.msra.mxu0 %v593
        %v595 = vand.u32 %v233, 4294901760
        %596 = vmatpush.msra.mxu0 %v595
        %v597 = vand.u32 %v231, 4294901760
        %598 = vmatpush.msra.mxu0 %v597
        %v599 = vand.u32 %v229, 4294901760
        %600 = vmatpush.msra.mxu0 %v599
        %v601 = vand.u32 %v227, 4294901760
        %602 = vmatpush.msra.mxu0 %v601
        %v603 = vand.u32 %v225, 4294901760
        %604 = vmatpush.msra.mxu0 %v603
        %v605 = vand.u32 %v263, 4294901760
        %606 = vmatmul.f32.gmra.mxu0 %v605
        %v607 = vpop.f32.mrf.mxu0
        %v608 = vadd.f32 %v571, %v607
        %609 = vdwg.mxu0
        %610 = vmatpush.msra.mxu0 0.0
        %611 = vmatpush.msra.mxu0 0.0
        %612 = vmatpush.msra.mxu0 0.0
        %613 = vmatpush.msra.mxu0 0.0
        %614 = vmatpush.msra.mxu0 0.0
        %615 = vmatpush.msra.mxu0 0.0
        %616 = vmatpush.msra.mxu0 0.0
        %617 = vmatpush.msra.mxu0 0.0
        %618 = vmatpush.msra.mxu0 0.0
        %619 = vmatpush.msra.mxu0 0.0
        %620 = vmatpush.msra.mxu0 0.0
        %621 = vmatpush.msra.mxu0 0.0
        %622 = vmatpush.msra.mxu0 0.0
        %623 = vmatpush.msra.mxu0 0.0
        %v624 = vand.u32 %v259, 4294901760
        %625 = vmatpush.msra.mxu0 %v624
        %v626 = vand.u32 %v257, 4294901760
        %627 = vmatpush.msra.mxu0 %v626
        %v628 = vand.u32 %v267, 4294901760
        %v629 = vsub.f32 %v267, %v628
        %v630 = vand.u32 %v629, 4294901760
        %v631 = vsub.f32 %v629, %v630
        %v632 = vand.u32 %v631, 4294901760
        %633 = vmatmul.f32.gmra.mxu0 %v632
        %v634 = vpop.f32.mrf.mxu0
        %v635 = vadd.f32 %v608, %v634
        %636 = vdwg.mxu0
        %637 = vmatpush.msra.mxu0 0.0
        %638 = vmatpush.msra.mxu0 0.0
        %639 = vmatpush.msra.mxu0 0.0
        %640 = vmatpush.msra.mxu0 0.0
        %641 = vmatpush.msra.mxu0 0.0
        %642 = vmatpush.msra.mxu0 0.0
        %643 = vmatpush.msra.mxu0 0.0
        %644 = vmatpush.msra.mxu0 0.0
        %645 = vmatpush.msra.mxu0 0.0
        %646 = vmatpush.msra.mxu0 0.0
        %647 = vmatpush.msra.mxu0 0.0
        %648 = vmatpush.msra.mxu0 0.0
        %649 = vmatpush.msra.mxu0 0.0
        %650 = vmatpush.msra.mxu0 0.0
        %v651 = vand.u32 %v259, 4294901760
        %v652 = vsub.f32 %v259, %v651
        %v653 = vand.u32 %v652, 4294901760
        %v654 = vsub.f32 %v652, %v653
        %v655 = vand.u32 %v654, 4294901760
        %656 = vmatpush.msra.mxu0 %v655
        %v657 = vand.u32 %v257, 4294901760
        %v658 = vsub.f32 %v257, %v657
        %v659 = vand.u32 %v658, 4294901760
        %v660 = vsub.f32 %v658, %v659
        %v661 = vand.u32 %v660, 4294901760
        %662 = vmatpush.msra.mxu0 %v661
        %v663 = vand.u32 %v267, 4294901760
        %664 = vmatmul.f32.gmra.mxu0 %v663
        %v665 = vpop.f32.mrf.mxu0
        %v666 = vadd.f32 %v635, %v665
        %667 = vdwg.mxu0
        %668 = vmatpush.msra.mxu0 0.0
        %669 = vmatpush.msra.mxu0 0.0
        %670 = vmatpush.msra.mxu0 0.0
        %671 = vmatpush.msra.mxu0 0.0
        %672 = vmatpush.msra.mxu0 0.0
        %673 = vmatpush.msra.mxu0 0.0
        %674 = vmatpush.msra.mxu0 0.0
        %675 = vmatpush.msra.mxu0 0.0
        %676 = vmatpush.msra.mxu0 0.0
        %677 = vmatpush.msra.mxu0 0.0
        %678 = vmatpush.msra.mxu0 0.0
        %679 = vmatpush.msra.mxu0 0.0
        %680 = vmatpush.msra.mxu0 0.0
        %681 = vmatpush.msra.mxu0 0.0
        %v682 = vand.u32 %v259, 4294901760
        %v683 = vsub.f32 %v259, %v682
        %684 = vmatpush.msra.mxu0 %v683
        %v685 = vand.u32 %v257, 4294901760
        %v686 = vsub.f32 %v257, %v685
        %687 = vmatpush.msra.mxu0 %v686
        %v688 = vand.u32 %v267, 4294901760
        %v689 = vsub.f32 %v267, %v688
        %690 = vmatmul.f32.gmra.mxu0 %v689
        %v691 = vpop.f32.mrf.mxu0
        %v692 = vadd.f32 %v666, %v691
        %693 = vdwg.mxu0
        %694 = vmatpush.msra.mxu0 0.0
        %695 = vmatpush.msra.mxu0 0.0
        %696 = vmatpush.msra.mxu0 0.0
        %697 = vmatpush.msra.mxu0 0.0
        %698 = vmatpush.msra.mxu0 0.0
        %699 = vmatpush.msra.mxu0 0.0
        %700 = vmatpush.msra.mxu0 0.0
        %701 = vmatpush.msra.mxu0 0.0
        %702 = vmatpush.msra.mxu0 0.0
        %703 = vmatpush.msra.mxu0 0.0
        %704 = vmatpush.msra.mxu0 0.0
        %705 = vmatpush.msra.mxu0 0.0
        %706 = vmatpush.msra.mxu0 0.0
        %707 = vmatpush.msra.mxu0 0.0
        %v708 = vand.u32 %v259, 4294901760
        %709 = vmatpush.msra.mxu0 %v708
        %v710 = vand.u32 %v257, 4294901760
        %711 = vmatpush.msra.mxu0 %v710
        %v712 = vand.u32 %v267, 4294901760
        %v713 = vsub.f32 %v267, %v712
        %v714 = vand.u32 %v713, 4294901760
        %715 = vmatmul.f32.gmra.mxu0 %v714
        %v716 = vpop.f32.mrf.mxu0
        %v717 = vadd.f32 %v692, %v716
        %718 = vdwg.mxu0
        %719 = vmatpush.msra.mxu0 0.0
        %720 = vmatpush.msra.mxu0 0.0
        %721 = vmatpush.msra.mxu0 0.0
        %722 = vmatpush.msra.mxu0 0.0
        %723 = vmatpush.msra.mxu0 0.0
        %724 = vmatpush.msra.mxu0 0.0
        %725 = vmatpush.msra.mxu0 0.0
        %726 = vmatpush.msra.mxu0 0.0
        %727 = vmatpush.msra.mxu0 0.0
        %728 = vmatpush.msra.mxu0 0.0
        %729 = vmatpush.msra.mxu0 0.0
        %730 = vmatpush.msra.mxu0 0.0
        %731 = vmatpush.msra.mxu0 0.0
        %732 = vmatpush.msra.mxu0 0.0
        %v733 = vand.u32 %v259, 4294901760
        %v734 = vsub.f32 %v259, %v733
        %v735 = vand.u32 %v734, 4294901760
        %736 = vmatpush.msra.mxu0 %v735
        %v737 = vand.u32 %v257, 4294901760
        %v738 = vsub.f32 %v257, %v737
        %v739 = vand.u32 %v738, 4294901760
        %740 = vmatpush.msra.mxu0 %v739
        %v741 = vand.u32 %v267, 4294901760
        %742 = vmatmul.f32.gmra.mxu0 %v741
        %v743 = vpop.f32.mrf.mxu0
        %v744 = vadd.f32 %v717, %v743
        %745 = vdwg.mxu0
        %746 = vmatpush.msra.mxu0 0.0
        %747 = vmatpush.msra.mxu0 0.0
        %748 = vmatpush.msra.mxu0 0.0
        %749 = vmatpush.msra.mxu0 0.0
        %750 = vmatpush.msra.mxu0 0.0
        %751 = vmatpush.msra.mxu0 0.0
        %752 = vmatpush.msra.mxu0 0.0
        %753 = vmatpush.msra.mxu0 0.0
        %754 = vmatpush.msra.mxu0 0.0
        %755 = vmatpush.msra.mxu0 0.0
        %756 = vmatpush.msra.mxu0 0.0
        %757 = vmatpush.msra.mxu0 0.0
        %758 = vmatpush.msra.mxu0 0.0
        %759 = vmatpush.msra.mxu0 0.0
        %v760 = vand.u32 %v259, 4294901760
        %761 = vmatpush.msra.mxu0 %v760
        %v762 = vand.u32 %v257, 4294901760
        %763 = vmatpush.msra.mxu0 %v762
        %v764 = vand.u32 %v267, 4294901760
        %765 = vmatmul.f32.gmra.mxu0 %v764
        %v766 = vpop.f32.mrf.mxu0
        %v767 = vadd.f32 %v744, %v766
        %768 = vdwg.mxu0
        %v769 = vand.u32 %v256, 4294901760
        %770 = vmatpush.msra.mxu0 %v769
        %v771 = vand.u32 %v254, 4294901760
        %772 = vmatpush.msra.mxu0 %v771
        %v773 = vand.u32 %v252, 4294901760
        %774 = vmatpush.msra.mxu0 %v773
        %v775 = vand.u32 %v250, 4294901760
        %776 = vmatpush.msra.mxu0 %v775
        %v777 = vand.u32 %v248, 4294901760
        %778 = vmatpush.msra.mxu0 %v777
        %v779 = vand.u32 %v246, 4294901760
        %780 = vmatpush.msra.mxu0 %v779
        %v781 = vand.u32 %v244, 4294901760
        %782 = vmatpush.msra.mxu0 %v781
        %v783 = vand.u32 %v242, 4294901760
        %784 = vmatpush.msra.mxu0 %v783
        %v785 = vand.u32 %v240, 4294901760
        %786 = vmatpush.msra.mxu0 %v785
        %v787 = vand.u32 %v238, 4294901760
        %788 = vmatpush.msra.mxu0 %v787
        %v789 = vand.u32 %v236, 4294901760
        %790 = vmatpush.msra.mxu0 %v789
        %v791 = vand.u32 %v234, 4294901760
        %792 = vmatpush.msra.mxu0 %v791
        %v793 = vand.u32 %v232, 4294901760
        %794 = vmatpush.msra.mxu0 %v793
        %v795 = vand.u32 %v230, 4294901760
        %796 = vmatpush.msra.mxu0 %v795
        %v797 = vand.u32 %v228, 4294901760
        %798 = vmatpush.msra.mxu0 %v797
        %v799 = vand.u32 %v226, 4294901760
        %800 = vmatpush.msra.mxu0 %v799
        %v801 = vand.u32 %v263, 4294901760
        %v802 = vsub.f32 %v263, %v801
        %v803 = vand.u32 %v802, 4294901760
        %v804 = vsub.f32 %v802, %v803
        %v805 = vand.u32 %v804, 4294901760
        %806 = vmatmul.f32.gmra.mxu0 %v805
        %v807 = vpop.f32.mrf.mxu0
        %v808 = vadd.f32 0.0, %v807
        %809 = vdwg.mxu0
        %v810 = vand.u32 %v256, 4294901760
        %v811 = vsub.f32 %v256, %v810
        %v812 = vand.u32 %v811, 4294901760
        %v813 = vsub.f32 %v811, %v812
        %v814 = vand.u32 %v813, 4294901760
        %815 = vmatpush.msra.mxu0 %v814
        %v816 = vand.u32 %v254, 4294901760
        %v817 = vsub.f32 %v254, %v816
        %v818 = vand.u32 %v817, 4294901760
        %v819 = vsub.f32 %v817, %v818
        %v820 = vand.u32 %v819, 4294901760
        %821 = vmatpush.msra.mxu0 %v820
        %v822 = vand.u32 %v252, 4294901760
        %v823 = vsub.f32 %v252, %v822
        %v824 = vand.u32 %v823, 4294901760
        %v825 = vsub.f32 %v823, %v824
        %v826 = vand.u32 %v825, 4294901760
        %827 = vmatpush.msra.mxu0 %v826
        %v828 = vand.u32 %v250, 4294901760
        %v829 = vsub.f32 %v250, %v828
        %v830 = vand.u32 %v829, 4294901760
        %v831 = vsub.f32 %v829, %v830
        %v832 = vand.u32 %v831, 4294901760
        %833 = vmatpush.msra.mxu0 %v832
        %v834 = vand.u32 %v248, 4294901760
        %v835 = vsub.f32 %v248, %v834
        %v836 = vand.u32 %v835, 4294901760
        %v837 = vsub.f32 %v835, %v836
        %v838 = vand.u32 %v837, 4294901760
        %839 = vmatpush.msra.mxu0 %v838
        %v840 = vand.u32 %v246, 4294901760
        %v841 = vsub.f32 %v246, %v840
        %v842 = vand.u32 %v841, 4294901760
        %v843 = vsub.f32 %v841, %v842
        %v844 = vand.u32 %v843, 4294901760
        %845 = vmatpush.msra.mxu0 %v844
        %v846 = vand.u32 %v244, 4294901760
        %v847 = vsub.f32 %v244, %v846
        %v848 = vand.u32 %v847, 4294901760
        %v849 = vsub.f32 %v847, %v848
        %v850 = vand.u32 %v849, 4294901760
        %851 = vmatpush.msra.mxu0 %v850
        %v852 = vand.u32 %v242, 4294901760
        %v853 = vsub.f32 %v242, %v852
        %v854 = vand.u32 %v853, 4294901760
        %v855 = vsub.f32 %v853, %v854
        %v856 = vand.u32 %v855, 4294901760
        %857 = vmatpush.msra.mxu0 %v856
        %v858 = vand.u32 %v240, 4294901760
        %v859 = vsub.f32 %v240, %v858
        %v860 = vand.u32 %v859, 4294901760
        %v861 = vsub.f32 %v859, %v860
        %v862 = vand.u32 %v861, 4294901760
        %863 = vmatpush.msra.mxu0 %v862
        %v864 = vand.u32 %v238, 4294901760
        %v865 = vsub.f32 %v238, %v864
        %v866 = vand.u32 %v865, 4294901760
        %v867 = vsub.f32 %v865, %v866
        %v868 = vand.u32 %v867, 4294901760
        %869 = vmatpush.msra.mxu0 %v868
        %v870 = vand.u32 %v236, 4294901760
        %v871 = vsub.f32 %v236, %v870
        %v872 = vand.u32 %v871, 4294901760
        %v873 = vsub.f32 %v871, %v872
        %v874 = vand.u32 %v873, 4294901760
        %875 = vmatpush.msra.mxu0 %v874
        %v876 = vand.u32 %v234, 4294901760
        %v877 = vsub.f32 %v234, %v876
        %v878 = vand.u32 %v877, 4294901760
        %v879 = vsub.f32 %v877, %v878
        %v880 = vand.u32 %v879, 4294901760
        %881 = vmatpush.msra.mxu0 %v880
        %v882 = vand.u32 %v232, 4294901760
        %v883 = vsub.f32 %v232, %v882
        %v884 = vand.u32 %v883, 4294901760
        %v885 = vsub.f32 %v883, %v884
        %v886 = vand.u32 %v885, 4294901760
        %887 = vmatpush.msra.mxu0 %v886
        %v888 = vand.u32 %v230, 4294901760
        %v889 = vsub.f32 %v230, %v888
        %v890 = vand.u32 %v889, 4294901760
        %v891 = vsub.f32 %v889, %v890
        %v892 = vand.u32 %v891, 4294901760
        %893 = vmatpush.msra.mxu0 %v892
        %v894 = vand.u32 %v228, 4294901760
        %v895 = vsub.f32 %v228, %v894
        %v896 = vand.u32 %v895, 4294901760
        %v897 = vsub.f32 %v895, %v896
        %v898 = vand.u32 %v897, 4294901760
        %899 = vmatpush.msra.mxu0 %v898
        %v900 = vand.u32 %v226, 4294901760
        %v901 = vsub.f32 %v226, %v900
        %v902 = vand.u32 %v901, 4294901760
        %v903 = vsub.f32 %v901, %v902
        %v904 = vand.u32 %v903, 4294901760
        %905 = vmatpush.msra.mxu0 %v904
        %v906 = vand.u32 %v263, 4294901760
        %907 = vmatmul.f32.gmra.mxu0 %v906
        %v908 = vpop.f32.mrf.mxu0
        %v909 = vadd.f32 %v808, %v908
        %910 = vdwg.mxu0
        %v911 = vand.u32 %v256, 4294901760
        %v912 = vsub.f32 %v256, %v911
        %913 = vmatpush.msra.mxu0 %v912
        %v914 = vand.u32 %v254, 4294901760
        %v915 = vsub.f32 %v254, %v914
        %916 = vmatpush.msra.mxu0 %v915
        %v917 = vand.u32 %v252, 4294901760
        %v918 = vsub.f32 %v252, %v917
        %919 = vmatpush.msra.mxu0 %v918
        %v920 = vand.u32 %v250, 4294901760
        %v921 = vsub.f32 %v250, %v920
        %922 = vmatpush.msra.mxu0 %v921
        %v923 = vand.u32 %v248, 4294901760
        %v924 = vsub.f32 %v248, %v923
        %925 = vmatpush.msra.mxu0 %v924
        %v926 = vand.u32 %v246, 4294901760
        %v927 = vsub.f32 %v246, %v926
        %928 = vmatpush.msra.mxu0 %v927
        %v929 = vand.u32 %v244, 4294901760
        %v930 = vsub.f32 %v244, %v929
        %931 = vmatpush.msra.mxu0 %v930
        %v932 = vand.u32 %v242, 4294901760
        %v933 = vsub.f32 %v242, %v932
        %934 = vmatpush.msra.mxu0 %v933
        %v935 = vand.u32 %v240, 4294901760
        %v936 = vsub.f32 %v240, %v935
        %937 = vmatpush.msra.mxu0 %v936
        %v938 = vand.u32 %v238, 4294901760
        %v939 = vsub.f32 %v238, %v938
        %940 = vmatpush.msra.mxu0 %v939
        %v941 = vand.u32 %v236, 4294901760
        %v942 = vsub.f32 %v236, %v941
        %943 = vmatpush.msra.mxu0 %v942
        %v944 = vand.u32 %v234, 4294901760
        %v945 = vsub.f32 %v234, %v944
        %946 = vmatpush.msra.mxu0 %v945
        %v947 = vand.u32 %v232, 4294901760
        %v948 = vsub.f32 %v232, %v947
        %949 = vmatpush.msra.mxu0 %v948
        %v950 = vand.u32 %v230, 4294901760
        %v951 = vsub.f32 %v230, %v950
        %952 = vmatpush.msra.mxu0 %v951
        %v953 = vand.u32 %v228, 4294901760
        %v954 = vsub.f32 %v228, %v953
        %955 = vmatpush.msra.mxu0 %v954
        %v956 = vand.u32 %v226, 4294901760
        %v957 = vsub.f32 %v226, %v956
        %958 = vmatpush.msra.mxu0 %v957
        %v959 = vand.u32 %v263, 4294901760
        %v960 = vsub.f32 %v263, %v959
        %961 = vmatmul.f32.gmra.mxu0 %v960
        %v962 = vpop.f32.mrf.mxu0
        %v963 = vadd.f32 %v909, %v962
        %964 = vdwg.mxu0
        %v965 = vand.u32 %v256, 4294901760
        %966 = vmatpush.msra.mxu0 %v965
        %v967 = vand.u32 %v254, 4294901760
        %968 = vmatpush.msra.mxu0 %v967
        %v969 = vand.u32 %v252, 4294901760
        %970 = vmatpush.msra.mxu0 %v969
        %v971 = vand.u32 %v250, 4294901760
        %972 = vmatpush.msra.mxu0 %v971
        %v973 = vand.u32 %v248, 4294901760
        %974 = vmatpush.msra.mxu0 %v973
        %v975 = vand.u32 %v246, 4294901760
        %976 = vmatpush.msra.mxu0 %v975
        %v977 = vand.u32 %v244, 4294901760
        %978 = vmatpush.msra.mxu0 %v977
        %v979 = vand.u32 %v242, 4294901760
        %980 = vmatpush.msra.mxu0 %v979
        %v981 = vand.u32 %v240, 4294901760
        %982 = vmatpush.msra.mxu0 %v981
        %v983 = vand.u32 %v238, 4294901760
        %984 = vmatpush.msra.mxu0 %v983
        %v985 = vand.u32 %v236, 4294901760
        %986 = vmatpush.msra.mxu0 %v985
        %v987 = vand.u32 %v234, 4294901760
        %988 = vmatpush.msra.mxu0 %v987
        %v989 = vand.u32 %v232, 4294901760
        %990 = vmatpush.msra.mxu0 %v989
        %v991 = vand.u32 %v230, 4294901760
        %992 = vmatpush.msra.mxu0 %v991
        %v993 = vand.u32 %v228, 4294901760
        %994 = vmatpush.msra.mxu0 %v993
        %v995 = vand.u32 %v226, 4294901760
        %996 = vmatpush.msra.mxu0 %v995
        %v997 = vand.u32 %v263, 4294901760
        %v998 = vsub.f32 %v263, %v997
        %v999 = vand.u32 %v998, 4294901760
        %1000 = vmatmul.f32.gmra.mxu0 %v999
        %v1001 = vpop.f32.mrf.mxu0
        %v1002 = vadd.f32 %v963, %v1001
        %1003 = vdwg.mxu0
        %v1004 = vand.u32 %v256, 4294901760
        %v1005 = vsub.f32 %v256, %v1004
        %v1006 = vand.u32 %v1005, 4294901760
        %1007 = vmatpush.msra.mxu0 %v1006
        %v1008 = vand.u32 %v254, 4294901760
        %v1009 = vsub.f32 %v254, %v1008
        %v1010 = vand.u32 %v1009, 4294901760
        %1011 = vmatpush.msra.mxu0 %v1010
        %v1012 = vand.u32 %v252, 4294901760
        %v1013 = vsub.f32 %v252, %v1012
        %v1014 = vand.u32 %v1013, 4294901760
        %1015 = vmatpush.msra.mxu0 %v1014
        %v1016 = vand.u32 %v250, 4294901760
        %v1017 = vsub.f32 %v250, %v1016
        %v1018 = vand.u32 %v1017, 4294901760
        %1019 = vmatpush.msra.mxu0 %v1018
        %v1020 = vand.u32 %v248, 4294901760
        %v1021 = vsub.f32 %v248, %v1020
        %v1022 = vand.u32 %v1021, 4294901760
        %1023 = vmatpush.msra.mxu0 %v1022
        %v1024 = vand.u32 %v246, 4294901760
        %v1025 = vsub.f32 %v246, %v1024
        %v1026 = vand.u32 %v1025, 4294901760
        %1027 = vmatpush.msra.mxu0 %v1026
        %v1028 = vand.u32 %v244, 4294901760
        %v1029 = vsub.f32 %v244, %v1028
        %v1030 = vand.u32 %v1029, 4294901760
        %1031 = vmatpush.msra.mxu0 %v1030
        %v1032 = vand.u32 %v242, 4294901760
        %v1033 = vsub.f32 %v242, %v1032
        %v1034 = vand.u32 %v1033, 4294901760
        %1035 = vmatpush.msra.mxu0 %v1034
        %v1036 = vand.u32 %v240, 4294901760
        %v1037 = vsub.f32 %v240, %v1036
        %v1038 = vand.u32 %v1037, 4294901760
        %1039 = vmatpush.msra.mxu0 %v1038
        %v1040 = vand.u32 %v238, 4294901760
        %v1041 = vsub.f32 %v238, %v1040
        %v1042 = vand.u32 %v1041, 4294901760
        %1043 = vmatpush.msra.mxu0 %v1042
        %v1044 = vand.u32 %v236, 4294901760
        %v1045 = vsub.f32 %v236, %v1044
        %v1046 = vand.u32 %v1045, 4294901760
        %1047 = vmatpush.msra.mxu0 %v1046
        %v1048 = vand.u32 %v234, 4294901760
        %v1049 = vsub.f32 %v234, %v1048
        %v1050 = vand.u32 %v1049, 4294901760
        %1051 = vmatpush.msra.mxu0 %v1050
        %v1052 = vand.u32 %v232, 4294901760
        %v1053 = vsub.f32 %v232, %v1052
        %v1054 = vand.u32 %v1053, 4294901760
        %1055 = vmatpush.msra.mxu0 %v1054
        %v1056 = vand.u32 %v230, 4294901760
        %v1057 = vsub.f32 %v230, %v1056
        %v1058 = vand.u32 %v1057, 4294901760
        %1059 = vmatpush.msra.mxu0 %v1058
        %v1060 = vand.u32 %v228, 4294901760
        %v1061 = vsub.f32 %v228, %v1060
        %v1062 = vand.u32 %v1061, 4294901760
        %1063 = vmatpush.msra.mxu0 %v1062
        %v1064 = vand.u32 %v226, 4294901760
        %v1065 = vsub.f32 %v226, %v1064
        %v1066 = vand.u32 %v1065, 4294901760
        %1067 = vmatpush.msra.mxu0 %v1066
        %v1068 = vand.u32 %v263, 4294901760
        %1069 = vmatmul.f32.gmra.mxu0 %v1068
        %v1070 = vpop.f32.mrf.mxu0
        %v1071 = vadd.f32 %v1002, %v1070
        %1072 = vdwg.mxu0
        %v1073 = vand.u32 %v256, 4294901760
        %1074 = vmatpush.msra.mxu0 %v1073
        %v1075 = vand.u32 %v254, 4294901760
        %1076 = vmatpush.msra.mxu0 %v1075
        %v1077 = vand.u32 %v252, 4294901760
        %1078 = vmatpush.msra.mxu0 %v1077
        %v1079 = vand.u32 %v250, 4294901760
        %1080 = vmatpush.msra.mxu0 %v1079
        %v1081 = vand.u32 %v248, 4294901760
        %1082 = vmatpush.msra.mxu0 %v1081
        %v1083 = vand.u32 %v246, 4294901760
        %1084 = vmatpush.msra.mxu0 %v1083
        %v1085 = vand.u32 %v244, 4294901760
        %1086 = vmatpush.msra.mxu0 %v1085
        %v1087 = vand.u32 %v242, 4294901760
        %1088 = vmatpush.msra.mxu0 %v1087
        %v1089 = vand.u32 %v240, 4294901760
        %1090 = vmatpush.msra.mxu0 %v1089
        %v1091 = vand.u32 %v238, 4294901760
        %1092 = vmatpush.msra.mxu0 %v1091
        %v1093 = vand.u32 %v236, 4294901760
        %1094 = vmatpush.msra.mxu0 %v1093
        %v1095 = vand.u32 %v234, 4294901760
        %1096 = vmatpush.msra.mxu0 %v1095
        %v1097 = vand.u32 %v232, 4294901760
        %1098 = vmatpush.msra.mxu0 %v1097
        %v1099 = vand.u32 %v230, 4294901760
        %1100 = vmatpush.msra.mxu0 %v1099
        %v1101 = vand.u32 %v228, 4294901760
        %1102 = vmatpush.msra.mxu0 %v1101
        %v1103 = vand.u32 %v226, 4294901760
        %1104 = vmatpush.msra.mxu0 %v1103
        %v1105 = vand.u32 %v263, 4294901760
        %1106 = vmatmul.f32.gmra.mxu0 %v1105
        %v1107 = vpop.f32.mrf.mxu0
        %v1108 = vadd.f32 %v1071, %v1107
        %1109 = vdwg.mxu0
        %1110 = vmatpush.msra.mxu0 0.0
        %1111 = vmatpush.msra.mxu0 0.0
        %1112 = vmatpush.msra.mxu0 0.0
        %1113 = vmatpush.msra.mxu0 0.0
        %1114 = vmatpush.msra.mxu0 0.0
        %1115 = vmatpush.msra.mxu0 0.0
        %1116 = vmatpush.msra.mxu0 0.0
        %1117 = vmatpush.msra.mxu0 0.0
        %1118 = vmatpush.msra.mxu0 0.0
        %1119 = vmatpush.msra.mxu0 0.0
        %1120 = vmatpush.msra.mxu0 0.0
        %1121 = vmatpush.msra.mxu0 0.0
        %1122 = vmatpush.msra.mxu0 0.0
        %1123 = vmatpush.msra.mxu0 0.0
        %v1124 = vand.u32 %v260, 4294901760
        %1125 = vmatpush.msra.mxu0 %v1124
        %v1126 = vand.u32 %v258, 4294901760
        %1127 = vmatpush.msra.mxu0 %v1126
        %v1128 = vand.u32 %v267, 4294901760
        %v1129 = vsub.f32 %v267, %v1128
        %v1130 = vand.u32 %v1129, 4294901760
        %v1131 = vsub.f32 %v1129, %v1130
        %v1132 = vand.u32 %v1131, 4294901760
        %1133 = vmatmul.f32.gmra.mxu0 %v1132
        %v1134 = vpop.f32.mrf.mxu0
        %v1135 = vadd.f32 %v1108, %v1134
        %1136 = vdwg.mxu0
        %1137 = vmatpush.msra.mxu0 0.0
        %1138 = vmatpush.msra.mxu0 0.0
        %1139 = vmatpush.msra.mxu0 0.0
        %1140 = vmatpush.msra.mxu0 0.0
        %1141 = vmatpush.msra.mxu0 0.0
        %1142 = vmatpush.msra.mxu0 0.0
        %1143 = vmatpush.msra.mxu0 0.0
        %1144 = vmatpush.msra.mxu0 0.0
        %1145 = vmatpush.msra.mxu0 0.0
        %1146 = vmatpush.msra.mxu0 0.0
        %1147 = vmatpush.msra.mxu0 0.0
        %1148 = vmatpush.msra.mxu0 0.0
        %1149 = vmatpush.msra.mxu0 0.0
        %1150 = vmatpush.msra.mxu0 0.0
        %v1151 = vand.u32 %v260, 4294901760
        %v1152 = vsub.f32 %v260, %v1151
        %v1153 = vand.u32 %v1152, 4294901760
        %v1154 = vsub.f32 %v1152, %v1153
        %v1155 = vand.u32 %v1154, 4294901760
        %1156 = vmatpush.msra.mxu0 %v1155
        %v1157 = vand.u32 %v258, 4294901760
        %v1158 = vsub.f32 %v258, %v1157
        %v1159 = vand.u32 %v1158, 4294901760
        %v1160 = vsub.f32 %v1158, %v1159
        %v1161 = vand.u32 %v1160, 4294901760
        %1162 = vmatpush.msra.mxu0 %v1161
        %v1163 = vand.u32 %v267, 4294901760
        %1164 = vmatmul.f32.gmra.mxu0 %v1163
        %v1165 = vpop.f32.mrf.mxu0
        %v1166 = vadd.f32 %v1135, %v1165
        %1167 = vdwg.mxu0
        %1168 = vmatpush.msra.mxu0 0.0
        %1169 = vmatpush.msra.mxu0 0.0
        %1170 = vmatpush.msra.mxu0 0.0
        %1171 = vmatpush.msra.mxu0 0.0
        %1172 = vmatpush.msra.mxu0 0.0
        %1173 = vmatpush.msra.mxu0 0.0
        %1174 = vmatpush.msra.mxu0 0.0
        %1175 = vmatpush.msra.mxu0 0.0
        %1176 = vmatpush.msra.mxu0 0.0
        %1177 = vmatpush.msra.mxu0 0.0
        %1178 = vmatpush.msra.mxu0 0.0
        %1179 = vmatpush.msra.mxu0 0.0
        %1180 = vmatpush.msra.mxu0 0.0
        %1181 = vmatpush.msra.mxu0 0.0
        %v1182 = vand.u32 %v260, 4294901760
        %v1183 = vsub.f32 %v260, %v1182
        %1184 = vmatpush.msra.mxu0 %v1183
        %v1185 = vand.u32 %v258, 4294901760
        %v1186 = vsub.f32 %v258, %v1185
        %1187 = vmatpush.msra.mxu0 %v1186
        %v1188 = vand.u32 %v267, 4294901760
        %v1189 = vsub.f32 %v267, %v1188
        %1190 = vmatmul.f32.gmra.mxu0 %v1189
        %v1191 = vpop.f32.mrf.mxu0
        %v1192 = vadd.f32 %v1166, %v1191
        %1193 = vdwg.mxu0
        %1194 = vmatpush.msra.mxu0 0.0
        %1195 = vmatpush.msra.mxu0 0.0
        %1196 = vmatpush.msra.mxu0 0.0
        %1197 = vmatpush.msra.mxu0 0.0
        %1198 = vmatpush.msra.mxu0 0.0
        %1199 = vmatpush.msra.mxu0 0.0
        %1200 = vmatpush.msra.mxu0 0.0
        %1201 = vmatpush.msra.mxu0 0.0
        %1202 = vmatpush.msra.mxu0 0.0
        %1203 = vmatpush.msra.mxu0 0.0
        %1204 = vmatpush.msra.mxu0 0.0
        %1205 = vmatpush.msra.mxu0 0.0
        %1206 = vmatpush.msra.mxu0 0.0
        %1207 = vmatpush.msra.mxu0 0.0
        %v1208 = vand.u32 %v260, 4294901760
        %1209 = vmatpush.msra.mxu0 %v1208
        %v1210 = vand.u32 %v258, 4294901760
        %1211 = vmatpush.msra.mxu0 %v1210
        %v1212 = vand.u32 %v267, 4294901760
        %v1213 = vsub.f32 %v267, %v1212
        %v1214 = vand.u32 %v1213, 4294901760
        %1215 = vmatmul.f32.gmra.mxu0 %v1214
        %v1216 = vpop.f32.mrf.mxu0
        %v1217 = vadd.f32 %v1192, %v1216
        %1218 = vdwg.mxu0
        %1219 = vmatpush.msra.mxu0 0.0
        %1220 = vmatpush.msra.mxu0 0.0
        %1221 = vmatpush.msra.mxu0 0.0
        %1222 = vmatpush.msra.mxu0 0.0
        %1223 = vmatpush.msra.mxu0 0.0
        %1224 = vmatpush.msra.mxu0 0.0
        %1225 = vmatpush.msra.mxu0 0.0
        %1226 = vmatpush.msra.mxu0 0.0
        %1227 = vmatpush.msra.mxu0 0.0
        %1228 = vmatpush.msra.mxu0 0.0
        %1229 = vmatpush.msra.mxu0 0.0
        %1230 = vmatpush.msra.mxu0 0.0
        %1231 = vmatpush.msra.mxu0 0.0
        %1232 = vmatpush.msra.mxu0 0.0
        %v1233 = vand.u32 %v260, 4294901760
        %v1234 = vsub.f32 %v260, %v1233
        %v1235 = vand.u32 %v1234, 4294901760
        %1236 = vmatpush.msra.mxu0 %v1235
        %v1237 = vand.u32 %v258, 4294901760
        %v1238 = vsub.f32 %v258, %v1237
        %v1239 = vand.u32 %v1238, 4294901760
        %1240 = vmatpush.msra.mxu0 %v1239
        %v1241 = vand.u32 %v267, 4294901760
        %1242 = vmatmul.f32.gmra.mxu0 %v1241
        %v1243 = vpop.f32.mrf.mxu0
        %v1244 = vadd.f32 %v1217, %v1243
        %1245 = vdwg.mxu0
        %1246 = vmatpush.msra.mxu0 0.0
        %1247 = vmatpush.msra.mxu0 0.0
        %1248 = vmatpush.msra.mxu0 0.0
        %1249 = vmatpush.msra.mxu0 0.0
        %1250 = vmatpush.msra.mxu0 0.0
        %1251 = vmatpush.msra.mxu0 0.0
        %1252 = vmatpush.msra.mxu0 0.0
        %1253 = vmatpush.msra.mxu0 0.0
        %1254 = vmatpush.msra.mxu0 0.0
        %1255 = vmatpush.msra.mxu0 0.0
        %1256 = vmatpush.msra.mxu0 0.0
        %1257 = vmatpush.msra.mxu0 0.0
        %1258 = vmatpush.msra.mxu0 0.0
        %1259 = vmatpush.msra.mxu0 0.0
        %v1260 = vand.u32 %v260, 4294901760
        %1261 = vmatpush.msra.mxu0 %v1260
        %v1262 = vand.u32 %v258, 4294901760
        %1263 = vmatpush.msra.mxu0 %v1262
        %v1264 = vand.u32 %v267, 4294901760
        %1265 = vmatmul.f32.gmra.mxu0 %v1264
        %v1266 = vpop.f32.mrf.mxu0
        %v1267 = vadd.f32 %v1244, %v1266
        %1268 = vdwg.mxu0
        %v1269 = vld [vmem:[#allocation6] sm:$0xff]
        %v1270 = vld [vmem:[#allocation6 + $0x8] sm:$0xff]
        %v1271 = vld [vmem:[#allocation6 + $0x10] sm:$0xff]
        %v1272 = vld [vmem:[#allocation6 + $0x18] sm:$0xff]
        %v1273 = vld [vmem:[#allocation6 + $0x20] sm:$0xff]
        %v1274 = vld [vmem:[#allocation6 + $0x28] sm:$0xff]
        %v1275 = vld [vmem:[#allocation6 + $0x30] sm:$0xff]
        %v1276 = vld [vmem:[#allocation6 + $0x38] sm:$0xff]
        %v1277 = vld [vmem:[#allocation6 + $0x40] sm:$0xff]
        %v1278 = vld [vmem:[#allocation6 + $0x48] sm:$0xff]
        %v1279 = vld [vmem:[#allocation6 + $0x50] sm:$0xff]
        %v1280 = vld [vmem:[#allocation6 + $0x58] sm:$0xff]
        %v1281 = vld [vmem:[#allocation6 + $0x60] sm:$0xff]
        %v1282 = vld [vmem:[#allocation6 + $0x68] sm:$0xff]
        %v1283 = vld [vmem:[#allocation6 + $0x70] sm:$0xff]
        %v1284 = vld [vmem:[#allocation6 + $0x78] sm:$0xff]
        %v1285 = vld [vmem:[#allocation6 + $0x80] sm:$0xff]
        %v1286 = vld [vmem:[#allocation6 + $0x88] sm:$0xff]
        %v1287 = vld [vmem:[#allocation6 + $0x90] sm:$0xff]
        %v1288 = vld [vmem:[#allocation6 + $0x98] sm:$0xff]
        %v1289 = vld [vmem:[#allocation6 + $0xa0] sm:$0xff]
        %v1290 = vld [vmem:[#allocation6 + $0xa8] sm:$0xff]
        %v1291 = vld [vmem:[#allocation6 + $0xb0] sm:$0xff]
        %v1292 = vld [vmem:[#allocation6 + $0xb8] sm:$0xff]
        %v1293 = vld [vmem:[#allocation6 + $0xc0] sm:$0xff]
        %v1294 = vld [vmem:[#allocation6 + $0xc8] sm:$0xff]
        %v1295 = vld [vmem:[#allocation6 + $0xd0] sm:$0xff]
        %v1296 = vld [vmem:[#allocation6 + $0xd8] sm:$0xff]
        %v1297 = vld [vmem:[#allocation6 + $0xe0] sm:$0xff]
        %v1298 = vld [vmem:[#allocation6 + $0xe8] sm:$0xff]
        %v1299 = vld [vmem:[#allocation6 + $0xf0] sm:$0xff]
        %v1300 = vld [vmem:[#allocation6 + $0xf8] sm:$0xff]
        %v1301 = vld [vmem:[#allocation6 + $0x100] sm:$0xff]
        %v1302 = vld [vmem:[#allocation6 + $0x108] sm:$0xff]
        %v1303 = vld [vmem:[#allocation6 + $0x110] sm:$0xff]
        %v1304 = vld [vmem:[#allocation6 + $0x118] sm:$0xff]
        %v1305 = vld [vmem:[#allocation6 + $0x120] sm:$0xff]
        %v1306 = vld [vmem:[#allocation6 + $0x128] sm:$0xff]
        %v1307 = vld [vmem:[#allocation6 + $0x130] sm:$0xff]
        %v1308 = vld [vmem:[#allocation6 + $0x138] sm:$0xff]
        %v1309 = vld [vmem:[#allocation6 + $0x140] sm:$0xff]
        %v1310 = vld [vmem:[#allocation6 + $0x148] sm:$0xff]
        %v1311 = vld [vmem:[#allocation6 + $0x150] sm:$0xff]
        %v1312 = vld [vmem:[#allocation6 + $0x158] sm:$0xff]
        %v1313 = vld [vmem:[#allocation6 + $0x160] sm:$0xff]
        %v1314 = vld [vmem:[#allocation6 + $0x168] sm:$0xff]
        %v1315 = vld [vmem:[#allocation6 + $0x170] sm:$0xff]
        %v1316 = vld [vmem:[#allocation6 + $0x178] sm:$0xff]
        %v1317 = vld [vmem:[#allocation6 + $0x180] sm:$0xff]
        %v1318 = vld [vmem:[#allocation6 + $0x188] sm:$0xff]
        %v1319 = vld [vmem:[#allocation6 + $0x190] sm:$0xff]
        %v1320 = vld [vmem:[#allocation6 + $0x198] sm:$0xff]
        %v1321 = vld [vmem:[#allocation6 + $0x1a0] sm:$0xff]
        %v1322 = vld [vmem:[#allocation6 + $0x1a8] sm:$0xff]
        %v1323 = vld [vmem:[#allocation6 + $0x1b0] sm:$0xff]
        %v1324 = vld [vmem:[#allocation6 + $0x1b8] sm:$0xff]
        %v1325 = vld [vmem:[#allocation6 + $0x1c0] sm:$0xff]
        %v1326 = vld [vmem:[#allocation6 + $0x1c8] sm:$0xff]
        %v1327 = vld [vmem:[#allocation6 + $0x1d0] sm:$0xff]
        %v1328 = vld [vmem:[#allocation6 + $0x1d8] sm:$0xff]
        %v1329 = vld [vmem:[#allocation6 + $0x1e0] sm:$0xff]
        %v1330 = vld [vmem:[#allocation6 + $0x1e8] sm:$0xff]
        %v1331 = vld [vmem:[#allocation6 + $0x1f0] sm:$0xff]
        %v1332 = vld [vmem:[#allocation6 + $0x1f8] sm:$0xff]
        %v1333 = vld [vmem:[#allocation6 + $0x200] sm:$0xff]
        %v1334 = vld [vmem:[#allocation6 + $0x208] sm:$0xff]
        %v1335 = vld [vmem:[#allocation6 + $0x210] sm:$0xff]
        %v1336 = vld [vmem:[#allocation6 + $0x218] sm:$0xff]
        %v1337 = vld [vmem:[#allocation6 + $0x220] sm:$0xff]
        %v1338 = vld [vmem:[#allocation6 + $0x228] sm:$0xff]
        %v1339 = vld [vmem:[#allocation6 + $0x230] sm:$0xff]
        %v1340 = vld [vmem:[#allocation6 + $0x238] sm:$0xff]
        %v1341 = vld [vmem:[#allocation6 + $0x240] sm:$0xff]
        %v1342 = vld [vmem:[#allocation6 + $0x248] sm:$0xff]
        %v1343 = vld [vmem:[#allocation6 + $0x250] sm:$0xff]
        %v1344 = vld [vmem:[#allocation6 + $0x258] sm:$0xff]
        %v1345 = vld [vmem:[#allocation6 + $0x260] sm:$0xff]
        %v1346 = vld [vmem:[#allocation6 + $0x268] sm:$0xff]
        %v1347 = vld [vmem:[#allocation6 + $0x270] sm:$0xff]
        %v1348 = vld [vmem:[#allocation6 + $0x278] sm:$0xff]
        %v1349 = vld [vmem:[#allocation6 + $0x280] sm:$0xff]
        %v1350 = vld [vmem:[#allocation6 + $0x288] sm:$0xff]
        %v1351 = vld [vmem:[#allocation6 + $0x290] sm:$0xff]
        %v1352 = vld [vmem:[#allocation6 + $0x298] sm:$0xff]
        %v1353 = vld [vmem:[#allocation6 + $0x2a0] sm:$0xff]
        %v1354 = vld [vmem:[#allocation6 + $0x2a8] sm:$0xff]
        %v1355 = vld [vmem:[#allocation6 + $0x2b0] sm:$0xff]
        %v1356 = vld [vmem:[#allocation6 + $0x2b8] sm:$0xff]
        %v1357 = vld [vmem:[#allocation6 + $0x2c0] sm:$0xff]
        %v1358 = vld [vmem:[#allocation6 + $0x2c8] sm:$0xff]
        %v1359 = vld [vmem:[#allocation6 + $0x2d0] sm:$0xff]
        %v1360 = vld [vmem:[#allocation6 + $0x2d8] sm:$0xff]
        %v1361 = vld [vmem:[#allocation6 + $0x2e0] sm:$0xff]
        %v1362 = vld [vmem:[#allocation6 + $0x2e8] sm:$0xff]
        %v1363 = vld [vmem:[#allocation6 + $0x2f0] sm:$0xff]
        %v1364 = vld [vmem:[#allocation6 + $0x2f8] sm:$0xff]
        %v1365 = vld [vmem:[#allocation6 + $0x300] sm:$0xff]
        %v1366 = vld [vmem:[#allocation6 + $0x308] sm:$0xff]
        %v1367 = vld [vmem:[#allocation6 + $0x310] sm:$0xff]
        %v1368 = vld [vmem:[#allocation6 + $0x318] sm:$0xff]
        %v1369 = vld [vmem:[#allocation6 + $0x320] sm:$0xff]
        %v1370 = vld [vmem:[#allocation6 + $0x328] sm:$0xff]
        %v1371 = vld [vmem:[#allocation6 + $0x330] sm:$0xff]
        %v1372 = vld [vmem:[#allocation6 + $0x338] sm:$0xff]
        %v1373 = vld [vmem:[#allocation6 + $0x340] sm:$0xff]
        %v1374 = vld [vmem:[#allocation6 + $0x348] sm:$0xff]
        %v1375 = vld [vmem:[#allocation6 + $0x350] sm:$0xff]
        %v1376 = vld [vmem:[#allocation6 + $0x358] sm:$0xff]
        %v1377 = vld [vmem:[#allocation6 + $0x360] sm:$0xff]
        %v1378 = vld [vmem:[#allocation6 + $0x368] sm:$0xff]
        %v1379 = vld [vmem:[#allocation6 + $0x370] sm:$0xff]
        %v1380 = vld [vmem:[#allocation6 + $0x378] sm:$0xff]
        %v1381 = vld [vmem:[#allocation6 + $0x380] sm:$0xff]
        %v1382 = vld [vmem:[#allocation6 + $0x388] sm:$0xff]
        %v1383 = vld [vmem:[#allocation6 + $0x390] sm:$0xff]
        %v1384 = vld [vmem:[#allocation6 + $0x398] sm:$0xff]
        %v1385 = vld [vmem:[#allocation6 + $0x3a0] sm:$0xff]
        %v1386 = vld [vmem:[#allocation6 + $0x3a8] sm:$0xff]
        %v1387 = vld [vmem:[#allocation6 + $0x3b0] sm:$0xff]
        %v1388 = vld [vmem:[#allocation6 + $0x3b8] sm:$0xff]
        %v1389 = vld [vmem:[#allocation6 + $0x3c0] sm:$0xff]
        %v1390 = vld [vmem:[#allocation6 + $0x3c8] sm:$0xff]
        %v1391 = vld [vmem:[#allocation6 + $0x3d0] sm:$0xff]
        %v1392 = vld [vmem:[#allocation6 + $0x3d8] sm:$0xff]
        %v1393 = vld [vmem:[#allocation6 + $0x3e0] sm:$0xff]
        %v1394 = vld [vmem:[#allocation6 + $0x3e8] sm:$0xff]
        %v1395 = vld [vmem:[#allocation6 + $0x3f0] sm:$0xff]
        %v1396 = vld [vmem:[#allocation6 + $0x3f8] sm:$0xff]
        %v1397 = vld [vmem:[#allocation6 + $0x400] sm:$0xff]
        %v1398 = vld [vmem:[#allocation6 + $0x408] sm:$0xff]
        %v1399 = vld [vmem:[#allocation6 + $0x410] sm:$0xff]
        %v1400 = vld [vmem:[#allocation6 + $0x418] sm:$0xff]
        %v1401 = vld [vmem:[#allocation6 + $0x420] sm:$0xff]
        %v1402 = vld [vmem:[#allocation6 + $0x428] sm:$0xff]
        %v1403 = vld [vmem:[#allocation6 + $0x430] sm:$0xff]
        %v1404 = vld [vmem:[#allocation6 + $0x438] sm:$0xff]
        %v1405 = vld [vmem:[#allocation6 + $0x440] sm:$0xff]
        %v1406 = vld [vmem:[#allocation6 + $0x448] sm:$0xff]
        %v1407 = vld [vmem:[#allocation6 + $0x450] sm:$0xff]
        %v1408 = vld [vmem:[#allocation6 + $0x458] sm:$0xff]
        %v1409 = vld [vmem:[#allocation6 + $0x460] sm:$0xff]
        %v1410 = vld [vmem:[#allocation6 + $0x468] sm:$0xff]
        %v1411 = vld [vmem:[#allocation6 + $0x470] sm:$0xff]
        %v1412 = vld [vmem:[#allocation6 + $0x478] sm:$0xff]
        %v1413 = vld [vmem:[#allocation6 + $0x480] sm:$0xff]
        %v1414 = vld [vmem:[#allocation6 + $0x488] sm:$0xff]
        %v1415 = vld [vmem:[#allocation6 + $0x490] sm:$0xff]
        %v1416 = vld [vmem:[#allocation6 + $0x498] sm:$0xff]
        %v1417 = vld [vmem:[#allocation6 + $0x4a0] sm:$0xff]
        %v1418 = vld [vmem:[#allocation6 + $0x4a8] sm:$0xff]
        %v1419 = vld [vmem:[#allocation6 + $0x4b0] sm:$0xff]
        %v1420 = vld [vmem:[#allocation6 + $0x4b8] sm:$0xff]
        %v1421 = vld [vmem:[#allocation6 + $0x4c0] sm:$0xff]
        %v1422 = vld [vmem:[#allocation6 + $0x4c8] sm:$0xff]
        %v1423 = vld [vmem:[#allocation6 + $0x4d0] sm:$0xff]
        %v1424 = vld [vmem:[#allocation6 + $0x4d8] sm:$0xff]
        %v1425 = vld [vmem:[#allocation6 + $0x4e0] sm:$0xff]
        %v1426 = vld [vmem:[#allocation6 + $0x4e8] sm:$0xff]
        %v1427 = vld [vmem:[#allocation6 + $0x4f0] sm:$0xff]
        %v1428 = vld [vmem:[#allocation6 + $0x4f8] sm:$0xff]
        %v1429 = vld [vmem:[#allocation6 + $0x500] sm:$0xff]
        %v1430 = vld [vmem:[#allocation6 + $0x508] sm:$0xff]
        %v1431 = vld [vmem:[#allocation6 + $0x510] sm:$0xff]
        %v1432 = vld [vmem:[#allocation6 + $0x518] sm:$0xff]
        %v1433 = vld [vmem:[#allocation6 + $0x520] sm:$0xff]
        %v1434 = vld [vmem:[#allocation6 + $0x528] sm:$0xff]
        %v1435 = vld [vmem:[#allocation6 + $0x530] sm:$0xff]
        %v1436 = vld [vmem:[#allocation6 + $0x538] sm:$0xff]
        %v1437 = vld [vmem:[#allocation6 + $0x540] sm:$0xff]
        %v1438 = vld [vmem:[#allocation6 + $0x548] sm:$0xff]
        %v1439 = vld [vmem:[#allocation6 + $0x550] sm:$0xff]
        %v1440 = vld [vmem:[#allocation6 + $0x558] sm:$0xff]
        %v1441 = vld [vmem:[#allocation6 + $0x560] sm:$0xff]
        %v1442 = vld [vmem:[#allocation6 + $0x568] sm:$0xff]
        %v1443 = vld [vmem:[#allocation6 + $0x570] sm:$0xff]
        %v1444 = vld [vmem:[#allocation6 + $0x578] sm:$0xff]
        %v1445 = vld [vmem:[#allocation6 + $0x580] sm:$0xff]
        %v1446 = vld [vmem:[#allocation6 + $0x588] sm:$0xff]
        %v1447 = vld [vmem:[#allocation6 + $0x590] sm:$0xff]
        %v1448 = vld [vmem:[#allocation6 + $0x598] sm:$0xff]
        %v1449 = vld [vmem:[#allocation6 + $0x5a0] sm:$0xff]
        %v1450 = vld [vmem:[#allocation6 + $0x5a8] sm:$0xff]
        %v1451 = vld [vmem:[#allocation6 + $0x5b0] sm:$0xff]
        %v1452 = vld [vmem:[#allocation6 + $0x5b8] sm:$0xff]
        %v1453 = vld [vmem:[#allocation6 + $0x5c0] sm:$0xff]
        %v1454 = vld [vmem:[#allocation6 + $0x5c8] sm:$0xff]
        %v1455 = vld [vmem:[#allocation6 + $0x5d0] sm:$0xff]
        %v1456 = vld [vmem:[#allocation6 + $0x5d8] sm:$0xff]
        %v1457 = vld [vmem:[#allocation6 + $0x5e0] sm:$0xff]
        %v1458 = vld [vmem:[#allocation6 + $0x5e8] sm:$0xff]
        %v1459 = vld [vmem:[#allocation6 + $0x5f0] sm:$0xff]
        %v1460 = vld [vmem:[#allocation6 + $0x5f8] sm:$0xff]
        %v1461 = vld [vmem:[#allocation6 + $0x600] sm:$0xff]
        %v1462 = vld [vmem:[#allocation6 + $0x608] sm:$0xff]
        %v1463 = vld [vmem:[#allocation6 + $0x610] sm:$0xff]
        %v1464 = vld [vmem:[#allocation6 + $0x618] sm:$0xff]
        %v1465 = vld [vmem:[#allocation6 + $0x620] sm:$0xff]
        %v1466 = vld [vmem:[#allocation6 + $0x628] sm:$0xff]
        %v1467 = vld [vmem:[#allocation6 + $0x630] sm:$0xff]
        %v1468 = vld [vmem:[#allocation6 + $0x638] sm:$0xff]
        %v1469 = vld [vmem:[#allocation6 + $0x640] sm:$0xff]
        %v1470 = vld [vmem:[#allocation6 + $0x648] sm:$0xff]
        %v1471 = vld [vmem:[#allocation6 + $0x650] sm:$0xff]
        %v1472 = vld [vmem:[#allocation6 + $0x658] sm:$0xff]
        %v1473 = vld [vmem:[#allocation6 + $0x660] sm:$0xff]
        %v1474 = vld [vmem:[#allocation6 + $0x668] sm:$0xff]
        %v1475 = vld [vmem:[#allocation6 + $0x670] sm:$0xff]
        %v1476 = vld [vmem:[#allocation6 + $0x678] sm:$0xff]
        %v1477 = vld [vmem:[#allocation6 + $0x680] sm:$0xff]
        %v1478 = vld [vmem:[#allocation6 + $0x688] sm:$0xff]
        %v1479 = vld [vmem:[#allocation6 + $0x690] sm:$0xff]
        %v1480 = vld [vmem:[#allocation6 + $0x698] sm:$0xff]
        %v1481 = vld [vmem:[#allocation6 + $0x6a0] sm:$0xff]
        %v1482 = vld [vmem:[#allocation6 + $0x6a8] sm:$0xff]
        %v1483 = vld [vmem:[#allocation6 + $0x6b0] sm:$0xff]
        %v1484 = vld [vmem:[#allocation6 + $0x6b8] sm:$0xff]
        %v1485 = vld [vmem:[#allocation6 + $0x6c0] sm:$0xff]
        %v1486 = vld [vmem:[#allocation6 + $0x6c8] sm:$0xff]
        %v1487 = vld [vmem:[#allocation6 + $0x6d0] sm:$0xff]
        %v1488 = vld [vmem:[#allocation6 + $0x6d8] sm:$0xff]
        %v1489 = vld [vmem:[#allocation6 + $0x6e0] sm:$0xff]
        %v1490 = vld [vmem:[#allocation6 + $0x6e8] sm:$0xff]
        %v1491 = vld [vmem:[#allocation6 + $0x6f0] sm:$0xff]
        %v1492 = vld [vmem:[#allocation6 + $0x6f8] sm:$0xff]
        %v1493 = vld [vmem:[#allocation6 + $0x700] sm:$0xff]
        %v1494 = vld [vmem:[#allocation6 + $0x708] sm:$0xff]
        %v1495 = vld [vmem:[#allocation6 + $0x710] sm:$0xff]
        %v1496 = vld [vmem:[#allocation6 + $0x718] sm:$0xff]
        %v1497 = vld [vmem:[#allocation6 + $0x720] sm:$0xff]
        %v1498 = vld [vmem:[#allocation6 + $0x728] sm:$0xff]
        %v1499 = vld [vmem:[#allocation6 + $0x730] sm:$0xff]
        %v1500 = vld [vmem:[#allocation6 + $0x738] sm:$0xff]
        %v1501 = vld [vmem:[#allocation6 + $0x740] sm:$0xff]
        %v1502 = vld [vmem:[#allocation6 + $0x748] sm:$0xff]
        %v1503 = vld [vmem:[#allocation6 + $0x750] sm:$0xff]
        %v1504 = vld [vmem:[#allocation6 + $0x758] sm:$0xff]
        %v1505 = vld [vmem:[#allocation6 + $0x760] sm:$0xff]
        %v1506 = vld [vmem:[#allocation6 + $0x768] sm:$0xff]
        %v1507 = vld [vmem:[#allocation6 + $0x770] sm:$0xff]
        %v1508 = vld [vmem:[#allocation6 + $0x778] sm:$0xff]
        %v1509 = vld [vmem:[#allocation6 + $0x780] sm:$0xff]
        %v1510 = vld [vmem:[#allocation6 + $0x788] sm:$0xff]
        %v1511 = vld [vmem:[#allocation6 + $0x790] sm:$0xff]
        %v1512 = vld [vmem:[#allocation6 + $0x798] sm:$0xff]
        %v1513 = vld [vmem:[#allocation6 + $0x7a0] sm:$0xff]
        %v1514 = vld [vmem:[#allocation6 + $0x7a8] sm:$0xff]
        %v1515 = vld [vmem:[#allocation6 + $0x7b0] sm:$0xff]
        %v1516 = vld [vmem:[#allocation6 + $0x7b8] sm:$0xff]
        %v1517 = vld [vmem:[#allocation6 + $0x7c0] sm:$0xff]
        %v1518 = vld [vmem:[#allocation6 + $0x7c8] sm:$0xff]
        %v1519 = vld [vmem:[#allocation6 + $0x7d0] sm:$0xff]
        %v1520 = vld [vmem:[#allocation6 + $0x7d8] sm:$0xff]
        %v1521 = vld [vmem:[#allocation6 + $0x7e0] sm:$0xff]
        %v1522 = vld [vmem:[#allocation6 + $0x7e8] sm:$0xff]
        %v1523 = vld [vmem:[#allocation6 + $0x7f0] sm:$0xff]
        %v1524 = vld [vmem:[#allocation6 + $0x7f8] sm:$0xff]
        %v1525 = vand.u32 %v1389, 4294901760
        %1526 = vmatpush.msra.mxu0 %v1525
        %v1527 = vand.u32 %v1381, 4294901760
        %1528 = vmatpush.msra.mxu0 %v1527
        %v1529 = vand.u32 %v1373, 4294901760
        %1530 = vmatpush.msra.mxu0 %v1529
        %v1531 = vand.u32 %v1365, 4294901760
        %1532 = vmatpush.msra.mxu0 %v1531
        %v1533 = vand.u32 %v1357, 4294901760
        %1534 = vmatpush.msra.mxu0 %v1533
        %v1535 = vand.u32 %v1349, 4294901760
        %1536 = vmatpush.msra.mxu0 %v1535
        %v1537 = vand.u32 %v1341, 4294901760
        %1538 = vmatpush.msra.mxu0 %v1537
        %v1539 = vand.u32 %v1333, 4294901760
        %1540 = vmatpush.msra.mxu0 %v1539
        %v1541 = vand.u32 %v1325, 4294901760
        %1542 = vmatpush.msra.mxu0 %v1541
        %v1543 = vand.u32 %v1317, 4294901760
        %1544 = vmatpush.msra.mxu0 %v1543
        %v1545 = vand.u32 %v1309, 4294901760
        %1546 = vmatpush.msra.mxu0 %v1545
        %v1547 = vand.u32 %v1301, 4294901760
        %1548 = vmatpush.msra.mxu0 %v1547
        %v1549 = vand.u32 %v1293, 4294901760
        %1550 = vmatpush.msra.mxu0 %v1549
        %v1551 = vand.u32 %v1285, 4294901760
        %1552 = vmatpush.msra.mxu0 %v1551
        %v1553 = vand.u32 %v1277, 4294901760
        %1554 = vmatpush.msra.mxu0 %v1553
        %v1555 = vand.u32 %v1269, 4294901760
        %1556 = vmatpush.msra.mxu0 %v1555
        %v1557 = vand.u32 %v767, 4294901760
        %v1558 = vsub.f32 %v767, %v1557
        %v1559 = vand.u32 %v1558, 4294901760
        %v1560 = vsub.f32 %v1558, %v1559
        %v1561 = vand.u32 %v1560, 4294901760
        %1562 = vmatmul.f32.gmra.mxu0 %v1561
        %v1563 = vpop.f32.mrf.mxu0
        %v1564 = vadd.f32 0.0, %v1563
        %1565 = vdwg.mxu0
        %v1566 = vand.u32 %v1389, 4294901760
        %v1567 = vsub.f32 %v1389, %v1566
        %v1568 = vand.u32 %v1567, 4294901760
        %v1569 = vsub.f32 %v1567, %v1568
        %v1570 = vand.u32 %v1569, 4294901760
        %1571 = vmatpush.msra.mxu0 %v1570
        %v1572 = vand.u32 %v1381, 4294901760
        %v1573 = vsub.f32 %v1381, %v1572
        %v1574 = vand.u32 %v1573, 4294901760
        %v1575 = vsub.f32 %v1573, %v1574
        %v1576 = vand.u32 %v1575, 4294901760
        %1577 = vmatpush.msra.mxu0 %v1576
        %v1578 = vand.u32 %v1373, 4294901760
        %v1579 = vsub.f32 %v1373, %v1578
        %v1580 = vand.u32 %v1579, 4294901760
        %v1581 = vsub.f32 %v1579, %v1580
        %v1582 = vand.u32 %v1581, 4294901760
        %1583 = vmatpush.msra.mxu0 %v1582
        %v1584 = vand.u32 %v1365, 4294901760
        %v1585 = vsub.f32 %v1365, %v1584
        %v1586 = vand.u32 %v1585, 4294901760
        %v1587 = vsub.f32 %v1585, %v1586
        %v1588 = vand.u32 %v1587, 4294901760
        %1589 = vmatpush.msra.mxu0 %v1588
        %v1590 = vand.u32 %v1357, 4294901760
        %v1591 = vsub.f32 %v1357, %v1590
        %v1592 = vand.u32 %v1591, 4294901760
        %v1593 = vsub.f32 %v1591, %v1592
        %v1594 = vand.u32 %v1593, 4294901760
        %1595 = vmatpush.msra.mxu0 %v1594
        %v1596 = vand.u32 %v1349, 4294901760
        %v1597 = vsub.f32 %v1349, %v1596
        %v1598 = vand.u32 %v1597, 4294901760
        %v1599 = vsub.f32 %v1597, %v1598
        %v1600 = vand.u32 %v1599, 4294901760
        %1601 = vmatpush.msra.mxu0 %v1600
        %v1602 = vand.u32 %v1341, 4294901760
        %v1603 = vsub.f32 %v1341, %v1602
        %v1604 = vand.u32 %v1603, 4294901760
        %v1605 = vsub.f32 %v1603, %v1604
        %v1606 = vand.u32 %v1605, 4294901760
        %1607 = vmatpush.msra.mxu0 %v1606
        %v1608 = vand.u32 %v1333, 4294901760
        %v1609 = vsub.f32 %v1333, %v1608
        %v1610 = vand.u32 %v1609, 4294901760
        %v1611 = vsub.f32 %v1609, %v1610
        %v1612 = vand.u32 %v1611, 4294901760
        %1613 = vmatpush.msra.mxu0 %v1612
        %v1614 = vand.u32 %v1325, 4294901760
        %v1615 = vsub.f32 %v1325, %v1614
        %v1616 = vand.u32 %v1615, 4294901760
        %v1617 = vsub.f32 %v1615, %v1616
        %v1618 = vand.u32 %v1617, 4294901760
        %1619 = vmatpush.msra.mxu0 %v1618
        %v1620 = vand.u32 %v1317, 4294901760
        %v1621 = vsub.f32 %v1317, %v1620
        %v1622 = vand.u32 %v1621, 4294901760
        %v1623 = vsub.f32 %v1621, %v1622
        %v1624 = vand.u32 %v1623, 4294901760
        %1625 = vmatpush.msra.mxu0 %v1624
        %v1626 = vand.u32 %v1309, 4294901760
        %v1627 = vsub.f32 %v1309, %v1626
        %v1628 = vand.u32 %v1627, 4294901760
        %v1629 = vsub.f32 %v1627, %v1628
        %v1630 = vand.u32 %v1629, 4294901760
        %1631 = vmatpush.msra.mxu0 %v1630
        %v1632 = vand.u32 %v1301, 4294901760
        %v1633 = vsub.f32 %v1301, %v1632
        %v1634 = vand.u32 %v1633, 4294901760
        %v1635 = vsub.f32 %v1633, %v1634
        %v1636 = vand.u32 %v1635, 4294901760
        %1637 = vmatpush.msra.mxu0 %v1636
        %v1638 = vand.u32 %v1293, 4294901760
        %v1639 = vsub.f32 %v1293, %v1638
        %v1640 = vand.u32 %v1639, 4294901760
        %v1641 = vsub.f32 %v1639, %v1640
        %v1642 = vand.u32 %v1641, 4294901760
        %1643 = vmatpush.msra.mxu0 %v1642
        %v1644 = vand.u32 %v1285, 4294901760
        %v1645 = vsub.f32 %v1285, %v1644
        %v1646 = vand.u32 %v1645, 4294901760
        %v1647 = vsub.f32 %v1645, %v1646
        %v1648 = vand.u32 %v1647, 4294901760
        %1649 = vmatpush.msra.mxu0 %v1648
        %v1650 = vand.u32 %v1277, 4294901760
        %v1651 = vsub.f32 %v1277, %v1650
        %v1652 = vand.u32 %v1651, 4294901760
        %v1653 = vsub.f32 %v1651, %v1652
        %v1654 = vand.u32 %v1653, 4294901760
        %1655 = vmatpush.msra.mxu0 %v1654
        %v1656 = vand.u32 %v1269, 4294901760
        %v1657 = vsub.f32 %v1269, %v1656
        %v1658 = vand.u32 %v1657, 4294901760
        %v1659 = vsub.f32 %v1657, %v1658
        %v1660 = vand.u32 %v1659, 4294901760
        %1661 = vmatpush.msra.mxu0 %v1660
        %v1662 = vand.u32 %v767, 4294901760
        %1663 = vmatmul.f32.gmra.mxu0 %v1662
        %v1664 = vpop.f32.mrf.mxu0
        %v1665 = vadd.f32 %v1564, %v1664
        %1666 = vdwg.mxu0
        %v1667 = vand.u32 %v1389, 4294901760
        %v1668 = vsub.f32 %v1389, %v1667
        %1669 = vmatpush.msra.mxu0 %v1668
        %v1670 = vand.u32 %v1381, 4294901760
        %v1671 = vsub.f32 %v1381, %v1670
        %1672 = vmatpush.msra.mxu0 %v1671
        %v1673 = vand.u32 %v1373, 4294901760
        %v1674 = vsub.f32 %v1373, %v1673
        %1675 = vmatpush.msra.mxu0 %v1674
        %v1676 = vand.u32 %v1365, 4294901760
        %v1677 = vsub.f32 %v1365, %v1676
        %1678 = vmatpush.msra.mxu0 %v1677
        %v1679 = vand.u32 %v1357, 4294901760
        %v1680 = vsub.f32 %v1357, %v1679
        %1681 = vmatpush.msra.mxu0 %v1680
        %v1682 = vand.u32 %v1349, 4294901760
        %v1683 = vsub.f32 %v1349, %v1682
        %1684 = vmatpush.msra.mxu0 %v1683
        %v1685 = vand.u32 %v1341, 4294901760
        %v1686 = vsub.f32 %v1341, %v1685
        %1687 = vmatpush.msra.mxu0 %v1686
        %v1688 = vand.u32 %v1333, 4294901760
        %v1689 = vsub.f32 %v1333, %v1688
        %1690 = vmatpush.msra.mxu0 %v1689
        %v1691 = vand.u32 %v1325, 4294901760
        %v1692 = vsub.f32 %v1325, %v1691
        %1693 = vmatpush.msra.mxu0 %v1692
        %v1694 = vand.u32 %v1317, 4294901760
        %v1695 = vsub.f32 %v1317, %v1694
        %1696 = vmatpush.msra.mxu0 %v1695
        %v1697 = vand.u32 %v1309, 4294901760
        %v1698 = vsub.f32 %v1309, %v1697
        %1699 = vmatpush.msra.mxu0 %v1698
        %v1700 = vand.u32 %v1301, 4294901760
        %v1701 = vsub.f32 %v1301, %v1700
        %1702 = vmatpush.msra.mxu0 %v1701
        %v1703 = vand.u32 %v1293, 4294901760
        %v1704 = vsub.f32 %v1293, %v1703
        %1705 = vmatpush.msra.mxu0 %v1704
        %v1706 = vand.u32 %v1285, 4294901760
        %v1707 = vsub.f32 %v1285, %v1706
        %1708 = vmatpush.msra.mxu0 %v1707
        %v1709 = vand.u32 %v1277, 4294901760
        %v1710 = vsub.f32 %v1277, %v1709
        %1711 = vmatpush.msra.mxu0 %v1710
        %v1712 = vand.u32 %v1269, 4294901760
        %v1713 = vsub.f32 %v1269, %v1712
        %1714 = vmatpush.msra.mxu0 %v1713
        %v1715 = vand.u32 %v767, 4294901760
        %v1716 = vsub.f32 %v767, %v1715
        %1717 = vmatmul.f32.gmra.mxu0 %v1716
        %v1718 = vpop.f32.mrf.mxu0
        %v1719 = vadd.f32 %v1665, %v1718
        %1720 = vdwg.mxu0
        %v1721 = vand.u32 %v1389, 4294901760
        %1722 = vmatpush.msra.mxu0 %v1721
        %v1723 = vand.u32 %v1381, 4294901760
        %1724 = vmatpush.msra.mxu0 %v1723
        %v1725 = vand.u32 %v1373, 4294901760
        %1726 = vmatpush.msra.mxu0 %v1725
        %v1727 = vand.u32 %v1365, 4294901760
        %1728 = vmatpush.msra.mxu0 %v1727
        %v1729 = vand.u32 %v1357, 4294901760
        %1730 = vmatpush.msra.mxu0 %v1729
        %v1731 = vand.u32 %v1349, 4294901760
        %1732 = vmatpush.msra.mxu0 %v1731
        %v1733 = vand.u32 %v1341, 4294901760
        %1734 = vmatpush.msra.mxu0 %v1733
        %v1735 = vand.u32 %v1333, 4294901760
        %1736 = vmatpush.msra.mxu0 %v1735
        %v1737 = vand.u32 %v1325, 4294901760
        %1738 = vmatpush.msra.mxu0 %v1737
        %v1739 = vand.u32 %v1317, 4294901760
        %1740 = vmatpush.msra.mxu0 %v1739
        %v1741 = vand.u32 %v1309, 4294901760
        %1742 = vmatpush.msra.mxu0 %v1741
        %v1743 = vand.u32 %v1301, 4294901760
        %1744 = vmatpush.msra.mxu0 %v1743
        %v1745 = vand.u32 %v1293, 4294901760
        %1746 = vmatpush.msra.mxu0 %v1745
        %v1747 = vand.u32 %v1285, 4294901760
        %1748 = vmatpush.msra.mxu0 %v1747
        %v1749 = vand.u32 %v1277, 4294901760
        %1750 = vmatpush.msra.mxu0 %v1749
        %v1751 = vand.u32 %v1269, 4294901760
        %1752 = vmatpush.msra.mxu0 %v1751
        %v1753 = vand.u32 %v767, 4294901760
        %v1754 = vsub.f32 %v767, %v1753
        %v1755 = vand.u32 %v1754, 4294901760
        %1756 = vmatmul.f32.gmra.mxu0 %v1755
        %v1757 = vpop.f32.mrf.mxu0
        %v1758 = vadd.f32 %v1719, %v1757
        %1759 = vdwg.mxu0
        %v1760 = vand.u32 %v1389, 4294901760
        %v1761 = vsub.f32 %v1389, %v1760
        %v1762 = vand.u32 %v1761, 4294901760
        %1763 = vmatpush.msra.mxu0 %v1762
        %v1764 = vand.u32 %v1381, 4294901760
        %v1765 = vsub.f32 %v1381, %v1764
        %v1766 = vand.u32 %v1765, 4294901760
        %1767 = vmatpush.msra.mxu0 %v1766
        %v1768 = vand.u32 %v1373, 4294901760
        %v1769 = vsub.f32 %v1373, %v1768
        %v1770 = vand.u32 %v1769, 4294901760
        %1771 = vmatpush.msra.mxu0 %v1770
        %v1772 = vand.u32 %v1365, 4294901760
        %v1773 = vsub.f32 %v1365, %v1772
        %v1774 = vand.u32 %v1773, 4294901760
        %1775 = vmatpush.msra.mxu0 %v1774
        %v1776 = vand.u32 %v1357, 4294901760
        %v1777 = vsub.f32 %v1357, %v1776
        %v1778 = vand.u32 %v1777, 4294901760
        %1779 = vmatpush.msra.mxu0 %v1778
        %v1780 = vand.u32 %v1349, 4294901760
        %v1781 = vsub.f32 %v1349, %v1780
        %v1782 = vand.u32 %v1781, 4294901760
        %1783 = vmatpush.msra.mxu0 %v1782
        %v1784 = vand.u32 %v1341, 4294901760
        %v1785 = vsub.f32 %v1341, %v1784
        %v1786 = vand.u32 %v1785, 4294901760
        %1787 = vmatpush.msra.mxu0 %v1786
        %v1788 = vand.u32 %v1333, 4294901760
        %v1789 = vsub.f32 %v1333, %v1788
        %v1790 = vand.u32 %v1789, 4294901760
        %1791 = vmatpush.msra.mxu0 %v1790
        %v1792 = vand.u32 %v1325, 4294901760
        %v1793 = vsub.f32 %v1325, %v1792
        %v1794 = vand.u32 %v1793, 4294901760
        %1795 = vmatpush.msra.mxu0 %v1794
        %v1796 = vand.u32 %v1317, 4294901760
        %v1797 = vsub.f32 %v1317, %v1796
        %v1798 = vand.u32 %v1797, 4294901760
        %1799 = vmatpush.msra.mxu0 %v1798
        %v1800 = vand.u32 %v1309, 4294901760
        %v1801 = vsub.f32 %v1309, %v1800
        %v1802 = vand.u32 %v1801, 4294901760
        %1803 = vmatpush.msra.mxu0 %v1802
        %v1804 = vand.u32 %v1301, 4294901760
        %v1805 = vsub.f32 %v1301, %v1804
        %v1806 = vand.u32 %v1805, 4294901760
        %1807 = vmatpush.msra.mxu0 %v1806
        %v1808 = vand.u32 %v1293, 4294901760
        %v1809 = vsub.f32 %v1293, %v1808
        %v1810 = vand.u32 %v1809, 4294901760
        %1811 = vmatpush.msra.mxu0 %v1810
        %v1812 = vand.u32 %v1285, 4294901760
        %v1813 = vsub.f32 %v1285, %v1812
        %v1814 = vand.u32 %v1813, 4294901760
        %1815 = vmatpush.msra.mxu0 %v1814
        %v1816 = vand.u32 %v1277, 4294901760
        %v1817 = vsub.f32 %v1277, %v1816
        %v1818 = vand.u32 %v1817, 4294901760
        %1819 = vmatpush.msra.mxu0 %v1818
        %v1820 = vand.u32 %v1269, 4294901760
        %v1821 = vsub.f32 %v1269, %v1820
        %v1822 = vand.u32 %v1821, 4294901760
        %1823 = vmatpush.msra.mxu0 %v1822
        %v1824 = vand.u32 %v767, 4294901760
        %1825 = vmatmul.f32.gmra.mxu0 %v1824
        %v1826 = vpop.f32.mrf.mxu0
        %v1827 = vadd.f32 %v1758, %v1826
        %1828 = vdwg.mxu0
        %v1829 = vand.u32 %v1389, 4294901760
        %1830 = vmatpush.msra.mxu0 %v1829
        %v1831 = vand.u32 %v1381, 4294901760
        %1832 = vmatpush.msra.mxu0 %v1831
        %v1833 = vand.u32 %v1373, 4294901760
        %1834 = vmatpush.msra.mxu0 %v1833
        %v1835 = vand.u32 %v1365, 4294901760
        %1836 = vmatpush.msra.mxu0 %v1835
        %v1837 = vand.u32 %v1357, 4294901760
        %1838 = vmatpush.msra.mxu0 %v1837
        %v1839 = vand.u32 %v1349, 4294901760
        %1840 = vmatpush.msra.mxu0 %v1839
        %v1841 = vand.u32 %v1341, 4294901760
        %1842 = vmatpush.msra.mxu0 %v1841
        %v1843 = vand.u32 %v1333, 4294901760
        %1844 = vmatpush.msra.mxu0 %v1843
        %v1845 = vand.u32 %v1325, 4294901760
        %1846 = vmatpush.msra.mxu0 %v1845
        %v1847 = vand.u32 %v1317, 4294901760
        %1848 = vmatpush.msra.mxu0 %v1847
        %v1849 = vand.u32 %v1309, 4294901760
        %1850 = vmatpush.msra.mxu0 %v1849
        %v1851 = vand.u32 %v1301, 4294901760
        %1852 = vmatpush.msra.mxu0 %v1851
        %v1853 = vand.u32 %v1293, 4294901760
        %1854 = vmatpush.msra.mxu0 %v1853
        %v1855 = vand.u32 %v1285, 4294901760
        %1856 = vmatpush.msra.mxu0 %v1855
        %v1857 = vand.u32 %v1277, 4294901760
        %1858 = vmatpush.msra.mxu0 %v1857
        %v1859 = vand.u32 %v1269, 4294901760
        %1860 = vmatpush.msra.mxu0 %v1859
        %v1861 = vand.u32 %v767, 4294901760
        %1862 = vmatmul.f32.gmra.mxu0 %v1861
        %v1863 = vpop.f32.mrf.mxu0
        %v1864 = vadd.f32 %v1827, %v1863
        %1865 = vdwg.mxu0
        %v1866 = vand.u32 %v1517, 4294901760
        %1867 = vmatpush.msra.mxu0 %v1866
        %v1868 = vand.u32 %v1509, 4294901760
        %1869 = vmatpush.msra.mxu0 %v1868
        %v1870 = vand.u32 %v1501, 4294901760
        %1871 = vmatpush.msra.mxu0 %v1870
        %v1872 = vand.u32 %v1493, 4294901760
        %1873 = vmatpush.msra.mxu0 %v1872
        %v1874 = vand.u32 %v1485, 4294901760
        %1875 = vmatpush.msra.mxu0 %v1874
        %v1876 = vand.u32 %v1477, 4294901760
        %1877 = vmatpush.msra.mxu0 %v1876
        %v1878 = vand.u32 %v1469, 4294901760
        %1879 = vmatpush.msra.mxu0 %v1878
        %v1880 = vand.u32 %v1461, 4294901760
        %1881 = vmatpush.msra.mxu0 %v1880
        %v1882 = vand.u32 %v1453, 4294901760
        %1883 = vmatpush.msra.mxu0 %v1882
        %v1884 = vand.u32 %v1445, 4294901760
        %1885 = vmatpush.msra.mxu0 %v1884
        %v1886 = vand.u32 %v1437, 4294901760
        %1887 = vmatpush.msra.mxu0 %v1886
        %v1888 = vand.u32 %v1429, 4294901760
        %1889 = vmatpush.msra.mxu0 %v1888
        %v1890 = vand.u32 %v1421, 4294901760
        %1891 = vmatpush.msra.mxu0 %v1890
        %v1892 = vand.u32 %v1413, 4294901760
        %1893 = vmatpush.msra.mxu0 %v1892
        %v1894 = vand.u32 %v1405, 4294901760
        %1895 = vmatpush.msra.mxu0 %v1894
        %v1896 = vand.u32 %v1397, 4294901760
        %1897 = vmatpush.msra.mxu0 %v1896
        %v1898 = vand.u32 %v1267, 4294901760
        %v1899 = vsub.f32 %v1267, %v1898
        %v1900 = vand.u32 %v1899, 4294901760
        %v1901 = vsub.f32 %v1899, %v1900
        %v1902 = vand.u32 %v1901, 4294901760
        %1903 = vmatmul.f32.gmra.mxu0 %v1902
        %v1904 = vpop.f32.mrf.mxu0
        %v1905 = vadd.f32 %v1864, %v1904
        %1906 = vdwg.mxu0
        %v1907 = vand.u32 %v1517, 4294901760
        %v1908 = vsub.f32 %v1517, %v1907
        %v1909 = vand.u32 %v1908, 4294901760
        %v1910 = vsub.f32 %v1908, %v1909
        %v1911 = vand.u32 %v1910, 4294901760
        %1912 = vmatpush.msra.mxu0 %v1911
        %v1913 = vand.u32 %v1509, 4294901760
        %v1914 = vsub.f32 %v1509, %v1913
        %v1915 = vand.u32 %v1914, 4294901760
        %v1916 = vsub.f32 %v1914, %v1915
        %v1917 = vand.u32 %v1916, 4294901760
        %1918 = vmatpush.msra.mxu0 %v1917
        %v1919 = vand.u32 %v1501, 4294901760
        %v1920 = vsub.f32 %v1501, %v1919
        %v1921 = vand.u32 %v1920, 4294901760
        %v1922 = vsub.f32 %v1920, %v1921
        %v1923 = vand.u32 %v1922, 4294901760
        %1924 = vmatpush.msra.mxu0 %v1923
        %v1925 = vand.u32 %v1493, 4294901760
        %v1926 = vsub.f32 %v1493, %v1925
        %v1927 = vand.u32 %v1926, 4294901760
        %v1928 = vsub.f32 %v1926, %v1927
        %v1929 = vand.u32 %v1928, 4294901760
        %1930 = vmatpush.msra.mxu0 %v1929
        %v1931 = vand.u32 %v1485, 4294901760
        %v1932 = vsub.f32 %v1485, %v1931
        %v1933 = vand.u32 %v1932, 4294901760
        %v1934 = vsub.f32 %v1932, %v1933
        %v1935 = vand.u32 %v1934, 4294901760
        %1936 = vmatpush.msra.mxu0 %v1935
        %v1937 = vand.u32 %v1477, 4294901760
        %v1938 = vsub.f32 %v1477, %v1937
        %v1939 = vand.u32 %v1938, 4294901760
        %v1940 = vsub.f32 %v1938, %v1939
        %v1941 = vand.u32 %v1940, 4294901760
        %1942 = vmatpush.msra.mxu0 %v1941
        %v1943 = vand.u32 %v1469, 4294901760
        %v1944 = vsub.f32 %v1469, %v1943
        %v1945 = vand.u32 %v1944, 4294901760
        %v1946 = vsub.f32 %v1944, %v1945
        %v1947 = vand.u32 %v1946, 4294901760
        %1948 = vmatpush.msra.mxu0 %v1947
        %v1949 = vand.u32 %v1461, 4294901760
        %v1950 = vsub.f32 %v1461, %v1949
        %v1951 = vand.u32 %v1950, 4294901760
        %v1952 = vsub.f32 %v1950, %v1951
        %v1953 = vand.u32 %v1952, 4294901760
        %1954 = vmatpush.msra.mxu0 %v1953
        %v1955 = vand.u32 %v1453, 4294901760
        %v1956 = vsub.f32 %v1453, %v1955
        %v1957 = vand.u32 %v1956, 4294901760
        %v1958 = vsub.f32 %v1956, %v1957
        %v1959 = vand.u32 %v1958, 4294901760
        %1960 = vmatpush.msra.mxu0 %v1959
        %v1961 = vand.u32 %v1445, 4294901760
        %v1962 = vsub.f32 %v1445, %v1961
        %v1963 = vand.u32 %v1962, 4294901760
        %v1964 = vsub.f32 %v1962, %v1963
        %v1965 = vand.u32 %v1964, 4294901760
        %1966 = vmatpush.msra.mxu0 %v1965
        %v1967 = vand.u32 %v1437, 4294901760
        %v1968 = vsub.f32 %v1437, %v1967
        %v1969 = vand.u32 %v1968, 4294901760
        %v1970 = vsub.f32 %v1968, %v1969
        %v1971 = vand.u32 %v1970, 4294901760
        %1972 = vmatpush.msra.mxu0 %v1971
        %v1973 = vand.u32 %v1429, 4294901760
        %v1974 = vsub.f32 %v1429, %v1973
        %v1975 = vand.u32 %v1974, 4294901760
        %v1976 = vsub.f32 %v1974, %v1975
        %v1977 = vand.u32 %v1976, 4294901760
        %1978 = vmatpush.msra.mxu0 %v1977
        %v1979 = vand.u32 %v1421, 4294901760
        %v1980 = vsub.f32 %v1421, %v1979
        %v1981 = vand.u32 %v1980, 4294901760
        %v1982 = vsub.f32 %v1980, %v1981
        %v1983 = vand.u32 %v1982, 4294901760
        %1984 = vmatpush.msra.mxu0 %v1983
        %v1985 = vand.u32 %v1413, 4294901760
        %v1986 = vsub.f32 %v1413, %v1985
        %v1987 = vand.u32 %v1986, 4294901760
        %v1988 = vsub.f32 %v1986, %v1987
        %v1989 = vand.u32 %v1988, 4294901760
        %1990 = vmatpush.msra.mxu0 %v1989
        %v1991 = vand.u32 %v1405, 4294901760
        %v1992 = vsub.f32 %v1405, %v1991
        %v1993 = vand.u32 %v1992, 4294901760
        %v1994 = vsub.f32 %v1992, %v1993
        %v1995 = vand.u32 %v1994, 4294901760
        %1996 = vmatpush.msra.mxu0 %v1995
        %v1997 = vand.u32 %v1397, 4294901760
        %v1998 = vsub.f32 %v1397, %v1997
        %v1999 = vand.u32 %v1998, 4294901760
        %v2000 = vsub.f32 %v1998, %v1999
        %v2001 = vand.u32 %v2000, 4294901760
        %2002 = vmatpush.msra.mxu0 %v2001
        %v2003 = vand.u32 %v1267, 4294901760
        %2004 = vmatmul.f32.gmra.mxu0 %v2003
        %v2005 = vpop.f32.mrf.mxu0
        %v2006 = vadd.f32 %v1905, %v2005
        %2007 = vdwg.mxu0
        %v2008 = vand.u32 %v1517, 4294901760
        %v2009 = vsub.f32 %v1517, %v2008
        %2010 = vmatpush.msra.mxu0 %v2009
        %v2011 = vand.u32 %v1509, 4294901760
        %v2012 = vsub.f32 %v1509, %v2011
        %2013 = vmatpush.msra.mxu0 %v2012
        %v2014 = vand.u32 %v1501, 4294901760
        %v2015 = vsub.f32 %v1501, %v2014
        %2016 = vmatpush.msra.mxu0 %v2015
        %v2017 = vand.u32 %v1493, 4294901760
        %v2018 = vsub.f32 %v1493, %v2017
        %2019 = vmatpush.msra.mxu0 %v2018
        %v2020 = vand.u32 %v1485, 4294901760
        %v2021 = vsub.f32 %v1485, %v2020
        %2022 = vmatpush.msra.mxu0 %v2021
        %v2023 = vand.u32 %v1477, 4294901760
        %v2024 = vsub.f32 %v1477, %v2023
        %2025 = vmatpush.msra.mxu0 %v2024
        %v2026 = vand.u32 %v1469, 4294901760
        %v2027 = vsub.f32 %v1469, %v2026
        %2028 = vmatpush.msra.mxu0 %v2027
        %v2029 = vand.u32 %v1461, 4294901760
        %v2030 = vsub.f32 %v1461, %v2029
        %2031 = vmatpush.msra.mxu0 %v2030
        %v2032 = vand.u32 %v1453, 4294901760
        %v2033 = vsub.f32 %v1453, %v2032
        %2034 = vmatpush.msra.mxu0 %v2033
        %v2035 = vand.u32 %v1445, 4294901760
        %v2036 = vsub.f32 %v1445, %v2035
        %2037 = vmatpush.msra.mxu0 %v2036
        %v2038 = vand.u32 %v1437, 4294901760
        %v2039 = vsub.f32 %v1437, %v2038
        %2040 = vmatpush.msra.mxu0 %v2039
        %v2041 = vand.u32 %v1429, 4294901760
        %v2042 = vsub.f32 %v1429, %v2041
        %2043 = vmatpush.msra.mxu0 %v2042
        %v2044 = vand.u32 %v1421, 4294901760
        %v2045 = vsub.f32 %v1421, %v2044
        %2046 = vmatpush.msra.mxu0 %v2045
        %v2047 = vand.u32 %v1413, 4294901760
        %v2048 = vsub.f32 %v1413, %v2047
        %2049 = vmatpush.msra.mxu0 %v2048
        %v2050 = vand.u32 %v1405, 4294901760
        %v2051 = vsub.f32 %v1405, %v2050
        %2052 = vmatpush.msra.mxu0 %v2051
        %v2053 = vand.u32 %v1397, 4294901760
        %v2054 = vsub.f32 %v1397, %v2053
        %2055 = vmatpush.msra.mxu0 %v2054
        %v2056 = vand.u32 %v1267, 4294901760
        %v2057 = vsub.f32 %v1267, %v2056
        %2058 = vmatmul.f32.gmra.mxu0 %v2057
        %v2059 = vpop.f32.mrf.mxu0
        %v2060 = vadd.f32 %v2006, %v2059
        %2061 = vdwg.mxu0
        %v2062 = vand.u32 %v1517, 4294901760
        %2063 = vmatpush.msra.mxu0 %v2062
        %v2064 = vand.u32 %v1509, 4294901760
        %2065 = vmatpush.msra.mxu0 %v2064
        %v2066 = vand.u32 %v1501, 4294901760
        %2067 = vmatpush.msra.mxu0 %v2066
        %v2068 = vand.u32 %v1493, 4294901760
        %2069 = vmatpush.msra.mxu0 %v2068
        %v2070 = vand.u32 %v1485, 4294901760
        %2071 = vmatpush.msra.mxu0 %v2070
        %v2072 = vand.u32 %v1477, 4294901760
        %2073 = vmatpush.msra.mxu0 %v2072
        %v2074 = vand.u32 %v1469, 4294901760
        %2075 = vmatpush.msra.mxu0 %v2074
        %v2076 = vand.u32 %v1461, 4294901760
        %2077 = vmatpush.msra.mxu0 %v2076
        %v2078 = vand.u32 %v1453, 4294901760
        %2079 = vmatpush.msra.mxu0 %v2078
        %v2080 = vand.u32 %v1445, 4294901760
        %2081 = vmatpush.msra.mxu0 %v2080
        %v2082 = vand.u32 %v1437, 4294901760
        %2083 = vmatpush.msra.mxu0 %v2082
        %v2084 = vand.u32 %v1429, 4294901760
        %2085 = vmatpush.msra.mxu0 %v2084
        %v2086 = vand.u32 %v1421, 4294901760
        %2087 = vmatpush.msra.mxu0 %v2086
        %v2088 = vand.u32 %v1413, 4294901760
        %2089 = vmatpush.msra.mxu0 %v2088
        %v2090 = vand.u32 %v1405, 4294901760
        %2091 = vmatpush.msra.mxu0 %v2090
        %v2092 = vand.u32 %v1397, 4294901760
        %2093 = vmatpush.msra.mxu0 %v2092
        %v2094 = vand.u32 %v1267, 4294901760
        %v2095 = vsub.f32 %v1267, %v2094
        %v2096 = vand.u32 %v2095, 4294901760
        %2097 = vmatmul.f32.gmra.mxu0 %v2096
        %v2098 = vpop.f32.mrf.mxu0
        %v2099 = vadd.f32 %v2060, %v2098
        %2100 = vdwg.mxu0
        %v2101 = vand.u32 %v1517, 4294901760
        %v2102 = vsub.f32 %v1517, %v2101
        %v2103 = vand.u32 %v2102, 4294901760
        %2104 = vmatpush.msra.mxu0 %v2103
        %v2105 = vand.u32 %v1509, 4294901760
        %v2106 = vsub.f32 %v1509, %v2105
        %v2107 = vand.u32 %v2106, 4294901760
        %2108 = vmatpush.msra.mxu0 %v2107
        %v2109 = vand.u32 %v1501, 4294901760
        %v2110 = vsub.f32 %v1501, %v2109
        %v2111 = vand.u32 %v2110, 4294901760
        %2112 = vmatpush.msra.mxu0 %v2111
        %v2113 = vand.u32 %v1493, 4294901760
        %v2114 = vsub.f32 %v1493, %v2113
        %v2115 = vand.u32 %v2114, 4294901760
        %2116 = vmatpush.msra.mxu0 %v2115
        %v2117 = vand.u32 %v1485, 4294901760
        %v2118 = vsub.f32 %v1485, %v2117
        %v2119 = vand.u32 %v2118, 4294901760
        %2120 = vmatpush.msra.mxu0 %v2119
        %v2121 = vand.u32 %v1477, 4294901760
        %v2122 = vsub.f32 %v1477, %v2121
        %v2123 = vand.u32 %v2122, 4294901760
        %2124 = vmatpush.msra.mxu0 %v2123
        %v2125 = vand.u32 %v1469, 4294901760
        %v2126 = vsub.f32 %v1469, %v2125
        %v2127 = vand.u32 %v2126, 4294901760
        %2128 = vmatpush.msra.mxu0 %v2127
        %v2129 = vand.u32 %v1461, 4294901760
        %v2130 = vsub.f32 %v1461, %v2129
        %v2131 = vand.u32 %v2130, 4294901760
        %2132 = vmatpush.msra.mxu0 %v2131
        %v2133 = vand.u32 %v1453, 4294901760
        %v2134 = vsub.f32 %v1453, %v2133
        %v2135 = vand.u32 %v2134, 4294901760
        %2136 = vmatpush.msra.mxu0 %v2135
        %v2137 = vand.u32 %v1445, 4294901760
        %v2138 = vsub.f32 %v1445, %v2137
        %v2139 = vand.u32 %v2138, 4294901760
        %2140 = vmatpush.msra.mxu0 %v2139
        %v2141 = vand.u32 %v1437, 4294901760
        %v2142 = vsub.f32 %v1437, %v2141
        %v2143 = vand.u32 %v2142, 4294901760
        %2144 = vmatpush.msra.mxu0 %v2143
        %v2145 = vand.u32 %v1429, 4294901760
        %v2146 = vsub.f32 %v1429, %v2145
        %v2147 = vand.u32 %v2146, 4294901760
        %2148 = vmatpush.msra.mxu0 %v2147
        %v2149 = vand.u32 %v1421, 4294901760
        %v2150 = vsub.f32 %v1421, %v2149
        %v2151 = vand.u32 %v2150, 4294901760
        %2152 = vmatpush.msra.mxu0 %v2151
        %v2153 = vand.u32 %v1413, 4294901760
        %v2154 = vsub.f32 %v1413, %v2153
        %v2155 = vand.u32 %v2154, 4294901760
        %2156 = vmatpush.msra.mxu0 %v2155
        %v2157 = vand.u32 %v1405, 4294901760
        %v2158 = vsub.f32 %v1405, %v2157
        %v2159 = vand.u32 %v2158, 4294901760
        %2160 = vmatpush.msra.mxu0 %v2159
        %v2161 = vand.u32 %v1397, 4294901760
        %v2162 = vsub.f32 %v1397, %v2161
        %v2163 = vand.u32 %v2162, 4294901760
        %2164 = vmatpush.msra.mxu0 %v2163
        %v2165 = vand.u32 %v1267, 4294901760
        %2166 = vmatmul.f32.gmra.mxu0 %v2165
        %v2167 = vpop.f32.mrf.mxu0
        %v2168 = vadd.f32 %v2099, %v2167
        %2169 = vdwg.mxu0
        %v2170 = vand.u32 %v1517, 4294901760
        %2171 = vmatpush.msra.mxu0 %v2170
        %v2172 = vand.u32 %v1509, 4294901760
        %2173 = vmatpush.msra.mxu0 %v2172
        %v2174 = vand.u32 %v1501, 4294901760
        %2175 = vmatpush.msra.mxu0 %v2174
        %v2176 = vand.u32 %v1493, 4294901760
        %2177 = vmatpush.msra.mxu0 %v2176
        %v2178 = vand.u32 %v1485, 4294901760
        %2179 = vmatpush.msra.mxu0 %v2178
        %v2180 = vand.u32 %v1477, 4294901760
        %2181 = vmatpush.msra.mxu0 %v2180
        %v2182 = vand.u32 %v1469, 4294901760
        %2183 = vmatpush.msra.mxu0 %v2182
        %v2184 = vand.u32 %v1461, 4294901760
        %2185 = vmatpush.msra.mxu0 %v2184
        %v2186 = vand.u32 %v1453, 4294901760
        %2187 = vmatpush.msra.mxu0 %v2186
        %v2188 = vand.u32 %v1445, 4294901760
        %2189 = vmatpush.msra.mxu0 %v2188
        %v2190 = vand.u32 %v1437, 4294901760
        %2191 = vmatpush.msra.mxu0 %v2190
        %v2192 = vand.u32 %v1429, 4294901760
        %2193 = vmatpush.msra.mxu0 %v2192
        %v2194 = vand.u32 %v1421, 4294901760
        %2195 = vmatpush.msra.mxu0 %v2194
        %v2196 = vand.u32 %v1413, 4294901760
        %2197 = vmatpush.msra.mxu0 %v2196
        %v2198 = vand.u32 %v1405, 4294901760
        %2199 = vmatpush.msra.mxu0 %v2198
        %v2200 = vand.u32 %v1397, 4294901760
        %2201 = vmatpush.msra.mxu0 %v2200
        %v2202 = vand.u32 %v1267, 4294901760
        %2203 = vmatmul.f32.gmra.mxu0 %v2202
        %v2204 = vpop.f32.mrf.mxu0
        %v2205 = vadd.f32 %v2168, %v2204
        %2206 = vdwg.mxu0
        %v2207 = vand.u32 %v1390, 4294901760
        %2208 = vmatpush.msra.mxu0 %v2207
        %v2209 = vand.u32 %v1382, 4294901760
        %2210 = vmatpush.msra.mxu0 %v2209
        %v2211 = vand.u32 %v1374, 4294901760
        %2212 = vmatpush.msra.mxu0 %v2211
        %v2213 = vand.u32 %v1366, 4294901760
        %2214 = vmatpush.msra.mxu0 %v2213
        %v2215 = vand.u32 %v1358, 4294901760
        %2216 = vmatpush.msra.mxu0 %v2215
        %v2217 = vand.u32 %v1350, 4294901760
        %2218 = vmatpush.msra.mxu0 %v2217
        %v2219 = vand.u32 %v1342, 4294901760
        %2220 = vmatpush.msra.mxu0 %v2219
        %v2221 = vand.u32 %v1334, 4294901760
        %2222 = vmatpush.msra.mxu0 %v2221
        %v2223 = vand.u32 %v1326, 4294901760
        %2224 = vmatpush.msra.mxu0 %v2223
        %v2225 = vand.u32 %v1318, 4294901760
        %2226 = vmatpush.msra.mxu0 %v2225
        %v2227 = vand.u32 %v1310, 4294901760
        %2228 = vmatpush.msra.mxu0 %v2227
        %v2229 = vand.u32 %v1302, 4294901760
        %2230 = vmatpush.msra.mxu0 %v2229
        %v2231 = vand.u32 %v1294, 4294901760
        %2232 = vmatpush.msra.mxu0 %v2231
        %v2233 = vand.u32 %v1286, 4294901760
        %2234 = vmatpush.msra.mxu0 %v2233
        %v2235 = vand.u32 %v1278, 4294901760
        %2236 = vmatpush.msra.mxu0 %v2235
        %v2237 = vand.u32 %v1270, 4294901760
        %2238 = vmatpush.msra.mxu0 %v2237
        %v2239 = vand.u32 %v767, 4294901760
        %v2240 = vsub.f32 %v767, %v2239
        %v2241 = vand.u32 %v2240, 4294901760
        %v2242 = vsub.f32 %v2240, %v2241
        %v2243 = vand.u32 %v2242, 4294901760
        %2244 = vmatmul.f32.gmra.mxu0 %v2243
        %v2245 = vpop.f32.mrf.mxu0
        %v2246 = vadd.f32 0.0, %v2245
        %2247 = vdwg.mxu0
        %v2248 = vand.u32 %v1390, 4294901760
        %v2249 = vsub.f32 %v1390, %v2248
        %v2250 = vand.u32 %v2249, 4294901760
        %v2251 = vsub.f32 %v2249, %v2250
        %v2252 = vand.u32 %v2251, 4294901760
        %2253 = vmatpush.msra.mxu0 %v2252
        %v2254 = vand.u32 %v1382, 4294901760
        %v2255 = vsub.f32 %v1382, %v2254
        %v2256 = vand.u32 %v2255, 4294901760
        %v2257 = vsub.f32 %v2255, %v2256
        %v2258 = vand.u32 %v2257, 4294901760
        %2259 = vmatpush.msra.mxu0 %v2258
        %v2260 = vand.u32 %v1374, 4294901760
        %v2261 = vsub.f32 %v1374, %v2260
        %v2262 = vand.u32 %v2261, 4294901760
        %v2263 = vsub.f32 %v2261, %v2262
        %v2264 = vand.u32 %v2263, 4294901760
        %2265 = vmatpush.msra.mxu0 %v2264
        %v2266 = vand.u32 %v1366, 4294901760
        %v2267 = vsub.f32 %v1366, %v2266
        %v2268 = vand.u32 %v2267, 4294901760
        %v2269 = vsub.f32 %v2267, %v2268
        %v2270 = vand.u32 %v2269, 4294901760
        %2271 = vmatpush.msra.mxu0 %v2270
        %v2272 = vand.u32 %v1358, 4294901760
        %v2273 = vsub.f32 %v1358, %v2272
        %v2274 = vand.u32 %v2273, 4294901760
        %v2275 = vsub.f32 %v2273, %v2274
        %v2276 = vand.u32 %v2275, 4294901760
        %2277 = vmatpush.msra.mxu0 %v2276
        %v2278 = vand.u32 %v1350, 4294901760
        %v2279 = vsub.f32 %v1350, %v2278
        %v2280 = vand.u32 %v2279, 4294901760
        %v2281 = vsub.f32 %v2279, %v2280
        %v2282 = vand.u32 %v2281, 4294901760
        %2283 = vmatpush.msra.mxu0 %v2282
        %v2284 = vand.u32 %v1342, 4294901760
        %v2285 = vsub.f32 %v1342, %v2284
        %v2286 = vand.u32 %v2285, 4294901760
        %v2287 = vsub.f32 %v2285, %v2286
        %v2288 = vand.u32 %v2287, 4294901760
        %2289 = vmatpush.msra.mxu0 %v2288
        %v2290 = vand.u32 %v1334, 4294901760
        %v2291 = vsub.f32 %v1334, %v2290
        %v2292 = vand.u32 %v2291, 4294901760
        %v2293 = vsub.f32 %v2291, %v2292
        %v2294 = vand.u32 %v2293, 4294901760
        %2295 = vmatpush.msra.mxu0 %v2294
        %v2296 = vand.u32 %v1326, 4294901760
        %v2297 = vsub.f32 %v1326, %v2296
        %v2298 = vand.u32 %v2297, 4294901760
        %v2299 = vsub.f32 %v2297, %v2298
        %v2300 = vand.u32 %v2299, 4294901760
        %2301 = vmatpush.msra.mxu0 %v2300
        %v2302 = vand.u32 %v1318, 4294901760
        %v2303 = vsub.f32 %v1318, %v2302
        %v2304 = vand.u32 %v2303, 4294901760
        %v2305 = vsub.f32 %v2303, %v2304
        %v2306 = vand.u32 %v2305, 4294901760
        %2307 = vmatpush.msra.mxu0 %v2306
        %v2308 = vand.u32 %v1310, 4294901760
        %v2309 = vsub.f32 %v1310, %v2308
        %v2310 = vand.u32 %v2309, 4294901760
        %v2311 = vsub.f32 %v2309, %v2310
        %v2312 = vand.u32 %v2311, 4294901760
        %2313 = vmatpush.msra.mxu0 %v2312
        %v2314 = vand.u32 %v1302, 4294901760
        %v2315 = vsub.f32 %v1302, %v2314
        %v2316 = vand.u32 %v2315, 4294901760
        %v2317 = vsub.f32 %v2315, %v2316
        %v2318 = vand.u32 %v2317, 4294901760
        %2319 = vmatpush.msra.mxu0 %v2318
        %v2320 = vand.u32 %v1294, 4294901760
        %v2321 = vsub.f32 %v1294, %v2320
        %v2322 = vand.u32 %v2321, 4294901760
        %v2323 = vsub.f32 %v2321, %v2322
        %v2324 = vand.u32 %v2323, 4294901760
        %2325 = vmatpush.msra.mxu0 %v2324
        %v2326 = vand.u32 %v1286, 4294901760
        %v2327 = vsub.f32 %v1286, %v2326
        %v2328 = vand.u32 %v2327, 4294901760
        %v2329 = vsub.f32 %v2327, %v2328
        %v2330 = vand.u32 %v2329, 4294901760
        %2331 = vmatpush.msra.mxu0 %v2330
        %v2332 = vand.u32 %v1278, 4294901760
        %v2333 = vsub.f32 %v1278, %v2332
        %v2334 = vand.u32 %v2333, 4294901760
        %v2335 = vsub.f32 %v2333, %v2334
        %v2336 = vand.u32 %v2335, 4294901760
        %2337 = vmatpush.msra.mxu0 %v2336
        %v2338 = vand.u32 %v1270, 4294901760
        %v2339 = vsub.f32 %v1270, %v2338
        %v2340 = vand.u32 %v2339, 4294901760
        %v2341 = vsub.f32 %v2339, %v2340
        %v2342 = vand.u32 %v2341, 4294901760
        %2343 = vmatpush.msra.mxu0 %v2342
        %v2344 = vand.u32 %v767, 4294901760
        %2345 = vmatmul.f32.gmra.mxu0 %v2344
        %v2346 = vpop.f32.mrf.mxu0
        %v2347 = vadd.f32 %v2246, %v2346
        %2348 = vdwg.mxu0
        %v2349 = vand.u32 %v1390, 4294901760
        %v2350 = vsub.f32 %v1390, %v2349
        %2351 = vmatpush.msra.mxu0 %v2350
        %v2352 = vand.u32 %v1382, 4294901760
        %v2353 = vsub.f32 %v1382, %v2352
        %2354 = vmatpush.msra.mxu0 %v2353
        %v2355 = vand.u32 %v1374, 4294901760
        %v2356 = vsub.f32 %v1374, %v2355
        %2357 = vmatpush.msra.mxu0 %v2356
        %v2358 = vand.u32 %v1366, 4294901760
        %v2359 = vsub.f32 %v1366, %v2358
        %2360 = vmatpush.msra.mxu0 %v2359
        %v2361 = vand.u32 %v1358, 4294901760
        %v2362 = vsub.f32 %v1358, %v2361
        %2363 = vmatpush.msra.mxu0 %v2362
        %v2364 = vand.u32 %v1350, 4294901760
        %v2365 = vsub.f32 %v1350, %v2364
        %2366 = vmatpush.msra.mxu0 %v2365
        %v2367 = vand.u32 %v1342, 4294901760
        %v2368 = vsub.f32 %v1342, %v2367
        %2369 = vmatpush.msra.mxu0 %v2368
        %v2370 = vand.u32 %v1334, 4294901760
        %v2371 = vsub.f32 %v1334, %v2370
        %2372 = vmatpush.msra.mxu0 %v2371
        %v2373 = vand.u32 %v1326, 4294901760
        %v2374 = vsub.f32 %v1326, %v2373
        %2375 = vmatpush.msra.mxu0 %v2374
        %v2376 = vand.u32 %v1318, 4294901760
        %v2377 = vsub.f32 %v1318, %v2376
        %2378 = vmatpush.msra.mxu0 %v2377
        %v2379 = vand.u32 %v1310, 4294901760
        %v2380 = vsub.f32 %v1310, %v2379
        %2381 = vmatpush.msra.mxu0 %v2380
        %v2382 = vand.u32 %v1302, 4294901760
        %v2383 = vsub.f32 %v1302, %v2382
        %2384 = vmatpush.msra.mxu0 %v2383
        %v2385 = vand.u32 %v1294, 4294901760
        %v2386 = vsub.f32 %v1294, %v2385
        %2387 = vmatpush.msra.mxu0 %v2386
        %v2388 = vand.u32 %v1286, 4294901760
        %v2389 = vsub.f32 %v1286, %v2388
        %2390 = vmatpush.msra.mxu0 %v2389
        %v2391 = vand.u32 %v1278, 4294901760
        %v2392 = vsub.f32 %v1278, %v2391
        %2393 = vmatpush.msra.mxu0 %v2392
        %v2394 = vand.u32 %v1270, 4294901760
        %v2395 = vsub.f32 %v1270, %v2394
        %2396 = vmatpush.msra.mxu0 %v2395
        %v2397 = vand.u32 %v767, 4294901760
        %v2398 = vsub.f32 %v767, %v2397
        %2399 = vmatmul.f32.gmra.mxu0 %v2398
        %v2400 = vpop.f32.mrf.mxu0
        %v2401 = vadd.f32 %v2347, %v2400
        %2402 = vdwg.mxu0
        %v2403 = vand.u32 %v1390, 4294901760
        %2404 = vmatpush.msra.mxu0 %v2403
        %v2405 = vand.u32 %v1382, 4294901760
        %2406 = vmatpush.msra.mxu0 %v2405
        %v2407 = vand.u32 %v1374, 4294901760
        %2408 = vmatpush.msra.mxu0 %v2407
        %v2409 = vand.u32 %v1366, 4294901760
        %2410 = vmatpush.msra.mxu0 %v2409
        %v2411 = vand.u32 %v1358, 4294901760
        %2412 = vmatpush.msra.mxu0 %v2411
        %v2413 = vand.u32 %v1350, 4294901760
        %2414 = vmatpush.msra.mxu0 %v2413
        %v2415 = vand.u32 %v1342, 4294901760
        %2416 = vmatpush.msra.mxu0 %v2415
        %v2417 = vand.u32 %v1334, 4294901760
        %2418 = vmatpush.msra.mxu0 %v2417
        %v2419 = vand.u32 %v1326, 4294901760
        %2420 = vmatpush.msra.mxu0 %v2419
        %v2421 = vand.u32 %v1318, 4294901760
        %2422 = vmatpush.msra.mxu0 %v2421
        %v2423 = vand.u32 %v1310, 4294901760
        %2424 = vmatpush.msra.mxu0 %v2423
        %v2425 = vand.u32 %v1302, 4294901760
        %2426 = vmatpush.msra.mxu0 %v2425
        %v2427 = vand.u32 %v1294, 4294901760
        %2428 = vmatpush.msra.mxu0 %v2427
        %v2429 = vand.u32 %v1286, 4294901760
        %2430 = vmatpush.msra.mxu0 %v2429
        %v2431 = vand.u32 %v1278, 4294901760
        %2432 = vmatpush.msra.mxu0 %v2431
        %v2433 = vand.u32 %v1270, 4294901760
        %2434 = vmatpush.msra.mxu0 %v2433
        %v2435 = vand.u32 %v767, 4294901760
        %v2436 = vsub.f32 %v767, %v2435
        %v2437 = vand.u32 %v2436, 4294901760
        %2438 = vmatmul.f32.gmra.mxu0 %v2437
        %v2439 = vpop.f32.mrf.mxu0
        %v2440 = vadd.f32 %v2401, %v2439
        %2441 = vdwg.mxu0
        %v2442 = vand.u32 %v1390, 4294901760
        %v2443 = vsub.f32 %v1390, %v2442
        %v2444 = vand.u32 %v2443, 4294901760
        %2445 = vmatpush.msra.mxu0 %v2444
        %v2446 = vand.u32 %v1382, 4294901760
        %v2447 = vsub.f32 %v1382, %v2446
        %v2448 = vand.u32 %v2447, 4294901760
        %2449 = vmatpush.msra.mxu0 %v2448
        %v2450 = vand.u32 %v1374, 4294901760
        %v2451 = vsub.f32 %v1374, %v2450
        %v2452 = vand.u32 %v2451, 4294901760
        %2453 = vmatpush.msra.mxu0 %v2452
        %v2454 = vand.u32 %v1366, 4294901760
        %v2455 = vsub.f32 %v1366, %v2454
        %v2456 = vand.u32 %v2455, 4294901760
        %2457 = vmatpush.msra.mxu0 %v2456
        %v2458 = vand.u32 %v1358, 4294901760
        %v2459 = vsub.f32 %v1358, %v2458
        %v2460 = vand.u32 %v2459, 4294901760
        %2461 = vmatpush.msra.mxu0 %v2460
        %v2462 = vand.u32 %v1350, 4294901760
        %v2463 = vsub.f32 %v1350, %v2462
        %v2464 = vand.u32 %v2463, 4294901760
        %2465 = vmatpush.msra.mxu0 %v2464
        %v2466 = vand.u32 %v1342, 4294901760
        %v2467 = vsub.f32 %v1342, %v2466
        %v2468 = vand.u32 %v2467, 4294901760
        %2469 = vmatpush.msra.mxu0 %v2468
        %v2470 = vand.u32 %v1334, 4294901760
        %v2471 = vsub.f32 %v1334, %v2470
        %v2472 = vand.u32 %v2471, 4294901760
        %2473 = vmatpush.msra.mxu0 %v2472
        %v2474 = vand.u32 %v1326, 4294901760
        %v2475 = vsub.f32 %v1326, %v2474
        %v2476 = vand.u32 %v2475, 4294901760
        %2477 = vmatpush.msra.mxu0 %v2476
        %v2478 = vand.u32 %v1318, 4294901760
        %v2479 = vsub.f32 %v1318, %v2478
        %v2480 = vand.u32 %v2479, 4294901760
        %2481 = vmatpush.msra.mxu0 %v2480
        %v2482 = vand.u32 %v1310, 4294901760
        %v2483 = vsub.f32 %v1310, %v2482
        %v2484 = vand.u32 %v2483, 4294901760
        %2485 = vmatpush.msra.mxu0 %v2484
        %v2486 = vand.u32 %v1302, 4294901760
        %v2487 = vsub.f32 %v1302, %v2486
        %v2488 = vand.u32 %v2487, 4294901760
        %2489 = vmatpush.msra.mxu0 %v2488
        %v2490 = vand.u32 %v1294, 4294901760
        %v2491 = vsub.f32 %v1294, %v2490
        %v2492 = vand.u32 %v2491, 4294901760
        %2493 = vmatpush.msra.mxu0 %v2492
        %v2494 = vand.u32 %v1286, 4294901760
        %v2495 = vsub.f32 %v1286, %v2494
        %v2496 = vand.u32 %v2495, 4294901760
        %2497 = vmatpush.msra.mxu0 %v2496
        %v2498 = vand.u32 %v1278, 4294901760
        %v2499 = vsub.f32 %v1278, %v2498
        %v2500 = vand.u32 %v2499, 4294901760
        %2501 = vmatpush.msra.mxu0 %v2500
        %v2502 = vand.u32 %v1270, 4294901760
        %v2503 = vsub.f32 %v1270, %v2502
        %v2504 = vand.u32 %v2503, 4294901760
        %2505 = vmatpush.msra.mxu0 %v2504
        %v2506 = vand.u32 %v767, 4294901760
        %2507 = vmatmul.f32.gmra.mxu0 %v2506
        %v2508 = vpop.f32.mrf.mxu0
        %v2509 = vadd.f32 %v2440, %v2508
        %2510 = vdwg.mxu0
        %v2511 = vand.u32 %v1390, 4294901760
        %2512 = vmatpush.msra.mxu0 %v2511
        %v2513 = vand.u32 %v1382, 4294901760
        %2514 = vmatpush.msra.mxu0 %v2513
        %v2515 = vand.u32 %v1374, 4294901760
        %2516 = vmatpush.msra.mxu0 %v2515
        %v2517 = vand.u32 %v1366, 4294901760
        %2518 = vmatpush.msra.mxu0 %v2517
        %v2519 = vand.u32 %v1358, 4294901760
        %2520 = vmatpush.msra.mxu0 %v2519
        %v2521 = vand.u32 %v1350, 4294901760
        %2522 = vmatpush.msra.mxu0 %v2521
        %v2523 = vand.u32 %v1342, 4294901760
        %2524 = vmatpush.msra.mxu0 %v2523
        %v2525 = vand.u32 %v1334, 4294901760
        %2526 = vmatpush.msra.mxu0 %v2525
        %v2527 = vand.u32 %v1326, 4294901760
        %2528 = vmatpush.msra.mxu0 %v2527
        %v2529 = vand.u32 %v1318, 4294901760
        %2530 = vmatpush.msra.mxu0 %v2529
        %v2531 = vand.u32 %v1310, 4294901760
        %2532 = vmatpush.msra.mxu0 %v2531
        %v2533 = vand.u32 %v1302, 4294901760
        %2534 = vmatpush.msra.mxu0 %v2533
        %v2535 = vand.u32 %v1294, 4294901760
        %2536 = vmatpush.msra.mxu0 %v2535
        %v2537 = vand.u32 %v1286, 4294901760
        %2538 = vmatpush.msra.mxu0 %v2537
        %v2539 = vand.u32 %v1278, 4294901760
        %2540 = vmatpush.msra.mxu0 %v2539
        %v2541 = vand.u32 %v1270, 4294901760
        %2542 = vmatpush.msra.mxu0 %v2541
        %v2543 = vand.u32 %v767, 4294901760
        %2544 = vmatmul.f32.gmra.mxu0 %v2543
        %v2545 = vpop.f32.mrf.mxu0
        %v2546 = vadd.f32 %v2509, %v2545
        %2547 = vdwg.mxu0
        %v2548 = vand.u32 %v1518, 4294901760
        %2549 = vmatpush.msra.mxu0 %v2548
        %v2550 = vand.u32 %v1510, 4294901760
        %2551 = vmatpush.msra.mxu0 %v2550
        %v2552 = vand.u32 %v1502, 4294901760
        %2553 = vmatpush.msra.mxu0 %v2552
        %v2554 = vand.u32 %v1494, 4294901760
        %2555 = vmatpush.msra.mxu0 %v2554
        %v2556 = vand.u32 %v1486, 4294901760
        %2557 = vmatpush.msra.mxu0 %v2556
        %v2558 = vand.u32 %v1478, 4294901760
        %2559 = vmatpush.msra.mxu0 %v2558
        %v2560 = vand.u32 %v1470, 4294901760
        %2561 = vmatpush.msra.mxu0 %v2560
        %v2562 = vand.u32 %v1462, 4294901760
        %2563 = vmatpush.msra.mxu0 %v2562
        %v2564 = vand.u32 %v1454, 4294901760
        %2565 = vmatpush.msra.mxu0 %v2564
        %v2566 = vand.u32 %v1446, 4294901760
        %2567 = vmatpush.msra.mxu0 %v2566
        %v2568 = vand.u32 %v1438, 4294901760
        %2569 = vmatpush.msra.mxu0 %v2568
        %v2570 = vand.u32 %v1430, 4294901760
        %2571 = vmatpush.msra.mxu0 %v2570
        %v2572 = vand.u32 %v1422, 4294901760
        %2573 = vmatpush.msra.mxu0 %v2572
        %v2574 = vand.u32 %v1414, 4294901760
        %2575 = vmatpush.msra.mxu0 %v2574
        %v2576 = vand.u32 %v1406, 4294901760
        %2577 = vmatpush.msra.mxu0 %v2576
        %v2578 = vand.u32 %v1398, 4294901760
        %2579 = vmatpush.msra.mxu0 %v2578
        %v2580 = vand.u32 %v1267, 4294901760
        %v2581 = vsub.f32 %v1267, %v2580
        %v2582 = vand.u32 %v2581, 4294901760
        %v2583 = vsub.f32 %v2581, %v2582
        %v2584 = vand.u32 %v2583, 4294901760
        %2585 = vmatmul.f32.gmra.mxu0 %v2584
        %v2586 = vpop.f32.mrf.mxu0
        %v2587 = vadd.f32 %v2546, %v2586
        %2588 = vdwg.mxu0
        %v2589 = vand.u32 %v1518, 4294901760
        %v2590 = vsub.f32 %v1518, %v2589
        %v2591 = vand.u32 %v2590, 4294901760
        %v2592 = vsub.f32 %v2590, %v2591
        %v2593 = vand.u32 %v2592, 4294901760
        %2594 = vmatpush.msra.mxu0 %v2593
        %v2595 = vand.u32 %v1510, 4294901760
        %v2596 = vsub.f32 %v1510, %v2595
        %v2597 = vand.u32 %v2596, 4294901760
        %v2598 = vsub.f32 %v2596, %v2597
        %v2599 = vand.u32 %v2598, 4294901760
        %2600 = vmatpush.msra.mxu0 %v2599
        %v2601 = vand.u32 %v1502, 4294901760
        %v2602 = vsub.f32 %v1502, %v2601
        %v2603 = vand.u32 %v2602, 4294901760
        %v2604 = vsub.f32 %v2602, %v2603
        %v2605 = vand.u32 %v2604, 4294901760
        %2606 = vmatpush.msra.mxu0 %v2605
        %v2607 = vand.u32 %v1494, 4294901760
        %v2608 = vsub.f32 %v1494, %v2607
        %v2609 = vand.u32 %v2608, 4294901760
        %v2610 = vsub.f32 %v2608, %v2609
        %v2611 = vand.u32 %v2610, 4294901760
        %2612 = vmatpush.msra.mxu0 %v2611
        %v2613 = vand.u32 %v1486, 4294901760
        %v2614 = vsub.f32 %v1486, %v2613
        %v2615 = vand.u32 %v2614, 4294901760
        %v2616 = vsub.f32 %v2614, %v2615
        %v2617 = vand.u32 %v2616, 4294901760
        %2618 = vmatpush.msra.mxu0 %v2617
        %v2619 = vand.u32 %v1478, 4294901760
        %v2620 = vsub.f32 %v1478, %v2619
        %v2621 = vand.u32 %v2620, 4294901760
        %v2622 = vsub.f32 %v2620, %v2621
        %v2623 = vand.u32 %v2622, 4294901760
        %2624 = vmatpush.msra.mxu0 %v2623
        %v2625 = vand.u32 %v1470, 4294901760
        %v2626 = vsub.f32 %v1470, %v2625
        %v2627 = vand.u32 %v2626, 4294901760
        %v2628 = vsub.f32 %v2626, %v2627
        %v2629 = vand.u32 %v2628, 4294901760
        %2630 = vmatpush.msra.mxu0 %v2629
        %v2631 = vand.u32 %v1462, 4294901760
        %v2632 = vsub.f32 %v1462, %v2631
        %v2633 = vand.u32 %v2632, 4294901760
        %v2634 = vsub.f32 %v2632, %v2633
        %v2635 = vand.u32 %v2634, 4294901760
        %2636 = vmatpush.msra.mxu0 %v2635
        %v2637 = vand.u32 %v1454, 4294901760
        %v2638 = vsub.f32 %v1454, %v2637
        %v2639 = vand.u32 %v2638, 4294901760
        %v2640 = vsub.f32 %v2638, %v2639
        %v2641 = vand.u32 %v2640, 4294901760
        %2642 = vmatpush.msra.mxu0 %v2641
        %v2643 = vand.u32 %v1446, 4294901760
        %v2644 = vsub.f32 %v1446, %v2643
        %v2645 = vand.u32 %v2644, 4294901760
        %v2646 = vsub.f32 %v2644, %v2645
        %v2647 = vand.u32 %v2646, 4294901760
        %2648 = vmatpush.msra.mxu0 %v2647
        %v2649 = vand.u32 %v1438, 4294901760
        %v2650 = vsub.f32 %v1438, %v2649
        %v2651 = vand.u32 %v2650, 4294901760
        %v2652 = vsub.f32 %v2650, %v2651
        %v2653 = vand.u32 %v2652, 4294901760
        %2654 = vmatpush.msra.mxu0 %v2653
        %v2655 = vand.u32 %v1430, 4294901760
        %v2656 = vsub.f32 %v1430, %v2655
        %v2657 = vand.u32 %v2656, 4294901760
        %v2658 = vsub.f32 %v2656, %v2657
        %v2659 = vand.u32 %v2658, 4294901760
        %2660 = vmatpush.msra.mxu0 %v2659
        %v2661 = vand.u32 %v1422, 4294901760
        %v2662 = vsub.f32 %v1422, %v2661
        %v2663 = vand.u32 %v2662, 4294901760
        %v2664 = vsub.f32 %v2662, %v2663
        %v2665 = vand.u32 %v2664, 4294901760
        %2666 = vmatpush.msra.mxu0 %v2665
        %v2667 = vand.u32 %v1414, 4294901760
        %v2668 = vsub.f32 %v1414, %v2667
        %v2669 = vand.u32 %v2668, 4294901760
        %v2670 = vsub.f32 %v2668, %v2669
        %v2671 = vand.u32 %v2670, 4294901760
        %2672 = vmatpush.msra.mxu0 %v2671
        %v2673 = vand.u32 %v1406, 4294901760
        %v2674 = vsub.f32 %v1406, %v2673
        %v2675 = vand.u32 %v2674, 4294901760
        %v2676 = vsub.f32 %v2674, %v2675
        %v2677 = vand.u32 %v2676, 4294901760
        %2678 = vmatpush.msra.mxu0 %v2677
        %v2679 = vand.u32 %v1398, 4294901760
        %v2680 = vsub.f32 %v1398, %v2679
        %v2681 = vand.u32 %v2680, 4294901760
        %v2682 = vsub.f32 %v2680, %v2681
        %v2683 = vand.u32 %v2682, 4294901760
        %2684 = vmatpush.msra.mxu0 %v2683
        %v2685 = vand.u32 %v1267, 4294901760
        %2686 = vmatmul.f32.gmra.mxu0 %v2685
        %v2687 = vpop.f32.mrf.mxu0
        %v2688 = vadd.f32 %v2587, %v2687
        %2689 = vdwg.mxu0
        %v2690 = vand.u32 %v1518, 4294901760
        %v2691 = vsub.f32 %v1518, %v2690
        %2692 = vmatpush.msra.mxu0 %v2691
        %v2693 = vand.u32 %v1510, 4294901760
        %v2694 = vsub.f32 %v1510, %v2693
        %2695 = vmatpush.msra.mxu0 %v2694
        %v2696 = vand.u32 %v1502, 4294901760
        %v2697 = vsub.f32 %v1502, %v2696
        %2698 = vmatpush.msra.mxu0 %v2697
        %v2699 = vand.u32 %v1494, 4294901760
        %v2700 = vsub.f32 %v1494, %v2699
        %2701 = vmatpush.msra.mxu0 %v2700
        %v2702 = vand.u32 %v1486, 4294901760
        %v2703 = vsub.f32 %v1486, %v2702
        %2704 = vmatpush.msra.mxu0 %v2703
        %v2705 = vand.u32 %v1478, 4294901760
        %v2706 = vsub.f32 %v1478, %v2705
        %2707 = vmatpush.msra.mxu0 %v2706
        %v2708 = vand.u32 %v1470, 4294901760
        %v2709 = vsub.f32 %v1470, %v2708
        %2710 = vmatpush.msra.mxu0 %v2709
        %v2711 = vand.u32 %v1462, 4294901760
        %v2712 = vsub.f32 %v1462, %v2711
        %2713 = vmatpush.msra.mxu0 %v2712
        %v2714 = vand.u32 %v1454, 4294901760
        %v2715 = vsub.f32 %v1454, %v2714
        %2716 = vmatpush.msra.mxu0 %v2715
        %v2717 = vand.u32 %v1446, 4294901760
        %v2718 = vsub.f32 %v1446, %v2717
        %2719 = vmatpush.msra.mxu0 %v2718
        %v2720 = vand.u32 %v1438, 4294901760
        %v2721 = vsub.f32 %v1438, %v2720
        %2722 = vmatpush.msra.mxu0 %v2721
        %v2723 = vand.u32 %v1430, 4294901760
        %v2724 = vsub.f32 %v1430, %v2723
        %2725 = vmatpush.msra.mxu0 %v2724
        %v2726 = vand.u32 %v1422, 4294901760
        %v2727 = vsub.f32 %v1422, %v2726
        %2728 = vmatpush.msra.mxu0 %v2727
        %v2729 = vand.u32 %v1414, 4294901760
        %v2730 = vsub.f32 %v1414, %v2729
        %2731 = vmatpush.msra.mxu0 %v2730
        %v2732 = vand.u32 %v1406, 4294901760
        %v2733 = vsub.f32 %v1406, %v2732
        %2734 = vmatpush.msra.mxu0 %v2733
        %v2735 = vand.u32 %v1398, 4294901760
        %v2736 = vsub.f32 %v1398, %v2735
        %2737 = vmatpush.msra.mxu0 %v2736
        %v2738 = vand.u32 %v1267, 4294901760
        %v2739 = vsub.f32 %v1267, %v2738
        %2740 = vmatmul.f32.gmra.mxu0 %v2739
        %v2741 = vpop.f32.mrf.mxu0
        %v2742 = vadd.f32 %v2688, %v2741
        %2743 = vdwg.mxu0
        %v2744 = vand.u32 %v1518, 4294901760
        %2745 = vmatpush.msra.mxu0 %v2744
        %v2746 = vand.u32 %v1510, 4294901760
        %2747 = vmatpush.msra.mxu0 %v2746
        %v2748 = vand.u32 %v1502, 4294901760
        %2749 = vmatpush.msra.mxu0 %v2748
        %v2750 = vand.u32 %v1494, 4294901760
        %2751 = vmatpush.msra.mxu0 %v2750
        %v2752 = vand.u32 %v1486, 4294901760
        %2753 = vmatpush.msra.mxu0 %v2752
        %v2754 = vand.u32 %v1478, 4294901760
        %2755 = vmatpush.msra.mxu0 %v2754
        %v2756 = vand.u32 %v1470, 4294901760
        %2757 = vmatpush.msra.mxu0 %v2756
        %v2758 = vand.u32 %v1462, 4294901760
        %2759 = vmatpush.msra.mxu0 %v2758
        %v2760 = vand.u32 %v1454, 4294901760
        %2761 = vmatpush.msra.mxu0 %v2760
        %v2762 = vand.u32 %v1446, 4294901760
        %2763 = vmatpush.msra.mxu0 %v2762
        %v2764 = vand.u32 %v1438, 4294901760
        %2765 = vmatpush.msra.mxu0 %v2764
        %v2766 = vand.u32 %v1430, 4294901760
        %2767 = vmatpush.msra.mxu0 %v2766
        %v2768 = vand.u32 %v1422, 4294901760
        %2769 = vmatpush.msra.mxu0 %v2768
        %v2770 = vand.u32 %v1414, 4294901760
        %2771 = vmatpush.msra.mxu0 %v2770
        %v2772 = vand.u32 %v1406, 4294901760
        %2773 = vmatpush.msra.mxu0 %v2772
        %v2774 = vand.u32 %v1398, 4294901760
        %2775 = vmatpush.msra.mxu0 %v2774
        %v2776 = vand.u32 %v1267, 4294901760
        %v2777 = vsub.f32 %v1267, %v2776
        %v2778 = vand.u32 %v2777, 4294901760
        %2779 = vmatmul.f32.gmra.mxu0 %v2778
        %v2780 = vpop.f32.mrf.mxu0
        %v2781 = vadd.f32 %v2742, %v2780
        %2782 = vdwg.mxu0
        %v2783 = vand.u32 %v1518, 4294901760
        %v2784 = vsub.f32 %v1518, %v2783
        %v2785 = vand.u32 %v2784, 4294901760
        %2786 = vmatpush.msra.mxu0 %v2785
        %v2787 = vand.u32 %v1510, 4294901760
        %v2788 = vsub.f32 %v1510, %v2787
        %v2789 = vand.u32 %v2788, 4294901760
        %2790 = vmatpush.msra.mxu0 %v2789
        %v2791 = vand.u32 %v1502, 4294901760
        %v2792 = vsub.f32 %v1502, %v2791
        %v2793 = vand.u32 %v2792, 4294901760
        %2794 = vmatpush.msra.mxu0 %v2793
        %v2795 = vand.u32 %v1494, 4294901760
        %v2796 = vsub.f32 %v1494, %v2795
        %v2797 = vand.u32 %v2796, 4294901760
        %2798 = vmatpush.msra.mxu0 %v2797
        %v2799 = vand.u32 %v1486, 4294901760
        %v2800 = vsub.f32 %v1486, %v2799
        %v2801 = vand.u32 %v2800, 4294901760
        %2802 = vmatpush.msra.mxu0 %v2801
        %v2803 = vand.u32 %v1478, 4294901760
        %v2804 = vsub.f32 %v1478, %v2803
        %v2805 = vand.u32 %v2804, 4294901760
        %2806 = vmatpush.msra.mxu0 %v2805
        %v2807 = vand.u32 %v1470, 4294901760
        %v2808 = vsub.f32 %v1470, %v2807
        %v2809 = vand.u32 %v2808, 4294901760
        %2810 = vmatpush.msra.mxu0 %v2809
        %v2811 = vand.u32 %v1462, 4294901760
        %v2812 = vsub.f32 %v1462, %v2811
        %v2813 = vand.u32 %v2812, 4294901760
        %2814 = vmatpush.msra.mxu0 %v2813
        %v2815 = vand.u32 %v1454, 4294901760
        %v2816 = vsub.f32 %v1454, %v2815
        %v2817 = vand.u32 %v2816, 4294901760
        %2818 = vmatpush.msra.mxu0 %v2817
        %v2819 = vand.u32 %v1446, 4294901760
        %v2820 = vsub.f32 %v1446, %v2819
        %v2821 = vand.u32 %v2820, 4294901760
        %2822 = vmatpush.msra.mxu0 %v2821
        %v2823 = vand.u32 %v1438, 4294901760
        %v2824 = vsub.f32 %v1438, %v2823
        %v2825 = vand.u32 %v2824, 4294901760
        %2826 = vmatpush.msra.mxu0 %v2825
        %v2827 = vand.u32 %v1430, 4294901760
        %v2828 = vsub.f32 %v1430, %v2827
        %v2829 = vand.u32 %v2828, 4294901760
        %2830 = vmatpush.msra.mxu0 %v2829
        %v2831 = vand.u32 %v1422, 4294901760
        %v2832 = vsub.f32 %v1422, %v2831
        %v2833 = vand.u32 %v2832, 4294901760
        %2834 = vmatpush.msra.mxu0 %v2833
        %v2835 = vand.u32 %v1414, 4294901760
        %v2836 = vsub.f32 %v1414, %v2835
        %v2837 = vand.u32 %v2836, 4294901760
        %2838 = vmatpush.msra.mxu0 %v2837
        %v2839 = vand.u32 %v1406, 4294901760
        %v2840 = vsub.f32 %v1406, %v2839
        %v2841 = vand.u32 %v2840, 4294901760
        %2842 = vmatpush.msra.mxu0 %v2841
        %v2843 = vand.u32 %v1398, 4294901760
        %v2844 = vsub.f32 %v1398, %v2843
        %v2845 = vand.u32 %v2844, 4294901760
        %2846 = vmatpush.msra.mxu0 %v2845
        %v2847 = vand.u32 %v1267, 4294901760
        %2848 = vmatmul.f32.gmra.mxu0 %v2847
        %v2849 = vpop.f32.mrf.mxu0
        %v2850 = vadd.f32 %v2781, %v2849
        %2851 = vdwg.mxu0
        %v2852 = vand.u32 %v1518, 4294901760
        %2853 = vmatpush.msra.mxu0 %v2852
        %v2854 = vand.u32 %v1510, 4294901760
        %2855 = vmatpush.msra.mxu0 %v2854
        %v2856 = vand.u32 %v1502, 4294901760
        %2857 = vmatpush.msra.mxu0 %v2856
        %v2858 = vand.u32 %v1494, 4294901760
        %2859 = vmatpush.msra.mxu0 %v2858
        %v2860 = vand.u32 %v1486, 4294901760
        %2861 = vmatpush.msra.mxu0 %v2860
        %v2862 = vand.u32 %v1478, 4294901760
        %2863 = vmatpush.msra.mxu0 %v2862
        %v2864 = vand.u32 %v1470, 4294901760
        %2865 = vmatpush.msra.mxu0 %v2864
        %v2866 = vand.u32 %v1462, 4294901760
        %2867 = vmatpush.msra.mxu0 %v2866
        %v2868 = vand.u32 %v1454, 4294901760
        %2869 = vmatpush.msra.mxu0 %v2868
        %v2870 = vand.u32 %v1446, 4294901760
        %2871 = vmatpush.msra.mxu0 %v2870
        %v2872 = vand.u32 %v1438, 4294901760
        %2873 = vmatpush.msra.mxu0 %v2872
        %v2874 = vand.u32 %v1430, 4294901760
        %2875 = vmatpush.msra.mxu0 %v2874
        %v2876 = vand.u32 %v1422, 4294901760
        %2877 = vmatpush.msra.mxu0 %v2876
        %v2878 = vand.u32 %v1414, 4294901760
        %2879 = vmatpush.msra.mxu0 %v2878
        %v2880 = vand.u32 %v1406, 4294901760
        %2881 = vmatpush.msra.mxu0 %v2880
        %v2882 = vand.u32 %v1398, 4294901760
        %2883 = vmatpush.msra.mxu0 %v2882
        %v2884 = vand.u32 %v1267, 4294901760
        %2885 = vmatmul.f32.gmra.mxu0 %v2884
        %v2886 = vpop.f32.mrf.mxu0
        %v2887 = vadd.f32 %v2850, %v2886
        %2888 = vdwg.mxu0
        %v2889 = vand.u32 %v1391, 4294901760
        %2890 = vmatpush.msra.mxu0 %v2889
        %v2891 = vand.u32 %v1383, 4294901760
        %2892 = vmatpush.msra.mxu0 %v2891
        %v2893 = vand.u32 %v1375, 4294901760
        %2894 = vmatpush.msra.mxu0 %v2893
        %v2895 = vand.u32 %v1367, 4294901760
        %2896 = vmatpush.msra.mxu0 %v2895
        %v2897 = vand.u32 %v1359, 4294901760
        %2898 = vmatpush.msra.mxu0 %v2897
        %v2899 = vand.u32 %v1351, 4294901760
        %2900 = vmatpush.msra.mxu0 %v2899
        %v2901 = vand.u32 %v1343, 4294901760
        %2902 = vmatpush.msra.mxu0 %v2901
        %v2903 = vand.u32 %v1335, 4294901760
        %2904 = vmatpush.msra.mxu0 %v2903
        %v2905 = vand.u32 %v1327, 4294901760
        %2906 = vmatpush.msra.mxu0 %v2905
        %v2907 = vand.u32 %v1319, 4294901760
        %2908 = vmatpush.msra.mxu0 %v2907
        %v2909 = vand.u32 %v1311, 4294901760
        %2910 = vmatpush.msra.mxu0 %v2909
        %v2911 = vand.u32 %v1303, 4294901760
        %2912 = vmatpush.msra.mxu0 %v2911
        %v2913 = vand.u32 %v1295, 4294901760
        %2914 = vmatpush.msra.mxu0 %v2913
        %v2915 = vand.u32 %v1287, 4294901760
        %2916 = vmatpush.msra.mxu0 %v2915
        %v2917 = vand.u32 %v1279, 4294901760
        %2918 = vmatpush.msra.mxu0 %v2917
        %v2919 = vand.u32 %v1271, 4294901760
        %2920 = vmatpush.msra.mxu0 %v2919
        %v2921 = vand.u32 %v767, 4294901760
        %v2922 = vsub.f32 %v767, %v2921
        %v2923 = vand.u32 %v2922, 4294901760
        %v2924 = vsub.f32 %v2922, %v2923
        %v2925 = vand.u32 %v2924, 4294901760
        %2926 = vmatmul.f32.gmra.mxu0 %v2925
        %v2927 = vpop.f32.mrf.mxu0
        %v2928 = vadd.f32 0.0, %v2927
        %2929 = vdwg.mxu0
        %v2930 = vand.u32 %v1391, 4294901760
        %v2931 = vsub.f32 %v1391, %v2930
        %v2932 = vand.u32 %v2931, 4294901760
        %v2933 = vsub.f32 %v2931, %v2932
        %v2934 = vand.u32 %v2933, 4294901760
        %2935 = vmatpush.msra.mxu0 %v2934
        %v2936 = vand.u32 %v1383, 4294901760
        %v2937 = vsub.f32 %v1383, %v2936
        %v2938 = vand.u32 %v2937, 4294901760
        %v2939 = vsub.f32 %v2937, %v2938
        %v2940 = vand.u32 %v2939, 4294901760
        %2941 = vmatpush.msra.mxu0 %v2940
        %v2942 = vand.u32 %v1375, 4294901760
        %v2943 = vsub.f32 %v1375, %v2942
        %v2944 = vand.u32 %v2943, 4294901760
        %v2945 = vsub.f32 %v2943, %v2944
        %v2946 = vand.u32 %v2945, 4294901760
        %2947 = vmatpush.msra.mxu0 %v2946
        %v2948 = vand.u32 %v1367, 4294901760
        %v2949 = vsub.f32 %v1367, %v2948
        %v2950 = vand.u32 %v2949, 4294901760
        %v2951 = vsub.f32 %v2949, %v2950
        %v2952 = vand.u32 %v2951, 4294901760
        %2953 = vmatpush.msra.mxu0 %v2952
        %v2954 = vand.u32 %v1359, 4294901760
        %v2955 = vsub.f32 %v1359, %v2954
        %v2956 = vand.u32 %v2955, 4294901760
        %v2957 = vsub.f32 %v2955, %v2956
        %v2958 = vand.u32 %v2957, 4294901760
        %2959 = vmatpush.msra.mxu0 %v2958
        %v2960 = vand.u32 %v1351, 4294901760
        %v2961 = vsub.f32 %v1351, %v2960
        %v2962 = vand.u32 %v2961, 4294901760
        %v2963 = vsub.f32 %v2961, %v2962
        %v2964 = vand.u32 %v2963, 4294901760
        %2965 = vmatpush.msra.mxu0 %v2964
        %v2966 = vand.u32 %v1343, 4294901760
        %v2967 = vsub.f32 %v1343, %v2966
        %v2968 = vand.u32 %v2967, 4294901760
        %v2969 = vsub.f32 %v2967, %v2968
        %v2970 = vand.u32 %v2969, 4294901760
        %2971 = vmatpush.msra.mxu0 %v2970
        %v2972 = vand.u32 %v1335, 4294901760
        %v2973 = vsub.f32 %v1335, %v2972
        %v2974 = vand.u32 %v2973, 4294901760
        %v2975 = vsub.f32 %v2973, %v2974
        %v2976 = vand.u32 %v2975, 4294901760
        %2977 = vmatpush.msra.mxu0 %v2976
        %v2978 = vand.u32 %v1327, 4294901760
        %v2979 = vsub.f32 %v1327, %v2978
        %v2980 = vand.u32 %v2979, 4294901760
        %v2981 = vsub.f32 %v2979, %v2980
        %v2982 = vand.u32 %v2981, 4294901760
        %2983 = vmatpush.msra.mxu0 %v2982
        %v2984 = vand.u32 %v1319, 4294901760
        %v2985 = vsub.f32 %v1319, %v2984
        %v2986 = vand.u32 %v2985, 4294901760
        %v2987 = vsub.f32 %v2985, %v2986
        %v2988 = vand.u32 %v2987, 4294901760
        %2989 = vmatpush.msra.mxu0 %v2988
        %v2990 = vand.u32 %v1311, 4294901760
        %v2991 = vsub.f32 %v1311, %v2990
        %v2992 = vand.u32 %v2991, 4294901760
        %v2993 = vsub.f32 %v2991, %v2992
        %v2994 = vand.u32 %v2993, 4294901760
        %2995 = vmatpush.msra.mxu0 %v2994
        %v2996 = vand.u32 %v1303, 4294901760
        %v2997 = vsub.f32 %v1303, %v2996
        %v2998 = vand.u32 %v2997, 4294901760
        %v2999 = vsub.f32 %v2997, %v2998
        %v3000 = vand.u32 %v2999, 4294901760
        %3001 = vmatpush.msra.mxu0 %v3000
        %v3002 = vand.u32 %v1295, 4294901760
        %v3003 = vsub.f32 %v1295, %v3002
        %v3004 = vand.u32 %v3003, 4294901760
        %v3005 = vsub.f32 %v3003, %v3004
        %v3006 = vand.u32 %v3005, 4294901760
        %3007 = vmatpush.msra.mxu0 %v3006
        %v3008 = vand.u32 %v1287, 4294901760
        %v3009 = vsub.f32 %v1287, %v3008
        %v3010 = vand.u32 %v3009, 4294901760
        %v3011 = vsub.f32 %v3009, %v3010
        %v3012 = vand.u32 %v3011, 4294901760
        %3013 = vmatpush.msra.mxu0 %v3012
        %v3014 = vand.u32 %v1279, 4294901760
        %v3015 = vsub.f32 %v1279, %v3014
        %v3016 = vand.u32 %v3015, 4294901760
        %v3017 = vsub.f32 %v3015, %v3016
        %v3018 = vand.u32 %v3017, 4294901760
        %3019 = vmatpush.msra.mxu0 %v3018
        %v3020 = vand.u32 %v1271, 4294901760
        %v3021 = vsub.f32 %v1271, %v3020
        %v3022 = vand.u32 %v3021, 4294901760
        %v3023 = vsub.f32 %v3021, %v3022
        %v3024 = vand.u32 %v3023, 4294901760
        %3025 = vmatpush.msra.mxu0 %v3024
        %v3026 = vand.u32 %v767, 4294901760
        %3027 = vmatmul.f32.gmra.mxu0 %v3026
        %v3028 = vpop.f32.mrf.mxu0
        %v3029 = vadd.f32 %v2928, %v3028
        %3030 = vdwg.mxu0
        %v3031 = vand.u32 %v1391, 4294901760
        %v3032 = vsub.f32 %v1391, %v3031
        %3033 = vmatpush.msra.mxu0 %v3032
        %v3034 = vand.u32 %v1383, 4294901760
        %v3035 = vsub.f32 %v1383, %v3034
        %3036 = vmatpush.msra.mxu0 %v3035
        %v3037 = vand.u32 %v1375, 4294901760
        %v3038 = vsub.f32 %v1375, %v3037
        %3039 = vmatpush.msra.mxu0 %v3038
        %v3040 = vand.u32 %v1367, 4294901760
        %v3041 = vsub.f32 %v1367, %v3040
        %3042 = vmatpush.msra.mxu0 %v3041
        %v3043 = vand.u32 %v1359, 4294901760
        %v3044 = vsub.f32 %v1359, %v3043
        %3045 = vmatpush.msra.mxu0 %v3044
        %v3046 = vand.u32 %v1351, 4294901760
        %v3047 = vsub.f32 %v1351, %v3046
        %3048 = vmatpush.msra.mxu0 %v3047
        %v3049 = vand.u32 %v1343, 4294901760
        %v3050 = vsub.f32 %v1343, %v3049
        %3051 = vmatpush.msra.mxu0 %v3050
        %v3052 = vand.u32 %v1335, 4294901760
        %v3053 = vsub.f32 %v1335, %v3052
        %3054 = vmatpush.msra.mxu0 %v3053
        %v3055 = vand.u32 %v1327, 4294901760
        %v3056 = vsub.f32 %v1327, %v3055
        %3057 = vmatpush.msra.mxu0 %v3056
        %v3058 = vand.u32 %v1319, 4294901760
        %v3059 = vsub.f32 %v1319, %v3058
        %3060 = vmatpush.msra.mxu0 %v3059
        %v3061 = vand.u32 %v1311, 4294901760
        %v3062 = vsub.f32 %v1311, %v3061
        %3063 = vmatpush.msra.mxu0 %v3062
        %v3064 = vand.u32 %v1303, 4294901760
        %v3065 = vsub.f32 %v1303, %v3064
        %3066 = vmatpush.msra.mxu0 %v3065
        %v3067 = vand.u32 %v1295, 4294901760
        %v3068 = vsub.f32 %v1295, %v3067
        %3069 = vmatpush.msra.mxu0 %v3068
        %v3070 = vand.u32 %v1287, 4294901760
        %v3071 = vsub.f32 %v1287, %v3070
        %3072 = vmatpush.msra.mxu0 %v3071
        %v3073 = vand.u32 %v1279, 4294901760
        %v3074 = vsub.f32 %v1279, %v3073
        %3075 = vmatpush.msra.mxu0 %v3074
        %v3076 = vand.u32 %v1271, 4294901760
        %v3077 = vsub.f32 %v1271, %v3076
        %3078 = vmatpush.msra.mxu0 %v3077
        %v3079 = vand.u32 %v767, 4294901760
        %v3080 = vsub.f32 %v767, %v3079
        %3081 = vmatmul.f32.gmra.mxu0 %v3080
        %v3082 = vpop.f32.mrf.mxu0
        %v3083 = vadd.f32 %v3029, %v3082
        %3084 = vdwg.mxu0
        %v3085 = vand.u32 %v1391, 4294901760
        %3086 = vmatpush.msra.mxu0 %v3085
        %v3087 = vand.u32 %v1383, 4294901760
        %3088 = vmatpush.msra.mxu0 %v3087
        %v3089 = vand.u32 %v1375, 4294901760
        %3090 = vmatpush.msra.mxu0 %v3089
        %v3091 = vand.u32 %v1367, 4294901760
        %3092 = vmatpush.msra.mxu0 %v3091
        %v3093 = vand.u32 %v1359, 4294901760
        %3094 = vmatpush.msra.mxu0 %v3093
        %v3095 = vand.u32 %v1351, 4294901760
        %3096 = vmatpush.msra.mxu0 %v3095
        %v3097 = vand.u32 %v1343, 4294901760
        %3098 = vmatpush.msra.mxu0 %v3097
        %v3099 = vand.u32 %v1335, 4294901760
        %3100 = vmatpush.msra.mxu0 %v3099
        %v3101 = vand.u32 %v1327, 4294901760
        %3102 = vmatpush.msra.mxu0 %v3101
        %v3103 = vand.u32 %v1319, 4294901760
        %3104 = vmatpush.msra.mxu0 %v3103
        %v3105 = vand.u32 %v1311, 4294901760
        %3106 = vmatpush.msra.mxu0 %v3105
        %v3107 = vand.u32 %v1303, 4294901760
        %3108 = vmatpush.msra.mxu0 %v3107
        %v3109 = vand.u32 %v1295, 4294901760
        %3110 = vmatpush.msra.mxu0 %v3109
        %v3111 = vand.u32 %v1287, 4294901760
        %3112 = vmatpush.msra.mxu0 %v3111
        %v3113 = vand.u32 %v1279, 4294901760
        %3114 = vmatpush.msra.mxu0 %v3113
        %v3115 = vand.u32 %v1271, 4294901760
        %3116 = vmatpush.msra.mxu0 %v3115
        %v3117 = vand.u32 %v767, 4294901760
        %v3118 = vsub.f32 %v767, %v3117
        %v3119 = vand.u32 %v3118, 4294901760
        %3120 = vmatmul.f32.gmra.mxu0 %v3119
        %v3121 = vpop.f32.mrf.mxu0
        %v3122 = vadd.f32 %v3083, %v3121
        %3123 = vdwg.mxu0
        %v3124 = vand.u32 %v1391, 4294901760
        %v3125 = vsub.f32 %v1391, %v3124
        %v3126 = vand.u32 %v3125, 4294901760
        %3127 = vmatpush.msra.mxu0 %v3126
        %v3128 = vand.u32 %v1383, 4294901760
        %v3129 = vsub.f32 %v1383, %v3128
        %v3130 = vand.u32 %v3129, 4294901760
        %3131 = vmatpush.msra.mxu0 %v3130
        %v3132 = vand.u32 %v1375, 4294901760
        %v3133 = vsub.f32 %v1375, %v3132
        %v3134 = vand.u32 %v3133, 4294901760
        %3135 = vmatpush.msra.mxu0 %v3134
        %v3136 = vand.u32 %v1367, 4294901760
        %v3137 = vsub.f32 %v1367, %v3136
        %v3138 = vand.u32 %v3137, 4294901760
        %3139 = vmatpush.msra.mxu0 %v3138
        %v3140 = vand.u32 %v1359, 4294901760
        %v3141 = vsub.f32 %v1359, %v3140
        %v3142 = vand.u32 %v3141, 4294901760
        %3143 = vmatpush.msra.mxu0 %v3142
        %v3144 = vand.u32 %v1351, 4294901760
        %v3145 = vsub.f32 %v1351, %v3144
        %v3146 = vand.u32 %v3145, 4294901760
        %3147 = vmatpush.msra.mxu0 %v3146
        %v3148 = vand.u32 %v1343, 4294901760
        %v3149 = vsub.f32 %v1343, %v3148
        %v3150 = vand.u32 %v3149, 4294901760
        %3151 = vmatpush.msra.mxu0 %v3150
        %v3152 = vand.u32 %v1335, 4294901760
        %v3153 = vsub.f32 %v1335, %v3152
        %v3154 = vand.u32 %v3153, 4294901760
        %3155 = vmatpush.msra.mxu0 %v3154
        %v3156 = vand.u32 %v1327, 4294901760
        %v3157 = vsub.f32 %v1327, %v3156
        %v3158 = vand.u32 %v3157, 4294901760
        %3159 = vmatpush.msra.mxu0 %v3158
        %v3160 = vand.u32 %v1319, 4294901760
        %v3161 = vsub.f32 %v1319, %v3160
        %v3162 = vand.u32 %v3161, 4294901760
        %3163 = vmatpush.msra.mxu0 %v3162
        %v3164 = vand.u32 %v1311, 4294901760
        %v3165 = vsub.f32 %v1311, %v3164
        %v3166 = vand.u32 %v3165, 4294901760
        %3167 = vmatpush.msra.mxu0 %v3166
        %v3168 = vand.u32 %v1303, 4294901760
        %v3169 = vsub.f32 %v1303, %v3168
        %v3170 = vand.u32 %v3169, 4294901760
        %3171 = vmatpush.msra.mxu0 %v3170
        %v3172 = vand.u32 %v1295, 4294901760
        %v3173 = vsub.f32 %v1295, %v3172
        %v3174 = vand.u32 %v3173, 4294901760
        %3175 = vmatpush.msra.mxu0 %v3174
        %v3176 = vand.u32 %v1287, 4294901760
        %v3177 = vsub.f32 %v1287, %v3176
        %v3178 = vand.u32 %v3177, 4294901760
        %3179 = vmatpush.msra.mxu0 %v3178
        %v3180 = vand.u32 %v1279, 4294901760
        %v3181 = vsub.f32 %v1279, %v3180
        %v3182 = vand.u32 %v3181, 4294901760
        %3183 = vmatpush.msra.mxu0 %v3182
        %v3184 = vand.u32 %v1271, 4294901760
        %v3185 = vsub.f32 %v1271, %v3184
        %v3186 = vand.u32 %v3185, 4294901760
        %3187 = vmatpush.msra.mxu0 %v3186
        %v3188 = vand.u32 %v767, 4294901760
        %3189 = vmatmul.f32.gmra.mxu0 %v3188
        %v3190 = vpop.f32.mrf.mxu0
        %v3191 = vadd.f32 %v3122, %v3190
        %3192 = vdwg.mxu0
        %v3193 = vand.u32 %v1391, 4294901760
        %3194 = vmatpush.msra.mxu0 %v3193
        %v3195 = vand.u32 %v1383, 4294901760
        %3196 = vmatpush.msra.mxu0 %v3195
        %v3197 = vand.u32 %v1375, 4294901760
        %3198 = vmatpush.msra.mxu0 %v3197
        %v3199 = vand.u32 %v1367, 4294901760
        %3200 = vmatpush.msra.mxu0 %v3199
        %v3201 = vand.u32 %v1359, 4294901760
        %3202 = vmatpush.msra.mxu0 %v3201
        %v3203 = vand.u32 %v1351, 4294901760
        %3204 = vmatpush.msra.mxu0 %v3203
        %v3205 = vand.u32 %v1343, 4294901760
        %3206 = vmatpush.msra.mxu0 %v3205
        %v3207 = vand.u32 %v1335, 4294901760
        %3208 = vmatpush.msra.mxu0 %v3207
        %v3209 = vand.u32 %v1327, 4294901760
        %3210 = vmatpush.msra.mxu0 %v3209
        %v3211 = vand.u32 %v1319, 4294901760
        %3212 = vmatpush.msra.mxu0 %v3211
        %v3213 = vand.u32 %v1311, 4294901760
        %3214 = vmatpush.msra.mxu0 %v3213
        %v3215 = vand.u32 %v1303, 4294901760
        %3216 = vmatpush.msra.mxu0 %v3215
        %v3217 = vand.u32 %v1295, 4294901760
        %3218 = vmatpush.msra.mxu0 %v3217
        %v3219 = vand.u32 %v1287, 4294901760
        %3220 = vmatpush.msra.mxu0 %v3219
        %v3221 = vand.u32 %v1279, 4294901760
        %3222 = vmatpush.msra.mxu0 %v3221
        %v3223 = vand.u32 %v1271, 4294901760
        %3224 = vmatpush.msra.mxu0 %v3223
        %v3225 = vand.u32 %v767, 4294901760
        %3226 = vmatmul.f32.gmra.mxu0 %v3225
        %v3227 = vpop.f32.mrf.mxu0
        %v3228 = vadd.f32 %v3191, %v3227
        %3229 = vdwg.mxu0
        %v3230 = vand.u32 %v1519, 4294901760
        %3231 = vmatpush.msra.mxu0 %v3230
        %v3232 = vand.u32 %v1511, 4294901760
        %3233 = vmatpush.msra.mxu0 %v3232
        %v3234 = vand.u32 %v1503, 4294901760
        %3235 = vmatpush.msra.mxu0 %v3234
        %v3236 = vand.u32 %v1495, 4294901760
        %3237 = vmatpush.msra.mxu0 %v3236
        %v3238 = vand.u32 %v1487, 4294901760
        %3239 = vmatpush.msra.mxu0 %v3238
        %v3240 = vand.u32 %v1479, 4294901760
        %3241 = vmatpush.msra.mxu0 %v3240
        %v3242 = vand.u32 %v1471, 4294901760
        %3243 = vmatpush.msra.mxu0 %v3242
        %v3244 = vand.u32 %v1463, 4294901760
        %3245 = vmatpush.msra.mxu0 %v3244
        %v3246 = vand.u32 %v1455, 4294901760
        %3247 = vmatpush.msra.mxu0 %v3246
        %v3248 = vand.u32 %v1447, 4294901760
        %3249 = vmatpush.msra.mxu0 %v3248
        %v3250 = vand.u32 %v1439, 4294901760
        %3251 = vmatpush.msra.mxu0 %v3250
        %v3252 = vand.u32 %v1431, 4294901760
        %3253 = vmatpush.msra.mxu0 %v3252
        %v3254 = vand.u32 %v1423, 4294901760
        %3255 = vmatpush.msra.mxu0 %v3254
        %v3256 = vand.u32 %v1415, 4294901760
        %3257 = vmatpush.msra.mxu0 %v3256
        %v3258 = vand.u32 %v1407, 4294901760
        %3259 = vmatpush.msra.mxu0 %v3258
        %v3260 = vand.u32 %v1399, 4294901760
        %3261 = vmatpush.msra.mxu0 %v3260
        %v3262 = vand.u32 %v1267, 4294901760
        %v3263 = vsub.f32 %v1267, %v3262
        %v3264 = vand.u32 %v3263, 4294901760
        %v3265 = vsub.f32 %v3263, %v3264
        %v3266 = vand.u32 %v3265, 4294901760
        %3267 = vmatmul.f32.gmra.mxu0 %v3266
        %v3268 = vpop.f32.mrf.mxu0
        %v3269 = vadd.f32 %v3228, %v3268
        %3270 = vdwg.mxu0
        %v3271 = vand.u32 %v1519, 4294901760
        %v3272 = vsub.f32 %v1519, %v3271
        %v3273 = vand.u32 %v3272, 4294901760
        %v3274 = vsub.f32 %v3272, %v3273
        %v3275 = vand.u32 %v3274, 4294901760
        %3276 = vmatpush.msra.mxu0 %v3275
        %v3277 = vand.u32 %v1511, 4294901760
        %v3278 = vsub.f32 %v1511, %v3277
        %v3279 = vand.u32 %v3278, 4294901760
        %v3280 = vsub.f32 %v3278, %v3279
        %v3281 = vand.u32 %v3280, 4294901760
        %3282 = vmatpush.msra.mxu0 %v3281
        %v3283 = vand.u32 %v1503, 4294901760
        %v3284 = vsub.f32 %v1503, %v3283
        %v3285 = vand.u32 %v3284, 4294901760
        %v3286 = vsub.f32 %v3284, %v3285
        %v3287 = vand.u32 %v3286, 4294901760
        %3288 = vmatpush.msra.mxu0 %v3287
        %v3289 = vand.u32 %v1495, 4294901760
        %v3290 = vsub.f32 %v1495, %v3289
        %v3291 = vand.u32 %v3290, 4294901760
        %v3292 = vsub.f32 %v3290, %v3291
        %v3293 = vand.u32 %v3292, 4294901760
        %3294 = vmatpush.msra.mxu0 %v3293
        %v3295 = vand.u32 %v1487, 4294901760
        %v3296 = vsub.f32 %v1487, %v3295
        %v3297 = vand.u32 %v3296, 4294901760
        %v3298 = vsub.f32 %v3296, %v3297
        %v3299 = vand.u32 %v3298, 4294901760
        %3300 = vmatpush.msra.mxu0 %v3299
        %v3301 = vand.u32 %v1479, 4294901760
        %v3302 = vsub.f32 %v1479, %v3301
        %v3303 = vand.u32 %v3302, 4294901760
        %v3304 = vsub.f32 %v3302, %v3303
        %v3305 = vand.u32 %v3304, 4294901760
        %3306 = vmatpush.msra.mxu0 %v3305
        %v3307 = vand.u32 %v1471, 4294901760
        %v3308 = vsub.f32 %v1471, %v3307
        %v3309 = vand.u32 %v3308, 4294901760
        %v3310 = vsub.f32 %v3308, %v3309
        %v3311 = vand.u32 %v3310, 4294901760
        %3312 = vmatpush.msra.mxu0 %v3311
        %v3313 = vand.u32 %v1463, 4294901760
        %v3314 = vsub.f32 %v1463, %v3313
        %v3315 = vand.u32 %v3314, 4294901760
        %v3316 = vsub.f32 %v3314, %v3315
        %v3317 = vand.u32 %v3316, 4294901760
        %3318 = vmatpush.msra.mxu0 %v3317
        %v3319 = vand.u32 %v1455, 4294901760
        %v3320 = vsub.f32 %v1455, %v3319
        %v3321 = vand.u32 %v3320, 4294901760
        %v3322 = vsub.f32 %v3320, %v3321
        %v3323 = vand.u32 %v3322, 4294901760
        %3324 = vmatpush.msra.mxu0 %v3323
        %v3325 = vand.u32 %v1447, 4294901760
        %v3326 = vsub.f32 %v1447, %v3325
        %v3327 = vand.u32 %v3326, 4294901760
        %v3328 = vsub.f32 %v3326, %v3327
        %v3329 = vand.u32 %v3328, 4294901760
        %3330 = vmatpush.msra.mxu0 %v3329
        %v3331 = vand.u32 %v1439, 4294901760
        %v3332 = vsub.f32 %v1439, %v3331
        %v3333 = vand.u32 %v3332, 4294901760
        %v3334 = vsub.f32 %v3332, %v3333
        %v3335 = vand.u32 %v3334, 4294901760
        %3336 = vmatpush.msra.mxu0 %v3335
        %v3337 = vand.u32 %v1431, 4294901760
        %v3338 = vsub.f32 %v1431, %v3337
        %v3339 = vand.u32 %v3338, 4294901760
        %v3340 = vsub.f32 %v3338, %v3339
        %v3341 = vand.u32 %v3340, 4294901760
        %3342 = vmatpush.msra.mxu0 %v3341
        %v3343 = vand.u32 %v1423, 4294901760
        %v3344 = vsub.f32 %v1423, %v3343
        %v3345 = vand.u32 %v3344, 4294901760
        %v3346 = vsub.f32 %v3344, %v3345
        %v3347 = vand.u32 %v3346, 4294901760
        %3348 = vmatpush.msra.mxu0 %v3347
        %v3349 = vand.u32 %v1415, 4294901760
        %v3350 = vsub.f32 %v1415, %v3349
        %v3351 = vand.u32 %v3350, 4294901760
        %v3352 = vsub.f32 %v3350, %v3351
        %v3353 = vand.u32 %v3352, 4294901760
        %3354 = vmatpush.msra.mxu0 %v3353
        %v3355 = vand.u32 %v1407, 4294901760
        %v3356 = vsub.f32 %v1407, %v3355
        %v3357 = vand.u32 %v3356, 4294901760
        %v3358 = vsub.f32 %v3356, %v3357
        %v3359 = vand.u32 %v3358, 4294901760
        %3360 = vmatpush.msra.mxu0 %v3359
        %v3361 = vand.u32 %v1399, 4294901760
        %v3362 = vsub.f32 %v1399, %v3361
        %v3363 = vand.u32 %v3362, 4294901760
        %v3364 = vsub.f32 %v3362, %v3363
        %v3365 = vand.u32 %v3364, 4294901760
        %3366 = vmatpush.msra.mxu0 %v3365
        %v3367 = vand.u32 %v1267, 4294901760
        %3368 = vmatmul.f32.gmra.mxu0 %v3367
        %v3369 = vpop.f32.mrf.mxu0
        %v3370 = vadd.f32 %v3269, %v3369
        %3371 = vdwg.mxu0
        %v3372 = vand.u32 %v1519, 4294901760
        %v3373 = vsub.f32 %v1519, %v3372
        %3374 = vmatpush.msra.mxu0 %v3373
        %v3375 = vand.u32 %v1511, 4294901760
        %v3376 = vsub.f32 %v1511, %v3375
        %3377 = vmatpush.msra.mxu0 %v3376
        %v3378 = vand.u32 %v1503, 4294901760
        %v3379 = vsub.f32 %v1503, %v3378
        %3380 = vmatpush.msra.mxu0 %v3379
        %v3381 = vand.u32 %v1495, 4294901760
        %v3382 = vsub.f32 %v1495, %v3381
        %3383 = vmatpush.msra.mxu0 %v3382
        %v3384 = vand.u32 %v1487, 4294901760
        %v3385 = vsub.f32 %v1487, %v3384
        %3386 = vmatpush.msra.mxu0 %v3385
        %v3387 = vand.u32 %v1479, 4294901760
        %v3388 = vsub.f32 %v1479, %v3387
        %3389 = vmatpush.msra.mxu0 %v3388
        %v3390 = vand.u32 %v1471, 4294901760
        %v3391 = vsub.f32 %v1471, %v3390
        %3392 = vmatpush.msra.mxu0 %v3391
        %v3393 = vand.u32 %v1463, 4294901760
        %v3394 = vsub.f32 %v1463, %v3393
        %3395 = vmatpush.msra.mxu0 %v3394
        %v3396 = vand.u32 %v1455, 4294901760
        %v3397 = vsub.f32 %v1455, %v3396
        %3398 = vmatpush.msra.mxu0 %v3397
        %v3399 = vand.u32 %v1447, 4294901760
        %v3400 = vsub.f32 %v1447, %v3399
        %3401 = vmatpush.msra.mxu0 %v3400
        %v3402 = vand.u32 %v1439, 4294901760
        %v3403 = vsub.f32 %v1439, %v3402
        %3404 = vmatpush.msra.mxu0 %v3403
        %v3405 = vand.u32 %v1431, 4294901760
        %v3406 = vsub.f32 %v1431, %v3405
        %3407 = vmatpush.msra.mxu0 %v3406
        %v3408 = vand.u32 %v1423, 4294901760
        %v3409 = vsub.f32 %v1423, %v3408
        %3410 = vmatpush.msra.mxu0 %v3409
        %v3411 = vand.u32 %v1415, 4294901760
        %v3412 = vsub.f32 %v1415, %v3411
        %3413 = vmatpush.msra.mxu0 %v3412
        %v3414 = vand.u32 %v1407, 4294901760
        %v3415 = vsub.f32 %v1407, %v3414
        %3416 = vmatpush.msra.mxu0 %v3415
        %v3417 = vand.u32 %v1399, 4294901760
        %v3418 = vsub.f32 %v1399, %v3417
        %3419 = vmatpush.msra.mxu0 %v3418
        %v3420 = vand.u32 %v1267, 4294901760
        %v3421 = vsub.f32 %v1267, %v3420
        %3422 = vmatmul.f32.gmra.mxu0 %v3421
        %v3423 = vpop.f32.mrf.mxu0
        %v3424 = vadd.f32 %v3370, %v3423
        %3425 = vdwg.mxu0
        %v3426 = vand.u32 %v1519, 4294901760
        %3427 = vmatpush.msra.mxu0 %v3426
        %v3428 = vand.u32 %v1511, 4294901760
        %3429 = vmatpush.msra.mxu0 %v3428
        %v3430 = vand.u32 %v1503, 4294901760
        %3431 = vmatpush.msra.mxu0 %v3430
        %v3432 = vand.u32 %v1495, 4294901760
        %3433 = vmatpush.msra.mxu0 %v3432
        %v3434 = vand.u32 %v1487, 4294901760
        %3435 = vmatpush.msra.mxu0 %v3434
        %v3436 = vand.u32 %v1479, 4294901760
        %3437 = vmatpush.msra.mxu0 %v3436
        %v3438 = vand.u32 %v1471, 4294901760
        %3439 = vmatpush.msra.mxu0 %v3438
        %v3440 = vand.u32 %v1463, 4294901760
        %3441 = vmatpush.msra.mxu0 %v3440
        %v3442 = vand.u32 %v1455, 4294901760
        %3443 = vmatpush.msra.mxu0 %v3442
        %v3444 = vand.u32 %v1447, 4294901760
        %3445 = vmatpush.msra.mxu0 %v3444
        %v3446 = vand.u32 %v1439, 4294901760
        %3447 = vmatpush.msra.mxu0 %v3446
        %v3448 = vand.u32 %v1431, 4294901760
        %3449 = vmatpush.msra.mxu0 %v3448
        %v3450 = vand.u32 %v1423, 4294901760
        %3451 = vmatpush.msra.mxu0 %v3450
        %v3452 = vand.u32 %v1415, 4294901760
        %3453 = vmatpush.msra.mxu0 %v3452
        %v3454 = vand.u32 %v1407, 4294901760
        %3455 = vmatpush.msra.mxu0 %v3454
        %v3456 = vand.u32 %v1399, 4294901760
        %3457 = vmatpush.msra.mxu0 %v3456
        %v3458 = vand.u32 %v1267, 4294901760
        %v3459 = vsub.f32 %v1267, %v3458
        %v3460 = vand.u32 %v3459, 4294901760
        %3461 = vmatmul.f32.gmra.mxu0 %v3460
        %v3462 = vpop.f32.mrf.mxu0
        %v3463 = vadd.f32 %v3424, %v3462
        %3464 = vdwg.mxu0
        %v3465 = vand.u32 %v1519, 4294901760
        %v3466 = vsub.f32 %v1519, %v3465
        %v3467 = vand.u32 %v3466, 4294901760
        %3468 = vmatpush.msra.mxu0 %v3467
        %v3469 = vand.u32 %v1511, 4294901760
        %v3470 = vsub.f32 %v1511, %v3469
        %v3471 = vand.u32 %v3470, 4294901760
        %3472 = vmatpush.msra.mxu0 %v3471
        %v3473 = vand.u32 %v1503, 4294901760
        %v3474 = vsub.f32 %v1503, %v3473
        %v3475 = vand.u32 %v3474, 4294901760
        %3476 = vmatpush.msra.mxu0 %v3475
        %v3477 = vand.u32 %v1495, 4294901760
        %v3478 = vsub.f32 %v1495, %v3477
        %v3479 = vand.u32 %v3478, 4294901760
        %3480 = vmatpush.msra.mxu0 %v3479
        %v3481 = vand.u32 %v1487, 4294901760
        %v3482 = vsub.f32 %v1487, %v3481
        %v3483 = vand.u32 %v3482, 4294901760
        %3484 = vmatpush.msra.mxu0 %v3483
        %v3485 = vand.u32 %v1479, 4294901760
        %v3486 = vsub.f32 %v1479, %v3485
        %v3487 = vand.u32 %v3486, 4294901760
        %3488 = vmatpush.msra.mxu0 %v3487
        %v3489 = vand.u32 %v1471, 4294901760
        %v3490 = vsub.f32 %v1471, %v3489
        %v3491 = vand.u32 %v3490, 4294901760
        %3492 = vmatpush.msra.mxu0 %v3491
        %v3493 = vand.u32 %v1463, 4294901760
        %v3494 = vsub.f32 %v1463, %v3493
        %v3495 = vand.u32 %v3494, 4294901760
        %3496 = vmatpush.msra.mxu0 %v3495
        %v3497 = vand.u32 %v1455, 4294901760
        %v3498 = vsub.f32 %v1455, %v3497
        %v3499 = vand.u32 %v3498, 4294901760
        %3500 = vmatpush.msra.mxu0 %v3499
        %v3501 = vand.u32 %v1447, 4294901760
        %v3502 = vsub.f32 %v1447, %v3501
        %v3503 = vand.u32 %v3502, 4294901760
        %3504 = vmatpush.msra.mxu0 %v3503
        %v3505 = vand.u32 %v1439, 4294901760
        %v3506 = vsub.f32 %v1439, %v3505
        %v3507 = vand.u32 %v3506, 4294901760
        %3508 = vmatpush.msra.mxu0 %v3507
        %v3509 = vand.u32 %v1431, 4294901760
        %v3510 = vsub.f32 %v1431, %v3509
        %v3511 = vand.u32 %v3510, 4294901760
        %3512 = vmatpush.msra.mxu0 %v3511
        %v3513 = vand.u32 %v1423, 4294901760
        %v3514 = vsub.f32 %v1423, %v3513
        %v3515 = vand.u32 %v3514, 4294901760
        %3516 = vmatpush.msra.mxu0 %v3515
        %v3517 = vand.u32 %v1415, 4294901760
        %v3518 = vsub.f32 %v1415, %v3517
        %v3519 = vand.u32 %v3518, 4294901760
        %3520 = vmatpush.msra.mxu0 %v3519
        %v3521 = vand.u32 %v1407, 4294901760
        %v3522 = vsub.f32 %v1407, %v3521
        %v3523 = vand.u32 %v3522, 4294901760
        %3524 = vmatpush.msra.mxu0 %v3523
        %v3525 = vand.u32 %v1399, 4294901760
        %v3526 = vsub.f32 %v1399, %v3525
        %v3527 = vand.u32 %v3526, 4294901760
        %3528 = vmatpush.msra.mxu0 %v3527
        %v3529 = vand.u32 %v1267, 4294901760
        %3530 = vmatmul.f32.gmra.mxu0 %v3529
        %v3531 = vpop.f32.mrf.mxu0
        %v3532 = vadd.f32 %v3463, %v3531
        %3533 = vdwg.mxu0
        %v3534 = vand.u32 %v1519, 4294901760
        %3535 = vmatpush.msra.mxu0 %v3534
        %v3536 = vand.u32 %v1511, 4294901760
        %3537 = vmatpush.msra.mxu0 %v3536
        %v3538 = vand.u32 %v1503, 4294901760
        %3539 = vmatpush.msra.mxu0 %v3538
        %v3540 = vand.u32 %v1495, 4294901760
        %3541 = vmatpush.msra.mxu0 %v3540
        %v3542 = vand.u32 %v1487, 4294901760
        %3543 = vmatpush.msra.mxu0 %v3542
        %v3544 = vand.u32 %v1479, 4294901760
        %3545 = vmatpush.msra.mxu0 %v3544
        %v3546 = vand.u32 %v1471, 4294901760
        %3547 = vmatpush.msra.mxu0 %v3546
        %v3548 = vand.u32 %v1463, 4294901760
        %3549 = vmatpush.msra.mxu0 %v3548
        %v3550 = vand.u32 %v1455, 4294901760
        %3551 = vmatpush.msra.mxu0 %v3550
        %v3552 = vand.u32 %v1447, 4294901760
        %3553 = vmatpush.msra.mxu0 %v3552
        %v3554 = vand.u32 %v1439, 4294901760
        %3555 = vmatpush.msra.mxu0 %v3554
        %v3556 = vand.u32 %v1431, 4294901760
        %3557 = vmatpush.msra.mxu0 %v3556
        %v3558 = vand.u32 %v1423, 4294901760
        %3559 = vmatpush.msra.mxu0 %v3558
        %v3560 = vand.u32 %v1415, 4294901760
        %3561 = vmatpush.msra.mxu0 %v3560
        %v3562 = vand.u32 %v1407, 4294901760
        %3563 = vmatpush.msra.mxu0 %v3562
        %v3564 = vand.u32 %v1399, 4294901760
        %3565 = vmatpush.msra.mxu0 %v3564
        %v3566 = vand.u32 %v1267, 4294901760
        %3567 = vmatmul.f32.gmra.mxu0 %v3566
        %v3568 = vpop.f32.mrf.mxu0
        %v3569 = vadd.f32 %v3532, %v3568
        %3570 = vdwg.mxu0
        %v3571 = vand.u32 %v1392, 4294901760
        %3572 = vmatpush.msra.mxu0 %v3571
        %v3573 = vand.u32 %v1384, 4294901760
        %3574 = vmatpush.msra.mxu0 %v3573
        %v3575 = vand.u32 %v1376, 4294901760
        %3576 = vmatpush.msra.mxu0 %v3575
        %v3577 = vand.u32 %v1368, 4294901760
        %3578 = vmatpush.msra.mxu0 %v3577
        %v3579 = vand.u32 %v1360, 4294901760
        %3580 = vmatpush.msra.mxu0 %v3579
        %v3581 = vand.u32 %v1352, 4294901760
        %3582 = vmatpush.msra.mxu0 %v3581
        %v3583 = vand.u32 %v1344, 4294901760
        %3584 = vmatpush.msra.mxu0 %v3583
        %v3585 = vand.u32 %v1336, 4294901760
        %3586 = vmatpush.msra.mxu0 %v3585
        %v3587 = vand.u32 %v1328, 4294901760
        %3588 = vmatpush.msra.mxu0 %v3587
        %v3589 = vand.u32 %v1320, 4294901760
        %3590 = vmatpush.msra.mxu0 %v3589
        %v3591 = vand.u32 %v1312, 4294901760
        %3592 = vmatpush.msra.mxu0 %v3591
        %v3593 = vand.u32 %v1304, 4294901760
        %3594 = vmatpush.msra.mxu0 %v3593
        %v3595 = vand.u32 %v1296, 4294901760
        %3596 = vmatpush.msra.mxu0 %v3595
        %v3597 = vand.u32 %v1288, 4294901760
        %3598 = vmatpush.msra.mxu0 %v3597
        %v3599 = vand.u32 %v1280, 4294901760
        %3600 = vmatpush.msra.mxu0 %v3599
        %v3601 = vand.u32 %v1272, 4294901760
        %3602 = vmatpush.msra.mxu0 %v3601
        %v3603 = vand.u32 %v767, 4294901760
        %v3604 = vsub.f32 %v767, %v3603
        %v3605 = vand.u32 %v3604, 4294901760
        %v3606 = vsub.f32 %v3604, %v3605
        %v3607 = vand.u32 %v3606, 4294901760
        %3608 = vmatmul.f32.gmra.mxu0 %v3607
        %v3609 = vpop.f32.mrf.mxu0
        %v3610 = vadd.f32 0.0, %v3609
        %3611 = vdwg.mxu0
        %v3612 = vand.u32 %v1392, 4294901760
        %v3613 = vsub.f32 %v1392, %v3612
        %v3614 = vand.u32 %v3613, 4294901760
        %v3615 = vsub.f32 %v3613, %v3614
        %v3616 = vand.u32 %v3615, 4294901760
        %3617 = vmatpush.msra.mxu0 %v3616
        %v3618 = vand.u32 %v1384, 4294901760
        %v3619 = vsub.f32 %v1384, %v3618
        %v3620 = vand.u32 %v3619, 4294901760
        %v3621 = vsub.f32 %v3619, %v3620
        %v3622 = vand.u32 %v3621, 4294901760
        %3623 = vmatpush.msra.mxu0 %v3622
        %v3624 = vand.u32 %v1376, 4294901760
        %v3625 = vsub.f32 %v1376, %v3624
        %v3626 = vand.u32 %v3625, 4294901760
        %v3627 = vsub.f32 %v3625, %v3626
        %v3628 = vand.u32 %v3627, 4294901760
        %3629 = vmatpush.msra.mxu0 %v3628
        %v3630 = vand.u32 %v1368, 4294901760
        %v3631 = vsub.f32 %v1368, %v3630
        %v3632 = vand.u32 %v3631, 4294901760
        %v3633 = vsub.f32 %v3631, %v3632
        %v3634 = vand.u32 %v3633, 4294901760
        %3635 = vmatpush.msra.mxu0 %v3634
        %v3636 = vand.u32 %v1360, 4294901760
        %v3637 = vsub.f32 %v1360, %v3636
        %v3638 = vand.u32 %v3637, 4294901760
        %v3639 = vsub.f32 %v3637, %v3638
        %v3640 = vand.u32 %v3639, 4294901760
        %3641 = vmatpush.msra.mxu0 %v3640
        %v3642 = vand.u32 %v1352, 4294901760
        %v3643 = vsub.f32 %v1352, %v3642
        %v3644 = vand.u32 %v3643, 4294901760
        %v3645 = vsub.f32 %v3643, %v3644
        %v3646 = vand.u32 %v3645, 4294901760
        %3647 = vmatpush.msra.mxu0 %v3646
        %v3648 = vand.u32 %v1344, 4294901760
        %v3649 = vsub.f32 %v1344, %v3648
        %v3650 = vand.u32 %v3649, 4294901760
        %v3651 = vsub.f32 %v3649, %v3650
        %v3652 = vand.u32 %v3651, 4294901760
        %3653 = vmatpush.msra.mxu0 %v3652
        %v3654 = vand.u32 %v1336, 4294901760
        %v3655 = vsub.f32 %v1336, %v3654
        %v3656 = vand.u32 %v3655, 4294901760
        %v3657 = vsub.f32 %v3655, %v3656
        %v3658 = vand.u32 %v3657, 4294901760
        %3659 = vmatpush.msra.mxu0 %v3658
        %v3660 = vand.u32 %v1328, 4294901760
        %v3661 = vsub.f32 %v1328, %v3660
        %v3662 = vand.u32 %v3661, 4294901760
        %v3663 = vsub.f32 %v3661, %v3662
        %v3664 = vand.u32 %v3663, 4294901760
        %3665 = vmatpush.msra.mxu0 %v3664
        %v3666 = vand.u32 %v1320, 4294901760
        %v3667 = vsub.f32 %v1320, %v3666
        %v3668 = vand.u32 %v3667, 4294901760
        %v3669 = vsub.f32 %v3667, %v3668
        %v3670 = vand.u32 %v3669, 4294901760
        %3671 = vmatpush.msra.mxu0 %v3670
        %v3672 = vand.u32 %v1312, 4294901760
        %v3673 = vsub.f32 %v1312, %v3672
        %v3674 = vand.u32 %v3673, 4294901760
        %v3675 = vsub.f32 %v3673, %v3674
        %v3676 = vand.u32 %v3675, 4294901760
        %3677 = vmatpush.msra.mxu0 %v3676
        %v3678 = vand.u32 %v1304, 4294901760
        %v3679 = vsub.f32 %v1304, %v3678
        %v3680 = vand.u32 %v3679, 4294901760
        %v3681 = vsub.f32 %v3679, %v3680
        %v3682 = vand.u32 %v3681, 4294901760
        %3683 = vmatpush.msra.mxu0 %v3682
        %v3684 = vand.u32 %v1296, 4294901760
        %v3685 = vsub.f32 %v1296, %v3684
        %v3686 = vand.u32 %v3685, 4294901760
        %v3687 = vsub.f32 %v3685, %v3686
        %v3688 = vand.u32 %v3687, 4294901760
        %3689 = vmatpush.msra.mxu0 %v3688
        %v3690 = vand.u32 %v1288, 4294901760
        %v3691 = vsub.f32 %v1288, %v3690
        %v3692 = vand.u32 %v3691, 4294901760
        %v3693 = vsub.f32 %v3691, %v3692
        %v3694 = vand.u32 %v3693, 4294901760
        %3695 = vmatpush.msra.mxu0 %v3694
        %v3696 = vand.u32 %v1280, 4294901760
        %v3697 = vsub.f32 %v1280, %v3696
        %v3698 = vand.u32 %v3697, 4294901760
        %v3699 = vsub.f32 %v3697, %v3698
        %v3700 = vand.u32 %v3699, 4294901760
        %3701 = vmatpush.msra.mxu0 %v3700
        %v3702 = vand.u32 %v1272, 4294901760
        %v3703 = vsub.f32 %v1272, %v3702
        %v3704 = vand.u32 %v3703, 4294901760
        %v3705 = vsub.f32 %v3703, %v3704
        %v3706 = vand.u32 %v3705, 4294901760
        %3707 = vmatpush.msra.mxu0 %v3706
        %v3708 = vand.u32 %v767, 4294901760
        %3709 = vmatmul.f32.gmra.mxu0 %v3708
        %v3710 = vpop.f32.mrf.mxu0
        %v3711 = vadd.f32 %v3610, %v3710
        %3712 = vdwg.mxu0
        %v3713 = vand.u32 %v1392, 4294901760
        %v3714 = vsub.f32 %v1392, %v3713
        %3715 = vmatpush.msra.mxu0 %v3714
        %v3716 = vand.u32 %v1384, 4294901760
        %v3717 = vsub.f32 %v1384, %v3716
        %3718 = vmatpush.msra.mxu0 %v3717
        %v3719 = vand.u32 %v1376, 4294901760
        %v3720 = vsub.f32 %v1376, %v3719
        %3721 = vmatpush.msra.mxu0 %v3720
        %v3722 = vand.u32 %v1368, 4294901760
        %v3723 = vsub.f32 %v1368, %v3722
        %3724 = vmatpush.msra.mxu0 %v3723
        %v3725 = vand.u32 %v1360, 4294901760
        %v3726 = vsub.f32 %v1360, %v3725
        %3727 = vmatpush.msra.mxu0 %v3726
        %v3728 = vand.u32 %v1352, 4294901760
        %v3729 = vsub.f32 %v1352, %v3728
        %3730 = vmatpush.msra.mxu0 %v3729
        %v3731 = vand.u32 %v1344, 4294901760
        %v3732 = vsub.f32 %v1344, %v3731
        %3733 = vmatpush.msra.mxu0 %v3732
        %v3734 = vand.u32 %v1336, 4294901760
        %v3735 = vsub.f32 %v1336, %v3734
        %3736 = vmatpush.msra.mxu0 %v3735
        %v3737 = vand.u32 %v1328, 4294901760
        %v3738 = vsub.f32 %v1328, %v3737
        %3739 = vmatpush.msra.mxu0 %v3738
        %v3740 = vand.u32 %v1320, 4294901760
        %v3741 = vsub.f32 %v1320, %v3740
        %3742 = vmatpush.msra.mxu0 %v3741
        %v3743 = vand.u32 %v1312, 4294901760
        %v3744 = vsub.f32 %v1312, %v3743
        %3745 = vmatpush.msra.mxu0 %v3744
        %v3746 = vand.u32 %v1304, 4294901760
        %v3747 = vsub.f32 %v1304, %v3746
        %3748 = vmatpush.msra.mxu0 %v3747
        %v3749 = vand.u32 %v1296, 4294901760
        %v3750 = vsub.f32 %v1296, %v3749
        %3751 = vmatpush.msra.mxu0 %v3750
        %v3752 = vand.u32 %v1288, 4294901760
        %v3753 = vsub.f32 %v1288, %v3752
        %3754 = vmatpush.msra.mxu0 %v3753
        %v3755 = vand.u32 %v1280, 4294901760
        %v3756 = vsub.f32 %v1280, %v3755
        %3757 = vmatpush.msra.mxu0 %v3756
        %v3758 = vand.u32 %v1272, 4294901760
        %v3759 = vsub.f32 %v1272, %v3758
        %3760 = vmatpush.msra.mxu0 %v3759
        %v3761 = vand.u32 %v767, 4294901760
        %v3762 = vsub.f32 %v767, %v3761
        %3763 = vmatmul.f32.gmra.mxu0 %v3762
        %v3764 = vpop.f32.mrf.mxu0
        %v3765 = vadd.f32 %v3711, %v3764
        %3766 = vdwg.mxu0
        %v3767 = vand.u32 %v1392, 4294901760
        %3768 = vmatpush.msra.mxu0 %v3767
        %v3769 = vand.u32 %v1384, 4294901760
        %3770 = vmatpush.msra.mxu0 %v3769
        %v3771 = vand.u32 %v1376, 4294901760
        %3772 = vmatpush.msra.mxu0 %v3771
        %v3773 = vand.u32 %v1368, 4294901760
        %3774 = vmatpush.msra.mxu0 %v3773
        %v3775 = vand.u32 %v1360, 4294901760
        %3776 = vmatpush.msra.mxu0 %v3775
        %v3777 = vand.u32 %v1352, 4294901760
        %3778 = vmatpush.msra.mxu0 %v3777
        %v3779 = vand.u32 %v1344, 4294901760
        %3780 = vmatpush.msra.mxu0 %v3779
        %v3781 = vand.u32 %v1336, 4294901760
        %3782 = vmatpush.msra.mxu0 %v3781
        %v3783 = vand.u32 %v1328, 4294901760
        %3784 = vmatpush.msra.mxu0 %v3783
        %v3785 = vand.u32 %v1320, 4294901760
        %3786 = vmatpush.msra.mxu0 %v3785
        %v3787 = vand.u32 %v1312, 4294901760
        %3788 = vmatpush.msra.mxu0 %v3787
        %v3789 = vand.u32 %v1304, 4294901760
        %3790 = vmatpush.msra.mxu0 %v3789
        %v3791 = vand.u32 %v1296, 4294901760
        %3792 = vmatpush.msra.mxu0 %v3791
        %v3793 = vand.u32 %v1288, 4294901760
        %3794 = vmatpush.msra.mxu0 %v3793
        %v3795 = vand.u32 %v1280, 4294901760
        %3796 = vmatpush.msra.mxu0 %v3795
        %v3797 = vand.u32 %v1272, 4294901760
        %3798 = vmatpush.msra.mxu0 %v3797
        %v3799 = vand.u32 %v767, 4294901760
        %v3800 = vsub.f32 %v767, %v3799
        %v3801 = vand.u32 %v3800, 4294901760
        %3802 = vmatmul.f32.gmra.mxu0 %v3801
        %v3803 = vpop.f32.mrf.mxu0
        %v3804 = vadd.f32 %v3765, %v3803
        %3805 = vdwg.mxu0
        %v3806 = vand.u32 %v1392, 4294901760
        %v3807 = vsub.f32 %v1392, %v3806
        %v3808 = vand.u32 %v3807, 4294901760
        %3809 = vmatpush.msra.mxu0 %v3808
        %v3810 = vand.u32 %v1384, 4294901760
        %v3811 = vsub.f32 %v1384, %v3810
        %v3812 = vand.u32 %v3811, 4294901760
        %3813 = vmatpush.msra.mxu0 %v3812
        %v3814 = vand.u32 %v1376, 4294901760
        %v3815 = vsub.f32 %v1376, %v3814
        %v3816 = vand.u32 %v3815, 4294901760
        %3817 = vmatpush.msra.mxu0 %v3816
        %v3818 = vand.u32 %v1368, 4294901760
        %v3819 = vsub.f32 %v1368, %v3818
        %v3820 = vand.u32 %v3819, 4294901760
        %3821 = vmatpush.msra.mxu0 %v3820
        %v3822 = vand.u32 %v1360, 4294901760
        %v3823 = vsub.f32 %v1360, %v3822
        %v3824 = vand.u32 %v3823, 4294901760
        %3825 = vmatpush.msra.mxu0 %v3824
        %v3826 = vand.u32 %v1352, 4294901760
        %v3827 = vsub.f32 %v1352, %v3826
        %v3828 = vand.u32 %v3827, 4294901760
        %3829 = vmatpush.msra.mxu0 %v3828
        %v3830 = vand.u32 %v1344, 4294901760
        %v3831 = vsub.f32 %v1344, %v3830
        %v3832 = vand.u32 %v3831, 4294901760
        %3833 = vmatpush.msra.mxu0 %v3832
        %v3834 = vand.u32 %v1336, 4294901760
        %v3835 = vsub.f32 %v1336, %v3834
        %v3836 = vand.u32 %v3835, 4294901760
        %3837 = vmatpush.msra.mxu0 %v3836
        %v3838 = vand.u32 %v1328, 4294901760
        %v3839 = vsub.f32 %v1328, %v3838
        %v3840 = vand.u32 %v3839, 4294901760
        %3841 = vmatpush.msra.mxu0 %v3840
        %v3842 = vand.u32 %v1320, 4294901760
        %v3843 = vsub.f32 %v1320, %v3842
        %v3844 = vand.u32 %v3843, 4294901760
        %3845 = vmatpush.msra.mxu0 %v3844
        %v3846 = vand.u32 %v1312, 4294901760
        %v3847 = vsub.f32 %v1312, %v3846
        %v3848 = vand.u32 %v3847, 4294901760
        %3849 = vmatpush.msra.mxu0 %v3848
        %v3850 = vand.u32 %v1304, 4294901760
        %v3851 = vsub.f32 %v1304, %v3850
        %v3852 = vand.u32 %v3851, 4294901760
        %3853 = vmatpush.msra.mxu0 %v3852
        %v3854 = vand.u32 %v1296, 4294901760
        %v3855 = vsub.f32 %v1296, %v3854
        %v3856 = vand.u32 %v3855, 4294901760
        %3857 = vmatpush.msra.mxu0 %v3856
        %v3858 = vand.u32 %v1288, 4294901760
        %v3859 = vsub.f32 %v1288, %v3858
        %v3860 = vand.u32 %v3859, 4294901760
        %3861 = vmatpush.msra.mxu0 %v3860
        %v3862 = vand.u32 %v1280, 4294901760
        %v3863 = vsub.f32 %v1280, %v3862
        %v3864 = vand.u32 %v3863, 4294901760
        %3865 = vmatpush.msra.mxu0 %v3864
        %v3866 = vand.u32 %v1272, 4294901760
        %v3867 = vsub.f32 %v1272, %v3866
        %v3868 = vand.u32 %v3867, 4294901760
        %3869 = vmatpush.msra.mxu0 %v3868
        %v3870 = vand.u32 %v767, 4294901760
        %3871 = vmatmul.f32.gmra.mxu0 %v3870
        %v3872 = vpop.f32.mrf.mxu0
        %v3873 = vadd.f32 %v3804, %v3872
        %3874 = vdwg.mxu0
        %v3875 = vand.u32 %v1392, 4294901760
        %3876 = vmatpush.msra.mxu0 %v3875
        %v3877 = vand.u32 %v1384, 4294901760
        %3878 = vmatpush.msra.mxu0 %v3877
        %v3879 = vand.u32 %v1376, 4294901760
        %3880 = vmatpush.msra.mxu0 %v3879
        %v3881 = vand.u32 %v1368, 4294901760
        %3882 = vmatpush.msra.mxu0 %v3881
        %v3883 = vand.u32 %v1360, 4294901760
        %3884 = vmatpush.msra.mxu0 %v3883
        %v3885 = vand.u32 %v1352, 4294901760
        %3886 = vmatpush.msra.mxu0 %v3885
        %v3887 = vand.u32 %v1344, 4294901760
        %3888 = vmatpush.msra.mxu0 %v3887
        %v3889 = vand.u32 %v1336, 4294901760
        %3890 = vmatpush.msra.mxu0 %v3889
        %v3891 = vand.u32 %v1328, 4294901760
        %3892 = vmatpush.msra.mxu0 %v3891
        %v3893 = vand.u32 %v1320, 4294901760
        %3894 = vmatpush.msra.mxu0 %v3893
        %v3895 = vand.u32 %v1312, 4294901760
        %3896 = vmatpush.msra.mxu0 %v3895
        %v3897 = vand.u32 %v1304, 4294901760
        %3898 = vmatpush.msra.mxu0 %v3897
        %v3899 = vand.u32 %v1296, 4294901760
        %3900 = vmatpush.msra.mxu0 %v3899
        %v3901 = vand.u32 %v1288, 4294901760
        %3902 = vmatpush.msra.mxu0 %v3901
        %v3903 = vand.u32 %v1280, 4294901760
        %3904 = vmatpush.msra.mxu0 %v3903
        %v3905 = vand.u32 %v1272, 4294901760
        %3906 = vmatpush.msra.mxu0 %v3905
        %v3907 = vand.u32 %v767, 4294901760
        %3908 = vmatmul.f32.gmra.mxu0 %v3907
        %v3909 = vpop.f32.mrf.mxu0
        %v3910 = vadd.f32 %v3873, %v3909
        %3911 = vdwg.mxu0
        %v3912 = vand.u32 %v1520, 4294901760
        %3913 = vmatpush.msra.mxu0 %v3912
        %v3914 = vand.u32 %v1512, 4294901760
        %3915 = vmatpush.msra.mxu0 %v3914
        %v3916 = vand.u32 %v1504, 4294901760
        %3917 = vmatpush.msra.mxu0 %v3916
        %v3918 = vand.u32 %v1496, 4294901760
        %3919 = vmatpush.msra.mxu0 %v3918
        %v3920 = vand.u32 %v1488, 4294901760
        %3921 = vmatpush.msra.mxu0 %v3920
        %v3922 = vand.u32 %v1480, 4294901760
        %3923 = vmatpush.msra.mxu0 %v3922
        %v3924 = vand.u32 %v1472, 4294901760
        %3925 = vmatpush.msra.mxu0 %v3924
        %v3926 = vand.u32 %v1464, 4294901760
        %3927 = vmatpush.msra.mxu0 %v3926
        %v3928 = vand.u32 %v1456, 4294901760
        %3929 = vmatpush.msra.mxu0 %v3928
        %v3930 = vand.u32 %v1448, 4294901760
        %3931 = vmatpush.msra.mxu0 %v3930
        %v3932 = vand.u32 %v1440, 4294901760
        %3933 = vmatpush.msra.mxu0 %v3932
        %v3934 = vand.u32 %v1432, 4294901760
        %3935 = vmatpush.msra.mxu0 %v3934
        %v3936 = vand.u32 %v1424, 4294901760
        %3937 = vmatpush.msra.mxu0 %v3936
        %v3938 = vand.u32 %v1416, 4294901760
        %3939 = vmatpush.msra.mxu0 %v3938
        %v3940 = vand.u32 %v1408, 4294901760
        %3941 = vmatpush.msra.mxu0 %v3940
        %v3942 = vand.u32 %v1400, 4294901760
        %3943 = vmatpush.msra.mxu0 %v3942
        %v3944 = vand.u32 %v1267, 4294901760
        %v3945 = vsub.f32 %v1267, %v3944
        %v3946 = vand.u32 %v3945, 4294901760
        %v3947 = vsub.f32 %v3945, %v3946
        %v3948 = vand.u32 %v3947, 4294901760
        %3949 = vmatmul.f32.gmra.mxu0 %v3948
        %v3950 = vpop.f32.mrf.mxu0
        %v3951 = vadd.f32 %v3910, %v3950
        %3952 = vdwg.mxu0
        %v3953 = vand.u32 %v1520, 4294901760
        %v3954 = vsub.f32 %v1520, %v3953
        %v3955 = vand.u32 %v3954, 4294901760
        %v3956 = vsub.f32 %v3954, %v3955
        %v3957 = vand.u32 %v3956, 4294901760
        %3958 = vmatpush.msra.mxu0 %v3957
        %v3959 = vand.u32 %v1512, 4294901760
        %v3960 = vsub.f32 %v1512, %v3959
        %v3961 = vand.u32 %v3960, 4294901760
        %v3962 = vsub.f32 %v3960, %v3961
        %v3963 = vand.u32 %v3962, 4294901760
        %3964 = vmatpush.msra.mxu0 %v3963
        %v3965 = vand.u32 %v1504, 4294901760
        %v3966 = vsub.f32 %v1504, %v3965
        %v3967 = vand.u32 %v3966, 4294901760
        %v3968 = vsub.f32 %v3966, %v3967
        %v3969 = vand.u32 %v3968, 4294901760
        %3970 = vmatpush.msra.mxu0 %v3969
        %v3971 = vand.u32 %v1496, 4294901760
        %v3972 = vsub.f32 %v1496, %v3971
        %v3973 = vand.u32 %v3972, 4294901760
        %v3974 = vsub.f32 %v3972, %v3973
        %v3975 = vand.u32 %v3974, 4294901760
        %3976 = vmatpush.msra.mxu0 %v3975
        %v3977 = vand.u32 %v1488, 4294901760
        %v3978 = vsub.f32 %v1488, %v3977
        %v3979 = vand.u32 %v3978, 4294901760
        %v3980 = vsub.f32 %v3978, %v3979
        %v3981 = vand.u32 %v3980, 4294901760
        %3982 = vmatpush.msra.mxu0 %v3981
        %v3983 = vand.u32 %v1480, 4294901760
        %v3984 = vsub.f32 %v1480, %v3983
        %v3985 = vand.u32 %v3984, 4294901760
        %v3986 = vsub.f32 %v3984, %v3985
        %v3987 = vand.u32 %v3986, 4294901760
        %3988 = vmatpush.msra.mxu0 %v3987
        %v3989 = vand.u32 %v1472, 4294901760
        %v3990 = vsub.f32 %v1472, %v3989
        %v3991 = vand.u32 %v3990, 4294901760
        %v3992 = vsub.f32 %v3990, %v3991
        %v3993 = vand.u32 %v3992, 4294901760
        %3994 = vmatpush.msra.mxu0 %v3993
        %v3995 = vand.u32 %v1464, 4294901760
        %v3996 = vsub.f32 %v1464, %v3995
        %v3997 = vand.u32 %v3996, 4294901760
        %v3998 = vsub.f32 %v3996, %v3997
        %v3999 = vand.u32 %v3998, 4294901760
        %4000 = vmatpush.msra.mxu0 %v3999
        %v4001 = vand.u32 %v1456, 4294901760
        %v4002 = vsub.f32 %v1456, %v4001
        %v4003 = vand.u32 %v4002, 4294901760
        %v4004 = vsub.f32 %v4002, %v4003
        %v4005 = vand.u32 %v4004, 4294901760
        %4006 = vmatpush.msra.mxu0 %v4005
        %v4007 = vand.u32 %v1448, 4294901760
        %v4008 = vsub.f32 %v1448, %v4007
        %v4009 = vand.u32 %v4008, 4294901760
        %v4010 = vsub.f32 %v4008, %v4009
        %v4011 = vand.u32 %v4010, 4294901760
        %4012 = vmatpush.msra.mxu0 %v4011
        %v4013 = vand.u32 %v1440, 4294901760
        %v4014 = vsub.f32 %v1440, %v4013
        %v4015 = vand.u32 %v4014, 4294901760
        %v4016 = vsub.f32 %v4014, %v4015
        %v4017 = vand.u32 %v4016, 4294901760
        %4018 = vmatpush.msra.mxu0 %v4017
        %v4019 = vand.u32 %v1432, 4294901760
        %v4020 = vsub.f32 %v1432, %v4019
        %v4021 = vand.u32 %v4020, 4294901760
        %v4022 = vsub.f32 %v4020, %v4021
        %v4023 = vand.u32 %v4022, 4294901760
        %4024 = vmatpush.msra.mxu0 %v4023
        %v4025 = vand.u32 %v1424, 4294901760
        %v4026 = vsub.f32 %v1424, %v4025
        %v4027 = vand.u32 %v4026, 4294901760
        %v4028 = vsub.f32 %v4026, %v4027
        %v4029 = vand.u32 %v4028, 4294901760
        %4030 = vmatpush.msra.mxu0 %v4029
        %v4031 = vand.u32 %v1416, 4294901760
        %v4032 = vsub.f32 %v1416, %v4031
        %v4033 = vand.u32 %v4032, 4294901760
        %v4034 = vsub.f32 %v4032, %v4033
        %v4035 = vand.u32 %v4034, 4294901760
        %4036 = vmatpush.msra.mxu0 %v4035
        %v4037 = vand.u32 %v1408, 4294901760
        %v4038 = vsub.f32 %v1408, %v4037
        %v4039 = vand.u32 %v4038, 4294901760
        %v4040 = vsub.f32 %v4038, %v4039
        %v4041 = vand.u32 %v4040, 4294901760
        %4042 = vmatpush.msra.mxu0 %v4041
        %v4043 = vand.u32 %v1400, 4294901760
        %v4044 = vsub.f32 %v1400, %v4043
        %v4045 = vand.u32 %v4044, 4294901760
        %v4046 = vsub.f32 %v4044, %v4045
        %v4047 = vand.u32 %v4046, 4294901760
        %4048 = vmatpush.msra.mxu0 %v4047
        %v4049 = vand.u32 %v1267, 4294901760
        %4050 = vmatmul.f32.gmra.mxu0 %v4049
        %v4051 = vpop.f32.mrf.mxu0
        %v4052 = vadd.f32 %v3951, %v4051
        %4053 = vdwg.mxu0
        %v4054 = vand.u32 %v1520, 4294901760
        %v4055 = vsub.f32 %v1520, %v4054
        %4056 = vmatpush.msra.mxu0 %v4055
        %v4057 = vand.u32 %v1512, 4294901760
        %v4058 = vsub.f32 %v1512, %v4057
        %4059 = vmatpush.msra.mxu0 %v4058
        %v4060 = vand.u32 %v1504, 4294901760
        %v4061 = vsub.f32 %v1504, %v4060
        %4062 = vmatpush.msra.mxu0 %v4061
        %v4063 = vand.u32 %v1496, 4294901760
        %v4064 = vsub.f32 %v1496, %v4063
        %4065 = vmatpush.msra.mxu0 %v4064
        %v4066 = vand.u32 %v1488, 4294901760
        %v4067 = vsub.f32 %v1488, %v4066
        %4068 = vmatpush.msra.mxu0 %v4067
        %v4069 = vand.u32 %v1480, 4294901760
        %v4070 = vsub.f32 %v1480, %v4069
        %4071 = vmatpush.msra.mxu0 %v4070
        %v4072 = vand.u32 %v1472, 4294901760
        %v4073 = vsub.f32 %v1472, %v4072
        %4074 = vmatpush.msra.mxu0 %v4073
        %v4075 = vand.u32 %v1464, 4294901760
        %v4076 = vsub.f32 %v1464, %v4075
        %4077 = vmatpush.msra.mxu0 %v4076
        %v4078 = vand.u32 %v1456, 4294901760
        %v4079 = vsub.f32 %v1456, %v4078
        %4080 = vmatpush.msra.mxu0 %v4079
        %v4081 = vand.u32 %v1448, 4294901760
        %v4082 = vsub.f32 %v1448, %v4081
        %4083 = vmatpush.msra.mxu0 %v4082
        %v4084 = vand.u32 %v1440, 4294901760
        %v4085 = vsub.f32 %v1440, %v4084
        %4086 = vmatpush.msra.mxu0 %v4085
        %v4087 = vand.u32 %v1432, 4294901760
        %v4088 = vsub.f32 %v1432, %v4087
        %4089 = vmatpush.msra.mxu0 %v4088
        %v4090 = vand.u32 %v1424, 4294901760
        %v4091 = vsub.f32 %v1424, %v4090
        %4092 = vmatpush.msra.mxu0 %v4091
        %v4093 = vand.u32 %v1416, 4294901760
        %v4094 = vsub.f32 %v1416, %v4093
        %4095 = vmatpush.msra.mxu0 %v4094
        %v4096 = vand.u32 %v1408, 4294901760
        %v4097 = vsub.f32 %v1408, %v4096
        %4098 = vmatpush.msra.mxu0 %v4097
        %v4099 = vand.u32 %v1400, 4294901760
        %v4100 = vsub.f32 %v1400, %v4099
        %4101 = vmatpush.msra.mxu0 %v4100
        %v4102 = vand.u32 %v1267, 4294901760
        %v4103 = vsub.f32 %v1267, %v4102
        %4104 = vmatmul.f32.gmra.mxu0 %v4103
        %v4105 = vpop.f32.mrf.mxu0
        %v4106 = vadd.f32 %v4052, %v4105
        %4107 = vdwg.mxu0
        %v4108 = vand.u32 %v1520, 4294901760
        %4109 = vmatpush.msra.mxu0 %v4108
        %v4110 = vand.u32 %v1512, 4294901760
        %4111 = vmatpush.msra.mxu0 %v4110
        %v4112 = vand.u32 %v1504, 4294901760
        %4113 = vmatpush.msra.mxu0 %v4112
        %v4114 = vand.u32 %v1496, 4294901760
        %4115 = vmatpush.msra.mxu0 %v4114
        %v4116 = vand.u32 %v1488, 4294901760
        %4117 = vmatpush.msra.mxu0 %v4116
        %v4118 = vand.u32 %v1480, 4294901760
        %4119 = vmatpush.msra.mxu0 %v4118
        %v4120 = vand.u32 %v1472, 4294901760
        %4121 = vmatpush.msra.mxu0 %v4120
        %v4122 = vand.u32 %v1464, 4294901760
        %4123 = vmatpush.msra.mxu0 %v4122
        %v4124 = vand.u32 %v1456, 4294901760
        %4125 = vmatpush.msra.mxu0 %v4124
        %v4126 = vand.u32 %v1448, 4294901760
        %4127 = vmatpush.msra.mxu0 %v4126
        %v4128 = vand.u32 %v1440, 4294901760
        %4129 = vmatpush.msra.mxu0 %v4128
        %v4130 = vand.u32 %v1432, 4294901760
        %4131 = vmatpush.msra.mxu0 %v4130
        %v4132 = vand.u32 %v1424, 4294901760
        %4133 = vmatpush.msra.mxu0 %v4132
        %v4134 = vand.u32 %v1416, 4294901760
        %4135 = vmatpush.msra.mxu0 %v4134
        %v4136 = vand.u32 %v1408, 4294901760
        %4137 = vmatpush.msra.mxu0 %v4136
        %v4138 = vand.u32 %v1400, 4294901760
        %4139 = vmatpush.msra.mxu0 %v4138
        %v4140 = vand.u32 %v1267, 4294901760
        %v4141 = vsub.f32 %v1267, %v4140
        %v4142 = vand.u32 %v4141, 4294901760
        %4143 = vmatmul.f32.gmra.mxu0 %v4142
        %v4144 = vpop.f32.mrf.mxu0
        %v4145 = vadd.f32 %v4106, %v4144
        %4146 = vdwg.mxu0
        %v4147 = vand.u32 %v1520, 4294901760
        %v4148 = vsub.f32 %v1520, %v4147
        %v4149 = vand.u32 %v4148, 4294901760
        %4150 = vmatpush.msra.mxu0 %v4149
        %v4151 = vand.u32 %v1512, 4294901760
        %v4152 = vsub.f32 %v1512, %v4151
        %v4153 = vand.u32 %v4152, 4294901760
        %4154 = vmatpush.msra.mxu0 %v4153
        %v4155 = vand.u32 %v1504, 4294901760
        %v4156 = vsub.f32 %v1504, %v4155
        %v4157 = vand.u32 %v4156, 4294901760
        %4158 = vmatpush.msra.mxu0 %v4157
        %v4159 = vand.u32 %v1496, 4294901760
        %v4160 = vsub.f32 %v1496, %v4159
        %v4161 = vand.u32 %v4160, 4294901760
        %4162 = vmatpush.msra.mxu0 %v4161
        %v4163 = vand.u32 %v1488, 4294901760
        %v4164 = vsub.f32 %v1488, %v4163
        %v4165 = vand.u32 %v4164, 4294901760
        %4166 = vmatpush.msra.mxu0 %v4165
        %v4167 = vand.u32 %v1480, 4294901760
        %v4168 = vsub.f32 %v1480, %v4167
        %v4169 = vand.u32 %v4168, 4294901760
        %4170 = vmatpush.msra.mxu0 %v4169
        %v4171 = vand.u32 %v1472, 4294901760
        %v4172 = vsub.f32 %v1472, %v4171
        %v4173 = vand.u32 %v4172, 4294901760
        %4174 = vmatpush.msra.mxu0 %v4173
        %v4175 = vand.u32 %v1464, 4294901760
        %v4176 = vsub.f32 %v1464, %v4175
        %v4177 = vand.u32 %v4176, 4294901760
        %4178 = vmatpush.msra.mxu0 %v4177
        %v4179 = vand.u32 %v1456, 4294901760
        %v4180 = vsub.f32 %v1456, %v4179
        %v4181 = vand.u32 %v4180, 4294901760
        %4182 = vmatpush.msra.mxu0 %v4181
        %v4183 = vand.u32 %v1448, 4294901760
        %v4184 = vsub.f32 %v1448, %v4183
        %v4185 = vand.u32 %v4184, 4294901760
        %4186 = vmatpush.msra.mxu0 %v4185
        %v4187 = vand.u32 %v1440, 4294901760
        %v4188 = vsub.f32 %v1440, %v4187
        %v4189 = vand.u32 %v4188, 4294901760
        %4190 = vmatpush.msra.mxu0 %v4189
        %v4191 = vand.u32 %v1432, 4294901760
        %v4192 = vsub.f32 %v1432, %v4191
        %v4193 = vand.u32 %v4192, 4294901760
        %4194 = vmatpush.msra.mxu0 %v4193
        %v4195 = vand.u32 %v1424, 4294901760
        %v4196 = vsub.f32 %v1424, %v4195
        %v4197 = vand.u32 %v4196, 4294901760
        %4198 = vmatpush.msra.mxu0 %v4197
        %v4199 = vand.u32 %v1416, 4294901760
        %v4200 = vsub.f32 %v1416, %v4199
        %v4201 = vand.u32 %v4200, 4294901760
        %4202 = vmatpush.msra.mxu0 %v4201
        %v4203 = vand.u32 %v1408, 4294901760
        %v4204 = vsub.f32 %v1408, %v4203
        %v4205 = vand.u32 %v4204, 4294901760
        %4206 = vmatpush.msra.mxu0 %v4205
        %v4207 = vand.u32 %v1400, 4294901760
        %v4208 = vsub.f32 %v1400, %v4207
        %v4209 = vand.u32 %v4208, 4294901760
        %4210 = vmatpush.msra.mxu0 %v4209
        %v4211 = vand.u32 %v1267, 4294901760
        %4212 = vmatmul.f32.gmra.mxu0 %v4211
        %v4213 = vpop.f32.mrf.mxu0
        %v4214 = vadd.f32 %v4145, %v4213
        %4215 = vdwg.mxu0
        %v4216 = vand.u32 %v1520, 4294901760
        %4217 = vmatpush.msra.mxu0 %v4216
        %v4218 = vand.u32 %v1512, 4294901760
        %4219 = vmatpush.msra.mxu0 %v4218
        %v4220 = vand.u32 %v1504, 4294901760
        %4221 = vmatpush.msra.mxu0 %v4220
        %v4222 = vand.u32 %v1496, 4294901760
        %4223 = vmatpush.msra.mxu0 %v4222
        %v4224 = vand.u32 %v1488, 4294901760
        %4225 = vmatpush.msra.mxu0 %v4224
        %v4226 = vand.u32 %v1480, 4294901760
        %4227 = vmatpush.msra.mxu0 %v4226
        %v4228 = vand.u32 %v1472, 4294901760
        %4229 = vmatpush.msra.mxu0 %v4228
        %v4230 = vand.u32 %v1464, 4294901760
        %4231 = vmatpush.msra.mxu0 %v4230
        %v4232 = vand.u32 %v1456, 4294901760
        %4233 = vmatpush.msra.mxu0 %v4232
        %v4234 = vand.u32 %v1448, 4294901760
        %4235 = vmatpush.msra.mxu0 %v4234
        %v4236 = vand.u32 %v1440, 4294901760
        %4237 = vmatpush.msra.mxu0 %v4236
        %v4238 = vand.u32 %v1432, 4294901760
        %4239 = vmatpush.msra.mxu0 %v4238
        %v4240 = vand.u32 %v1424, 4294901760
        %4241 = vmatpush.msra.mxu0 %v4240
        %v4242 = vand.u32 %v1416, 4294901760
        %4243 = vmatpush.msra.mxu0 %v4242
        %v4244 = vand.u32 %v1408, 4294901760
        %4245 = vmatpush.msra.mxu0 %v4244
        %v4246 = vand.u32 %v1400, 4294901760
        %4247 = vmatpush.msra.mxu0 %v4246
        %v4248 = vand.u32 %v1267, 4294901760
        %4249 = vmatmul.f32.gmra.mxu0 %v4248
        %v4250 = vpop.f32.mrf.mxu0
        %v4251 = vadd.f32 %v4214, %v4250
        %4252 = vdwg.mxu0
        %v4253 = vand.u32 %v1393, 4294901760
        %4254 = vmatpush.msra.mxu0 %v4253
        %v4255 = vand.u32 %v1385, 4294901760
        %4256 = vmatpush.msra.mxu0 %v4255
        %v4257 = vand.u32 %v1377, 4294901760
        %4258 = vmatpush.msra.mxu0 %v4257
        %v4259 = vand.u32 %v1369, 4294901760
        %4260 = vmatpush.msra.mxu0 %v4259
        %v4261 = vand.u32 %v1361, 4294901760
        %4262 = vmatpush.msra.mxu0 %v4261
        %v4263 = vand.u32 %v1353, 4294901760
        %4264 = vmatpush.msra.mxu0 %v4263
        %v4265 = vand.u32 %v1345, 4294901760
        %4266 = vmatpush.msra.mxu0 %v4265
        %v4267 = vand.u32 %v1337, 4294901760
        %4268 = vmatpush.msra.mxu0 %v4267
        %v4269 = vand.u32 %v1329, 4294901760
        %4270 = vmatpush.msra.mxu0 %v4269
        %v4271 = vand.u32 %v1321, 4294901760
        %4272 = vmatpush.msra.mxu0 %v4271
        %v4273 = vand.u32 %v1313, 4294901760
        %4274 = vmatpush.msra.mxu0 %v4273
        %v4275 = vand.u32 %v1305, 4294901760
        %4276 = vmatpush.msra.mxu0 %v4275
        %v4277 = vand.u32 %v1297, 4294901760
        %4278 = vmatpush.msra.mxu0 %v4277
        %v4279 = vand.u32 %v1289, 4294901760
        %4280 = vmatpush.msra.mxu0 %v4279
        %v4281 = vand.u32 %v1281, 4294901760
        %4282 = vmatpush.msra.mxu0 %v4281
        %v4283 = vand.u32 %v1273, 4294901760
        %4284 = vmatpush.msra.mxu0 %v4283
        %v4285 = vand.u32 %v767, 4294901760
        %v4286 = vsub.f32 %v767, %v4285
        %v4287 = vand.u32 %v4286, 4294901760
        %v4288 = vsub.f32 %v4286, %v4287
        %v4289 = vand.u32 %v4288, 4294901760
        %4290 = vmatmul.f32.gmra.mxu0 %v4289
        %v4291 = vpop.f32.mrf.mxu0
        %v4292 = vadd.f32 0.0, %v4291
        %4293 = vdwg.mxu0
        %v4294 = vand.u32 %v1393, 4294901760
        %v4295 = vsub.f32 %v1393, %v4294
        %v4296 = vand.u32 %v4295, 4294901760
        %v4297 = vsub.f32 %v4295, %v4296
        %v4298 = vand.u32 %v4297, 4294901760
        %4299 = vmatpush.msra.mxu0 %v4298
        %v4300 = vand.u32 %v1385, 4294901760
        %v4301 = vsub.f32 %v1385, %v4300
        %v4302 = vand.u32 %v4301, 4294901760
        %v4303 = vsub.f32 %v4301, %v4302
        %v4304 = vand.u32 %v4303, 4294901760
        %4305 = vmatpush.msra.mxu0 %v4304
        %v4306 = vand.u32 %v1377, 4294901760
        %v4307 = vsub.f32 %v1377, %v4306
        %v4308 = vand.u32 %v4307, 4294901760
        %v4309 = vsub.f32 %v4307, %v4308
        %v4310 = vand.u32 %v4309, 4294901760
        %4311 = vmatpush.msra.mxu0 %v4310
        %v4312 = vand.u32 %v1369, 4294901760
        %v4313 = vsub.f32 %v1369, %v4312
        %v4314 = vand.u32 %v4313, 4294901760
        %v4315 = vsub.f32 %v4313, %v4314
        %v4316 = vand.u32 %v4315, 4294901760
        %4317 = vmatpush.msra.mxu0 %v4316
        %v4318 = vand.u32 %v1361, 4294901760
        %v4319 = vsub.f32 %v1361, %v4318
        %v4320 = vand.u32 %v4319, 4294901760
        %v4321 = vsub.f32 %v4319, %v4320
        %v4322 = vand.u32 %v4321, 4294901760
        %4323 = vmatpush.msra.mxu0 %v4322
        %v4324 = vand.u32 %v1353, 4294901760
        %v4325 = vsub.f32 %v1353, %v4324
        %v4326 = vand.u32 %v4325, 4294901760
        %v4327 = vsub.f32 %v4325, %v4326
        %v4328 = vand.u32 %v4327, 4294901760
        %4329 = vmatpush.msra.mxu0 %v4328
        %v4330 = vand.u32 %v1345, 4294901760
        %v4331 = vsub.f32 %v1345, %v4330
        %v4332 = vand.u32 %v4331, 4294901760
        %v4333 = vsub.f32 %v4331, %v4332
        %v4334 = vand.u32 %v4333, 4294901760
        %4335 = vmatpush.msra.mxu0 %v4334
        %v4336 = vand.u32 %v1337, 4294901760
        %v4337 = vsub.f32 %v1337, %v4336
        %v4338 = vand.u32 %v4337, 4294901760
        %v4339 = vsub.f32 %v4337, %v4338
        %v4340 = vand.u32 %v4339, 4294901760
        %4341 = vmatpush.msra.mxu0 %v4340
        %v4342 = vand.u32 %v1329, 4294901760
        %v4343 = vsub.f32 %v1329, %v4342
        %v4344 = vand.u32 %v4343, 4294901760
        %v4345 = vsub.f32 %v4343, %v4344
        %v4346 = vand.u32 %v4345, 4294901760
        %4347 = vmatpush.msra.mxu0 %v4346
        %v4348 = vand.u32 %v1321, 4294901760
        %v4349 = vsub.f32 %v1321, %v4348
        %v4350 = vand.u32 %v4349, 4294901760
        %v4351 = vsub.f32 %v4349, %v4350
        %v4352 = vand.u32 %v4351, 4294901760
        %4353 = vmatpush.msra.mxu0 %v4352
        %v4354 = vand.u32 %v1313, 4294901760
        %v4355 = vsub.f32 %v1313, %v4354
        %v4356 = vand.u32 %v4355, 4294901760
        %v4357 = vsub.f32 %v4355, %v4356
        %v4358 = vand.u32 %v4357, 4294901760
        %4359 = vmatpush.msra.mxu0 %v4358
        %v4360 = vand.u32 %v1305, 4294901760
        %v4361 = vsub.f32 %v1305, %v4360
        %v4362 = vand.u32 %v4361, 4294901760
        %v4363 = vsub.f32 %v4361, %v4362
        %v4364 = vand.u32 %v4363, 4294901760
        %4365 = vmatpush.msra.mxu0 %v4364
        %v4366 = vand.u32 %v1297, 4294901760
        %v4367 = vsub.f32 %v1297, %v4366
        %v4368 = vand.u32 %v4367, 4294901760
        %v4369 = vsub.f32 %v4367, %v4368
        %v4370 = vand.u32 %v4369, 4294901760
        %4371 = vmatpush.msra.mxu0 %v4370
        %v4372 = vand.u32 %v1289, 4294901760
        %v4373 = vsub.f32 %v1289, %v4372
        %v4374 = vand.u32 %v4373, 4294901760
        %v4375 = vsub.f32 %v4373, %v4374
        %v4376 = vand.u32 %v4375, 4294901760
        %4377 = vmatpush.msra.mxu0 %v4376
        %v4378 = vand.u32 %v1281, 4294901760
        %v4379 = vsub.f32 %v1281, %v4378
        %v4380 = vand.u32 %v4379, 4294901760
        %v4381 = vsub.f32 %v4379, %v4380
        %v4382 = vand.u32 %v4381, 4294901760
        %4383 = vmatpush.msra.mxu0 %v4382
        %v4384 = vand.u32 %v1273, 4294901760
        %v4385 = vsub.f32 %v1273, %v4384
        %v4386 = vand.u32 %v4385, 4294901760
        %v4387 = vsub.f32 %v4385, %v4386
        %v4388 = vand.u32 %v4387, 4294901760
        %4389 = vmatpush.msra.mxu0 %v4388
        %v4390 = vand.u32 %v767, 4294901760
        %4391 = vmatmul.f32.gmra.mxu0 %v4390
        %v4392 = vpop.f32.mrf.mxu0
        %v4393 = vadd.f32 %v4292, %v4392
        %4394 = vdwg.mxu0
        %v4395 = vand.u32 %v1393, 4294901760
        %v4396 = vsub.f32 %v1393, %v4395
        %4397 = vmatpush.msra.mxu0 %v4396
        %v4398 = vand.u32 %v1385, 4294901760
        %v4399 = vsub.f32 %v1385, %v4398
        %4400 = vmatpush.msra.mxu0 %v4399
        %v4401 = vand.u32 %v1377, 4294901760
        %v4402 = vsub.f32 %v1377, %v4401
        %4403 = vmatpush.msra.mxu0 %v4402
        %v4404 = vand.u32 %v1369, 4294901760
        %v4405 = vsub.f32 %v1369, %v4404
        %4406 = vmatpush.msra.mxu0 %v4405
        %v4407 = vand.u32 %v1361, 4294901760
        %v4408 = vsub.f32 %v1361, %v4407
        %4409 = vmatpush.msra.mxu0 %v4408
        %v4410 = vand.u32 %v1353, 4294901760
        %v4411 = vsub.f32 %v1353, %v4410
        %4412 = vmatpush.msra.mxu0 %v4411
        %v4413 = vand.u32 %v1345, 4294901760
        %v4414 = vsub.f32 %v1345, %v4413
        %4415 = vmatpush.msra.mxu0 %v4414
        %v4416 = vand.u32 %v1337, 4294901760
        %v4417 = vsub.f32 %v1337, %v4416
        %4418 = vmatpush.msra.mxu0 %v4417
        %v4419 = vand.u32 %v1329, 4294901760
        %v4420 = vsub.f32 %v1329, %v4419
        %4421 = vmatpush.msra.mxu0 %v4420
        %v4422 = vand.u32 %v1321, 4294901760
        %v4423 = vsub.f32 %v1321, %v4422
        %4424 = vmatpush.msra.mxu0 %v4423
        %v4425 = vand.u32 %v1313, 4294901760
        %v4426 = vsub.f32 %v1313, %v4425
        %4427 = vmatpush.msra.mxu0 %v4426
        %v4428 = vand.u32 %v1305, 4294901760
        %v4429 = vsub.f32 %v1305, %v4428
        %4430 = vmatpush.msra.mxu0 %v4429
        %v4431 = vand.u32 %v1297, 4294901760
        %v4432 = vsub.f32 %v1297, %v4431
        %4433 = vmatpush.msra.mxu0 %v4432
        %v4434 = vand.u32 %v1289, 4294901760
        %v4435 = vsub.f32 %v1289, %v4434
        %4436 = vmatpush.msra.mxu0 %v4435
        %v4437 = vand.u32 %v1281, 4294901760
        %v4438 = vsub.f32 %v1281, %v4437
        %4439 = vmatpush.msra.mxu0 %v4438
        %v4440 = vand.u32 %v1273, 4294901760
        %v4441 = vsub.f32 %v1273, %v4440
        %4442 = vmatpush.msra.mxu0 %v4441
        %v4443 = vand.u32 %v767, 4294901760
        %v4444 = vsub.f32 %v767, %v4443
        %4445 = vmatmul.f32.gmra.mxu0 %v4444
        %v4446 = vpop.f32.mrf.mxu0
        %v4447 = vadd.f32 %v4393, %v4446
        %4448 = vdwg.mxu0
        %v4449 = vand.u32 %v1393, 4294901760
        %4450 = vmatpush.msra.mxu0 %v4449
        %v4451 = vand.u32 %v1385, 4294901760
        %4452 = vmatpush.msra.mxu0 %v4451
        %v4453 = vand.u32 %v1377, 4294901760
        %4454 = vmatpush.msra.mxu0 %v4453
        %v4455 = vand.u32 %v1369, 4294901760
        %4456 = vmatpush.msra.mxu0 %v4455
        %v4457 = vand.u32 %v1361, 4294901760
        %4458 = vmatpush.msra.mxu0 %v4457
        %v4459 = vand.u32 %v1353, 4294901760
        %4460 = vmatpush.msra.mxu0 %v4459
        %v4461 = vand.u32 %v1345, 4294901760
        %4462 = vmatpush.msra.mxu0 %v4461
        %v4463 = vand.u32 %v1337, 4294901760
        %4464 = vmatpush.msra.mxu0 %v4463
        %v4465 = vand.u32 %v1329, 4294901760
        %4466 = vmatpush.msra.mxu0 %v4465
        %v4467 = vand.u32 %v1321, 4294901760
        %4468 = vmatpush.msra.mxu0 %v4467
        %v4469 = vand.u32 %v1313, 4294901760
        %4470 = vmatpush.msra.mxu0 %v4469
        %v4471 = vand.u32 %v1305, 4294901760
        %4472 = vmatpush.msra.mxu0 %v4471
        %v4473 = vand.u32 %v1297, 4294901760
        %4474 = vmatpush.msra.mxu0 %v4473
        %v4475 = vand.u32 %v1289, 4294901760
        %4476 = vmatpush.msra.mxu0 %v4475
        %v4477 = vand.u32 %v1281, 4294901760
        %4478 = vmatpush.msra.mxu0 %v4477
        %v4479 = vand.u32 %v1273, 4294901760
        %4480 = vmatpush.msra.mxu0 %v4479
        %v4481 = vand.u32 %v767, 4294901760
        %v4482 = vsub.f32 %v767, %v4481
        %v4483 = vand.u32 %v4482, 4294901760
        %4484 = vmatmul.f32.gmra.mxu0 %v4483
        %v4485 = vpop.f32.mrf.mxu0
        %v4486 = vadd.f32 %v4447, %v4485
        %4487 = vdwg.mxu0
        %v4488 = vand.u32 %v1393, 4294901760
        %v4489 = vsub.f32 %v1393, %v4488
        %v4490 = vand.u32 %v4489, 4294901760
        %4491 = vmatpush.msra.mxu0 %v4490
        %v4492 = vand.u32 %v1385, 4294901760
        %v4493 = vsub.f32 %v1385, %v4492
        %v4494 = vand.u32 %v4493, 4294901760
        %4495 = vmatpush.msra.mxu0 %v4494
        %v4496 = vand.u32 %v1377, 4294901760
        %v4497 = vsub.f32 %v1377, %v4496
        %v4498 = vand.u32 %v4497, 4294901760
        %4499 = vmatpush.msra.mxu0 %v4498
        %v4500 = vand.u32 %v1369, 4294901760
        %v4501 = vsub.f32 %v1369, %v4500
        %v4502 = vand.u32 %v4501, 4294901760
        %4503 = vmatpush.msra.mxu0 %v4502
        %v4504 = vand.u32 %v1361, 4294901760
        %v4505 = vsub.f32 %v1361, %v4504
        %v4506 = vand.u32 %v4505, 4294901760
        %4507 = vmatpush.msra.mxu0 %v4506
        %v4508 = vand.u32 %v1353, 4294901760
        %v4509 = vsub.f32 %v1353, %v4508
        %v4510 = vand.u32 %v4509, 4294901760
        %4511 = vmatpush.msra.mxu0 %v4510
        %v4512 = vand.u32 %v1345, 4294901760
        %v4513 = vsub.f32 %v1345, %v4512
        %v4514 = vand.u32 %v4513, 4294901760
        %4515 = vmatpush.msra.mxu0 %v4514
        %v4516 = vand.u32 %v1337, 4294901760
        %v4517 = vsub.f32 %v1337, %v4516
        %v4518 = vand.u32 %v4517, 4294901760
        %4519 = vmatpush.msra.mxu0 %v4518
        %v4520 = vand.u32 %v1329, 4294901760
        %v4521 = vsub.f32 %v1329, %v4520
        %v4522 = vand.u32 %v4521, 4294901760
        %4523 = vmatpush.msra.mxu0 %v4522
        %v4524 = vand.u32 %v1321, 4294901760
        %v4525 = vsub.f32 %v1321, %v4524
        %v4526 = vand.u32 %v4525, 4294901760
        %4527 = vmatpush.msra.mxu0 %v4526
        %v4528 = vand.u32 %v1313, 4294901760
        %v4529 = vsub.f32 %v1313, %v4528
        %v4530 = vand.u32 %v4529, 4294901760
        %4531 = vmatpush.msra.mxu0 %v4530
        %v4532 = vand.u32 %v1305, 4294901760
        %v4533 = vsub.f32 %v1305, %v4532
        %v4534 = vand.u32 %v4533, 4294901760
        %4535 = vmatpush.msra.mxu0 %v4534
        %v4536 = vand.u32 %v1297, 4294901760
        %v4537 = vsub.f32 %v1297, %v4536
        %v4538 = vand.u32 %v4537, 4294901760
        %4539 = vmatpush.msra.mxu0 %v4538
        %v4540 = vand.u32 %v1289, 4294901760
        %v4541 = vsub.f32 %v1289, %v4540
        %v4542 = vand.u32 %v4541, 4294901760
        %4543 = vmatpush.msra.mxu0 %v4542
        %v4544 = vand.u32 %v1281, 4294901760
        %v4545 = vsub.f32 %v1281, %v4544
        %v4546 = vand.u32 %v4545, 4294901760
        %4547 = vmatpush.msra.mxu0 %v4546
        %v4548 = vand.u32 %v1273, 4294901760
        %v4549 = vsub.f32 %v1273, %v4548
        %v4550 = vand.u32 %v4549, 4294901760
        %4551 = vmatpush.msra.mxu0 %v4550
        %v4552 = vand.u32 %v767, 4294901760
        %4553 = vmatmul.f32.gmra.mxu0 %v4552
        %v4554 = vpop.f32.mrf.mxu0
        %v4555 = vadd.f32 %v4486, %v4554
        %4556 = vdwg.mxu0
        %v4557 = vand.u32 %v1393, 4294901760
        %4558 = vmatpush.msra.mxu0 %v4557
        %v4559 = vand.u32 %v1385, 4294901760
        %4560 = vmatpush.msra.mxu0 %v4559
        %v4561 = vand.u32 %v1377, 4294901760
        %4562 = vmatpush.msra.mxu0 %v4561
        %v4563 = vand.u32 %v1369, 4294901760
        %4564 = vmatpush.msra.mxu0 %v4563
        %v4565 = vand.u32 %v1361, 4294901760
        %4566 = vmatpush.msra.mxu0 %v4565
        %v4567 = vand.u32 %v1353, 4294901760
        %4568 = vmatpush.msra.mxu0 %v4567
        %v4569 = vand.u32 %v1345, 4294901760
        %4570 = vmatpush.msra.mxu0 %v4569
        %v4571 = vand.u32 %v1337, 4294901760
        %4572 = vmatpush.msra.mxu0 %v4571
        %v4573 = vand.u32 %v1329, 4294901760
        %4574 = vmatpush.msra.mxu0 %v4573
        %v4575 = vand.u32 %v1321, 4294901760
        %4576 = vmatpush.msra.mxu0 %v4575
        %v4577 = vand.u32 %v1313, 4294901760
        %4578 = vmatpush.msra.mxu0 %v4577
        %v4579 = vand.u32 %v1305, 4294901760
        %4580 = vmatpush.msra.mxu0 %v4579
        %v4581 = vand.u32 %v1297, 4294901760
        %4582 = vmatpush.msra.mxu0 %v4581
        %v4583 = vand.u32 %v1289, 4294901760
        %4584 = vmatpush.msra.mxu0 %v4583
        %v4585 = vand.u32 %v1281, 4294901760
        %4586 = vmatpush.msra.mxu0 %v4585
        %v4587 = vand.u32 %v1273, 4294901760
        %4588 = vmatpush.msra.mxu0 %v4587
        %v4589 = vand.u32 %v767, 4294901760
        %4590 = vmatmul.f32.gmra.mxu0 %v4589
        %v4591 = vpop.f32.mrf.mxu0
        %v4592 = vadd.f32 %v4555, %v4591
        %4593 = vdwg.mxu0
        %v4594 = vand.u32 %v1521, 4294901760
        %4595 = vmatpush.msra.mxu0 %v4594
        %v4596 = vand.u32 %v1513, 4294901760
        %4597 = vmatpush.msra.mxu0 %v4596
        %v4598 = vand.u32 %v1505, 4294901760
        %4599 = vmatpush.msra.mxu0 %v4598
        %v4600 = vand.u32 %v1497, 4294901760
        %4601 = vmatpush.msra.mxu0 %v4600
        %v4602 = vand.u32 %v1489, 4294901760
        %4603 = vmatpush.msra.mxu0 %v4602
        %v4604 = vand.u32 %v1481, 4294901760
        %4605 = vmatpush.msra.mxu0 %v4604
        %v4606 = vand.u32 %v1473, 4294901760
        %4607 = vmatpush.msra.mxu0 %v4606
        %v4608 = vand.u32 %v1465, 4294901760
        %4609 = vmatpush.msra.mxu0 %v4608
        %v4610 = vand.u32 %v1457, 4294901760
        %4611 = vmatpush.msra.mxu0 %v4610
        %v4612 = vand.u32 %v1449, 4294901760
        %4613 = vmatpush.msra.mxu0 %v4612
        %v4614 = vand.u32 %v1441, 4294901760
        %4615 = vmatpush.msra.mxu0 %v4614
        %v4616 = vand.u32 %v1433, 4294901760
        %4617 = vmatpush.msra.mxu0 %v4616
        %v4618 = vand.u32 %v1425, 4294901760
        %4619 = vmatpush.msra.mxu0 %v4618
        %v4620 = vand.u32 %v1417, 4294901760
        %4621 = vmatpush.msra.mxu0 %v4620
        %v4622 = vand.u32 %v1409, 4294901760
        %4623 = vmatpush.msra.mxu0 %v4622
        %v4624 = vand.u32 %v1401, 4294901760
        %4625 = vmatpush.msra.mxu0 %v4624
        %v4626 = vand.u32 %v1267, 4294901760
        %v4627 = vsub.f32 %v1267, %v4626
        %v4628 = vand.u32 %v4627, 4294901760
        %v4629 = vsub.f32 %v4627, %v4628
        %v4630 = vand.u32 %v4629, 4294901760
        %4631 = vmatmul.f32.gmra.mxu0 %v4630
        %v4632 = vpop.f32.mrf.mxu0
        %v4633 = vadd.f32 %v4592, %v4632
        %4634 = vdwg.mxu0
        %v4635 = vand.u32 %v1521, 4294901760
        %v4636 = vsub.f32 %v1521, %v4635
        %v4637 = vand.u32 %v4636, 4294901760
        %v4638 = vsub.f32 %v4636, %v4637
        %v4639 = vand.u32 %v4638, 4294901760
        %4640 = vmatpush.msra.mxu0 %v4639
        %v4641 = vand.u32 %v1513, 4294901760
        %v4642 = vsub.f32 %v1513, %v4641
        %v4643 = vand.u32 %v4642, 4294901760
        %v4644 = vsub.f32 %v4642, %v4643
        %v4645 = vand.u32 %v4644, 4294901760
        %4646 = vmatpush.msra.mxu0 %v4645
        %v4647 = vand.u32 %v1505, 4294901760
        %v4648 = vsub.f32 %v1505, %v4647
        %v4649 = vand.u32 %v4648, 4294901760
        %v4650 = vsub.f32 %v4648, %v4649
        %v4651 = vand.u32 %v4650, 4294901760
        %4652 = vmatpush.msra.mxu0 %v4651
        %v4653 = vand.u32 %v1497, 4294901760
        %v4654 = vsub.f32 %v1497, %v4653
        %v4655 = vand.u32 %v4654, 4294901760
        %v4656 = vsub.f32 %v4654, %v4655
        %v4657 = vand.u32 %v4656, 4294901760
        %4658 = vmatpush.msra.mxu0 %v4657
        %v4659 = vand.u32 %v1489, 4294901760
        %v4660 = vsub.f32 %v1489, %v4659
        %v4661 = vand.u32 %v4660, 4294901760
        %v4662 = vsub.f32 %v4660, %v4661
        %v4663 = vand.u32 %v4662, 4294901760
        %4664 = vmatpush.msra.mxu0 %v4663
        %v4665 = vand.u32 %v1481, 4294901760
        %v4666 = vsub.f32 %v1481, %v4665
        %v4667 = vand.u32 %v4666, 4294901760
        %v4668 = vsub.f32 %v4666, %v4667
        %v4669 = vand.u32 %v4668, 4294901760
        %4670 = vmatpush.msra.mxu0 %v4669
        %v4671 = vand.u32 %v1473, 4294901760
        %v4672 = vsub.f32 %v1473, %v4671
        %v4673 = vand.u32 %v4672, 4294901760
        %v4674 = vsub.f32 %v4672, %v4673
        %v4675 = vand.u32 %v4674, 4294901760
        %4676 = vmatpush.msra.mxu0 %v4675
        %v4677 = vand.u32 %v1465, 4294901760
        %v4678 = vsub.f32 %v1465, %v4677
        %v4679 = vand.u32 %v4678, 4294901760
        %v4680 = vsub.f32 %v4678, %v4679
        %v4681 = vand.u32 %v4680, 4294901760
        %4682 = vmatpush.msra.mxu0 %v4681
        %v4683 = vand.u32 %v1457, 4294901760
        %v4684 = vsub.f32 %v1457, %v4683
        %v4685 = vand.u32 %v4684, 4294901760
        %v4686 = vsub.f32 %v4684, %v4685
        %v4687 = vand.u32 %v4686, 4294901760
        %4688 = vmatpush.msra.mxu0 %v4687
        %v4689 = vand.u32 %v1449, 4294901760
        %v4690 = vsub.f32 %v1449, %v4689
        %v4691 = vand.u32 %v4690, 4294901760
        %v4692 = vsub.f32 %v4690, %v4691
        %v4693 = vand.u32 %v4692, 4294901760
        %4694 = vmatpush.msra.mxu0 %v4693
        %v4695 = vand.u32 %v1441, 4294901760
        %v4696 = vsub.f32 %v1441, %v4695
        %v4697 = vand.u32 %v4696, 4294901760
        %v4698 = vsub.f32 %v4696, %v4697
        %v4699 = vand.u32 %v4698, 4294901760
        %4700 = vmatpush.msra.mxu0 %v4699
        %v4701 = vand.u32 %v1433, 4294901760
        %v4702 = vsub.f32 %v1433, %v4701
        %v4703 = vand.u32 %v4702, 4294901760
        %v4704 = vsub.f32 %v4702, %v4703
        %v4705 = vand.u32 %v4704, 4294901760
        %4706 = vmatpush.msra.mxu0 %v4705
        %v4707 = vand.u32 %v1425, 4294901760
        %v4708 = vsub.f32 %v1425, %v4707
        %v4709 = vand.u32 %v4708, 4294901760
        %v4710 = vsub.f32 %v4708, %v4709
        %v4711 = vand.u32 %v4710, 4294901760
        %4712 = vmatpush.msra.mxu0 %v4711
        %v4713 = vand.u32 %v1417, 4294901760
        %v4714 = vsub.f32 %v1417, %v4713
        %v4715 = vand.u32 %v4714, 4294901760
        %v4716 = vsub.f32 %v4714, %v4715
        %v4717 = vand.u32 %v4716, 4294901760
        %4718 = vmatpush.msra.mxu0 %v4717
        %v4719 = vand.u32 %v1409, 4294901760
        %v4720 = vsub.f32 %v1409, %v4719
        %v4721 = vand.u32 %v4720, 4294901760
        %v4722 = vsub.f32 %v4720, %v4721
        %v4723 = vand.u32 %v4722, 4294901760
        %4724 = vmatpush.msra.mxu0 %v4723
        %v4725 = vand.u32 %v1401, 4294901760
        %v4726 = vsub.f32 %v1401, %v4725
        %v4727 = vand.u32 %v4726, 4294901760
        %v4728 = vsub.f32 %v4726, %v4727
        %v4729 = vand.u32 %v4728, 4294901760
        %4730 = vmatpush.msra.mxu0 %v4729
        %v4731 = vand.u32 %v1267, 4294901760
        %4732 = vmatmul.f32.gmra.mxu0 %v4731
        %v4733 = vpop.f32.mrf.mxu0
        %v4734 = vadd.f32 %v4633, %v4733
        %4735 = vdwg.mxu0
        %v4736 = vand.u32 %v1521, 4294901760
        %v4737 = vsub.f32 %v1521, %v4736
        %4738 = vmatpush.msra.mxu0 %v4737
        %v4739 = vand.u32 %v1513, 4294901760
        %v4740 = vsub.f32 %v1513, %v4739
        %4741 = vmatpush.msra.mxu0 %v4740
        %v4742 = vand.u32 %v1505, 4294901760
        %v4743 = vsub.f32 %v1505, %v4742
        %4744 = vmatpush.msra.mxu0 %v4743
        %v4745 = vand.u32 %v1497, 4294901760
        %v4746 = vsub.f32 %v1497, %v4745
        %4747 = vmatpush.msra.mxu0 %v4746
        %v4748 = vand.u32 %v1489, 4294901760
        %v4749 = vsub.f32 %v1489, %v4748
        %4750 = vmatpush.msra.mxu0 %v4749
        %v4751 = vand.u32 %v1481, 4294901760
        %v4752 = vsub.f32 %v1481, %v4751
        %4753 = vmatpush.msra.mxu0 %v4752
        %v4754 = vand.u32 %v1473, 4294901760
        %v4755 = vsub.f32 %v1473, %v4754
        %4756 = vmatpush.msra.mxu0 %v4755
        %v4757 = vand.u32 %v1465, 4294901760
        %v4758 = vsub.f32 %v1465, %v4757
        %4759 = vmatpush.msra.mxu0 %v4758
        %v4760 = vand.u32 %v1457, 4294901760
        %v4761 = vsub.f32 %v1457, %v4760
        %4762 = vmatpush.msra.mxu0 %v4761
        %v4763 = vand.u32 %v1449, 4294901760
        %v4764 = vsub.f32 %v1449, %v4763
        %4765 = vmatpush.msra.mxu0 %v4764
        %v4766 = vand.u32 %v1441, 4294901760
        %v4767 = vsub.f32 %v1441, %v4766
        %4768 = vmatpush.msra.mxu0 %v4767
        %v4769 = vand.u32 %v1433, 4294901760
        %v4770 = vsub.f32 %v1433, %v4769
        %4771 = vmatpush.msra.mxu0 %v4770
        %v4772 = vand.u32 %v1425, 4294901760
        %v4773 = vsub.f32 %v1425, %v4772
        %4774 = vmatpush.msra.mxu0 %v4773
        %v4775 = vand.u32 %v1417, 4294901760
        %v4776 = vsub.f32 %v1417, %v4775
        %4777 = vmatpush.msra.mxu0 %v4776
        %v4778 = vand.u32 %v1409, 4294901760
        %v4779 = vsub.f32 %v1409, %v4778
        %4780 = vmatpush.msra.mxu0 %v4779
        %v4781 = vand.u32 %v1401, 4294901760
        %v4782 = vsub.f32 %v1401, %v4781
        %4783 = vmatpush.msra.mxu0 %v4782
        %v4784 = vand.u32 %v1267, 4294901760
        %v4785 = vsub.f32 %v1267, %v4784
        %4786 = vmatmul.f32.gmra.mxu0 %v4785
        %v4787 = vpop.f32.mrf.mxu0
        %v4788 = vadd.f32 %v4734, %v4787
        %4789 = vdwg.mxu0
        %v4790 = vand.u32 %v1521, 4294901760
        %4791 = vmatpush.msra.mxu0 %v4790
        %v4792 = vand.u32 %v1513, 4294901760
        %4793 = vmatpush.msra.mxu0 %v4792
        %v4794 = vand.u32 %v1505, 4294901760
        %4795 = vmatpush.msra.mxu0 %v4794
        %v4796 = vand.u32 %v1497, 4294901760
        %4797 = vmatpush.msra.mxu0 %v4796
        %v4798 = vand.u32 %v1489, 4294901760
        %4799 = vmatpush.msra.mxu0 %v4798
        %v4800 = vand.u32 %v1481, 4294901760
        %4801 = vmatpush.msra.mxu0 %v4800
        %v4802 = vand.u32 %v1473, 4294901760
        %4803 = vmatpush.msra.mxu0 %v4802
        %v4804 = vand.u32 %v1465, 4294901760
        %4805 = vmatpush.msra.mxu0 %v4804
        %v4806 = vand.u32 %v1457, 4294901760
        %4807 = vmatpush.msra.mxu0 %v4806
        %v4808 = vand.u32 %v1449, 4294901760
        %4809 = vmatpush.msra.mxu0 %v4808
        %v4810 = vand.u32 %v1441, 4294901760
        %4811 = vmatpush.msra.mxu0 %v4810
        %v4812 = vand.u32 %v1433, 4294901760
        %4813 = vmatpush.msra.mxu0 %v4812
        %v4814 = vand.u32 %v1425, 4294901760
        %4815 = vmatpush.msra.mxu0 %v4814
        %v4816 = vand.u32 %v1417, 4294901760
        %4817 = vmatpush.msra.mxu0 %v4816
        %v4818 = vand.u32 %v1409, 4294901760
        %4819 = vmatpush.msra.mxu0 %v4818
        %v4820 = vand.u32 %v1401, 4294901760
        %4821 = vmatpush.msra.mxu0 %v4820
        %v4822 = vand.u32 %v1267, 4294901760
        %v4823 = vsub.f32 %v1267, %v4822
        %v4824 = vand.u32 %v4823, 4294901760
        %4825 = vmatmul.f32.gmra.mxu0 %v4824
        %v4826 = vpop.f32.mrf.mxu0
        %v4827 = vadd.f32 %v4788, %v4826
        %4828 = vdwg.mxu0
        %v4829 = vand.u32 %v1521, 4294901760
        %v4830 = vsub.f32 %v1521, %v4829
        %v4831 = vand.u32 %v4830, 4294901760
        %4832 = vmatpush.msra.mxu0 %v4831
        %v4833 = vand.u32 %v1513, 4294901760
        %v4834 = vsub.f32 %v1513, %v4833
        %v4835 = vand.u32 %v4834, 4294901760
        %4836 = vmatpush.msra.mxu0 %v4835
        %v4837 = vand.u32 %v1505, 4294901760
        %v4838 = vsub.f32 %v1505, %v4837
        %v4839 = vand.u32 %v4838, 4294901760
        %4840 = vmatpush.msra.mxu0 %v4839
        %v4841 = vand.u32 %v1497, 4294901760
        %v4842 = vsub.f32 %v1497, %v4841
        %v4843 = vand.u32 %v4842, 4294901760
        %4844 = vmatpush.msra.mxu0 %v4843
        %v4845 = vand.u32 %v1489, 4294901760
        %v4846 = vsub.f32 %v1489, %v4845
        %v4847 = vand.u32 %v4846, 4294901760
        %4848 = vmatpush.msra.mxu0 %v4847
        %v4849 = vand.u32 %v1481, 4294901760
        %v4850 = vsub.f32 %v1481, %v4849
        %v4851 = vand.u32 %v4850, 4294901760
        %4852 = vmatpush.msra.mxu0 %v4851
        %v4853 = vand.u32 %v1473, 4294901760
        %v4854 = vsub.f32 %v1473, %v4853
        %v4855 = vand.u32 %v4854, 4294901760
        %4856 = vmatpush.msra.mxu0 %v4855
        %v4857 = vand.u32 %v1465, 4294901760
        %v4858 = vsub.f32 %v1465, %v4857
        %v4859 = vand.u32 %v4858, 4294901760
        %4860 = vmatpush.msra.mxu0 %v4859
        %v4861 = vand.u32 %v1457, 4294901760
        %v4862 = vsub.f32 %v1457, %v4861
        %v4863 = vand.u32 %v4862, 4294901760
        %4864 = vmatpush.msra.mxu0 %v4863
        %v4865 = vand.u32 %v1449, 4294901760
        %v4866 = vsub.f32 %v1449, %v4865
        %v4867 = vand.u32 %v4866, 4294901760
        %4868 = vmatpush.msra.mxu0 %v4867
        %v4869 = vand.u32 %v1441, 4294901760
        %v4870 = vsub.f32 %v1441, %v4869
        %v4871 = vand.u32 %v4870, 4294901760
        %4872 = vmatpush.msra.mxu0 %v4871
        %v4873 = vand.u32 %v1433, 4294901760
        %v4874 = vsub.f32 %v1433, %v4873
        %v4875 = vand.u32 %v4874, 4294901760
        %4876 = vmatpush.msra.mxu0 %v4875
        %v4877 = vand.u32 %v1425, 4294901760
        %v4878 = vsub.f32 %v1425, %v4877
        %v4879 = vand.u32 %v4878, 4294901760
        %4880 = vmatpush.msra.mxu0 %v4879
        %v4881 = vand.u32 %v1417, 4294901760
        %v4882 = vsub.f32 %v1417, %v4881
        %v4883 = vand.u32 %v4882, 4294901760
        %4884 = vmatpush.msra.mxu0 %v4883
        %v4885 = vand.u32 %v1409, 4294901760
        %v4886 = vsub.f32 %v1409, %v4885
        %v4887 = vand.u32 %v4886, 4294901760
        %4888 = vmatpush.msra.mxu0 %v4887
        %v4889 = vand.u32 %v1401, 4294901760
        %v4890 = vsub.f32 %v1401, %v4889
        %v4891 = vand.u32 %v4890, 4294901760
        %4892 = vmatpush.msra.mxu0 %v4891
        %v4893 = vand.u32 %v1267, 4294901760
        %4894 = vmatmul.f32.gmra.mxu0 %v4893
        %v4895 = vpop.f32.mrf.mxu0
        %v4896 = vadd.f32 %v4827, %v4895
        %4897 = vdwg.mxu0
        %v4898 = vand.u32 %v1521, 4294901760
        %4899 = vmatpush.msra.mxu0 %v4898
        %v4900 = vand.u32 %v1513, 4294901760
        %4901 = vmatpush.msra.mxu0 %v4900
        %v4902 = vand.u32 %v1505, 4294901760
        %4903 = vmatpush.msra.mxu0 %v4902
        %v4904 = vand.u32 %v1497, 4294901760
        %4905 = vmatpush.msra.mxu0 %v4904
        %v4906 = vand.u32 %v1489, 4294901760
        %4907 = vmatpush.msra.mxu0 %v4906
        %v4908 = vand.u32 %v1481, 4294901760
        %4909 = vmatpush.msra.mxu0 %v4908
        %v4910 = vand.u32 %v1473, 4294901760
        %4911 = vmatpush.msra.mxu0 %v4910
        %v4912 = vand.u32 %v1465, 4294901760
        %4913 = vmatpush.msra.mxu0 %v4912
        %v4914 = vand.u32 %v1457, 4294901760
        %4915 = vmatpush.msra.mxu0 %v4914
        %v4916 = vand.u32 %v1449, 4294901760
        %4917 = vmatpush.msra.mxu0 %v4916
        %v4918 = vand.u32 %v1441, 4294901760
        %4919 = vmatpush.msra.mxu0 %v4918
        %v4920 = vand.u32 %v1433, 4294901760
        %4921 = vmatpush.msra.mxu0 %v4920
        %v4922 = vand.u32 %v1425, 4294901760
        %4923 = vmatpush.msra.mxu0 %v4922
        %v4924 = vand.u32 %v1417, 4294901760
        %4925 = vmatpush.msra.mxu0 %v4924
        %v4926 = vand.u32 %v1409, 4294901760
        %4927 = vmatpush.msra.mxu0 %v4926
        %v4928 = vand.u32 %v1401, 4294901760
        %4929 = vmatpush.msra.mxu0 %v4928
        %v4930 = vand.u32 %v1267, 4294901760
        %4931 = vmatmul.f32.gmra.mxu0 %v4930
        %v4932 = vpop.f32.mrf.mxu0
        %v4933 = vadd.f32 %v4896, %v4932
        %4934 = vdwg.mxu0
        %v4935 = vand.u32 %v1394, 4294901760
        %4936 = vmatpush.msra.mxu0 %v4935
        %v4937 = vand.u32 %v1386, 4294901760
        %4938 = vmatpush.msra.mxu0 %v4937
        %v4939 = vand.u32 %v1378, 4294901760
        %4940 = vmatpush.msra.mxu0 %v4939
        %v4941 = vand.u32 %v1370, 4294901760
        %4942 = vmatpush.msra.mxu0 %v4941
        %v4943 = vand.u32 %v1362, 4294901760
        %4944 = vmatpush.msra.mxu0 %v4943
        %v4945 = vand.u32 %v1354, 4294901760
        %4946 = vmatpush.msra.mxu0 %v4945
        %v4947 = vand.u32 %v1346, 4294901760
        %4948 = vmatpush.msra.mxu0 %v4947
        %v4949 = vand.u32 %v1338, 4294901760
        %4950 = vmatpush.msra.mxu0 %v4949
        %v4951 = vand.u32 %v1330, 4294901760
        %4952 = vmatpush.msra.mxu0 %v4951
        %v4953 = vand.u32 %v1322, 4294901760
        %4954 = vmatpush.msra.mxu0 %v4953
        %v4955 = vand.u32 %v1314, 4294901760
        %4956 = vmatpush.msra.mxu0 %v4955
        %v4957 = vand.u32 %v1306, 4294901760
        %4958 = vmatpush.msra.mxu0 %v4957
        %v4959 = vand.u32 %v1298, 4294901760
        %4960 = vmatpush.msra.mxu0 %v4959
        %v4961 = vand.u32 %v1290, 4294901760
        %4962 = vmatpush.msra.mxu0 %v4961
        %v4963 = vand.u32 %v1282, 4294901760
        %4964 = vmatpush.msra.mxu0 %v4963
        %v4965 = vand.u32 %v1274, 4294901760
        %4966 = vmatpush.msra.mxu0 %v4965
        %v4967 = vand.u32 %v767, 4294901760
        %v4968 = vsub.f32 %v767, %v4967
        %v4969 = vand.u32 %v4968, 4294901760
        %v4970 = vsub.f32 %v4968, %v4969
        %v4971 = vand.u32 %v4970, 4294901760
        %4972 = vmatmul.f32.gmra.mxu0 %v4971
        %v4973 = vpop.f32.mrf.mxu0
        %v4974 = vadd.f32 0.0, %v4973
        %4975 = vdwg.mxu0
        %v4976 = vand.u32 %v1394, 4294901760
        %v4977 = vsub.f32 %v1394, %v4976
        %v4978 = vand.u32 %v4977, 4294901760
        %v4979 = vsub.f32 %v4977, %v4978
        %v4980 = vand.u32 %v4979, 4294901760
        %4981 = vmatpush.msra.mxu0 %v4980
        %v4982 = vand.u32 %v1386, 4294901760
        %v4983 = vsub.f32 %v1386, %v4982
        %v4984 = vand.u32 %v4983, 4294901760
        %v4985 = vsub.f32 %v4983, %v4984
        %v4986 = vand.u32 %v4985, 4294901760
        %4987 = vmatpush.msra.mxu0 %v4986
        %v4988 = vand.u32 %v1378, 4294901760
        %v4989 = vsub.f32 %v1378, %v4988
        %v4990 = vand.u32 %v4989, 4294901760
        %v4991 = vsub.f32 %v4989, %v4990
        %v4992 = vand.u32 %v4991, 4294901760
        %4993 = vmatpush.msra.mxu0 %v4992
        %v4994 = vand.u32 %v1370, 4294901760
        %v4995 = vsub.f32 %v1370, %v4994
        %v4996 = vand.u32 %v4995, 4294901760
        %v4997 = vsub.f32 %v4995, %v4996
        %v4998 = vand.u32 %v4997, 4294901760
        %4999 = vmatpush.msra.mxu0 %v4998
        %v5000 = vand.u32 %v1362, 4294901760
        %v5001 = vsub.f32 %v1362, %v5000
        %v5002 = vand.u32 %v5001, 4294901760
        %v5003 = vsub.f32 %v5001, %v5002
        %v5004 = vand.u32 %v5003, 4294901760
        %5005 = vmatpush.msra.mxu0 %v5004
        %v5006 = vand.u32 %v1354, 4294901760
        %v5007 = vsub.f32 %v1354, %v5006
        %v5008 = vand.u32 %v5007, 4294901760
        %v5009 = vsub.f32 %v5007, %v5008
        %v5010 = vand.u32 %v5009, 4294901760
        %5011 = vmatpush.msra.mxu0 %v5010
        %v5012 = vand.u32 %v1346, 4294901760
        %v5013 = vsub.f32 %v1346, %v5012
        %v5014 = vand.u32 %v5013, 4294901760
        %v5015 = vsub.f32 %v5013, %v5014
        %v5016 = vand.u32 %v5015, 4294901760
        %5017 = vmatpush.msra.mxu0 %v5016
        %v5018 = vand.u32 %v1338, 4294901760
        %v5019 = vsub.f32 %v1338, %v5018
        %v5020 = vand.u32 %v5019, 4294901760
        %v5021 = vsub.f32 %v5019, %v5020
        %v5022 = vand.u32 %v5021, 4294901760
        %5023 = vmatpush.msra.mxu0 %v5022
        %v5024 = vand.u32 %v1330, 4294901760
        %v5025 = vsub.f32 %v1330, %v5024
        %v5026 = vand.u32 %v5025, 4294901760
        %v5027 = vsub.f32 %v5025, %v5026
        %v5028 = vand.u32 %v5027, 4294901760
        %5029 = vmatpush.msra.mxu0 %v5028
        %v5030 = vand.u32 %v1322, 4294901760
        %v5031 = vsub.f32 %v1322, %v5030
        %v5032 = vand.u32 %v5031, 4294901760
        %v5033 = vsub.f32 %v5031, %v5032
        %v5034 = vand.u32 %v5033, 4294901760
        %5035 = vmatpush.msra.mxu0 %v5034
        %v5036 = vand.u32 %v1314, 4294901760
        %v5037 = vsub.f32 %v1314, %v5036
        %v5038 = vand.u32 %v5037, 4294901760
        %v5039 = vsub.f32 %v5037, %v5038
        %v5040 = vand.u32 %v5039, 4294901760
        %5041 = vmatpush.msra.mxu0 %v5040
        %v5042 = vand.u32 %v1306, 4294901760
        %v5043 = vsub.f32 %v1306, %v5042
        %v5044 = vand.u32 %v5043, 4294901760
        %v5045 = vsub.f32 %v5043, %v5044
        %v5046 = vand.u32 %v5045, 4294901760
        %5047 = vmatpush.msra.mxu0 %v5046
        %v5048 = vand.u32 %v1298, 4294901760
        %v5049 = vsub.f32 %v1298, %v5048
        %v5050 = vand.u32 %v5049, 4294901760
        %v5051 = vsub.f32 %v5049, %v5050
        %v5052 = vand.u32 %v5051, 4294901760
        %5053 = vmatpush.msra.mxu0 %v5052
        %v5054 = vand.u32 %v1290, 4294901760
        %v5055 = vsub.f32 %v1290, %v5054
        %v5056 = vand.u32 %v5055, 4294901760
        %v5057 = vsub.f32 %v5055, %v5056
        %v5058 = vand.u32 %v5057, 4294901760
        %5059 = vmatpush.msra.mxu0 %v5058
        %v5060 = vand.u32 %v1282, 4294901760
        %v5061 = vsub.f32 %v1282, %v5060
        %v5062 = vand.u32 %v5061, 4294901760
        %v5063 = vsub.f32 %v5061, %v5062
        %v5064 = vand.u32 %v5063, 4294901760
        %5065 = vmatpush.msra.mxu0 %v5064
        %v5066 = vand.u32 %v1274, 4294901760
        %v5067 = vsub.f32 %v1274, %v5066
        %v5068 = vand.u32 %v5067, 4294901760
        %v5069 = vsub.f32 %v5067, %v5068
        %v5070 = vand.u32 %v5069, 4294901760
        %5071 = vmatpush.msra.mxu0 %v5070
        %v5072 = vand.u32 %v767, 4294901760
        %5073 = vmatmul.f32.gmra.mxu0 %v5072
        %v5074 = vpop.f32.mrf.mxu0
        %v5075 = vadd.f32 %v4974, %v5074
        %5076 = vdwg.mxu0
        %v5077 = vand.u32 %v1394, 4294901760
        %v5078 = vsub.f32 %v1394, %v5077
        %5079 = vmatpush.msra.mxu0 %v5078
        %v5080 = vand.u32 %v1386, 4294901760
        %v5081 = vsub.f32 %v1386, %v5080
        %5082 = vmatpush.msra.mxu0 %v5081
        %v5083 = vand.u32 %v1378, 4294901760
        %v5084 = vsub.f32 %v1378, %v5083
        %5085 = vmatpush.msra.mxu0 %v5084
        %v5086 = vand.u32 %v1370, 4294901760
        %v5087 = vsub.f32 %v1370, %v5086
        %5088 = vmatpush.msra.mxu0 %v5087
        %v5089 = vand.u32 %v1362, 4294901760
        %v5090 = vsub.f32 %v1362, %v5089
        %5091 = vmatpush.msra.mxu0 %v5090
        %v5092 = vand.u32 %v1354, 4294901760
        %v5093 = vsub.f32 %v1354, %v5092
        %5094 = vmatpush.msra.mxu0 %v5093
        %v5095 = vand.u32 %v1346, 4294901760
        %v5096 = vsub.f32 %v1346, %v5095
        %5097 = vmatpush.msra.mxu0 %v5096
        %v5098 = vand.u32 %v1338, 4294901760
        %v5099 = vsub.f32 %v1338, %v5098
        %5100 = vmatpush.msra.mxu0 %v5099
        %v5101 = vand.u32 %v1330, 4294901760
        %v5102 = vsub.f32 %v1330, %v5101
        %5103 = vmatpush.msra.mxu0 %v5102
        %v5104 = vand.u32 %v1322, 4294901760
        %v5105 = vsub.f32 %v1322, %v5104
        %5106 = vmatpush.msra.mxu0 %v5105
        %v5107 = vand.u32 %v1314, 4294901760
        %v5108 = vsub.f32 %v1314, %v5107
        %5109 = vmatpush.msra.mxu0 %v5108
        %v5110 = vand.u32 %v1306, 4294901760
        %v5111 = vsub.f32 %v1306, %v5110
        %5112 = vmatpush.msra.mxu0 %v5111
        %v5113 = vand.u32 %v1298, 4294901760
        %v5114 = vsub.f32 %v1298, %v5113
        %5115 = vmatpush.msra.mxu0 %v5114
        %v5116 = vand.u32 %v1290, 4294901760
        %v5117 = vsub.f32 %v1290, %v5116
        %5118 = vmatpush.msra.mxu0 %v5117
        %v5119 = vand.u32 %v1282, 4294901760
        %v5120 = vsub.f32 %v1282, %v5119
        %5121 = vmatpush.msra.mxu0 %v5120
        %v5122 = vand.u32 %v1274, 4294901760
        %v5123 = vsub.f32 %v1274, %v5122
        %5124 = vmatpush.msra.mxu0 %v5123
        %v5125 = vand.u32 %v767, 4294901760
        %v5126 = vsub.f32 %v767, %v5125
        %5127 = vmatmul.f32.gmra.mxu0 %v5126
        %v5128 = vpop.f32.mrf.mxu0
        %v5129 = vadd.f32 %v5075, %v5128
        %5130 = vdwg.mxu0
        %v5131 = vand.u32 %v1394, 4294901760
        %5132 = vmatpush.msra.mxu0 %v5131
        %v5133 = vand.u32 %v1386, 4294901760
        %5134 = vmatpush.msra.mxu0 %v5133
        %v5135 = vand.u32 %v1378, 4294901760
        %5136 = vmatpush.msra.mxu0 %v5135
        %v5137 = vand.u32 %v1370, 4294901760
        %5138 = vmatpush.msra.mxu0 %v5137
        %v5139 = vand.u32 %v1362, 4294901760
        %5140 = vmatpush.msra.mxu0 %v5139
        %v5141 = vand.u32 %v1354, 4294901760
        %5142 = vmatpush.msra.mxu0 %v5141
        %v5143 = vand.u32 %v1346, 4294901760
        %5144 = vmatpush.msra.mxu0 %v5143
        %v5145 = vand.u32 %v1338, 4294901760
        %5146 = vmatpush.msra.mxu0 %v5145
        %v5147 = vand.u32 %v1330, 4294901760
        %5148 = vmatpush.msra.mxu0 %v5147
        %v5149 = vand.u32 %v1322, 4294901760
        %5150 = vmatpush.msra.mxu0 %v5149
        %v5151 = vand.u32 %v1314, 4294901760
        %5152 = vmatpush.msra.mxu0 %v5151
        %v5153 = vand.u32 %v1306, 4294901760
        %5154 = vmatpush.msra.mxu0 %v5153
        %v5155 = vand.u32 %v1298, 4294901760
        %5156 = vmatpush.msra.mxu0 %v5155
        %v5157 = vand.u32 %v1290, 4294901760
        %5158 = vmatpush.msra.mxu0 %v5157
        %v5159 = vand.u32 %v1282, 4294901760
        %5160 = vmatpush.msra.mxu0 %v5159
        %v5161 = vand.u32 %v1274, 4294901760
        %5162 = vmatpush.msra.mxu0 %v5161
        %v5163 = vand.u32 %v767, 4294901760
        %v5164 = vsub.f32 %v767, %v5163
        %v5165 = vand.u32 %v5164, 4294901760
        %5166 = vmatmul.f32.gmra.mxu0 %v5165
        %v5167 = vpop.f32.mrf.mxu0
        %v5168 = vadd.f32 %v5129, %v5167
        %5169 = vdwg.mxu0
        %v5170 = vand.u32 %v1394, 4294901760
        %v5171 = vsub.f32 %v1394, %v5170
        %v5172 = vand.u32 %v5171, 4294901760
        %5173 = vmatpush.msra.mxu0 %v5172
        %v5174 = vand.u32 %v1386, 4294901760
        %v5175 = vsub.f32 %v1386, %v5174
        %v5176 = vand.u32 %v5175, 4294901760
        %5177 = vmatpush.msra.mxu0 %v5176
        %v5178 = vand.u32 %v1378, 4294901760
        %v5179 = vsub.f32 %v1378, %v5178
        %v5180 = vand.u32 %v5179, 4294901760
        %5181 = vmatpush.msra.mxu0 %v5180
        %v5182 = vand.u32 %v1370, 4294901760
        %v5183 = vsub.f32 %v1370, %v5182
        %v5184 = vand.u32 %v5183, 4294901760
        %5185 = vmatpush.msra.mxu0 %v5184
        %v5186 = vand.u32 %v1362, 4294901760
        %v5187 = vsub.f32 %v1362, %v5186
        %v5188 = vand.u32 %v5187, 4294901760
        %5189 = vmatpush.msra.mxu0 %v5188
        %v5190 = vand.u32 %v1354, 4294901760
        %v5191 = vsub.f32 %v1354, %v5190
        %v5192 = vand.u32 %v5191, 4294901760
        %5193 = vmatpush.msra.mxu0 %v5192
        %v5194 = vand.u32 %v1346, 4294901760
        %v5195 = vsub.f32 %v1346, %v5194
        %v5196 = vand.u32 %v5195, 4294901760
        %5197 = vmatpush.msra.mxu0 %v5196
        %v5198 = vand.u32 %v1338, 4294901760
        %v5199 = vsub.f32 %v1338, %v5198
        %v5200 = vand.u32 %v5199, 4294901760
        %5201 = vmatpush.msra.mxu0 %v5200
        %v5202 = vand.u32 %v1330, 4294901760
        %v5203 = vsub.f32 %v1330, %v5202
        %v5204 = vand.u32 %v5203, 4294901760
        %5205 = vmatpush.msra.mxu0 %v5204
        %v5206 = vand.u32 %v1322, 4294901760
        %v5207 = vsub.f32 %v1322, %v5206
        %v5208 = vand.u32 %v5207, 4294901760
        %5209 = vmatpush.msra.mxu0 %v5208
        %v5210 = vand.u32 %v1314, 4294901760
        %v5211 = vsub.f32 %v1314, %v5210
        %v5212 = vand.u32 %v5211, 4294901760
        %5213 = vmatpush.msra.mxu0 %v5212
        %v5214 = vand.u32 %v1306, 4294901760
        %v5215 = vsub.f32 %v1306, %v5214
        %v5216 = vand.u32 %v5215, 4294901760
        %5217 = vmatpush.msra.mxu0 %v5216
        %v5218 = vand.u32 %v1298, 4294901760
        %v5219 = vsub.f32 %v1298, %v5218
        %v5220 = vand.u32 %v5219, 4294901760
        %5221 = vmatpush.msra.mxu0 %v5220
        %v5222 = vand.u32 %v1290, 4294901760
        %v5223 = vsub.f32 %v1290, %v5222
        %v5224 = vand.u32 %v5223, 4294901760
        %5225 = vmatpush.msra.mxu0 %v5224
        %v5226 = vand.u32 %v1282, 4294901760
        %v5227 = vsub.f32 %v1282, %v5226
        %v5228 = vand.u32 %v5227, 4294901760
        %5229 = vmatpush.msra.mxu0 %v5228
        %v5230 = vand.u32 %v1274, 4294901760
        %v5231 = vsub.f32 %v1274, %v5230
        %v5232 = vand.u32 %v5231, 4294901760
        %5233 = vmatpush.msra.mxu0 %v5232
        %v5234 = vand.u32 %v767, 4294901760
        %5235 = vmatmul.f32.gmra.mxu0 %v5234
        %v5236 = vpop.f32.mrf.mxu0
        %v5237 = vadd.f32 %v5168, %v5236
        %5238 = vdwg.mxu0
        %v5239 = vand.u32 %v1394, 4294901760
        %5240 = vmatpush.msra.mxu0 %v5239
        %v5241 = vand.u32 %v1386, 4294901760
        %5242 = vmatpush.msra.mxu0 %v5241
        %v5243 = vand.u32 %v1378, 4294901760
        %5244 = vmatpush.msra.mxu0 %v5243
        %v5245 = vand.u32 %v1370, 4294901760
        %5246 = vmatpush.msra.mxu0 %v5245
        %v5247 = vand.u32 %v1362, 4294901760
        %5248 = vmatpush.msra.mxu0 %v5247
        %v5249 = vand.u32 %v1354, 4294901760
        %5250 = vmatpush.msra.mxu0 %v5249
        %v5251 = vand.u32 %v1346, 4294901760
        %5252 = vmatpush.msra.mxu0 %v5251
        %v5253 = vand.u32 %v1338, 4294901760
        %5254 = vmatpush.msra.mxu0 %v5253
        %v5255 = vand.u32 %v1330, 4294901760
        %5256 = vmatpush.msra.mxu0 %v5255
        %v5257 = vand.u32 %v1322, 4294901760
        %5258 = vmatpush.msra.mxu0 %v5257
        %v5259 = vand.u32 %v1314, 4294901760
        %5260 = vmatpush.msra.mxu0 %v5259
        %v5261 = vand.u32 %v1306, 4294901760
        %5262 = vmatpush.msra.mxu0 %v5261
        %v5263 = vand.u32 %v1298, 4294901760
        %5264 = vmatpush.msra.mxu0 %v5263
        %v5265 = vand.u32 %v1290, 4294901760
        %5266 = vmatpush.msra.mxu0 %v5265
        %v5267 = vand.u32 %v1282, 4294901760
        %5268 = vmatpush.msra.mxu0 %v5267
        %v5269 = vand.u32 %v1274, 4294901760
        %5270 = vmatpush.msra.mxu0 %v5269
        %v5271 = vand.u32 %v767, 4294901760
        %5272 = vmatmul.f32.gmra.mxu0 %v5271
        %v5273 = vpop.f32.mrf.mxu0
        %v5274 = vadd.f32 %v5237, %v5273
        %5275 = vdwg.mxu0
        %v5276 = vand.u32 %v1522, 4294901760
        %5277 = vmatpush.msra.mxu0 %v5276
        %v5278 = vand.u32 %v1514, 4294901760
        %5279 = vmatpush.msra.mxu0 %v5278
        %v5280 = vand.u32 %v1506, 4294901760
        %5281 = vmatpush.msra.mxu0 %v5280
        %v5282 = vand.u32 %v1498, 4294901760
        %5283 = vmatpush.msra.mxu0 %v5282
        %v5284 = vand.u32 %v1490, 4294901760
        %5285 = vmatpush.msra.mxu0 %v5284
        %v5286 = vand.u32 %v1482, 4294901760
        %5287 = vmatpush.msra.mxu0 %v5286
        %v5288 = vand.u32 %v1474, 4294901760
        %5289 = vmatpush.msra.mxu0 %v5288
        %v5290 = vand.u32 %v1466, 4294901760
        %5291 = vmatpush.msra.mxu0 %v5290
        %v5292 = vand.u32 %v1458, 4294901760
        %5293 = vmatpush.msra.mxu0 %v5292
        %v5294 = vand.u32 %v1450, 4294901760
        %5295 = vmatpush.msra.mxu0 %v5294
        %v5296 = vand.u32 %v1442, 4294901760
        %5297 = vmatpush.msra.mxu0 %v5296
        %v5298 = vand.u32 %v1434, 4294901760
        %5299 = vmatpush.msra.mxu0 %v5298
        %v5300 = vand.u32 %v1426, 4294901760
        %5301 = vmatpush.msra.mxu0 %v5300
        %v5302 = vand.u32 %v1418, 4294901760
        %5303 = vmatpush.msra.mxu0 %v5302
        %v5304 = vand.u32 %v1410, 4294901760
        %5305 = vmatpush.msra.mxu0 %v5304
        %v5306 = vand.u32 %v1402, 4294901760
        %5307 = vmatpush.msra.mxu0 %v5306
        %v5308 = vand.u32 %v1267, 4294901760
        %v5309 = vsub.f32 %v1267, %v5308
        %v5310 = vand.u32 %v5309, 4294901760
        %v5311 = vsub.f32 %v5309, %v5310
        %v5312 = vand.u32 %v5311, 4294901760
        %5313 = vmatmul.f32.gmra.mxu0 %v5312
        %v5314 = vpop.f32.mrf.mxu0
        %v5315 = vadd.f32 %v5274, %v5314
        %5316 = vdwg.mxu0
        %v5317 = vand.u32 %v1522, 4294901760
        %v5318 = vsub.f32 %v1522, %v5317
        %v5319 = vand.u32 %v5318, 4294901760
        %v5320 = vsub.f32 %v5318, %v5319
        %v5321 = vand.u32 %v5320, 4294901760
        %5322 = vmatpush.msra.mxu0 %v5321
        %v5323 = vand.u32 %v1514, 4294901760
        %v5324 = vsub.f32 %v1514, %v5323
        %v5325 = vand.u32 %v5324, 4294901760
        %v5326 = vsub.f32 %v5324, %v5325
        %v5327 = vand.u32 %v5326, 4294901760
        %5328 = vmatpush.msra.mxu0 %v5327
        %v5329 = vand.u32 %v1506, 4294901760
        %v5330 = vsub.f32 %v1506, %v5329
        %v5331 = vand.u32 %v5330, 4294901760
        %v5332 = vsub.f32 %v5330, %v5331
        %v5333 = vand.u32 %v5332, 4294901760
        %5334 = vmatpush.msra.mxu0 %v5333
        %v5335 = vand.u32 %v1498, 4294901760
        %v5336 = vsub.f32 %v1498, %v5335
        %v5337 = vand.u32 %v5336, 4294901760
        %v5338 = vsub.f32 %v5336, %v5337
        %v5339 = vand.u32 %v5338, 4294901760
        %5340 = vmatpush.msra.mxu0 %v5339
        %v5341 = vand.u32 %v1490, 4294901760
        %v5342 = vsub.f32 %v1490, %v5341
        %v5343 = vand.u32 %v5342, 4294901760
        %v5344 = vsub.f32 %v5342, %v5343
        %v5345 = vand.u32 %v5344, 4294901760
        %5346 = vmatpush.msra.mxu0 %v5345
        %v5347 = vand.u32 %v1482, 4294901760
        %v5348 = vsub.f32 %v1482, %v5347
        %v5349 = vand.u32 %v5348, 4294901760
        %v5350 = vsub.f32 %v5348, %v5349
        %v5351 = vand.u32 %v5350, 4294901760
        %5352 = vmatpush.msra.mxu0 %v5351
        %v5353 = vand.u32 %v1474, 4294901760
        %v5354 = vsub.f32 %v1474, %v5353
        %v5355 = vand.u32 %v5354, 4294901760
        %v5356 = vsub.f32 %v5354, %v5355
        %v5357 = vand.u32 %v5356, 4294901760
        %5358 = vmatpush.msra.mxu0 %v5357
        %v5359 = vand.u32 %v1466, 4294901760
        %v5360 = vsub.f32 %v1466, %v5359
        %v5361 = vand.u32 %v5360, 4294901760
        %v5362 = vsub.f32 %v5360, %v5361
        %v5363 = vand.u32 %v5362, 4294901760
        %5364 = vmatpush.msra.mxu0 %v5363
        %v5365 = vand.u32 %v1458, 4294901760
        %v5366 = vsub.f32 %v1458, %v5365
        %v5367 = vand.u32 %v5366, 4294901760
        %v5368 = vsub.f32 %v5366, %v5367
        %v5369 = vand.u32 %v5368, 4294901760
        %5370 = vmatpush.msra.mxu0 %v5369
        %v5371 = vand.u32 %v1450, 4294901760
        %v5372 = vsub.f32 %v1450, %v5371
        %v5373 = vand.u32 %v5372, 4294901760
        %v5374 = vsub.f32 %v5372, %v5373
        %v5375 = vand.u32 %v5374, 4294901760
        %5376 = vmatpush.msra.mxu0 %v5375
        %v5377 = vand.u32 %v1442, 4294901760
        %v5378 = vsub.f32 %v1442, %v5377
        %v5379 = vand.u32 %v5378, 4294901760
        %v5380 = vsub.f32 %v5378, %v5379
        %v5381 = vand.u32 %v5380, 4294901760
        %5382 = vmatpush.msra.mxu0 %v5381
        %v5383 = vand.u32 %v1434, 4294901760
        %v5384 = vsub.f32 %v1434, %v5383
        %v5385 = vand.u32 %v5384, 4294901760
        %v5386 = vsub.f32 %v5384, %v5385
        %v5387 = vand.u32 %v5386, 4294901760
        %5388 = vmatpush.msra.mxu0 %v5387
        %v5389 = vand.u32 %v1426, 4294901760
        %v5390 = vsub.f32 %v1426, %v5389
        %v5391 = vand.u32 %v5390, 4294901760
        %v5392 = vsub.f32 %v5390, %v5391
        %v5393 = vand.u32 %v5392, 4294901760
        %5394 = vmatpush.msra.mxu0 %v5393
        %v5395 = vand.u32 %v1418, 4294901760
        %v5396 = vsub.f32 %v1418, %v5395
        %v5397 = vand.u32 %v5396, 4294901760
        %v5398 = vsub.f32 %v5396, %v5397
        %v5399 = vand.u32 %v5398, 4294901760
        %5400 = vmatpush.msra.mxu0 %v5399
        %v5401 = vand.u32 %v1410, 4294901760
        %v5402 = vsub.f32 %v1410, %v5401
        %v5403 = vand.u32 %v5402, 4294901760
        %v5404 = vsub.f32 %v5402, %v5403
        %v5405 = vand.u32 %v5404, 4294901760
        %5406 = vmatpush.msra.mxu0 %v5405
        %v5407 = vand.u32 %v1402, 4294901760
        %v5408 = vsub.f32 %v1402, %v5407
        %v5409 = vand.u32 %v5408, 4294901760
        %v5410 = vsub.f32 %v5408, %v5409
        %v5411 = vand.u32 %v5410, 4294901760
        %5412 = vmatpush.msra.mxu0 %v5411
        %v5413 = vand.u32 %v1267, 4294901760
        %5414 = vmatmul.f32.gmra.mxu0 %v5413
        %v5415 = vpop.f32.mrf.mxu0
        %v5416 = vadd.f32 %v5315, %v5415
        %5417 = vdwg.mxu0
        %v5418 = vand.u32 %v1522, 4294901760
        %v5419 = vsub.f32 %v1522, %v5418
        %5420 = vmatpush.msra.mxu0 %v5419
        %v5421 = vand.u32 %v1514, 4294901760
        %v5422 = vsub.f32 %v1514, %v5421
        %5423 = vmatpush.msra.mxu0 %v5422
        %v5424 = vand.u32 %v1506, 4294901760
        %v5425 = vsub.f32 %v1506, %v5424
        %5426 = vmatpush.msra.mxu0 %v5425
        %v5427 = vand.u32 %v1498, 4294901760
        %v5428 = vsub.f32 %v1498, %v5427
        %5429 = vmatpush.msra.mxu0 %v5428
        %v5430 = vand.u32 %v1490, 4294901760
        %v5431 = vsub.f32 %v1490, %v5430
        %5432 = vmatpush.msra.mxu0 %v5431
        %v5433 = vand.u32 %v1482, 4294901760
        %v5434 = vsub.f32 %v1482, %v5433
        %5435 = vmatpush.msra.mxu0 %v5434
        %v5436 = vand.u32 %v1474, 4294901760
        %v5437 = vsub.f32 %v1474, %v5436
        %5438 = vmatpush.msra.mxu0 %v5437
        %v5439 = vand.u32 %v1466, 4294901760
        %v5440 = vsub.f32 %v1466, %v5439
        %5441 = vmatpush.msra.mxu0 %v5440
        %v5442 = vand.u32 %v1458, 4294901760
        %v5443 = vsub.f32 %v1458, %v5442
        %5444 = vmatpush.msra.mxu0 %v5443
        %v5445 = vand.u32 %v1450, 4294901760
        %v5446 = vsub.f32 %v1450, %v5445
        %5447 = vmatpush.msra.mxu0 %v5446
        %v5448 = vand.u32 %v1442, 4294901760
        %v5449 = vsub.f32 %v1442, %v5448
        %5450 = vmatpush.msra.mxu0 %v5449
        %v5451 = vand.u32 %v1434, 4294901760
        %v5452 = vsub.f32 %v1434, %v5451
        %5453 = vmatpush.msra.mxu0 %v5452
        %v5454 = vand.u32 %v1426, 4294901760
        %v5455 = vsub.f32 %v1426, %v5454
        %5456 = vmatpush.msra.mxu0 %v5455
        %v5457 = vand.u32 %v1418, 4294901760
        %v5458 = vsub.f32 %v1418, %v5457
        %5459 = vmatpush.msra.mxu0 %v5458
        %v5460 = vand.u32 %v1410, 4294901760
        %v5461 = vsub.f32 %v1410, %v5460
        %5462 = vmatpush.msra.mxu0 %v5461
        %v5463 = vand.u32 %v1402, 4294901760
        %v5464 = vsub.f32 %v1402, %v5463
        %5465 = vmatpush.msra.mxu0 %v5464
        %v5466 = vand.u32 %v1267, 4294901760
        %v5467 = vsub.f32 %v1267, %v5466
        %5468 = vmatmul.f32.gmra.mxu0 %v5467
        %v5469 = vpop.f32.mrf.mxu0
        %v5470 = vadd.f32 %v5416, %v5469
        %5471 = vdwg.mxu0
        %v5472 = vand.u32 %v1522, 4294901760
        %5473 = vmatpush.msra.mxu0 %v5472
        %v5474 = vand.u32 %v1514, 4294901760
        %5475 = vmatpush.msra.mxu0 %v5474
        %v5476 = vand.u32 %v1506, 4294901760
        %5477 = vmatpush.msra.mxu0 %v5476
        %v5478 = vand.u32 %v1498, 4294901760
        %5479 = vmatpush.msra.mxu0 %v5478
        %v5480 = vand.u32 %v1490, 4294901760
        %5481 = vmatpush.msra.mxu0 %v5480
        %v5482 = vand.u32 %v1482, 4294901760
        %5483 = vmatpush.msra.mxu0 %v5482
        %v5484 = vand.u32 %v1474, 4294901760
        %5485 = vmatpush.msra.mxu0 %v5484
        %v5486 = vand.u32 %v1466, 4294901760
        %5487 = vmatpush.msra.mxu0 %v5486
        %v5488 = vand.u32 %v1458, 4294901760
        %5489 = vmatpush.msra.mxu0 %v5488
        %v5490 = vand.u32 %v1450, 4294901760
        %5491 = vmatpush.msra.mxu0 %v5490
        %v5492 = vand.u32 %v1442, 4294901760
        %5493 = vmatpush.msra.mxu0 %v5492
        %v5494 = vand.u32 %v1434, 4294901760
        %5495 = vmatpush.msra.mxu0 %v5494
        %v5496 = vand.u32 %v1426, 4294901760
        %5497 = vmatpush.msra.mxu0 %v5496
        %v5498 = vand.u32 %v1418, 4294901760
        %5499 = vmatpush.msra.mxu0 %v5498
        %v5500 = vand.u32 %v1410, 4294901760
        %5501 = vmatpush.msra.mxu0 %v5500
        %v5502 = vand.u32 %v1402, 4294901760
        %5503 = vmatpush.msra.mxu0 %v5502
        %v5504 = vand.u32 %v1267, 4294901760
        %v5505 = vsub.f32 %v1267, %v5504
        %v5506 = vand.u32 %v5505, 4294901760
        %5507 = vmatmul.f32.gmra.mxu0 %v5506
        %v5508 = vpop.f32.mrf.mxu0
        %v5509 = vadd.f32 %v5470, %v5508
        %5510 = vdwg.mxu0
        %v5511 = vand.u32 %v1522, 4294901760
        %v5512 = vsub.f32 %v1522, %v5511
        %v5513 = vand.u32 %v5512, 4294901760
        %5514 = vmatpush.msra.mxu0 %v5513
        %v5515 = vand.u32 %v1514, 4294901760
        %v5516 = vsub.f32 %v1514, %v5515
        %v5517 = vand.u32 %v5516, 4294901760
        %5518 = vmatpush.msra.mxu0 %v5517
        %v5519 = vand.u32 %v1506, 4294901760
        %v5520 = vsub.f32 %v1506, %v5519
        %v5521 = vand.u32 %v5520, 4294901760
        %5522 = vmatpush.msra.mxu0 %v5521
        %v5523 = vand.u32 %v1498, 4294901760
        %v5524 = vsub.f32 %v1498, %v5523
        %v5525 = vand.u32 %v5524, 4294901760
        %5526 = vmatpush.msra.mxu0 %v5525
        %v5527 = vand.u32 %v1490, 4294901760
        %v5528 = vsub.f32 %v1490, %v5527
        %v5529 = vand.u32 %v5528, 4294901760
        %5530 = vmatpush.msra.mxu0 %v5529
        %v5531 = vand.u32 %v1482, 4294901760
        %v5532 = vsub.f32 %v1482, %v5531
        %v5533 = vand.u32 %v5532, 4294901760
        %5534 = vmatpush.msra.mxu0 %v5533
        %v5535 = vand.u32 %v1474, 4294901760
        %v5536 = vsub.f32 %v1474, %v5535
        %v5537 = vand.u32 %v5536, 4294901760
        %5538 = vmatpush.msra.mxu0 %v5537
        %v5539 = vand.u32 %v1466, 4294901760
        %v5540 = vsub.f32 %v1466, %v5539
        %v5541 = vand.u32 %v5540, 4294901760
        %5542 = vmatpush.msra.mxu0 %v5541
        %v5543 = vand.u32 %v1458, 4294901760
        %v5544 = vsub.f32 %v1458, %v5543
        %v5545 = vand.u32 %v5544, 4294901760
        %5546 = vmatpush.msra.mxu0 %v5545
        %v5547 = vand.u32 %v1450, 4294901760
        %v5548 = vsub.f32 %v1450, %v5547
        %v5549 = vand.u32 %v5548, 4294901760
        %5550 = vmatpush.msra.mxu0 %v5549
        %v5551 = vand.u32 %v1442, 4294901760
        %v5552 = vsub.f32 %v1442, %v5551
        %v5553 = vand.u32 %v5552, 4294901760
        %5554 = vmatpush.msra.mxu0 %v5553
        %v5555 = vand.u32 %v1434, 4294901760
        %v5556 = vsub.f32 %v1434, %v5555
        %v5557 = vand.u32 %v5556, 4294901760
        %5558 = vmatpush.msra.mxu0 %v5557
        %v5559 = vand.u32 %v1426, 4294901760
        %v5560 = vsub.f32 %v1426, %v5559
        %v5561 = vand.u32 %v5560, 4294901760
        %5562 = vmatpush.msra.mxu0 %v5561
        %v5563 = vand.u32 %v1418, 4294901760
        %v5564 = vsub.f32 %v1418, %v5563
        %v5565 = vand.u32 %v5564, 4294901760
        %5566 = vmatpush.msra.mxu0 %v5565
        %v5567 = vand.u32 %v1410, 4294901760
        %v5568 = vsub.f32 %v1410, %v5567
        %v5569 = vand.u32 %v5568, 4294901760
        %5570 = vmatpush.msra.mxu0 %v5569
        %v5571 = vand.u32 %v1402, 4294901760
        %v5572 = vsub.f32 %v1402, %v5571
        %v5573 = vand.u32 %v5572, 4294901760
        %5574 = vmatpush.msra.mxu0 %v5573
        %v5575 = vand.u32 %v1267, 4294901760
        %5576 = vmatmul.f32.gmra.mxu0 %v5575
        %v5577 = vpop.f32.mrf.mxu0
        %v5578 = vadd.f32 %v5509, %v5577
        %5579 = vdwg.mxu0
        %v5580 = vand.u32 %v1522, 4294901760
        %5581 = vmatpush.msra.mxu0 %v5580
        %v5582 = vand.u32 %v1514, 4294901760
        %5583 = vmatpush.msra.mxu0 %v5582
        %v5584 = vand.u32 %v1506, 4294901760
        %5585 = vmatpush.msra.mxu0 %v5584
        %v5586 = vand.u32 %v1498, 4294901760
        %5587 = vmatpush.msra.mxu0 %v5586
        %v5588 = vand.u32 %v1490, 4294901760
        %5589 = vmatpush.msra.mxu0 %v5588
        %v5590 = vand.u32 %v1482, 4294901760
        %5591 = vmatpush.msra.mxu0 %v5590
        %v5592 = vand.u32 %v1474, 4294901760
        %5593 = vmatpush.msra.mxu0 %v5592
        %v5594 = vand.u32 %v1466, 4294901760
        %5595 = vmatpush.msra.mxu0 %v5594
        %v5596 = vand.u32 %v1458, 4294901760
        %5597 = vmatpush.msra.mxu0 %v5596
        %v5598 = vand.u32 %v1450, 4294901760
        %5599 = vmatpush.msra.mxu0 %v5598
        %v5600 = vand.u32 %v1442, 4294901760
        %5601 = vmatpush.msra.mxu0 %v5600
        %v5602 = vand.u32 %v1434, 4294901760
        %5603 = vmatpush.msra.mxu0 %v5602
        %v5604 = vand.u32 %v1426, 4294901760
        %5605 = vmatpush.msra.mxu0 %v5604
        %v5606 = vand.u32 %v1418, 4294901760
        %5607 = vmatpush.msra.mxu0 %v5606
        %v5608 = vand.u32 %v1410, 4294901760
        %5609 = vmatpush.msra.mxu0 %v5608
        %v5610 = vand.u32 %v1402, 4294901760
        %5611 = vmatpush.msra.mxu0 %v5610
        %v5612 = vand.u32 %v1267, 4294901760
        %5613 = vmatmul.f32.gmra.mxu0 %v5612
        %v5614 = vpop.f32.mrf.mxu0
        %v5615 = vadd.f32 %v5578, %v5614
        %5616 = vdwg.mxu0
        %v5617 = vand.u32 %v1395, 4294901760
        %5618 = vmatpush.msra.mxu0 %v5617
        %v5619 = vand.u32 %v1387, 4294901760
        %5620 = vmatpush.msra.mxu0 %v5619
        %v5621 = vand.u32 %v1379, 4294901760
        %5622 = vmatpush.msra.mxu0 %v5621
        %v5623 = vand.u32 %v1371, 4294901760
        %5624 = vmatpush.msra.mxu0 %v5623
        %v5625 = vand.u32 %v1363, 4294901760
        %5626 = vmatpush.msra.mxu0 %v5625
        %v5627 = vand.u32 %v1355, 4294901760
        %5628 = vmatpush.msra.mxu0 %v5627
        %v5629 = vand.u32 %v1347, 4294901760
        %5630 = vmatpush.msra.mxu0 %v5629
        %v5631 = vand.u32 %v1339, 4294901760
        %5632 = vmatpush.msra.mxu0 %v5631
        %v5633 = vand.u32 %v1331, 4294901760
        %5634 = vmatpush.msra.mxu0 %v5633
        %v5635 = vand.u32 %v1323, 4294901760
        %5636 = vmatpush.msra.mxu0 %v5635
        %v5637 = vand.u32 %v1315, 4294901760
        %5638 = vmatpush.msra.mxu0 %v5637
        %v5639 = vand.u32 %v1307, 4294901760
        %5640 = vmatpush.msra.mxu0 %v5639
        %v5641 = vand.u32 %v1299, 4294901760
        %5642 = vmatpush.msra.mxu0 %v5641
        %v5643 = vand.u32 %v1291, 4294901760
        %5644 = vmatpush.msra.mxu0 %v5643
        %v5645 = vand.u32 %v1283, 4294901760
        %5646 = vmatpush.msra.mxu0 %v5645
        %v5647 = vand.u32 %v1275, 4294901760
        %5648 = vmatpush.msra.mxu0 %v5647
        %v5649 = vand.u32 %v767, 4294901760
        %v5650 = vsub.f32 %v767, %v5649
        %v5651 = vand.u32 %v5650, 4294901760
        %v5652 = vsub.f32 %v5650, %v5651
        %v5653 = vand.u32 %v5652, 4294901760
        %5654 = vmatmul.f32.gmra.mxu0 %v5653
        %v5655 = vpop.f32.mrf.mxu0
        %v5656 = vadd.f32 0.0, %v5655
        %5657 = vdwg.mxu0
        %v5658 = vand.u32 %v1395, 4294901760
        %v5659 = vsub.f32 %v1395, %v5658
        %v5660 = vand.u32 %v5659, 4294901760
        %v5661 = vsub.f32 %v5659, %v5660
        %v5662 = vand.u32 %v5661, 4294901760
        %5663 = vmatpush.msra.mxu0 %v5662
        %v5664 = vand.u32 %v1387, 4294901760
        %v5665 = vsub.f32 %v1387, %v5664
        %v5666 = vand.u32 %v5665, 4294901760
        %v5667 = vsub.f32 %v5665, %v5666
        %v5668 = vand.u32 %v5667, 4294901760
        %5669 = vmatpush.msra.mxu0 %v5668
        %v5670 = vand.u32 %v1379, 4294901760
        %v5671 = vsub.f32 %v1379, %v5670
        %v5672 = vand.u32 %v5671, 4294901760
        %v5673 = vsub.f32 %v5671, %v5672
        %v5674 = vand.u32 %v5673, 4294901760
        %5675 = vmatpush.msra.mxu0 %v5674
        %v5676 = vand.u32 %v1371, 4294901760
        %v5677 = vsub.f32 %v1371, %v5676
        %v5678 = vand.u32 %v5677, 4294901760
        %v5679 = vsub.f32 %v5677, %v5678
        %v5680 = vand.u32 %v5679, 4294901760
        %5681 = vmatpush.msra.mxu0 %v5680
        %v5682 = vand.u32 %v1363, 4294901760
        %v5683 = vsub.f32 %v1363, %v5682
        %v5684 = vand.u32 %v5683, 4294901760
        %v5685 = vsub.f32 %v5683, %v5684
        %v5686 = vand.u32 %v5685, 4294901760
        %5687 = vmatpush.msra.mxu0 %v5686
        %v5688 = vand.u32 %v1355, 4294901760
        %v5689 = vsub.f32 %v1355, %v5688
        %v5690 = vand.u32 %v5689, 4294901760
        %v5691 = vsub.f32 %v5689, %v5690
        %v5692 = vand.u32 %v5691, 4294901760
        %5693 = vmatpush.msra.mxu0 %v5692
        %v5694 = vand.u32 %v1347, 4294901760
        %v5695 = vsub.f32 %v1347, %v5694
        %v5696 = vand.u32 %v5695, 4294901760
        %v5697 = vsub.f32 %v5695, %v5696
        %v5698 = vand.u32 %v5697, 4294901760
        %5699 = vmatpush.msra.mxu0 %v5698
        %v5700 = vand.u32 %v1339, 4294901760
        %v5701 = vsub.f32 %v1339, %v5700
        %v5702 = vand.u32 %v5701, 4294901760
        %v5703 = vsub.f32 %v5701, %v5702
        %v5704 = vand.u32 %v5703, 4294901760
        %5705 = vmatpush.msra.mxu0 %v5704
        %v5706 = vand.u32 %v1331, 4294901760
        %v5707 = vsub.f32 %v1331, %v5706
        %v5708 = vand.u32 %v5707, 4294901760
        %v5709 = vsub.f32 %v5707, %v5708
        %v5710 = vand.u32 %v5709, 4294901760
        %5711 = vmatpush.msra.mxu0 %v5710
        %v5712 = vand.u32 %v1323, 4294901760
        %v5713 = vsub.f32 %v1323, %v5712
        %v5714 = vand.u32 %v5713, 4294901760
        %v5715 = vsub.f32 %v5713, %v5714
        %v5716 = vand.u32 %v5715, 4294901760
        %5717 = vmatpush.msra.mxu0 %v5716
        %v5718 = vand.u32 %v1315, 4294901760
        %v5719 = vsub.f32 %v1315, %v5718
        %v5720 = vand.u32 %v5719, 4294901760
        %v5721 = vsub.f32 %v5719, %v5720
        %v5722 = vand.u32 %v5721, 4294901760
        %5723 = vmatpush.msra.mxu0 %v5722
        %v5724 = vand.u32 %v1307, 4294901760
        %v5725 = vsub.f32 %v1307, %v5724
        %v5726 = vand.u32 %v5725, 4294901760
        %v5727 = vsub.f32 %v5725, %v5726
        %v5728 = vand.u32 %v5727, 4294901760
        %5729 = vmatpush.msra.mxu0 %v5728
        %v5730 = vand.u32 %v1299, 4294901760
        %v5731 = vsub.f32 %v1299, %v5730
        %v5732 = vand.u32 %v5731, 4294901760
        %v5733 = vsub.f32 %v5731, %v5732
        %v5734 = vand.u32 %v5733, 4294901760
        %5735 = vmatpush.msra.mxu0 %v5734
        %v5736 = vand.u32 %v1291, 4294901760
        %v5737 = vsub.f32 %v1291, %v5736
        %v5738 = vand.u32 %v5737, 4294901760
        %v5739 = vsub.f32 %v5737, %v5738
        %v5740 = vand.u32 %v5739, 4294901760
        %5741 = vmatpush.msra.mxu0 %v5740
        %v5742 = vand.u32 %v1283, 4294901760
        %v5743 = vsub.f32 %v1283, %v5742
        %v5744 = vand.u32 %v5743, 4294901760
        %v5745 = vsub.f32 %v5743, %v5744
        %v5746 = vand.u32 %v5745, 4294901760
        %5747 = vmatpush.msra.mxu0 %v5746
        %v5748 = vand.u32 %v1275, 4294901760
        %v5749 = vsub.f32 %v1275, %v5748
        %v5750 = vand.u32 %v5749, 4294901760
        %v5751 = vsub.f32 %v5749, %v5750
        %v5752 = vand.u32 %v5751, 4294901760
        %5753 = vmatpush.msra.mxu0 %v5752
        %v5754 = vand.u32 %v767, 4294901760
        %5755 = vmatmul.f32.gmra.mxu0 %v5754
        %v5756 = vpop.f32.mrf.mxu0
        %v5757 = vadd.f32 %v5656, %v5756
        %5758 = vdwg.mxu0
        %v5759 = vand.u32 %v1395, 4294901760
        %v5760 = vsub.f32 %v1395, %v5759
        %5761 = vmatpush.msra.mxu0 %v5760
        %v5762 = vand.u32 %v1387, 4294901760
        %v5763 = vsub.f32 %v1387, %v5762
        %5764 = vmatpush.msra.mxu0 %v5763
        %v5765 = vand.u32 %v1379, 4294901760
        %v5766 = vsub.f32 %v1379, %v5765
        %5767 = vmatpush.msra.mxu0 %v5766
        %v5768 = vand.u32 %v1371, 4294901760
        %v5769 = vsub.f32 %v1371, %v5768
        %5770 = vmatpush.msra.mxu0 %v5769
        %v5771 = vand.u32 %v1363, 4294901760
        %v5772 = vsub.f32 %v1363, %v5771
        %5773 = vmatpush.msra.mxu0 %v5772
        %v5774 = vand.u32 %v1355, 4294901760
        %v5775 = vsub.f32 %v1355, %v5774
        %5776 = vmatpush.msra.mxu0 %v5775
        %v5777 = vand.u32 %v1347, 4294901760
        %v5778 = vsub.f32 %v1347, %v5777
        %5779 = vmatpush.msra.mxu0 %v5778
        %v5780 = vand.u32 %v1339, 4294901760
        %v5781 = vsub.f32 %v1339, %v5780
        %5782 = vmatpush.msra.mxu0 %v5781
        %v5783 = vand.u32 %v1331, 4294901760
        %v5784 = vsub.f32 %v1331, %v5783
        %5785 = vmatpush.msra.mxu0 %v5784
        %v5786 = vand.u32 %v1323, 4294901760
        %v5787 = vsub.f32 %v1323, %v5786
        %5788 = vmatpush.msra.mxu0 %v5787
        %v5789 = vand.u32 %v1315, 4294901760
        %v5790 = vsub.f32 %v1315, %v5789
        %5791 = vmatpush.msra.mxu0 %v5790
        %v5792 = vand.u32 %v1307, 4294901760
        %v5793 = vsub.f32 %v1307, %v5792
        %5794 = vmatpush.msra.mxu0 %v5793
        %v5795 = vand.u32 %v1299, 4294901760
        %v5796 = vsub.f32 %v1299, %v5795
        %5797 = vmatpush.msra.mxu0 %v5796
        %v5798 = vand.u32 %v1291, 4294901760
        %v5799 = vsub.f32 %v1291, %v5798
        %5800 = vmatpush.msra.mxu0 %v5799
        %v5801 = vand.u32 %v1283, 4294901760
        %v5802 = vsub.f32 %v1283, %v5801
        %5803 = vmatpush.msra.mxu0 %v5802
        %v5804 = vand.u32 %v1275, 4294901760
        %v5805 = vsub.f32 %v1275, %v5804
        %5806 = vmatpush.msra.mxu0 %v5805
        %v5807 = vand.u32 %v767, 4294901760
        %v5808 = vsub.f32 %v767, %v5807
        %5809 = vmatmul.f32.gmra.mxu0 %v5808
        %v5810 = vpop.f32.mrf.mxu0
        %v5811 = vadd.f32 %v5757, %v5810
        %5812 = vdwg.mxu0
        %v5813 = vand.u32 %v1395, 4294901760
        %5814 = vmatpush.msra.mxu0 %v5813
        %v5815 = vand.u32 %v1387, 4294901760
        %5816 = vmatpush.msra.mxu0 %v5815
        %v5817 = vand.u32 %v1379, 4294901760
        %5818 = vmatpush.msra.mxu0 %v5817
        %v5819 = vand.u32 %v1371, 4294901760
        %5820 = vmatpush.msra.mxu0 %v5819
        %v5821 = vand.u32 %v1363, 4294901760
        %5822 = vmatpush.msra.mxu0 %v5821
        %v5823 = vand.u32 %v1355, 4294901760
        %5824 = vmatpush.msra.mxu0 %v5823
        %v5825 = vand.u32 %v1347, 4294901760
        %5826 = vmatpush.msra.mxu0 %v5825
        %v5827 = vand.u32 %v1339, 4294901760
        %5828 = vmatpush.msra.mxu0 %v5827
        %v5829 = vand.u32 %v1331, 4294901760
        %5830 = vmatpush.msra.mxu0 %v5829
        %v5831 = vand.u32 %v1323, 4294901760
        %5832 = vmatpush.msra.mxu0 %v5831
        %v5833 = vand.u32 %v1315, 4294901760
        %5834 = vmatpush.msra.mxu0 %v5833
        %v5835 = vand.u32 %v1307, 4294901760
        %5836 = vmatpush.msra.mxu0 %v5835
        %v5837 = vand.u32 %v1299, 4294901760
        %5838 = vmatpush.msra.mxu0 %v5837
        %v5839 = vand.u32 %v1291, 4294901760
        %5840 = vmatpush.msra.mxu0 %v5839
        %v5841 = vand.u32 %v1283, 4294901760
        %5842 = vmatpush.msra.mxu0 %v5841
        %v5843 = vand.u32 %v1275, 4294901760
        %5844 = vmatpush.msra.mxu0 %v5843
        %v5845 = vand.u32 %v767, 4294901760
        %v5846 = vsub.f32 %v767, %v5845
        %v5847 = vand.u32 %v5846, 4294901760
        %5848 = vmatmul.f32.gmra.mxu0 %v5847
        %v5849 = vpop.f32.mrf.mxu0
        %v5850 = vadd.f32 %v5811, %v5849
        %5851 = vdwg.mxu0
        %v5852 = vand.u32 %v1395, 4294901760
        %v5853 = vsub.f32 %v1395, %v5852
        %v5854 = vand.u32 %v5853, 4294901760
        %5855 = vmatpush.msra.mxu0 %v5854
        %v5856 = vand.u32 %v1387, 4294901760
        %v5857 = vsub.f32 %v1387, %v5856
        %v5858 = vand.u32 %v5857, 4294901760
        %5859 = vmatpush.msra.mxu0 %v5858
        %v5860 = vand.u32 %v1379, 4294901760
        %v5861 = vsub.f32 %v1379, %v5860
        %v5862 = vand.u32 %v5861, 4294901760
        %5863 = vmatpush.msra.mxu0 %v5862
        %v5864 = vand.u32 %v1371, 4294901760
        %v5865 = vsub.f32 %v1371, %v5864
        %v5866 = vand.u32 %v5865, 4294901760
        %5867 = vmatpush.msra.mxu0 %v5866
        %v5868 = vand.u32 %v1363, 4294901760
        %v5869 = vsub.f32 %v1363, %v5868
        %v5870 = vand.u32 %v5869, 4294901760
        %5871 = vmatpush.msra.mxu0 %v5870
        %v5872 = vand.u32 %v1355, 4294901760
        %v5873 = vsub.f32 %v1355, %v5872
        %v5874 = vand.u32 %v5873, 4294901760
        %5875 = vmatpush.msra.mxu0 %v5874
        %v5876 = vand.u32 %v1347, 4294901760
        %v5877 = vsub.f32 %v1347, %v5876
        %v5878 = vand.u32 %v5877, 4294901760
        %5879 = vmatpush.msra.mxu0 %v5878
        %v5880 = vand.u32 %v1339, 4294901760
        %v5881 = vsub.f32 %v1339, %v5880
        %v5882 = vand.u32 %v5881, 4294901760
        %5883 = vmatpush.msra.mxu0 %v5882
        %v5884 = vand.u32 %v1331, 4294901760
        %v5885 = vsub.f32 %v1331, %v5884
        %v5886 = vand.u32 %v5885, 4294901760
        %5887 = vmatpush.msra.mxu0 %v5886
        %v5888 = vand.u32 %v1323, 4294901760
        %v5889 = vsub.f32 %v1323, %v5888
        %v5890 = vand.u32 %v5889, 4294901760
        %5891 = vmatpush.msra.mxu0 %v5890
        %v5892 = vand.u32 %v1315, 4294901760
        %v5893 = vsub.f32 %v1315, %v5892
        %v5894 = vand.u32 %v5893, 4294901760
        %5895 = vmatpush.msra.mxu0 %v5894
        %v5896 = vand.u32 %v1307, 4294901760
        %v5897 = vsub.f32 %v1307, %v5896
        %v5898 = vand.u32 %v5897, 4294901760
        %5899 = vmatpush.msra.mxu0 %v5898
        %v5900 = vand.u32 %v1299, 4294901760
        %v5901 = vsub.f32 %v1299, %v5900
        %v5902 = vand.u32 %v5901, 4294901760
        %5903 = vmatpush.msra.mxu0 %v5902
        %v5904 = vand.u32 %v1291, 4294901760
        %v5905 = vsub.f32 %v1291, %v5904
        %v5906 = vand.u32 %v5905, 4294901760
        %5907 = vmatpush.msra.mxu0 %v5906
        %v5908 = vand.u32 %v1283, 4294901760
        %v5909 = vsub.f32 %v1283, %v5908
        %v5910 = vand.u32 %v5909, 4294901760
        %5911 = vmatpush.msra.mxu0 %v5910
        %v5912 = vand.u32 %v1275, 4294901760
        %v5913 = vsub.f32 %v1275, %v5912
        %v5914 = vand.u32 %v5913, 4294901760
        %5915 = vmatpush.msra.mxu0 %v5914
        %v5916 = vand.u32 %v767, 4294901760
        %5917 = vmatmul.f32.gmra.mxu0 %v5916
        %v5918 = vpop.f32.mrf.mxu0
        %v5919 = vadd.f32 %v5850, %v5918
        %5920 = vdwg.mxu0
        %v5921 = vand.u32 %v1395, 4294901760
        %5922 = vmatpush.msra.mxu0 %v5921
        %v5923 = vand.u32 %v1387, 4294901760
        %5924 = vmatpush.msra.mxu0 %v5923
        %v5925 = vand.u32 %v1379, 4294901760
        %5926 = vmatpush.msra.mxu0 %v5925
        %v5927 = vand.u32 %v1371, 4294901760
        %5928 = vmatpush.msra.mxu0 %v5927
        %v5929 = vand.u32 %v1363, 4294901760
        %5930 = vmatpush.msra.mxu0 %v5929
        %v5931 = vand.u32 %v1355, 4294901760
        %5932 = vmatpush.msra.mxu0 %v5931
        %v5933 = vand.u32 %v1347, 4294901760
        %5934 = vmatpush.msra.mxu0 %v5933
        %v5935 = vand.u32 %v1339, 4294901760
        %5936 = vmatpush.msra.mxu0 %v5935
        %v5937 = vand.u32 %v1331, 4294901760
        %5938 = vmatpush.msra.mxu0 %v5937
        %v5939 = vand.u32 %v1323, 4294901760
        %5940 = vmatpush.msra.mxu0 %v5939
        %v5941 = vand.u32 %v1315, 4294901760
        %5942 = vmatpush.msra.mxu0 %v5941
        %v5943 = vand.u32 %v1307, 4294901760
        %5944 = vmatpush.msra.mxu0 %v5943
        %v5945 = vand.u32 %v1299, 4294901760
        %5946 = vmatpush.msra.mxu0 %v5945
        %v5947 = vand.u32 %v1291, 4294901760
        %5948 = vmatpush.msra.mxu0 %v5947
        %v5949 = vand.u32 %v1283, 4294901760
        %5950 = vmatpush.msra.mxu0 %v5949
        %v5951 = vand.u32 %v1275, 4294901760
        %5952 = vmatpush.msra.mxu0 %v5951
        %v5953 = vand.u32 %v767, 4294901760
        %5954 = vmatmul.f32.gmra.mxu0 %v5953
        %v5955 = vpop.f32.mrf.mxu0
        %v5956 = vadd.f32 %v5919, %v5955
        %5957 = vdwg.mxu0
        %v5958 = vand.u32 %v1523, 4294901760
        %5959 = vmatpush.msra.mxu0 %v5958
        %v5960 = vand.u32 %v1515, 4294901760
        %5961 = vmatpush.msra.mxu0 %v5960
        %v5962 = vand.u32 %v1507, 4294901760
        %5963 = vmatpush.msra.mxu0 %v5962
        %v5964 = vand.u32 %v1499, 4294901760
        %5965 = vmatpush.msra.mxu0 %v5964
        %v5966 = vand.u32 %v1491, 4294901760
        %5967 = vmatpush.msra.mxu0 %v5966
        %v5968 = vand.u32 %v1483, 4294901760
        %5969 = vmatpush.msra.mxu0 %v5968
        %v5970 = vand.u32 %v1475, 4294901760
        %5971 = vmatpush.msra.mxu0 %v5970
        %v5972 = vand.u32 %v1467, 4294901760
        %5973 = vmatpush.msra.mxu0 %v5972
        %v5974 = vand.u32 %v1459, 4294901760
        %5975 = vmatpush.msra.mxu0 %v5974
        %v5976 = vand.u32 %v1451, 4294901760
        %5977 = vmatpush.msra.mxu0 %v5976
        %v5978 = vand.u32 %v1443, 4294901760
        %5979 = vmatpush.msra.mxu0 %v5978
        %v5980 = vand.u32 %v1435, 4294901760
        %5981 = vmatpush.msra.mxu0 %v5980
        %v5982 = vand.u32 %v1427, 4294901760
        %5983 = vmatpush.msra.mxu0 %v5982
        %v5984 = vand.u32 %v1419, 4294901760
        %5985 = vmatpush.msra.mxu0 %v5984
        %v5986 = vand.u32 %v1411, 4294901760
        %5987 = vmatpush.msra.mxu0 %v5986
        %v5988 = vand.u32 %v1403, 4294901760
        %5989 = vmatpush.msra.mxu0 %v5988
        %v5990 = vand.u32 %v1267, 4294901760
        %v5991 = vsub.f32 %v1267, %v5990
        %v5992 = vand.u32 %v5991, 4294901760
        %v5993 = vsub.f32 %v5991, %v5992
        %v5994 = vand.u32 %v5993, 4294901760
        %5995 = vmatmul.f32.gmra.mxu0 %v5994
        %v5996 = vpop.f32.mrf.mxu0
        %v5997 = vadd.f32 %v5956, %v5996
        %5998 = vdwg.mxu0
        %v5999 = vand.u32 %v1523, 4294901760
        %v6000 = vsub.f32 %v1523, %v5999
        %v6001 = vand.u32 %v6000, 4294901760
        %v6002 = vsub.f32 %v6000, %v6001
        %v6003 = vand.u32 %v6002, 4294901760
        %6004 = vmatpush.msra.mxu0 %v6003
        %v6005 = vand.u32 %v1515, 4294901760
        %v6006 = vsub.f32 %v1515, %v6005
        %v6007 = vand.u32 %v6006, 4294901760
        %v6008 = vsub.f32 %v6006, %v6007
        %v6009 = vand.u32 %v6008, 4294901760
        %6010 = vmatpush.msra.mxu0 %v6009
        %v6011 = vand.u32 %v1507, 4294901760
        %v6012 = vsub.f32 %v1507, %v6011
        %v6013 = vand.u32 %v6012, 4294901760
        %v6014 = vsub.f32 %v6012, %v6013
        %v6015 = vand.u32 %v6014, 4294901760
        %6016 = vmatpush.msra.mxu0 %v6015
        %v6017 = vand.u32 %v1499, 4294901760
        %v6018 = vsub.f32 %v1499, %v6017
        %v6019 = vand.u32 %v6018, 4294901760
        %v6020 = vsub.f32 %v6018, %v6019
        %v6021 = vand.u32 %v6020, 4294901760
        %6022 = vmatpush.msra.mxu0 %v6021
        %v6023 = vand.u32 %v1491, 4294901760
        %v6024 = vsub.f32 %v1491, %v6023
        %v6025 = vand.u32 %v6024, 4294901760
        %v6026 = vsub.f32 %v6024, %v6025
        %v6027 = vand.u32 %v6026, 4294901760
        %6028 = vmatpush.msra.mxu0 %v6027
        %v6029 = vand.u32 %v1483, 4294901760
        %v6030 = vsub.f32 %v1483, %v6029
        %v6031 = vand.u32 %v6030, 4294901760
        %v6032 = vsub.f32 %v6030, %v6031
        %v6033 = vand.u32 %v6032, 4294901760
        %6034 = vmatpush.msra.mxu0 %v6033
        %v6035 = vand.u32 %v1475, 4294901760
        %v6036 = vsub.f32 %v1475, %v6035
        %v6037 = vand.u32 %v6036, 4294901760
        %v6038 = vsub.f32 %v6036, %v6037
        %v6039 = vand.u32 %v6038, 4294901760
        %6040 = vmatpush.msra.mxu0 %v6039
        %v6041 = vand.u32 %v1467, 4294901760
        %v6042 = vsub.f32 %v1467, %v6041
        %v6043 = vand.u32 %v6042, 4294901760
        %v6044 = vsub.f32 %v6042, %v6043
        %v6045 = vand.u32 %v6044, 4294901760
        %6046 = vmatpush.msra.mxu0 %v6045
        %v6047 = vand.u32 %v1459, 4294901760
        %v6048 = vsub.f32 %v1459, %v6047
        %v6049 = vand.u32 %v6048, 4294901760
        %v6050 = vsub.f32 %v6048, %v6049
        %v6051 = vand.u32 %v6050, 4294901760
        %6052 = vmatpush.msra.mxu0 %v6051
        %v6053 = vand.u32 %v1451, 4294901760
        %v6054 = vsub.f32 %v1451, %v6053
        %v6055 = vand.u32 %v6054, 4294901760
        %v6056 = vsub.f32 %v6054, %v6055
        %v6057 = vand.u32 %v6056, 4294901760
        %6058 = vmatpush.msra.mxu0 %v6057
        %v6059 = vand.u32 %v1443, 4294901760
        %v6060 = vsub.f32 %v1443, %v6059
        %v6061 = vand.u32 %v6060, 4294901760
        %v6062 = vsub.f32 %v6060, %v6061
        %v6063 = vand.u32 %v6062, 4294901760
        %6064 = vmatpush.msra.mxu0 %v6063
        %v6065 = vand.u32 %v1435, 4294901760
        %v6066 = vsub.f32 %v1435, %v6065
        %v6067 = vand.u32 %v6066, 4294901760
        %v6068 = vsub.f32 %v6066, %v6067
        %v6069 = vand.u32 %v6068, 4294901760
        %6070 = vmatpush.msra.mxu0 %v6069
        %v6071 = vand.u32 %v1427, 4294901760
        %v6072 = vsub.f32 %v1427, %v6071
        %v6073 = vand.u32 %v6072, 4294901760
        %v6074 = vsub.f32 %v6072, %v6073
        %v6075 = vand.u32 %v6074, 4294901760
        %6076 = vmatpush.msra.mxu0 %v6075
        %v6077 = vand.u32 %v1419, 4294901760
        %v6078 = vsub.f32 %v1419, %v6077
        %v6079 = vand.u32 %v6078, 4294901760
        %v6080 = vsub.f32 %v6078, %v6079
        %v6081 = vand.u32 %v6080, 4294901760
        %6082 = vmatpush.msra.mxu0 %v6081
        %v6083 = vand.u32 %v1411, 4294901760
        %v6084 = vsub.f32 %v1411, %v6083
        %v6085 = vand.u32 %v6084, 4294901760
        %v6086 = vsub.f32 %v6084, %v6085
        %v6087 = vand.u32 %v6086, 4294901760
        %6088 = vmatpush.msra.mxu0 %v6087
        %v6089 = vand.u32 %v1403, 4294901760
        %v6090 = vsub.f32 %v1403, %v6089
        %v6091 = vand.u32 %v6090, 4294901760
        %v6092 = vsub.f32 %v6090, %v6091
        %v6093 = vand.u32 %v6092, 4294901760
        %6094 = vmatpush.msra.mxu0 %v6093
        %v6095 = vand.u32 %v1267, 4294901760
        %6096 = vmatmul.f32.gmra.mxu0 %v6095
        %v6097 = vpop.f32.mrf.mxu0
        %v6098 = vadd.f32 %v5997, %v6097
        %6099 = vdwg.mxu0
        %v6100 = vand.u32 %v1523, 4294901760
        %v6101 = vsub.f32 %v1523, %v6100
        %6102 = vmatpush.msra.mxu0 %v6101
        %v6103 = vand.u32 %v1515, 4294901760
        %v6104 = vsub.f32 %v1515, %v6103
        %6105 = vmatpush.msra.mxu0 %v6104
        %v6106 = vand.u32 %v1507, 4294901760
        %v6107 = vsub.f32 %v1507, %v6106
        %6108 = vmatpush.msra.mxu0 %v6107
        %v6109 = vand.u32 %v1499, 4294901760
        %v6110 = vsub.f32 %v1499, %v6109
        %6111 = vmatpush.msra.mxu0 %v6110
        %v6112 = vand.u32 %v1491, 4294901760
        %v6113 = vsub.f32 %v1491, %v6112
        %6114 = vmatpush.msra.mxu0 %v6113
        %v6115 = vand.u32 %v1483, 4294901760
        %v6116 = vsub.f32 %v1483, %v6115
        %6117 = vmatpush.msra.mxu0 %v6116
        %v6118 = vand.u32 %v1475, 4294901760
        %v6119 = vsub.f32 %v1475, %v6118
        %6120 = vmatpush.msra.mxu0 %v6119
        %v6121 = vand.u32 %v1467, 4294901760
        %v6122 = vsub.f32 %v1467, %v6121
        %6123 = vmatpush.msra.mxu0 %v6122
        %v6124 = vand.u32 %v1459, 4294901760
        %v6125 = vsub.f32 %v1459, %v6124
        %6126 = vmatpush.msra.mxu0 %v6125
        %v6127 = vand.u32 %v1451, 4294901760
        %v6128 = vsub.f32 %v1451, %v6127
        %6129 = vmatpush.msra.mxu0 %v6128
        %v6130 = vand.u32 %v1443, 4294901760
        %v6131 = vsub.f32 %v1443, %v6130
        %6132 = vmatpush.msra.mxu0 %v6131
        %v6133 = vand.u32 %v1435, 4294901760
        %v6134 = vsub.f32 %v1435, %v6133
        %6135 = vmatpush.msra.mxu0 %v6134
        %v6136 = vand.u32 %v1427, 4294901760
        %v6137 = vsub.f32 %v1427, %v6136
        %6138 = vmatpush.msra.mxu0 %v6137
        %v6139 = vand.u32 %v1419, 4294901760
        %v6140 = vsub.f32 %v1419, %v6139
        %6141 = vmatpush.msra.mxu0 %v6140
        %v6142 = vand.u32 %v1411, 4294901760
        %v6143 = vsub.f32 %v1411, %v6142
        %6144 = vmatpush.msra.mxu0 %v6143
        %v6145 = vand.u32 %v1403, 4294901760
        %v6146 = vsub.f32 %v1403, %v6145
        %6147 = vmatpush.msra.mxu0 %v6146
        %v6148 = vand.u32 %v1267, 4294901760
        %v6149 = vsub.f32 %v1267, %v6148
        %6150 = vmatmul.f32.gmra.mxu0 %v6149
        %v6151 = vpop.f32.mrf.mxu0
        %v6152 = vadd.f32 %v6098, %v6151
        %6153 = vdwg.mxu0
        %v6154 = vand.u32 %v1523, 4294901760
        %6155 = vmatpush.msra.mxu0 %v6154
        %v6156 = vand.u32 %v1515, 4294901760
        %6157 = vmatpush.msra.mxu0 %v6156
        %v6158 = vand.u32 %v1507, 4294901760
        %6159 = vmatpush.msra.mxu0 %v6158
        %v6160 = vand.u32 %v1499, 4294901760
        %6161 = vmatpush.msra.mxu0 %v6160
        %v6162 = vand.u32 %v1491, 4294901760
        %6163 = vmatpush.msra.mxu0 %v6162
        %v6164 = vand.u32 %v1483, 4294901760
        %6165 = vmatpush.msra.mxu0 %v6164
        %v6166 = vand.u32 %v1475, 4294901760
        %6167 = vmatpush.msra.mxu0 %v6166
        %v6168 = vand.u32 %v1467, 4294901760
        %6169 = vmatpush.msra.mxu0 %v6168
        %v6170 = vand.u32 %v1459, 4294901760
        %6171 = vmatpush.msra.mxu0 %v6170
        %v6172 = vand.u32 %v1451, 4294901760
        %6173 = vmatpush.msra.mxu0 %v6172
        %v6174 = vand.u32 %v1443, 4294901760
        %6175 = vmatpush.msra.mxu0 %v6174
        %v6176 = vand.u32 %v1435, 4294901760
        %6177 = vmatpush.msra.mxu0 %v6176
        %v6178 = vand.u32 %v1427, 4294901760
        %6179 = vmatpush.msra.mxu0 %v6178
        %v6180 = vand.u32 %v1419, 4294901760
        %6181 = vmatpush.msra.mxu0 %v6180
        %v6182 = vand.u32 %v1411, 4294901760
        %6183 = vmatpush.msra.mxu0 %v6182
        %v6184 = vand.u32 %v1403, 4294901760
        %6185 = vmatpush.msra.mxu0 %v6184
        %v6186 = vand.u32 %v1267, 4294901760
        %v6187 = vsub.f32 %v1267, %v6186
        %v6188 = vand.u32 %v6187, 4294901760
        %6189 = vmatmul.f32.gmra.mxu0 %v6188
        %v6190 = vpop.f32.mrf.mxu0
        %v6191 = vadd.f32 %v6152, %v6190
        %6192 = vdwg.mxu0
        %v6193 = vand.u32 %v1523, 4294901760
        %v6194 = vsub.f32 %v1523, %v6193
        %v6195 = vand.u32 %v6194, 4294901760
        %6196 = vmatpush.msra.mxu0 %v6195
        %v6197 = vand.u32 %v1515, 4294901760
        %v6198 = vsub.f32 %v1515, %v6197
        %v6199 = vand.u32 %v6198, 4294901760
        %6200 = vmatpush.msra.mxu0 %v6199
        %v6201 = vand.u32 %v1507, 4294901760
        %v6202 = vsub.f32 %v1507, %v6201
        %v6203 = vand.u32 %v6202, 4294901760
        %6204 = vmatpush.msra.mxu0 %v6203
        %v6205 = vand.u32 %v1499, 4294901760
        %v6206 = vsub.f32 %v1499, %v6205
        %v6207 = vand.u32 %v6206, 4294901760
        %6208 = vmatpush.msra.mxu0 %v6207
        %v6209 = vand.u32 %v1491, 4294901760
        %v6210 = vsub.f32 %v1491, %v6209
        %v6211 = vand.u32 %v6210, 4294901760
        %6212 = vmatpush.msra.mxu0 %v6211
        %v6213 = vand.u32 %v1483, 4294901760
        %v6214 = vsub.f32 %v1483, %v6213
        %v6215 = vand.u32 %v6214, 4294901760
        %6216 = vmatpush.msra.mxu0 %v6215
        %v6217 = vand.u32 %v1475, 4294901760
        %v6218 = vsub.f32 %v1475, %v6217
        %v6219 = vand.u32 %v6218, 4294901760
        %6220 = vmatpush.msra.mxu0 %v6219
        %v6221 = vand.u32 %v1467, 4294901760
        %v6222 = vsub.f32 %v1467, %v6221
        %v6223 = vand.u32 %v6222, 4294901760
        %6224 = vmatpush.msra.mxu0 %v6223
        %v6225 = vand.u32 %v1459, 4294901760
        %v6226 = vsub.f32 %v1459, %v6225
        %v6227 = vand.u32 %v6226, 4294901760
        %6228 = vmatpush.msra.mxu0 %v6227
        %v6229 = vand.u32 %v1451, 4294901760
        %v6230 = vsub.f32 %v1451, %v6229
        %v6231 = vand.u32 %v6230, 4294901760
        %6232 = vmatpush.msra.mxu0 %v6231
        %v6233 = vand.u32 %v1443, 4294901760
        %v6234 = vsub.f32 %v1443, %v6233
        %v6235 = vand.u32 %v6234, 4294901760
        %6236 = vmatpush.msra.mxu0 %v6235
        %v6237 = vand.u32 %v1435, 4294901760
        %v6238 = vsub.f32 %v1435, %v6237
        %v6239 = vand.u32 %v6238, 4294901760
        %6240 = vmatpush.msra.mxu0 %v6239
        %v6241 = vand.u32 %v1427, 4294901760
        %v6242 = vsub.f32 %v1427, %v6241
        %v6243 = vand.u32 %v6242, 4294901760
        %6244 = vmatpush.msra.mxu0 %v6243
        %v6245 = vand.u32 %v1419, 4294901760
        %v6246 = vsub.f32 %v1419, %v6245
        %v6247 = vand.u32 %v6246, 4294901760
        %6248 = vmatpush.msra.mxu0 %v6247
        %v6249 = vand.u32 %v1411, 4294901760
        %v6250 = vsub.f32 %v1411, %v6249
        %v6251 = vand.u32 %v6250, 4294901760
        %6252 = vmatpush.msra.mxu0 %v6251
        %v6253 = vand.u32 %v1403, 4294901760
        %v6254 = vsub.f32 %v1403, %v6253
        %v6255 = vand.u32 %v6254, 4294901760
        %6256 = vmatpush.msra.mxu0 %v6255
        %v6257 = vand.u32 %v1267, 4294901760
        %6258 = vmatmul.f32.gmra.mxu0 %v6257
        %v6259 = vpop.f32.mrf.mxu0
        %v6260 = vadd.f32 %v6191, %v6259
        %6261 = vdwg.mxu0
        %v6262 = vand.u32 %v1523, 4294901760
        %6263 = vmatpush.msra.mxu0 %v6262
        %v6264 = vand.u32 %v1515, 4294901760
        %6265 = vmatpush.msra.mxu0 %v6264
        %v6266 = vand.u32 %v1507, 4294901760
        %6267 = vmatpush.msra.mxu0 %v6266
        %v6268 = vand.u32 %v1499, 4294901760
        %6269 = vmatpush.msra.mxu0 %v6268
        %v6270 = vand.u32 %v1491, 4294901760
        %6271 = vmatpush.msra.mxu0 %v6270
        %v6272 = vand.u32 %v1483, 4294901760
        %6273 = vmatpush.msra.mxu0 %v6272
        %v6274 = vand.u32 %v1475, 4294901760
        %6275 = vmatpush.msra.mxu0 %v6274
        %v6276 = vand.u32 %v1467, 4294901760
        %6277 = vmatpush.msra.mxu0 %v6276
        %v6278 = vand.u32 %v1459, 4294901760
        %6279 = vmatpush.msra.mxu0 %v6278
        %v6280 = vand.u32 %v1451, 4294901760
        %6281 = vmatpush.msra.mxu0 %v6280
        %v6282 = vand.u32 %v1443, 4294901760
        %6283 = vmatpush.msra.mxu0 %v6282
        %v6284 = vand.u32 %v1435, 4294901760
        %6285 = vmatpush.msra.mxu0 %v6284
        %v6286 = vand.u32 %v1427, 4294901760
        %6287 = vmatpush.msra.mxu0 %v6286
        %v6288 = vand.u32 %v1419, 4294901760
        %6289 = vmatpush.msra.mxu0 %v6288
        %v6290 = vand.u32 %v1411, 4294901760
        %6291 = vmatpush.msra.mxu0 %v6290
        %v6292 = vand.u32 %v1403, 4294901760
        %6293 = vmatpush.msra.mxu0 %v6292
        %v6294 = vand.u32 %v1267, 4294901760
        %6295 = vmatmul.f32.gmra.mxu0 %v6294
        %v6296 = vpop.f32.mrf.mxu0
        %v6297 = vadd.f32 %v6260, %v6296
        %6298 = vdwg.mxu0
        %v6299 = vand.u32 %v1396, 4294901760
        %6300 = vmatpush.msra.mxu0 %v6299
        %v6301 = vand.u32 %v1388, 4294901760
        %6302 = vmatpush.msra.mxu0 %v6301
        %v6303 = vand.u32 %v1380, 4294901760
        %6304 = vmatpush.msra.mxu0 %v6303
        %v6305 = vand.u32 %v1372, 4294901760
        %6306 = vmatpush.msra.mxu0 %v6305
        %v6307 = vand.u32 %v1364, 4294901760
        %6308 = vmatpush.msra.mxu0 %v6307
        %v6309 = vand.u32 %v1356, 4294901760
        %6310 = vmatpush.msra.mxu0 %v6309
        %v6311 = vand.u32 %v1348, 4294901760
        %6312 = vmatpush.msra.mxu0 %v6311
        %v6313 = vand.u32 %v1340, 4294901760
        %6314 = vmatpush.msra.mxu0 %v6313
        %v6315 = vand.u32 %v1332, 4294901760
        %6316 = vmatpush.msra.mxu0 %v6315
        %v6317 = vand.u32 %v1324, 4294901760
        %6318 = vmatpush.msra.mxu0 %v6317
        %v6319 = vand.u32 %v1316, 4294901760
        %6320 = vmatpush.msra.mxu0 %v6319
        %v6321 = vand.u32 %v1308, 4294901760
        %6322 = vmatpush.msra.mxu0 %v6321
        %v6323 = vand.u32 %v1300, 4294901760
        %6324 = vmatpush.msra.mxu0 %v6323
        %v6325 = vand.u32 %v1292, 4294901760
        %6326 = vmatpush.msra.mxu0 %v6325
        %v6327 = vand.u32 %v1284, 4294901760
        %6328 = vmatpush.msra.mxu0 %v6327
        %v6329 = vand.u32 %v1276, 4294901760
        %6330 = vmatpush.msra.mxu0 %v6329
        %v6331 = vand.u32 %v767, 4294901760
        %v6332 = vsub.f32 %v767, %v6331
        %v6333 = vand.u32 %v6332, 4294901760
        %v6334 = vsub.f32 %v6332, %v6333
        %v6335 = vand.u32 %v6334, 4294901760
        %6336 = vmatmul.f32.gmra.mxu0 %v6335
        %v6337 = vpop.f32.mrf.mxu0
        %v6338 = vadd.f32 0.0, %v6337
        %6339 = vdwg.mxu0
        %v6340 = vand.u32 %v1396, 4294901760
        %v6341 = vsub.f32 %v1396, %v6340
        %v6342 = vand.u32 %v6341, 4294901760
        %v6343 = vsub.f32 %v6341, %v6342
        %v6344 = vand.u32 %v6343, 4294901760
        %6345 = vmatpush.msra.mxu0 %v6344
        %v6346 = vand.u32 %v1388, 4294901760
        %v6347 = vsub.f32 %v1388, %v6346
        %v6348 = vand.u32 %v6347, 4294901760
        %v6349 = vsub.f32 %v6347, %v6348
        %v6350 = vand.u32 %v6349, 4294901760
        %6351 = vmatpush.msra.mxu0 %v6350
        %v6352 = vand.u32 %v1380, 4294901760
        %v6353 = vsub.f32 %v1380, %v6352
        %v6354 = vand.u32 %v6353, 4294901760
        %v6355 = vsub.f32 %v6353, %v6354
        %v6356 = vand.u32 %v6355, 4294901760
        %6357 = vmatpush.msra.mxu0 %v6356
        %v6358 = vand.u32 %v1372, 4294901760
        %v6359 = vsub.f32 %v1372, %v6358
        %v6360 = vand.u32 %v6359, 4294901760
        %v6361 = vsub.f32 %v6359, %v6360
        %v6362 = vand.u32 %v6361, 4294901760
        %6363 = vmatpush.msra.mxu0 %v6362
        %v6364 = vand.u32 %v1364, 4294901760
        %v6365 = vsub.f32 %v1364, %v6364
        %v6366 = vand.u32 %v6365, 4294901760
        %v6367 = vsub.f32 %v6365, %v6366
        %v6368 = vand.u32 %v6367, 4294901760
        %6369 = vmatpush.msra.mxu0 %v6368
        %v6370 = vand.u32 %v1356, 4294901760
        %v6371 = vsub.f32 %v1356, %v6370
        %v6372 = vand.u32 %v6371, 4294901760
        %v6373 = vsub.f32 %v6371, %v6372
        %v6374 = vand.u32 %v6373, 4294901760
        %6375 = vmatpush.msra.mxu0 %v6374
        %v6376 = vand.u32 %v1348, 4294901760
        %v6377 = vsub.f32 %v1348, %v6376
        %v6378 = vand.u32 %v6377, 4294901760
        %v6379 = vsub.f32 %v6377, %v6378
        %v6380 = vand.u32 %v6379, 4294901760
        %6381 = vmatpush.msra.mxu0 %v6380
        %v6382 = vand.u32 %v1340, 4294901760
        %v6383 = vsub.f32 %v1340, %v6382
        %v6384 = vand.u32 %v6383, 4294901760
        %v6385 = vsub.f32 %v6383, %v6384
        %v6386 = vand.u32 %v6385, 4294901760
        %6387 = vmatpush.msra.mxu0 %v6386
        %v6388 = vand.u32 %v1332, 4294901760
        %v6389 = vsub.f32 %v1332, %v6388
        %v6390 = vand.u32 %v6389, 4294901760
        %v6391 = vsub.f32 %v6389, %v6390
        %v6392 = vand.u32 %v6391, 4294901760
        %6393 = vmatpush.msra.mxu0 %v6392
        %v6394 = vand.u32 %v1324, 4294901760
        %v6395 = vsub.f32 %v1324, %v6394
        %v6396 = vand.u32 %v6395, 4294901760
        %v6397 = vsub.f32 %v6395, %v6396
        %v6398 = vand.u32 %v6397, 4294901760
        %6399 = vmatpush.msra.mxu0 %v6398
        %v6400 = vand.u32 %v1316, 4294901760
        %v6401 = vsub.f32 %v1316, %v6400
        %v6402 = vand.u32 %v6401, 4294901760
        %v6403 = vsub.f32 %v6401, %v6402
        %v6404 = vand.u32 %v6403, 4294901760
        %6405 = vmatpush.msra.mxu0 %v6404
        %v6406 = vand.u32 %v1308, 4294901760
        %v6407 = vsub.f32 %v1308, %v6406
        %v6408 = vand.u32 %v6407, 4294901760
        %v6409 = vsub.f32 %v6407, %v6408
        %v6410 = vand.u32 %v6409, 4294901760
        %6411 = vmatpush.msra.mxu0 %v6410
        %v6412 = vand.u32 %v1300, 4294901760
        %v6413 = vsub.f32 %v1300, %v6412
        %v6414 = vand.u32 %v6413, 4294901760
        %v6415 = vsub.f32 %v6413, %v6414
        %v6416 = vand.u32 %v6415, 4294901760
        %6417 = vmatpush.msra.mxu0 %v6416
        %v6418 = vand.u32 %v1292, 4294901760
        %v6419 = vsub.f32 %v1292, %v6418
        %v6420 = vand.u32 %v6419, 4294901760
        %v6421 = vsub.f32 %v6419, %v6420
        %v6422 = vand.u32 %v6421, 4294901760
        %6423 = vmatpush.msra.mxu0 %v6422
        %v6424 = vand.u32 %v1284, 4294901760
        %v6425 = vsub.f32 %v1284, %v6424
        %v6426 = vand.u32 %v6425, 4294901760
        %v6427 = vsub.f32 %v6425, %v6426
        %v6428 = vand.u32 %v6427, 4294901760
        %6429 = vmatpush.msra.mxu0 %v6428
        %v6430 = vand.u32 %v1276, 4294901760
        %v6431 = vsub.f32 %v1276, %v6430
        %v6432 = vand.u32 %v6431, 4294901760
        %v6433 = vsub.f32 %v6431, %v6432
        %v6434 = vand.u32 %v6433, 4294901760
        %6435 = vmatpush.msra.mxu0 %v6434
        %v6436 = vand.u32 %v767, 4294901760
        %6437 = vmatmul.f32.gmra.mxu0 %v6436
        %v6438 = vpop.f32.mrf.mxu0
        %v6439 = vadd.f32 %v6338, %v6438
        %6440 = vdwg.mxu0
        %v6441 = vand.u32 %v1396, 4294901760
        %v6442 = vsub.f32 %v1396, %v6441
        %6443 = vmatpush.msra.mxu0 %v6442
        %v6444 = vand.u32 %v1388, 4294901760
        %v6445 = vsub.f32 %v1388, %v6444
        %6446 = vmatpush.msra.mxu0 %v6445
        %v6447 = vand.u32 %v1380, 4294901760
        %v6448 = vsub.f32 %v1380, %v6447
        %6449 = vmatpush.msra.mxu0 %v6448
        %v6450 = vand.u32 %v1372, 4294901760
        %v6451 = vsub.f32 %v1372, %v6450
        %6452 = vmatpush.msra.mxu0 %v6451
        %v6453 = vand.u32 %v1364, 4294901760
        %v6454 = vsub.f32 %v1364, %v6453
        %6455 = vmatpush.msra.mxu0 %v6454
        %v6456 = vand.u32 %v1356, 4294901760
        %v6457 = vsub.f32 %v1356, %v6456
        %6458 = vmatpush.msra.mxu0 %v6457
        %v6459 = vand.u32 %v1348, 4294901760
        %v6460 = vsub.f32 %v1348, %v6459
        %6461 = vmatpush.msra.mxu0 %v6460
        %v6462 = vand.u32 %v1340, 4294901760
        %v6463 = vsub.f32 %v1340, %v6462
        %6464 = vmatpush.msra.mxu0 %v6463
        %v6465 = vand.u32 %v1332, 4294901760
        %v6466 = vsub.f32 %v1332, %v6465
        %6467 = vmatpush.msra.mxu0 %v6466
        %v6468 = vand.u32 %v1324, 4294901760
        %v6469 = vsub.f32 %v1324, %v6468
        %6470 = vmatpush.msra.mxu0 %v6469
        %v6471 = vand.u32 %v1316, 4294901760
        %v6472 = vsub.f32 %v1316, %v6471
        %6473 = vmatpush.msra.mxu0 %v6472
        %v6474 = vand.u32 %v1308, 4294901760
        %v6475 = vsub.f32 %v1308, %v6474
        %6476 = vmatpush.msra.mxu0 %v6475
        %v6477 = vand.u32 %v1300, 4294901760
        %v6478 = vsub.f32 %v1300, %v6477
        %6479 = vmatpush.msra.mxu0 %v6478
        %v6480 = vand.u32 %v1292, 4294901760
        %v6481 = vsub.f32 %v1292, %v6480
        %6482 = vmatpush.msra.mxu0 %v6481
        %v6483 = vand.u32 %v1284, 4294901760
        %v6484 = vsub.f32 %v1284, %v6483
        %6485 = vmatpush.msra.mxu0 %v6484
        %v6486 = vand.u32 %v1276, 4294901760
        %v6487 = vsub.f32 %v1276, %v6486
        %6488 = vmatpush.msra.mxu0 %v6487
        %v6489 = vand.u32 %v767, 4294901760
        %v6490 = vsub.f32 %v767, %v6489
        %6491 = vmatmul.f32.gmra.mxu0 %v6490
        %v6492 = vpop.f32.mrf.mxu0
        %v6493 = vadd.f32 %v6439, %v6492
        %6494 = vdwg.mxu0
        %v6495 = vand.u32 %v1396, 4294901760
        %6496 = vmatpush.msra.mxu0 %v6495
        %v6497 = vand.u32 %v1388, 4294901760
        %6498 = vmatpush.msra.mxu0 %v6497
        %v6499 = vand.u32 %v1380, 4294901760
        %6500 = vmatpush.msra.mxu0 %v6499
        %v6501 = vand.u32 %v1372, 4294901760
        %6502 = vmatpush.msra.mxu0 %v6501
        %v6503 = vand.u32 %v1364, 4294901760
        %6504 = vmatpush.msra.mxu0 %v6503
        %v6505 = vand.u32 %v1356, 4294901760
        %6506 = vmatpush.msra.mxu0 %v6505
        %v6507 = vand.u32 %v1348, 4294901760
        %6508 = vmatpush.msra.mxu0 %v6507
        %v6509 = vand.u32 %v1340, 4294901760
        %6510 = vmatpush.msra.mxu0 %v6509
        %v6511 = vand.u32 %v1332, 4294901760
        %6512 = vmatpush.msra.mxu0 %v6511
        %v6513 = vand.u32 %v1324, 4294901760
        %6514 = vmatpush.msra.mxu0 %v6513
        %v6515 = vand.u32 %v1316, 4294901760
        %6516 = vmatpush.msra.mxu0 %v6515
        %v6517 = vand.u32 %v1308, 4294901760
        %6518 = vmatpush.msra.mxu0 %v6517
        %v6519 = vand.u32 %v1300, 4294901760
        %6520 = vmatpush.msra.mxu0 %v6519
        %v6521 = vand.u32 %v1292, 4294901760
        %6522 = vmatpush.msra.mxu0 %v6521
        %v6523 = vand.u32 %v1284, 4294901760
        %6524 = vmatpush.msra.mxu0 %v6523
        %v6525 = vand.u32 %v1276, 4294901760
        %6526 = vmatpush.msra.mxu0 %v6525
        %v6527 = vand.u32 %v767, 4294901760
        %v6528 = vsub.f32 %v767, %v6527
        %v6529 = vand.u32 %v6528, 4294901760
        %6530 = vmatmul.f32.gmra.mxu0 %v6529
        %v6531 = vpop.f32.mrf.mxu0
        %v6532 = vadd.f32 %v6493, %v6531
        %6533 = vdwg.mxu0
        %v6534 = vand.u32 %v1396, 4294901760
        %v6535 = vsub.f32 %v1396, %v6534
        %v6536 = vand.u32 %v6535, 4294901760
        %6537 = vmatpush.msra.mxu0 %v6536
        %v6538 = vand.u32 %v1388, 4294901760
        %v6539 = vsub.f32 %v1388, %v6538
        %v6540 = vand.u32 %v6539, 4294901760
        %6541 = vmatpush.msra.mxu0 %v6540
        %v6542 = vand.u32 %v1380, 4294901760
        %v6543 = vsub.f32 %v1380, %v6542
        %v6544 = vand.u32 %v6543, 4294901760
        %6545 = vmatpush.msra.mxu0 %v6544
        %v6546 = vand.u32 %v1372, 4294901760
        %v6547 = vsub.f32 %v1372, %v6546
        %v6548 = vand.u32 %v6547, 4294901760
        %6549 = vmatpush.msra.mxu0 %v6548
        %v6550 = vand.u32 %v1364, 4294901760
        %v6551 = vsub.f32 %v1364, %v6550
        %v6552 = vand.u32 %v6551, 4294901760
        %6553 = vmatpush.msra.mxu0 %v6552
        %v6554 = vand.u32 %v1356, 4294901760
        %v6555 = vsub.f32 %v1356, %v6554
        %v6556 = vand.u32 %v6555, 4294901760
        %6557 = vmatpush.msra.mxu0 %v6556
        %v6558 = vand.u32 %v1348, 4294901760
        %v6559 = vsub.f32 %v1348, %v6558
        %v6560 = vand.u32 %v6559, 4294901760
        %6561 = vmatpush.msra.mxu0 %v6560
        %v6562 = vand.u32 %v1340, 4294901760
        %v6563 = vsub.f32 %v1340, %v6562
        %v6564 = vand.u32 %v6563, 4294901760
        %6565 = vmatpush.msra.mxu0 %v6564
        %v6566 = vand.u32 %v1332, 4294901760
        %v6567 = vsub.f32 %v1332, %v6566
        %v6568 = vand.u32 %v6567, 4294901760
        %6569 = vmatpush.msra.mxu0 %v6568
        %v6570 = vand.u32 %v1324, 4294901760
        %v6571 = vsub.f32 %v1324, %v6570
        %v6572 = vand.u32 %v6571, 4294901760
        %6573 = vmatpush.msra.mxu0 %v6572
        %v6574 = vand.u32 %v1316, 4294901760
        %v6575 = vsub.f32 %v1316, %v6574
        %v6576 = vand.u32 %v6575, 4294901760
        %6577 = vmatpush.msra.mxu0 %v6576
        %v6578 = vand.u32 %v1308, 4294901760
        %v6579 = vsub.f32 %v1308, %v6578
        %v6580 = vand.u32 %v6579, 4294901760
        %6581 = vmatpush.msra.mxu0 %v6580
        %v6582 = vand.u32 %v1300, 4294901760
        %v6583 = vsub.f32 %v1300, %v6582
        %v6584 = vand.u32 %v6583, 4294901760
        %6585 = vmatpush.msra.mxu0 %v6584
        %v6586 = vand.u32 %v1292, 4294901760
        %v6587 = vsub.f32 %v1292, %v6586
        %v6588 = vand.u32 %v6587, 4294901760
        %6589 = vmatpush.msra.mxu0 %v6588
        %v6590 = vand.u32 %v1284, 4294901760
        %v6591 = vsub.f32 %v1284, %v6590
        %v6592 = vand.u32 %v6591, 4294901760
        %6593 = vmatpush.msra.mxu0 %v6592
        %v6594 = vand.u32 %v1276, 4294901760
        %v6595 = vsub.f32 %v1276, %v6594
        %v6596 = vand.u32 %v6595, 4294901760
        %6597 = vmatpush.msra.mxu0 %v6596
        %v6598 = vand.u32 %v767, 4294901760
        %6599 = vmatmul.f32.gmra.mxu0 %v6598
        %v6600 = vpop.f32.mrf.mxu0
        %v6601 = vadd.f32 %v6532, %v6600
        %6602 = vdwg.mxu0
        %v6603 = vand.u32 %v1396, 4294901760
        %6604 = vmatpush.msra.mxu0 %v6603
        %v6605 = vand.u32 %v1388, 4294901760
        %6606 = vmatpush.msra.mxu0 %v6605
        %v6607 = vand.u32 %v1380, 4294901760
        %6608 = vmatpush.msra.mxu0 %v6607
        %v6609 = vand.u32 %v1372, 4294901760
        %6610 = vmatpush.msra.mxu0 %v6609
        %v6611 = vand.u32 %v1364, 4294901760
        %6612 = vmatpush.msra.mxu0 %v6611
        %v6613 = vand.u32 %v1356, 4294901760
        %6614 = vmatpush.msra.mxu0 %v6613
        %v6615 = vand.u32 %v1348, 4294901760
        %6616 = vmatpush.msra.mxu0 %v6615
        %v6617 = vand.u32 %v1340, 4294901760
        %6618 = vmatpush.msra.mxu0 %v6617
        %v6619 = vand.u32 %v1332, 4294901760
        %6620 = vmatpush.msra.mxu0 %v6619
        %v6621 = vand.u32 %v1324, 4294901760
        %6622 = vmatpush.msra.mxu0 %v6621
        %v6623 = vand.u32 %v1316, 4294901760
        %6624 = vmatpush.msra.mxu0 %v6623
        %v6625 = vand.u32 %v1308, 4294901760
        %6626 = vmatpush.msra.mxu0 %v6625
        %v6627 = vand.u32 %v1300, 4294901760
        %6628 = vmatpush.msra.mxu0 %v6627
        %v6629 = vand.u32 %v1292, 4294901760
        %6630 = vmatpush.msra.mxu0 %v6629
        %v6631 = vand.u32 %v1284, 4294901760
        %6632 = vmatpush.msra.mxu0 %v6631
        %v6633 = vand.u32 %v1276, 4294901760
        %6634 = vmatpush.msra.mxu0 %v6633
        %v6635 = vand.u32 %v767, 4294901760
        %6636 = vmatmul.f32.gmra.mxu0 %v6635
        %v6637 = vpop.f32.mrf.mxu0
        %v6638 = vadd.f32 %v6601, %v6637
        %6639 = vdwg.mxu0
        %v6640 = vand.u32 %v1524, 4294901760
        %6641 = vmatpush.msra.mxu0 %v6640
        %v6642 = vand.u32 %v1516, 4294901760
        %6643 = vmatpush.msra.mxu0 %v6642
        %v6644 = vand.u32 %v1508, 4294901760
        %6645 = vmatpush.msra.mxu0 %v6644
        %v6646 = vand.u32 %v1500, 4294901760
        %6647 = vmatpush.msra.mxu0 %v6646
        %v6648 = vand.u32 %v1492, 4294901760
        %6649 = vmatpush.msra.mxu0 %v6648
        %v6650 = vand.u32 %v1484, 4294901760
        %6651 = vmatpush.msra.mxu0 %v6650
        %v6652 = vand.u32 %v1476, 4294901760
        %6653 = vmatpush.msra.mxu0 %v6652
        %v6654 = vand.u32 %v1468, 4294901760
        %6655 = vmatpush.msra.mxu0 %v6654
        %v6656 = vand.u32 %v1460, 4294901760
        %6657 = vmatpush.msra.mxu0 %v6656
        %v6658 = vand.u32 %v1452, 4294901760
        %6659 = vmatpush.msra.mxu0 %v6658
        %v6660 = vand.u32 %v1444, 4294901760
        %6661 = vmatpush.msra.mxu0 %v6660
        %v6662 = vand.u32 %v1436, 4294901760
        %6663 = vmatpush.msra.mxu0 %v6662
        %v6664 = vand.u32 %v1428, 4294901760
        %6665 = vmatpush.msra.mxu0 %v6664
        %v6666 = vand.u32 %v1420, 4294901760
        %6667 = vmatpush.msra.mxu0 %v6666
        %v6668 = vand.u32 %v1412, 4294901760
        %6669 = vmatpush.msra.mxu0 %v6668
        %v6670 = vand.u32 %v1404, 4294901760
        %6671 = vmatpush.msra.mxu0 %v6670
        %v6672 = vand.u32 %v1267, 4294901760
        %v6673 = vsub.f32 %v1267, %v6672
        %v6674 = vand.u32 %v6673, 4294901760
        %v6675 = vsub.f32 %v6673, %v6674
        %v6676 = vand.u32 %v6675, 4294901760
        %6677 = vmatmul.f32.gmra.mxu0 %v6676
        %v6678 = vpop.f32.mrf.mxu0
        %v6679 = vadd.f32 %v6638, %v6678
        %6680 = vdwg.mxu0
        %v6681 = vand.u32 %v1524, 4294901760
        %v6682 = vsub.f32 %v1524, %v6681
        %v6683 = vand.u32 %v6682, 4294901760
        %v6684 = vsub.f32 %v6682, %v6683
        %v6685 = vand.u32 %v6684, 4294901760
        %6686 = vmatpush.msra.mxu0 %v6685
        %v6687 = vand.u32 %v1516, 4294901760
        %v6688 = vsub.f32 %v1516, %v6687
        %v6689 = vand.u32 %v6688, 4294901760
        %v6690 = vsub.f32 %v6688, %v6689
        %v6691 = vand.u32 %v6690, 4294901760
        %6692 = vmatpush.msra.mxu0 %v6691
        %v6693 = vand.u32 %v1508, 4294901760
        %v6694 = vsub.f32 %v1508, %v6693
        %v6695 = vand.u32 %v6694, 4294901760
        %v6696 = vsub.f32 %v6694, %v6695
        %v6697 = vand.u32 %v6696, 4294901760
        %6698 = vmatpush.msra.mxu0 %v6697
        %v6699 = vand.u32 %v1500, 4294901760
        %v6700 = vsub.f32 %v1500, %v6699
        %v6701 = vand.u32 %v6700, 4294901760
        %v6702 = vsub.f32 %v6700, %v6701
        %v6703 = vand.u32 %v6702, 4294901760
        %6704 = vmatpush.msra.mxu0 %v6703
        %v6705 = vand.u32 %v1492, 4294901760
        %v6706 = vsub.f32 %v1492, %v6705
        %v6707 = vand.u32 %v6706, 4294901760
        %v6708 = vsub.f32 %v6706, %v6707
        %v6709 = vand.u32 %v6708, 4294901760
        %6710 = vmatpush.msra.mxu0 %v6709
        %v6711 = vand.u32 %v1484, 4294901760
        %v6712 = vsub.f32 %v1484, %v6711
        %v6713 = vand.u32 %v6712, 4294901760
        %v6714 = vsub.f32 %v6712, %v6713
        %v6715 = vand.u32 %v6714, 4294901760
        %6716 = vmatpush.msra.mxu0 %v6715
        %v6717 = vand.u32 %v1476, 4294901760
        %v6718 = vsub.f32 %v1476, %v6717
        %v6719 = vand.u32 %v6718, 4294901760
        %v6720 = vsub.f32 %v6718, %v6719
        %v6721 = vand.u32 %v6720, 4294901760
        %6722 = vmatpush.msra.mxu0 %v6721
        %v6723 = vand.u32 %v1468, 4294901760
        %v6724 = vsub.f32 %v1468, %v6723
        %v6725 = vand.u32 %v6724, 4294901760
        %v6726 = vsub.f32 %v6724, %v6725
        %v6727 = vand.u32 %v6726, 4294901760
        %6728 = vmatpush.msra.mxu0 %v6727
        %v6729 = vand.u32 %v1460, 4294901760
        %v6730 = vsub.f32 %v1460, %v6729
        %v6731 = vand.u32 %v6730, 4294901760
        %v6732 = vsub.f32 %v6730, %v6731
        %v6733 = vand.u32 %v6732, 4294901760
        %6734 = vmatpush.msra.mxu0 %v6733
        %v6735 = vand.u32 %v1452, 4294901760
        %v6736 = vsub.f32 %v1452, %v6735
        %v6737 = vand.u32 %v6736, 4294901760
        %v6738 = vsub.f32 %v6736, %v6737
        %v6739 = vand.u32 %v6738, 4294901760
        %6740 = vmatpush.msra.mxu0 %v6739
        %v6741 = vand.u32 %v1444, 4294901760
        %v6742 = vsub.f32 %v1444, %v6741
        %v6743 = vand.u32 %v6742, 4294901760
        %v6744 = vsub.f32 %v6742, %v6743
        %v6745 = vand.u32 %v6744, 4294901760
        %6746 = vmatpush.msra.mxu0 %v6745
        %v6747 = vand.u32 %v1436, 4294901760
        %v6748 = vsub.f32 %v1436, %v6747
        %v6749 = vand.u32 %v6748, 4294901760
        %v6750 = vsub.f32 %v6748, %v6749
        %v6751 = vand.u32 %v6750, 4294901760
        %6752 = vmatpush.msra.mxu0 %v6751
        %v6753 = vand.u32 %v1428, 4294901760
        %v6754 = vsub.f32 %v1428, %v6753
        %v6755 = vand.u32 %v6754, 4294901760
        %v6756 = vsub.f32 %v6754, %v6755
        %v6757 = vand.u32 %v6756, 4294901760
        %6758 = vmatpush.msra.mxu0 %v6757
        %v6759 = vand.u32 %v1420, 4294901760
        %v6760 = vsub.f32 %v1420, %v6759
        %v6761 = vand.u32 %v6760, 4294901760
        %v6762 = vsub.f32 %v6760, %v6761
        %v6763 = vand.u32 %v6762, 4294901760
        %6764 = vmatpush.msra.mxu0 %v6763
        %v6765 = vand.u32 %v1412, 4294901760
        %v6766 = vsub.f32 %v1412, %v6765
        %v6767 = vand.u32 %v6766, 4294901760
        %v6768 = vsub.f32 %v6766, %v6767
        %v6769 = vand.u32 %v6768, 4294901760
        %6770 = vmatpush.msra.mxu0 %v6769
        %v6771 = vand.u32 %v1404, 4294901760
        %v6772 = vsub.f32 %v1404, %v6771
        %v6773 = vand.u32 %v6772, 4294901760
        %v6774 = vsub.f32 %v6772, %v6773
        %v6775 = vand.u32 %v6774, 4294901760
        %6776 = vmatpush.msra.mxu0 %v6775
        %v6777 = vand.u32 %v1267, 4294901760
        %6778 = vmatmul.f32.gmra.mxu0 %v6777
        %v6779 = vpop.f32.mrf.mxu0
        %v6780 = vadd.f32 %v6679, %v6779
        %6781 = vdwg.mxu0
        %v6782 = vand.u32 %v1524, 4294901760
        %v6783 = vsub.f32 %v1524, %v6782
        %6784 = vmatpush.msra.mxu0 %v6783
        %v6785 = vand.u32 %v1516, 4294901760
        %v6786 = vsub.f32 %v1516, %v6785
        %6787 = vmatpush.msra.mxu0 %v6786
        %v6788 = vand.u32 %v1508, 4294901760
        %v6789 = vsub.f32 %v1508, %v6788
        %6790 = vmatpush.msra.mxu0 %v6789
        %v6791 = vand.u32 %v1500, 4294901760
        %v6792 = vsub.f32 %v1500, %v6791
        %6793 = vmatpush.msra.mxu0 %v6792
        %v6794 = vand.u32 %v1492, 4294901760
        %v6795 = vsub.f32 %v1492, %v6794
        %6796 = vmatpush.msra.mxu0 %v6795
        %v6797 = vand.u32 %v1484, 4294901760
        %v6798 = vsub.f32 %v1484, %v6797
        %6799 = vmatpush.msra.mxu0 %v6798
        %v6800 = vand.u32 %v1476, 4294901760
        %v6801 = vsub.f32 %v1476, %v6800
        %6802 = vmatpush.msra.mxu0 %v6801
        %v6803 = vand.u32 %v1468, 4294901760
        %v6804 = vsub.f32 %v1468, %v6803
        %6805 = vmatpush.msra.mxu0 %v6804
        %v6806 = vand.u32 %v1460, 4294901760
        %v6807 = vsub.f32 %v1460, %v6806
        %6808 = vmatpush.msra.mxu0 %v6807
        %v6809 = vand.u32 %v1452, 4294901760
        %v6810 = vsub.f32 %v1452, %v6809
        %6811 = vmatpush.msra.mxu0 %v6810
        %v6812 = vand.u32 %v1444, 4294901760
        %v6813 = vsub.f32 %v1444, %v6812
        %6814 = vmatpush.msra.mxu0 %v6813
        %v6815 = vand.u32 %v1436, 4294901760
        %v6816 = vsub.f32 %v1436, %v6815
        %6817 = vmatpush.msra.mxu0 %v6816
        %v6818 = vand.u32 %v1428, 4294901760
        %v6819 = vsub.f32 %v1428, %v6818
        %6820 = vmatpush.msra.mxu0 %v6819
        %v6821 = vand.u32 %v1420, 4294901760
        %v6822 = vsub.f32 %v1420, %v6821
        %6823 = vmatpush.msra.mxu0 %v6822
        %v6824 = vand.u32 %v1412, 4294901760
        %v6825 = vsub.f32 %v1412, %v6824
        %6826 = vmatpush.msra.mxu0 %v6825
        %v6827 = vand.u32 %v1404, 4294901760
        %v6828 = vsub.f32 %v1404, %v6827
        %6829 = vmatpush.msra.mxu0 %v6828
        %v6830 = vand.u32 %v1267, 4294901760
        %v6831 = vsub.f32 %v1267, %v6830
        %6832 = vmatmul.f32.gmra.mxu0 %v6831
        %v6833 = vpop.f32.mrf.mxu0
        %v6834 = vadd.f32 %v6780, %v6833
        %6835 = vdwg.mxu0
        %v6836 = vand.u32 %v1524, 4294901760
        %6837 = vmatpush.msra.mxu0 %v6836
        %v6838 = vand.u32 %v1516, 4294901760
        %6839 = vmatpush.msra.mxu0 %v6838
        %v6840 = vand.u32 %v1508, 4294901760
        %6841 = vmatpush.msra.mxu0 %v6840
        %v6842 = vand.u32 %v1500, 4294901760
        %6843 = vmatpush.msra.mxu0 %v6842
        %v6844 = vand.u32 %v1492, 4294901760
        %6845 = vmatpush.msra.mxu0 %v6844
        %v6846 = vand.u32 %v1484, 4294901760
        %6847 = vmatpush.msra.mxu0 %v6846
        %v6848 = vand.u32 %v1476, 4294901760
        %6849 = vmatpush.msra.mxu0 %v6848
        %v6850 = vand.u32 %v1468, 4294901760
        %6851 = vmatpush.msra.mxu0 %v6850
        %v6852 = vand.u32 %v1460, 4294901760
        %6853 = vmatpush.msra.mxu0 %v6852
        %v6854 = vand.u32 %v1452, 4294901760
        %6855 = vmatpush.msra.mxu0 %v6854
        %v6856 = vand.u32 %v1444, 4294901760
        %6857 = vmatpush.msra.mxu0 %v6856
        %v6858 = vand.u32 %v1436, 4294901760
        %6859 = vmatpush.msra.mxu0 %v6858
        %v6860 = vand.u32 %v1428, 4294901760
        %6861 = vmatpush.msra.mxu0 %v6860
        %v6862 = vand.u32 %v1420, 4294901760
        %6863 = vmatpush.msra.mxu0 %v6862
        %v6864 = vand.u32 %v1412, 4294901760
        %6865 = vmatpush.msra.mxu0 %v6864
        %v6866 = vand.u32 %v1404, 4294901760
        %6867 = vmatpush.msra.mxu0 %v6866
        %v6868 = vand.u32 %v1267, 4294901760
        %v6869 = vsub.f32 %v1267, %v6868
        %v6870 = vand.u32 %v6869, 4294901760
        %6871 = vmatmul.f32.gmra.mxu0 %v6870
        %v6872 = vpop.f32.mrf.mxu0
        %v6873 = vadd.f32 %v6834, %v6872
        %6874 = vdwg.mxu0
        %v6875 = vand.u32 %v1524, 4294901760
        %v6876 = vsub.f32 %v1524, %v6875
        %v6877 = vand.u32 %v6876, 4294901760
        %6878 = vmatpush.msra.mxu0 %v6877
        %v6879 = vand.u32 %v1516, 4294901760
        %v6880 = vsub.f32 %v1516, %v6879
        %v6881 = vand.u32 %v6880, 4294901760
        %6882 = vmatpush.msra.mxu0 %v6881
        %v6883 = vand.u32 %v1508, 4294901760
        %v6884 = vsub.f32 %v1508, %v6883
        %v6885 = vand.u32 %v6884, 4294901760
        %6886 = vmatpush.msra.mxu0 %v6885
        %v6887 = vand.u32 %v1500, 4294901760
        %v6888 = vsub.f32 %v1500, %v6887
        %v6889 = vand.u32 %v6888, 4294901760
        %6890 = vmatpush.msra.mxu0 %v6889
        %v6891 = vand.u32 %v1492, 4294901760
        %v6892 = vsub.f32 %v1492, %v6891
        %v6893 = vand.u32 %v6892, 4294901760
        %6894 = vmatpush.msra.mxu0 %v6893
        %v6895 = vand.u32 %v1484, 4294901760
        %v6896 = vsub.f32 %v1484, %v6895
        %v6897 = vand.u32 %v6896, 4294901760
        %6898 = vmatpush.msra.mxu0 %v6897
        %v6899 = vand.u32 %v1476, 4294901760
        %v6900 = vsub.f32 %v1476, %v6899
        %v6901 = vand.u32 %v6900, 4294901760
        %6902 = vmatpush.msra.mxu0 %v6901
        %v6903 = vand.u32 %v1468, 4294901760
        %v6904 = vsub.f32 %v1468, %v6903
        %v6905 = vand.u32 %v6904, 4294901760
        %6906 = vmatpush.msra.mxu0 %v6905
        %v6907 = vand.u32 %v1460, 4294901760
        %v6908 = vsub.f32 %v1460, %v6907
        %v6909 = vand.u32 %v6908, 4294901760
        %6910 = vmatpush.msra.mxu0 %v6909
        %v6911 = vand.u32 %v1452, 4294901760
        %v6912 = vsub.f32 %v1452, %v6911
        %v6913 = vand.u32 %v6912, 4294901760
        %6914 = vmatpush.msra.mxu0 %v6913
        %v6915 = vand.u32 %v1444, 4294901760
        %v6916 = vsub.f32 %v1444, %v6915
        %v6917 = vand.u32 %v6916, 4294901760
        %6918 = vmatpush.msra.mxu0 %v6917
        %v6919 = vand.u32 %v1436, 4294901760
        %v6920 = vsub.f32 %v1436, %v6919
        %v6921 = vand.u32 %v6920, 4294901760
        %6922 = vmatpush.msra.mxu0 %v6921
        %v6923 = vand.u32 %v1428, 4294901760
        %v6924 = vsub.f32 %v1428, %v6923
        %v6925 = vand.u32 %v6924, 4294901760
        %6926 = vmatpush.msra.mxu0 %v6925
        %v6927 = vand.u32 %v1420, 4294901760
        %v6928 = vsub.f32 %v1420, %v6927
        %v6929 = vand.u32 %v6928, 4294901760
        %6930 = vmatpush.msra.mxu0 %v6929
        %v6931 = vand.u32 %v1412, 4294901760
        %v6932 = vsub.f32 %v1412, %v6931
        %v6933 = vand.u32 %v6932, 4294901760
        %6934 = vmatpush.msra.mxu0 %v6933
        %v6935 = vand.u32 %v1404, 4294901760
        %v6936 = vsub.f32 %v1404, %v6935
        %v6937 = vand.u32 %v6936, 4294901760
        %6938 = vmatpush.msra.mxu0 %v6937
        %v6939 = vand.u32 %v1267, 4294901760
        %6940 = vmatmul.f32.gmra.mxu0 %v6939
        %v6941 = vpop.f32.mrf.mxu0
        %v6942 = vadd.f32 %v6873, %v6941
        %6943 = vdwg.mxu0
        %v6944 = vand.u32 %v1524, 4294901760
        %6945 = vmatpush.msra.mxu0 %v6944
        %v6946 = vand.u32 %v1516, 4294901760
        %6947 = vmatpush.msra.mxu0 %v6946
        %v6948 = vand.u32 %v1508, 4294901760
        %6949 = vmatpush.msra.mxu0 %v6948
        %v6950 = vand.u32 %v1500, 4294901760
        %6951 = vmatpush.msra.mxu0 %v6950
        %v6952 = vand.u32 %v1492, 4294901760
        %6953 = vmatpush.msra.mxu0 %v6952
        %v6954 = vand.u32 %v1484, 4294901760
        %6955 = vmatpush.msra.mxu0 %v6954
        %v6956 = vand.u32 %v1476, 4294901760
        %6957 = vmatpush.msra.mxu0 %v6956
        %v6958 = vand.u32 %v1468, 4294901760
        %6959 = vmatpush.msra.mxu0 %v6958
        %v6960 = vand.u32 %v1460, 4294901760
        %6961 = vmatpush.msra.mxu0 %v6960
        %v6962 = vand.u32 %v1452, 4294901760
        %6963 = vmatpush.msra.mxu0 %v6962
        %v6964 = vand.u32 %v1444, 4294901760
        %6965 = vmatpush.msra.mxu0 %v6964
        %v6966 = vand.u32 %v1436, 4294901760
        %6967 = vmatpush.msra.mxu0 %v6966
        %v6968 = vand.u32 %v1428, 4294901760
        %6969 = vmatpush.msra.mxu0 %v6968
        %v6970 = vand.u32 %v1420, 4294901760
        %6971 = vmatpush.msra.mxu0 %v6970
        %v6972 = vand.u32 %v1412, 4294901760
        %6973 = vmatpush.msra.mxu0 %v6972
        %v6974 = vand.u32 %v1404, 4294901760
        %6975 = vmatpush.msra.mxu0 %v6974
        %v6976 = vand.u32 %v1267, 4294901760
        %6977 = vmatmul.f32.gmra.mxu0 %v6976
        %v6978 = vpop.f32.mrf.mxu0
        %v6979 = vadd.f32 %v6942, %v6978
        %6980 = vdwg.mxu0
        %v6989 = vrot.slane %v2887, 4
        %v6990 = vrot.slane %v4251, 4
        %v6991 = vrot.slane %v5615, 4
        %v6992 = vrot.slane %v6979, 4
        %vm6993 = vcmask 1043456
        %v6994 = vsel %vm6993, %v2205, %v6989
        %v6995 = vsel %vm6993, %v3569, %v6990
        %v6996 = vsel %vm6993, %v4933, %v6991
        %v6997 = vsel %vm6993, %v6297, %v6992
        %7002 = vst [vmem:[%s223] sm:$0x77] %v6994
        %7003 = vst [vmem:[%s223 + $0x8] sm:$0x77] %v6995
        %7004 = vst [vmem:[%s223 + $0x10] sm:$0x77] %v6996
        %7005 = vst [vmem:[%s223 + $0x18] sm:$0x77] %v6997
        %p7006 = scmp.lt.s32.totalorder %s18, 1
        %s7007 = scalar_select %p7006, %s18, 1
        %s7008 = smul.addr %s7007, 8
        %s7009 = smul.addr %s7008, 4
        %s7010 = scalar_lea.vmem %s3, %s7009
        // Predicated region
        $region45: #{tpu_custom_call.1} parent=31 // pred_check
          %p7011 = pneg %p104
        $region46: #{tpu_custom_call.1} parent=31 // pred_check_branch
          %7013 = sbr.rel (%p7011) target = $region48
        $region47: #{tpu_custom_call.1} parent=31 // pred_region
          _
        $region48: #{tpu_custom_call.1} parent=31 // pred_fallthru
          _
      $region32: #{tpu_custom_call.1} parent=5 // pred_fallthru
        _
      %p7014 = scmp.le.s32.totalorder 2, %s13
      // Predicated region
      $region49: #{tpu_custom_call.1} parent=5 // pred_check
        %p7015 = pneg %p7014
      $region50: #{tpu_custom_call.1} parent=5 // pred_check_branch
        %7017 = sbr.rel (%p7015) target = $region52
      $region51: #{tpu_custom_call.1} parent=5 // pred_region
        %s7018 = ssub.s32 %s13, 2
        // Predicated region
        $region53: #{tpu_custom_call.1} parent=51 // pred_check
          %p7019 = pneg %p110
        $region54: #{tpu_custom_call.1} parent=51 // pred_check_branch
          %7021 = sbr.rel (%p7019) target = $region56
        $region55: #{tpu_custom_call.1} parent=51 // pred_region
          %p7022 = scmp.lt.s32.totalorder %s19, 1
          %s7023 = scalar_select %p7022, %s19, 1
          %s7024 = smul.addr %s7023, 8
          %s7025 = smul.addr %s7024, 4
          %s7026 = scalar_lea.vmem %s3, %s7025
        $region56: #{tpu_custom_call.1} parent=51 // pred_fallthru
          _
      $region52: #{tpu_custom_call.1} parent=5 // pred_fallthru
        _
    $region6: #{tpu_custom_call.1} parent=1 // loop_footer
      %s17 = sadd.s32 1, %s13
    $region7: #{tpu_custom_call.1} parent=1 // loop_footer_branch
      %12 = sbr.rel target = $region3
    $region8: #{tpu_custom_call.1} parent=1 // loop_exit
      _
    %7027 = vsyncpa [#allocation3], 1
    %s7028 = scalar_lea.sflag [#allocation3], 1
    %7029 = vsyncpa %s7028, 1
    %7030 = vsyncpa [#allocation5], 1

</llo_original>
